<compile_context>
chip_gen: v6e
topology: v6e:2x2x1
jax: 0.10.0
libtpu: 0.0.40
codegen_flags: <defaults>
</compile_context>

<pallas_src>
import functools

import jax
import jax.numpy as jnp
from jax.experimental import pallas as pl
from jax.experimental.pallas import tpu as pltpu

KW = 4            # conv kernel size
PADW = 1          # conv padding
LRELU_SLOPE = 0.2
BN_EPS = 1e-5
LANE = 128        # lane width / MXU RHS padding granularity


def _round_up(x, m):
    return (x + m - 1) // m * m


def _vmem_limit_bytes():
    """3/4 of physical VMEM, capped at 112 MiB; conservative 64 MiB fallback."""
    try:
        cap = int(getattr(pltpu.get_tpu_info(), "vmem_capacity_bytes", 0))
    except Exception:
        cap = 0
    if cap <= 0:
        return 64 * 1024 * 1024
    return int(min(cap * 3 // 4, 112 * 1024 * 1024))


def _choose_toh(oh, ow, cp, vmem_limit):
    """Output-row tile height derived from the per-layer VMEM budget."""
    bytes_per_row = ow * cp * (4 + 2 * 2)   # f32 accumulator + 2 bf16 out buffers
    rows = max(16, (vmem_limit // 4) // max(bytes_per_row, 1))
    return max(1, min(oh, rows // max(ow, 1)))


# ----------------------------------------------------------------------------
# Kernel: implicit-GEMM conv (taps unrolled in-kernel, f32 accumulation)
# ----------------------------------------------------------------------------
def _make_conv_kernel(*, taps, toh, ow, cout, oh, need_mask,
                      use_bias, use_act, emit_stats):
    rows = toh * ow

    def kernel(*refs):
        if use_bias:
            x_ref, w_ref, b_ref = refs[:3]
            out_refs = refs[3:]
        else:
            x_ref, w_ref = refs[:2]
            out_refs = refs[2:]
        o_ref = out_refs[0]

        t = pl.program_id(1)
        oh0 = t * toh                                  # offset into resident image

        acc = None
        for tap_idx, (dh, dw) in enumerate(taps):
            lhs = x_ref[pl.ds(oh0 + dh, toh), pl.ds(dw, ow), :]   # (toh, ow, cx)
            lhs = lhs.reshape(rows, lhs.shape[-1])
            contrib = jnp.dot(lhs, w_ref[tap_idx],
                              preferred_element_type=jnp.float32)
            acc = contrib if acc is None else acc + contrib

        if use_bias:
            acc = acc + b_ref[...]                     # (1, cp) broadcast
        y = acc[:, :cout]                              # trim padded lanes
        if use_act:
            y = jnp.where(y > 0, y, LRELU_SLOPE * y)   # LeakyReLU(0.2)
        o_ref[...] = y.reshape(toh, ow, cout).astype(o_ref.dtype)

        if emit_stats:
            sum_ref, sq_ref = out_refs[1], out_refs[2]
            if need_mask:                              # exclude padded output rows
                r = jax.lax.broadcasted_iota(jnp.int32, (rows, 1), 0) // ow
                valid = ((oh0 + r) < oh).astype(jnp.float32)
                ym = y * valid
            else:
                ym = y
            sum_ref[...] = jnp.sum(ym, axis=0, keepdims=True)
            sq_ref[...] = jnp.sum(ym * y, axis=0, keepdims=True)

    return kernel


# ----------------------------------------------------------------------------
# pallas_call wrapper for one conv layer
# ----------------------------------------------------------------------------
def _conv_pallas_call(x, cfg, p, oh, ow, toh, n_tiles, vmem_limit):
    N, Hx, Wx, cx = x.shape
    w = p["w"]
    n_taps, _, cp = w.shape
    cout = cfg["cout"]
    oh_pad = n_tiles * toh
    stride = cfg["stride"]
    use_bias, use_bn = cfg["use_bias"], cfg["use_bn"]
    use_act = cfg["use_act"] and not use_bn      # BN layers: act applied post-BN
    out_dtype = jnp.float32 if (not cfg["use_act"] and not use_bn) else jnp.bfloat16

    if stride == 2:
        taps = tuple((dh, dw) for dh in (0, 1) for dw in (0, 1))
    else:
        taps = tuple((dh, dw) for dh in range(KW) for dw in range(KW))

    kernel = _make_conv_kernel(taps=taps, toh=toh, ow=ow, cout=cout, oh=oh,
                               need_mask=(oh_pad != oh), use_bias=use_bias,
                               use_act=use_act, emit_stats=use_bn)

    in_specs = [
        # Full padded image resident per batch item (re-used across row tiles).
        pl.BlockSpec((None, Hx, Wx, cx), lambda n, t: (n, 0, 0, 0)),
        # Resident tap-major weights (n_taps, K, Cp).
        pl.BlockSpec((n_taps, cx, cp), lambda n, t: (0, 0, 0)),
    ]
    inputs = [x, w]
    if use_bias:
        in_specs.append(pl.BlockSpec((1, cp), lambda n, t: (0, 0)))
        inputs.append(p["b"])

    y_shape = jax.ShapeDtypeStruct((N, oh_pad, ow, cout), out_dtype)
    y_spec = pl.BlockSpec((None, toh, ow, cout), lambda n, t: (n, t, 0, 0))
    if use_bn:
        stat_shape = jax.ShapeDtypeStruct((N, n_tiles, 1, cout), jnp.float32)
        out_shape = (y_shape, stat_shape, stat_shape)
        out_specs = (y_spec,
                     pl.BlockSpec((None, None, 1, cout), lambda n, t: (n, t, 0, 0)),
                     pl.BlockSpec((None, None, 1, cout), lambda n, t: (n, t, 0, 0)))
    else:
        out_shape = y_shape
        out_specs = y_spec

    flops = 2 * N * oh_pad * ow * n_taps * cx * cp
    bytes_accessed = (x.size * 2 + w.size * 2
                      + N * oh_pad * ow * cout * jnp.dtype(out_dtype).itemsize
                      + (2 * N * n_tiles * cout * 4 if use_bn else 0)
                      + (cp * 4 if use_bias else 0))

    return pl.pallas_call(
        kernel,
        out_shape=out_shape,
        grid_spec=pltpu.PrefetchScalarGridSpec(
            num_scalar_prefetch=0,
            grid=(N, n_tiles),
            in_specs=in_specs,
            out_specs=out_specs,
        ),
        compiler_params=pltpu.CompilerParams(
            dimension_semantics=("parallel", "parallel"),
            vmem_limit_bytes=vmem_limit),
        cost_estimate=pl.CostEstimate(flops=int(flops), transcendentals=0,
                                      bytes_accessed=int(bytes_accessed)),
    )(*inputs)


# ----------------------------------------------------------------------------
# XLA glue: pad (+ space-to-depth for stride-2) — pure layout, fuses with the
# previous layer's BN scale/shift + LeakyReLU.
# ----------------------------------------------------------------------------
def _space_to_depth2(x):
    n, hp, wp, c = x.shape
    x = x.reshape(n, hp // 2, 2, wp // 2, 2, c)
    x = jnp.transpose(x, (0, 1, 3, 2, 4, 5))          # (N, Hh, Wh, pi, pj, C)
    return x.reshape(n, hp // 2, wp // 2, 4 * c)


def _prep_input(a, stride, oh, oh_pad):
    extra = oh_pad - oh
    if stride == 2:
        # stride-2 path assumes even spatial dims (true for PatchGAN inputs).
        assert a.shape[1] % 2 == 0 and a.shape[2] % 2 == 0
        a = jnp.pad(a, ((0, 0), (PADW, PADW + 2 * extra), (PADW, PADW), (0, 0)))
        a = _space_to_depth2(a)
    else:
        a = jnp.pad(a, ((0, 0), (PADW, PADW + extra), (PADW, PADW), (0, 0)))
    return a.astype(jnp.bfloat16)


def run_layer(a, cfg, p, vmem_limit):
    """a: (N, H, W, Cin) post-activation input. Returns raw conv output."""
    N, H, W, _ = a.shape
    stride = cfg["stride"]
    oh = (H + 2 * PADW - KW) // stride + 1
    ow = (W + 2 * PADW - KW) // stride + 1
    cp = p["w"].shape[-1]
    toh = _choose_toh(oh, ow, cp, vmem_limit)
    n_tiles = -(-oh // toh)
    oh_pad = n_tiles * toh
    x = _prep_input(a, stride, oh, oh_pad)
    res = _conv_pallas_call(x, cfg, p, oh, ow, toh, n_tiles, vmem_limit)
    if cfg["use_bn"]:
        y, s0, s1 = res
        return y, (s0, s1), oh, ow
    return res, None, oh, ow


# ----------------------------------------------------------------------------
# Parameter construction (deterministic, DCGAN-style N(0, 0.02) init)
# ----------------------------------------------------------------------------
def build_layer_configs(input_nc, ndf, n_layers):
    """Mirror NLayerDiscriminator.__init__ with norm_layer=BatchNorm2d
    (hence use_bias=False on the inner convs)."""
    cfgs = [dict(cin=input_nc, cout=ndf, stride=2,
                 use_bias=True, use_bn=False, use_act=True)]
    nf_mult = 1
    for n in range(1, n_layers):
        nf_mult_prev = nf_mult
        nf_mult = min(2 ** n, 8)
        cfgs.append(dict(cin=ndf * nf_mult_prev, cout=ndf * nf_mult, stride=2,
                         use_bias=False, use_bn=True, use_act=True))
    nf_mult_prev = nf_mult
    nf_mult = min(2 ** n_layers, 8)
    cfgs.append(dict(cin=ndf * nf_mult_prev, cout=ndf * nf_mult, stride=1,
                     use_bias=False, use_bn=True, use_act=True))
    cfgs.append(dict(cin=ndf * nf_mult, cout=1, stride=1,
                     use_bias=True, use_bn=False, use_act=False))
    return cfgs


def init_params(key, cfgs):
    params = []
    for cfg in cfgs:
        key, kw_ = jax.random.split(key)
        cin, cout, stride = cfg["cin"], cfg["cout"], cfg["stride"]
        cp = _round_up(cout, LANE)
        # PyTorch layout (Cout, Cin, kh, kw) -> tap-major (n_taps, K, Cp) bf16.
        w_oihw = 0.02 * jax.random.normal(kw_, (cout, cin, KW, KW), jnp.float32)
        w_hwio = jnp.transpose(w_oihw, (2, 3, 1, 0))            # (kh, kw, cin, cout)
        if stride == 2:
            w6 = w_hwio.reshape(2, 2, 2, 2, cin, cout)          # (di, pi, dj, pj, .)
            w6 = jnp.transpose(w6, (0, 2, 1, 3, 4, 5))          # (di, dj, pi, pj, .)
            w_t = w6.reshape(4, 4 * cin, cout)                  # rows = (pi*2+pj)*cin+c
        else:
            w_t = w_hwio.reshape(KW * KW, cin, cout)            # tap = i*4 + j
        w_t = jnp.pad(w_t, ((0, 0), (0, 0), (0, cp - cout))).astype(jnp.bfloat16)
        p = {"w": w_t}
        if cfg["use_bias"]:
            p["b"] = jnp.zeros((1, cp), jnp.float32)
        if cfg["use_bn"]:
            p["g"] = jnp.ones((cout,), jnp.float32)
            p["bt"] = jnp.zeros((cout,), jnp.float32)
        params.append(p)
    return params


# ----------------------------------------------------------------------------
# Full forward (NCHW in, NCHW out — PyTorch convention)
# ----------------------------------------------------------------------------
def nlayer_discriminator_forward(x_nchw, cfgs, params, vmem_limit):
    a = jnp.transpose(x_nchw, (0, 2, 3, 1)).astype(jnp.bfloat16)   # -> NHWC bf16
    for cfg, p in zip(cfgs, params):
        y, stats, oh, ow = run_layer(a, cfg, p, vmem_limit)
        y = y[:, :oh]                                   # drop padded output rows
        if cfg["use_bn"]:
            s0, s1 = stats
            ssum = jnp.sum(s0, axis=(0, 1, 2))
            ssq = jnp.sum(s1, axis=(0, 1, 2))
            m = y.shape[0] * oh * ow
            mean = ssum / m
            var = jnp.maximum(ssq / m - mean * mean, 0.0)   # biased var (PyTorch BN)
            scale = p["g"] * jax.lax.rsqrt(var + BN_EPS)
            shift = p["bt"] - mean * scale
            # Folded BN + LeakyReLU, fused by XLA into the next layer's pad/s2d.
            z = y.astype(jnp.float32) * scale + shift
            a = jnp.where(z > 0, z, LRELU_SLOPE * z).astype(jnp.bfloat16)
        else:
            a = y                                        # bias (+act) done in-kernel
    return jnp.transpose(a, (0, 3, 1, 2)).astype(jnp.float32)      # -> NCHW f32


if __name__ == "__main__":
    # Small shapes consistent with the module: input_nc=3, ndf=8, n_layers=3.
    N, INPUT_NC, H, W = 2, 3, 32, 32
    NDF, N_LAYERS = 8, 3

    key = jax.random.PRNGKey(0)
    kx, kp = jax.random.split(key)
    x = jax.random.normal(kx, (N, INPUT_NC, H, W), jnp.float32)

    cfgs = build_layer_configs(INPUT_NC, NDF, N_LAYERS)
    params = init_params(kp, cfgs)
    vmem_limit = _vmem_limit_bytes()

    fwd = jax.jit(functools.partial(nlayer_discriminator_forward, cfgs=cfgs,
                                    params=params, vmem_limit=vmem_limit))
    out = fwd(x)
    jax.block_until_ready(out)
    # Expected output shape for 32x32 input: (2, 1, 2, 2)
    assert out.shape == (N, 1, 2, 2), out.shape
    print("KERNEL_OK")
</pallas_src>

<mosaic_0001>
module attributes {stable_mosaic.version = 11 : i64} {
  func.func @kernel(%arg0: i32, %arg1: i32, %arg2: memref<1x17x17x12xbf16, #tpu.memory_space<vmem>>, %arg3: memref<4x12x128xbf16, #tpu.memory_space<vmem>>, %arg4: memref<1x128xf32, #tpu.memory_space<vmem>>, %arg5: memref<1x16x16x8xbf16, #tpu.memory_space<vmem>>) attributes {dimension_semantics = [#tpu.dimension_semantics<parallel>, #tpu.dimension_semantics<parallel>], iteration_bounds = array<i64: 2, 1>, scalar_prefetch = 0 : i64, scratch_operands = 0 : i64, tpu.core_type = #tpu.core_type<tc>, window_params = [{transform_indices = @transform_0, window_bounds = array<i64: 1, 17, 17, 12>}, {pipeline_mode = #tpu.pipeline_mode<synchronous>, transform_indices = @transform_1, window_bounds = array<i64: 4, 12, 128>}, {pipeline_mode = #tpu.pipeline_mode<synchronous>, transform_indices = @transform_2, window_bounds = array<i64: 1, 128>}, {transform_indices = @transform_3, window_bounds = array<i64: 1, 16, 16, 8>}]} {
    %c16_i32 = arith.constant 16 : i32
    %0 = arith.muli %arg1, %c16_i32 : i32
    %c0_i32 = arith.constant 0 : i32
    %1 = arith.addi %0, %c0_i32 : i32
    %c0 = arith.constant 0 : index
    %2 = arith.index_cast %1 : i32 to index
    %c0_0 = arith.constant 0 : index
    %c0_1 = arith.constant 0 : index
    %3 = vector.load %arg2[%c0, %2, %c0_0, %c0_1] : memref<1x17x17x12xbf16, #tpu.memory_space<vmem>>, vector<1x16x16x12xbf16>
    %4 = vector.shape_cast %3 : vector<1x16x16x12xbf16> to vector<16x16x12xbf16>
    %5 = vector.shape_cast %4 : vector<16x16x12xbf16> to vector<256x12xbf16>
    %c0_2 = arith.constant 0 : index
    %c0_3 = arith.constant 0 : index
    %c0_4 = arith.constant 0 : index
    %6 = vector.load %arg3[%c0_2, %c0_3, %c0_4] : memref<4x12x128xbf16, #tpu.memory_space<vmem>>, vector<1x12x128xbf16>
    %7 = vector.shape_cast %6 : vector<1x12x128xbf16> to vector<12x128xbf16>
    %cst = arith.constant dense<0.000000e+00> : vector<256x128xf32>
    %8 = tpu.matmul %5, %7, %cst {dimension_numbers = #tpu.dot_dimension_numbers<[1], [0], [0], [1], [0, 0, 1, 1], [], []>} : vector<256x12xbf16>, vector<12x128xbf16>, vector<256x128xf32> -> vector<256x128xf32>
    %c0_i32_5 = arith.constant 0 : i32
    %9 = arith.addi %0, %c0_i32_5 : i32
    %c0_6 = arith.constant 0 : index
    %10 = arith.index_cast %9 : i32 to index
    %c1 = arith.constant 1 : index
    %c0_7 = arith.constant 0 : index
    %11 = vector.load %arg2[%c0_6, %10, %c1, %c0_7] : memref<1x17x17x12xbf16, #tpu.memory_space<vmem>>, vector<1x16x16x12xbf16>
    %12 = vector.shape_cast %11 : vector<1x16x16x12xbf16> to vector<16x16x12xbf16>
    %13 = vector.shape_cast %12 : vector<16x16x12xbf16> to vector<256x12xbf16>
    %c1_8 = arith.constant 1 : index
    %c0_9 = arith.constant 0 : index
    %c0_10 = arith.constant 0 : index
    %14 = vector.load %arg3[%c1_8, %c0_9, %c0_10] : memref<4x12x128xbf16, #tpu.memory_space<vmem>>, vector<1x12x128xbf16>
    %15 = vector.shape_cast %14 : vector<1x12x128xbf16> to vector<12x128xbf16>
    %cst_11 = arith.constant dense<0.000000e+00> : vector<256x128xf32>
    %16 = tpu.matmul %13, %15, %cst_11 {dimension_numbers = #tpu.dot_dimension_numbers<[1], [0], [0], [1], [0, 0, 1, 1], [], []>} : vector<256x12xbf16>, vector<12x128xbf16>, vector<256x128xf32> -> vector<256x128xf32>
    %17 = arith.addf %8, %16 : vector<256x128xf32>
    %c1_i32 = arith.constant 1 : i32
    %18 = arith.addi %0, %c1_i32 : i32
    %c0_12 = arith.constant 0 : index
    %19 = arith.index_cast %18 : i32 to index
    %c0_13 = arith.constant 0 : index
    %c0_14 = arith.constant 0 : index
    %20 = vector.load %arg2[%c0_12, %19, %c0_13, %c0_14] : memref<1x17x17x12xbf16, #tpu.memory_space<vmem>>, vector<1x16x16x12xbf16>
    %21 = vector.shape_cast %20 : vector<1x16x16x12xbf16> to vector<16x16x12xbf16>
    %22 = vector.shape_cast %21 : vector<16x16x12xbf16> to vector<256x12xbf16>
    %c2 = arith.constant 2 : index
    %c0_15 = arith.constant 0 : index
    %c0_16 = arith.constant 0 : index
    %23 = vector.load %arg3[%c2, %c0_15, %c0_16] : memref<4x12x128xbf16, #tpu.memory_space<vmem>>, vector<1x12x128xbf16>
    %24 = vector.shape_cast %23 : vector<1x12x128xbf16> to vector<12x128xbf16>
    %cst_17 = arith.constant dense<0.000000e+00> : vector<256x128xf32>
    %25 = tpu.matmul %22, %24, %cst_17 {dimension_numbers = #tpu.dot_dimension_numbers<[1], [0], [0], [1], [0, 0, 1, 1], [], []>} : vector<256x12xbf16>, vector<12x128xbf16>, vector<256x128xf32> -> vector<256x128xf32>
    %26 = arith.addf %17, %25 : vector<256x128xf32>
    %c1_i32_18 = arith.constant 1 : i32
    %27 = arith.addi %0, %c1_i32_18 : i32
    %c0_19 = arith.constant 0 : index
    %28 = arith.index_cast %27 : i32 to index
    %c1_20 = arith.constant 1 : index
    %c0_21 = arith.constant 0 : index
    %29 = vector.load %arg2[%c0_19, %28, %c1_20, %c0_21] : memref<1x17x17x12xbf16, #tpu.memory_space<vmem>>, vector<1x16x16x12xbf16>
    %30 = vector.shape_cast %29 : vector<1x16x16x12xbf16> to vector<16x16x12xbf16>
    %31 = vector.shape_cast %30 : vector<16x16x12xbf16> to vector<256x12xbf16>
    %c3 = arith.constant 3 : index
    %c0_22 = arith.constant 0 : index
    %c0_23 = arith.constant 0 : index
    %32 = vector.load %arg3[%c3, %c0_22, %c0_23] : memref<4x12x128xbf16, #tpu.memory_space<vmem>>, vector<1x12x128xbf16>
    %33 = vector.shape_cast %32 : vector<1x12x128xbf16> to vector<12x128xbf16>
    %cst_24 = arith.constant dense<0.000000e+00> : vector<256x128xf32>
    %34 = tpu.matmul %31, %33, %cst_24 {dimension_numbers = #tpu.dot_dimension_numbers<[1], [0], [0], [1], [0, 0, 1, 1], [], []>} : vector<256x12xbf16>, vector<12x128xbf16>, vector<256x128xf32> -> vector<256x128xf32>
    %35 = arith.addf %26, %34 : vector<256x128xf32>
    %c0_25 = arith.constant 0 : index
    %c0_26 = arith.constant 0 : index
    %36 = vector.load %arg4[%c0_25, %c0_26] : memref<1x128xf32, #tpu.memory_space<vmem>>, vector<1x128xf32>
    %37 = vector.broadcast %36 : vector<1x128xf32> to vector<256x128xf32>
    %38 = arith.addf %35, %37 : vector<256x128xf32>
    %39 = vector.extract_strided_slice %38 {offsets = [0, 0], sizes = [256, 8], strides = [1, 1]} : vector<256x128xf32> to vector<256x8xf32>
    %cst_27 = arith.constant 0.000000e+00 : f32
    %40 = vector.broadcast %cst_27 : f32 to vector<256x8xf32>
    %41 = arith.cmpf ogt, %39, %40 : vector<256x8xf32>
    %cst_28 = arith.constant 2.000000e-01 : f32
    %42 = vector.broadcast %cst_28 : f32 to vector<256x8xf32>
    %43 = arith.mulf %42, %39 : vector<256x8xf32>
    %44 = arith.select %41, %39, %43 : vector<256x8xi1>, vector<256x8xf32>
    %45 = vector.shape_cast %44 : vector<256x8xf32> to vector<16x16x8xf32>
    %46 = arith.truncf %45 : vector<16x16x8xf32> to vector<16x16x8xbf16>
    %c0_29 = arith.constant 0 : index
    %c0_30 = arith.constant 0 : index
    %c0_31 = arith.constant 0 : index
    %c0_32 = arith.constant 0 : index
    %47 = vector.load %arg5[%c0_29, %c0_30, %c0_31, %c0_32] : memref<1x16x16x8xbf16, #tpu.memory_space<vmem>>, vector<1x16x16x8xbf16>
    %48 = vector.shape_cast %47 : vector<1x16x16x8xbf16> to vector<16x16x8xbf16>
    %49 = vector.shape_cast %46 : vector<16x16x8xbf16> to vector<1x16x16x8xbf16>
    tpu.vector_store %arg5[%c0_29, %c0_30, %c0_31, %c0_32], %49 {strides = array<i32>} : memref<1x16x16x8xbf16, #tpu.memory_space<vmem>>, vector<1x16x16x8xbf16>,
    return
  }
  func.func @transform_0(%arg0: i32, %arg1: i32) -> (i32, i32, i32, i32) {
    %c0_i32 = arith.constant 0 : i32
    %c0_i32_0 = arith.constant 0 : i32
    %c0_i32_1 = arith.constant 0 : i32
    %c0_i32_2 = arith.constant 0 : i32
    return %arg0, %c0_i32, %c0_i32_0, %c0_i32_1 : i32, i32, i32, i32
  }
  func.func @transform_1(%arg0: i32, %arg1: i32) -> (i32, i32, i32) {
    %c0_i32 = arith.constant 0 : i32
    %c0_i32_0 = arith.constant 0 : i32
    %c0_i32_1 = arith.constant 0 : i32
    %c0_i32_2 = arith.constant 0 : i32
    return %c0_i32, %c0_i32_0, %c0_i32_1 : i32, i32, i32
  }
  func.func @transform_2(%arg0: i32, %arg1: i32) -> (i32, i32) {
    %c0_i32 = arith.constant 0 : i32
    %c0_i32_0 = arith.constant 0 : i32
    %c0_i32_1 = arith.constant 0 : i32
    return %c0_i32, %c0_i32_0 : i32, i32
  }
  func.func @transform_3(%arg0: i32, %arg1: i32) -> (i32, i32, i32, i32) {
    %c0_i32 = arith.constant 0 : i32
    %c0_i32_0 = arith.constant 0 : i32
    %c0_i32_1 = arith.constant 0 : i32
    return %arg0, %arg1, %c0_i32, %c0_i32_0 : i32, i32, i32, i32
  }
}

module attributes {stable_mosaic.version = 11 : i64} {
  func.func @kernel(%arg0: i32, %arg1: i32, %arg2: memref<1x9x9x32xbf16, #tpu.memory_space<vmem>>, %arg3: memref<4x32x128xbf16, #tpu.memory_space<vmem>>, %arg4: memref<1x8x8x16xbf16, #tpu.memory_space<vmem>>, %arg5: memref<1x1x1x16xf32, #tpu.memory_space<vmem>>, %arg6: memref<1x1x1x16xf32, #tpu.memory_space<vmem>>) attributes {dimension_semantics = [#tpu.dimension_semantics<parallel>, #tpu.dimension_semantics<parallel>], iteration_bounds = array<i64: 2, 1>, scalar_prefetch = 0 : i64, scratch_operands = 0 : i64, tpu.core_type = #tpu.core_type<tc>, window_params = [{transform_indices = @transform_0, window_bounds = array<i64: 1, 9, 9, 32>}, {pipeline_mode = #tpu.pipeline_mode<synchronous>, transform_indices = @transform_1, window_bounds = array<i64: 4, 32, 128>}, {transform_indices = @transform_2, window_bounds = array<i64: 1, 8, 8, 16>}, {transform_indices = @transform_3, window_bounds = array<i64: 1, 1, 1, 16>}, {transform_indices = @transform_4, window_bounds = array<i64: 1, 1, 1, 16>}]} {
    %c8_i32 = arith.constant 8 : i32
    %0 = arith.muli %arg1, %c8_i32 : i32
    %c0_i32 = arith.constant 0 : i32
    %1 = arith.addi %0, %c0_i32 : i32
    %c0 = arith.constant 0 : index
    %2 = arith.index_cast %1 : i32 to index
    %c0_0 = arith.constant 0 : index
    %c0_1 = arith.constant 0 : index
    %3 = vector.load %arg2[%c0, %2, %c0_0, %c0_1] : memref<1x9x9x32xbf16, #tpu.memory_space<vmem>>, vector<1x8x8x32xbf16>
    %4 = vector.shape_cast %3 : vector<1x8x8x32xbf16> to vector<8x8x32xbf16>
    %5 = vector.shape_cast %4 : vector<8x8x32xbf16> to vector<64x32xbf16>
    %c0_2 = arith.constant 0 : index
    %c0_3 = arith.constant 0 : index
    %c0_4 = arith.constant 0 : index
    %6 = vector.load %arg3[%c0_2, %c0_3, %c0_4] : memref<4x32x128xbf16, #tpu.memory_space<vmem>>, vector<1x32x128xbf16>
    %7 = vector.shape_cast %6 : vector<1x32x128xbf16> to vector<32x128xbf16>
    %cst = arith.constant dense<0.000000e+00> : vector<64x128xf32>
    %8 = tpu.matmul %5, %7, %cst {dimension_numbers = #tpu.dot_dimension_numbers<[1], [0], [0], [1], [0, 0, 1, 1], [], []>} : vector<64x32xbf16>, vector<32x128xbf16>, vector<64x128xf32> -> vector<64x128xf32>
    %c0_i32_5 = arith.constant 0 : i32
    %9 = arith.addi %0, %c0_i32_5 : i32
    %c0_6 = arith.constant 0 : index
    %10 = arith.index_cast %9 : i32 to index
    %c1 = arith.constant 1 : index
    %c0_7 = arith.constant 0 : index
    %11 = vector.load %arg2[%c0_6, %10, %c1, %c0_7] : memref<1x9x9x32xbf16, #tpu.memory_space<vmem>>, vector<1x8x8x32xbf16>
    %12 = vector.shape_cast %11 : vector<1x8x8x32xbf16> to vector<8x8x32xbf16>
    %13 = vector.shape_cast %12 : vector<8x8x32xbf16> to vector<64x32xbf16>
    %c1_8 = arith.constant 1 : index
    %c0_9 = arith.constant 0 : index
    %c0_10 = arith.constant 0 : index
    %14 = vector.load %arg3[%c1_8, %c0_9, %c0_10] : memref<4x32x128xbf16, #tpu.memory_space<vmem>>, vector<1x32x128xbf16>
    %15 = vector.shape_cast %14 : vector<1x32x128xbf16> to vector<32x128xbf16>
    %cst_11 = arith.constant dense<0.000000e+00> : vector<64x128xf32>
    %16 = tpu.matmul %13, %15, %cst_11 {dimension_numbers = #tpu.dot_dimension_numbers<[1], [0], [0], [1], [0, 0, 1, 1], [], []>} : vector<64x32xbf16>, vector<32x128xbf16>, vector<64x128xf32> -> vector<64x128xf32>
    %17 = arith.addf %8, %16 : vector<64x128xf32>
    %c1_i32 = arith.constant 1 : i32
    %18 = arith.addi %0, %c1_i32 : i32
    %c0_12 = arith.constant 0 : index
    %19 = arith.index_cast %18 : i32 to index
    %c0_13 = arith.constant 0 : index
    %c0_14 = arith.constant 0 : index
    %20 = vector.load %arg2[%c0_12, %19, %c0_13, %c0_14] : memref<1x9x9x32xbf16, #tpu.memory_space<vmem>>, vector<1x8x8x32xbf16>
    %21 = vector.shape_cast %20 : vector<1x8x8x32xbf16> to vector<8x8x32xbf16>
    %22 = vector.shape_cast %21 : vector<8x8x32xbf16> to vector<64x32xbf16>
    %c2 = arith.constant 2 : index
    %c0_15 = arith.constant 0 : index
    %c0_16 = arith.constant 0 : index
    %23 = vector.load %arg3[%c2, %c0_15, %c0_16] : memref<4x32x128xbf16, #tpu.memory_space<vmem>>, vector<1x32x128xbf16>
    %24 = vector.shape_cast %23 : vector<1x32x128xbf16> to vector<32x128xbf16>
    %cst_17 = arith.constant dense<0.000000e+00> : vector<64x128xf32>
    %25 = tpu.matmul %22, %24, %cst_17 {dimension_numbers = #tpu.dot_dimension_numbers<[1], [0], [0], [1], [0, 0, 1, 1], [], []>} : vector<64x32xbf16>, vector<32x128xbf16>, vector<64x128xf32> -> vector<64x128xf32>
    %26 = arith.addf %17, %25 : vector<64x128xf32>
    %c1_i32_18 = arith.constant 1 : i32
    %27 = arith.addi %0, %c1_i32_18 : i32
    %c0_19 = arith.constant 0 : index
    %28 = arith.index_cast %27 : i32 to index
    %c1_20 = arith.constant 1 : index
    %c0_21 = arith.constant 0 : index
    %29 = vector.load %arg2[%c0_19, %28, %c1_20, %c0_21] : memref<1x9x9x32xbf16, #tpu.memory_space<vmem>>, vector<1x8x8x32xbf16>
    %30 = vector.shape_cast %29 : vector<1x8x8x32xbf16> to vector<8x8x32xbf16>
    %31 = vector.shape_cast %30 : vector<8x8x32xbf16> to vector<64x32xbf16>
    %c3 = arith.constant 3 : index
    %c0_22 = arith.constant 0 : index
    %c0_23 = arith.constant 0 : index
    %32 = vector.load %arg3[%c3, %c0_22, %c0_23] : memref<4x32x128xbf16, #tpu.memory_space<vmem>>, vector<1x32x128xbf16>
    %33 = vector.shape_cast %32 : vector<1x32x128xbf16> to vector<32x128xbf16>
    %cst_24 = arith.constant dense<0.000000e+00> : vector<64x128xf32>
    %34 = tpu.matmul %31, %33, %cst_24 {dimension_numbers = #tpu.dot_dimension_numbers<[1], [0], [0], [1], [0, 0, 1, 1], [], []>} : vector<64x32xbf16>, vector<32x128xbf16>, vector<64x128xf32> -> vector<64x128xf32>
    %35 = arith.addf %26, %34 : vector<64x128xf32>
    %36 = vector.extract_strided_slice %35 {offsets = [0, 0], sizes = [64, 16], strides = [1, 1]} : vector<64x128xf32> to vector<64x16xf32>
    %37 = vector.shape_cast %36 : vector<64x16xf32> to vector<8x8x16xf32>
    %38 = arith.truncf %37 : vector<8x8x16xf32> to vector<8x8x16xbf16>
    %c0_25 = arith.constant 0 : index
    %c0_26 = arith.constant 0 : index
    %c0_27 = arith.constant 0 : index
    %c0_28 = arith.constant 0 : index
    %39 = vector.load %arg4[%c0_25, %c0_26, %c0_27, %c0_28] : memref<1x8x8x16xbf16, #tpu.memory_space<vmem>>, vector<1x8x8x16xbf16>
    %40 = vector.shape_cast %39 : vector<1x8x8x16xbf16> to vector<8x8x16xbf16>
    %41 = vector.shape_cast %38 : vector<8x8x16xbf16> to vector<1x8x8x16xbf16>
    tpu.vector_store %arg4[%c0_25, %c0_26, %c0_27, %c0_28], %41 {strides = array<i32>} : memref<1x8x8x16xbf16, #tpu.memory_space<vmem>>, vector<1x8x8x16xbf16>,
    %cst_29 = arith.constant dense<0.000000e+00> : vector<16xf32>
    %42 = vector.multi_reduction <add>, %36, %cst_29 [0] : vector<64x16xf32> to vector<16xf32>
    %43 = vector.shape_cast %42 : vector<16xf32> to vector<1x16xf32>
    %c0_30 = arith.constant 0 : index
    %c0_31 = arith.constant 0 : index
    %c0_32 = arith.constant 0 : index
    %c0_33 = arith.constant 0 : index
    %44 = vector.load %arg5[%c0_30, %c0_31, %c0_32, %c0_33] : memref<1x1x1x16xf32, #tpu.memory_space<vmem>>, vector<1x1x1x16xf32>
    %45 = vector.shape_cast %44 : vector<1x1x1x16xf32> to vector<1x16xf32>
    %46 = vector.shape_cast %43 : vector<1x16xf32> to vector<1x1x1x16xf32>
    tpu.vector_store %arg5[%c0_30, %c0_31, %c0_32, %c0_33], %46 {strides = array<i32>} : memref<1x1x1x16xf32, #tpu.memory_space<vmem>>, vector<1x1x1x16xf32>,
    %47 = arith.mulf %36, %36 : vector<64x16xf32>
    %cst_34 = arith.constant dense<0.000000e+00> : vector<16xf32>
    %48 = vector.multi_reduction <add>, %47, %cst_34 [0] : vector<64x16xf32> to vector<16xf32>
    %49 = vector.shape_cast %48 : vector<16xf32> to vector<1x16xf32>
    %c0_35 = arith.constant 0 : index
    %c0_36 = arith.constant 0 : index
    %c0_37 = arith.constant 0 : index
    %c0_38 = arith.constant 0 : index
    %50 = vector.load %arg6[%c0_35, %c0_36, %c0_37, %c0_38] : memref<1x1x1x16xf32, #tpu.memory_space<vmem>>, vector<1x1x1x16xf32>
    %51 = vector.shape_cast %50 : vector<1x1x1x16xf32> to vector<1x16xf32>
    %52 = vector.shape_cast %49 : vector<1x16xf32> to vector<1x1x1x16xf32>
    tpu.vector_store %arg6[%c0_35, %c0_36, %c0_37, %c0_38], %52 {strides = array<i32>} : memref<1x1x1x16xf32, #tpu.memory_space<vmem>>, vector<1x1x1x16xf32>,
    return
  }
  func.func @transform_0(%arg0: i32, %arg1: i32) -> (i32, i32, i32, i32) {
    %c0_i32 = arith.constant 0 : i32
    %c0_i32_0 = arith.constant 0 : i32
    %c0_i32_1 = arith.constant 0 : i32
    %c0_i32_2 = arith.constant 0 : i32
    return %arg0, %c0_i32, %c0_i32_0, %c0_i32_1 : i32, i32, i32, i32
  }
  func.func @transform_1(%arg0: i32, %arg1: i32) -> (i32, i32, i32) {
    %c0_i32 = arith.constant 0 : i32
    %c0_i32_0 = arith.constant 0 : i32
    %c0_i32_1 = arith.constant 0 : i32
    %c0_i32_2 = arith.constant 0 : i32
    return %c0_i32, %c0_i32_0, %c0_i32_1 : i32, i32, i32
  }
  func.func @transform_2(%arg0: i32, %arg1: i32) -> (i32, i32, i32, i32) {
    %c0_i32 = arith.constant 0 : i32
    %c0_i32_0 = arith.constant 0 : i32
    %c0_i32_1 = arith.constant 0 : i32
    return %arg0, %arg1, %c0_i32, %c0_i32_0 : i32, i32, i32, i32
  }
  func.func @transform_3(%arg0: i32, %arg1: i32) -> (i32, i32, i32, i32) {
    %c0_i32 = arith.constant 0 : i32
    %c0_i32_0 = arith.constant 0 : i32
    %c0_i32_1 = arith.constant 0 : i32
    return %arg0, %arg1, %c0_i32, %c0_i32_0 : i32, i32, i32, i32
  }
  func.func @transform_4(%arg0: i32, %arg1: i32) -> (i32, i32, i32, i32) {
    %c0_i32 = arith.constant 0 : i32
    %c0_i32_0 = arith.constant 0 : i32
    %c0_i32_1 = arith.constant 0 : i32
    return %arg0, %arg1, %c0_i32, %c0_i32_0 : i32, i32, i32, i32
  }
}

module attributes {stable_mosaic.version = 11 : i64} {
  func.func @kernel(%arg0: i32, %arg1: i32, %arg2: memref<1x5x5x64xbf16, #tpu.memory_space<vmem>>, %arg3: memref<4x64x128xbf16, #tpu.memory_space<vmem>>, %arg4: memref<1x4x4x32xbf16, #tpu.memory_space<vmem>>, %arg5: memref<1x1x1x32xf32, #tpu.memory_space<vmem>>, %arg6: memref<1x1x1x32xf32, #tpu.memory_space<vmem>>) attributes {dimension_semantics = [#tpu.dimension_semantics<parallel>, #tpu.dimension_semantics<parallel>], iteration_bounds = array<i64: 2, 1>, scalar_prefetch = 0 : i64, scratch_operands = 0 : i64, tpu.core_type = #tpu.core_type<tc>, window_params = [{transform_indices = @transform_0, window_bounds = array<i64: 1, 5, 5, 64>}, {pipeline_mode = #tpu.pipeline_mode<synchronous>, transform_indices = @transform_1, window_bounds = array<i64: 4, 64, 128>}, {transform_indices = @transform_2, window_bounds = array<i64: 1, 4, 4, 32>}, {transform_indices = @transform_3, window_bounds = array<i64: 1, 1, 1, 32>}, {transform_indices = @transform_4, window_bounds = array<i64: 1, 1, 1, 32>}]} {
    %c4_i32 = arith.constant 4 : i32
    %0 = arith.muli %arg1, %c4_i32 : i32
    %c0_i32 = arith.constant 0 : i32
    %1 = arith.addi %0, %c0_i32 : i32
    %c0 = arith.constant 0 : index
    %2 = arith.index_cast %1 : i32 to index
    %c0_0 = arith.constant 0 : index
    %c0_1 = arith.constant 0 : index
    %3 = vector.load %arg2[%c0, %2, %c0_0, %c0_1] : memref<1x5x5x64xbf16, #tpu.memory_space<vmem>>, vector<1x4x4x64xbf16>
    %4 = vector.shape_cast %3 : vector<1x4x4x64xbf16> to vector<4x4x64xbf16>
    %5 = vector.shape_cast %4 : vector<4x4x64xbf16> to vector<16x64xbf16>
    %c0_2 = arith.constant 0 : index
    %c0_3 = arith.constant 0 : index
    %c0_4 = arith.constant 0 : index
    %6 = vector.load %arg3[%c0_2, %c0_3, %c0_4] : memref<4x64x128xbf16, #tpu.memory_space<vmem>>, vector<1x64x128xbf16>
    %7 = vector.shape_cast %6 : vector<1x64x128xbf16> to vector<64x128xbf16>
    %cst = arith.constant dense<0.000000e+00> : vector<16x128xf32>
    %8 = tpu.matmul %5, %7, %cst {dimension_numbers = #tpu.dot_dimension_numbers<[1], [0], [0], [1], [0, 0, 1, 1], [], []>} : vector<16x64xbf16>, vector<64x128xbf16>, vector<16x128xf32> -> vector<16x128xf32>
    %c0_i32_5 = arith.constant 0 : i32
    %9 = arith.addi %0, %c0_i32_5 : i32
    %c0_6 = arith.constant 0 : index
    %10 = arith.index_cast %9 : i32 to index
    %c1 = arith.constant 1 : index
    %c0_7 = arith.constant 0 : index
    %11 = vector.load %arg2[%c0_6, %10, %c1, %c0_7] : memref<1x5x5x64xbf16, #tpu.memory_space<vmem>>, vector<1x4x4x64xbf16>
    %12 = vector.shape_cast %11 : vector<1x4x4x64xbf16> to vector<4x4x64xbf16>
    %13 = vector.shape_cast %12 : vector<4x4x64xbf16> to vector<16x64xbf16>
    %c1_8 = arith.constant 1 : index
    %c0_9 = arith.constant 0 : index
    %c0_10 = arith.constant 0 : index
    %14 = vector.load %arg3[%c1_8, %c0_9, %c0_10] : memref<4x64x128xbf16, #tpu.memory_space<vmem>>, vector<1x64x128xbf16>
    %15 = vector.shape_cast %14 : vector<1x64x128xbf16> to vector<64x128xbf16>
    %cst_11 = arith.constant dense<0.000000e+00> : vector<16x128xf32>
    %16 = tpu.matmul %13, %15, %cst_11 {dimension_numbers = #tpu.dot_dimension_numbers<[1], [0], [0], [1], [0, 0, 1, 1], [], []>} : vector<16x64xbf16>, vector<64x128xbf16>, vector<16x128xf32> -> vector<16x128xf32>
    %17 = arith.addf %8, %16 : vector<16x128xf32>
    %c1_i32 = arith.constant 1 : i32
    %18 = arith.addi %0, %c1_i32 : i32
    %c0_12 = arith.constant 0 : index
    %19 = arith.index_cast %18 : i32 to index
    %c0_13 = arith.constant 0 : index
    %c0_14 = arith.constant 0 : index
    %20 = vector.load %arg2[%c0_12, %19, %c0_13, %c0_14] : memref<1x5x5x64xbf16, #tpu.memory_space<vmem>>, vector<1x4x4x64xbf16>
    %21 = vector.shape_cast %20 : vector<1x4x4x64xbf16> to vector<4x4x64xbf16>
    %22 = vector.shape_cast %21 : vector<4x4x64xbf16> to vector<16x64xbf16>
    %c2 = arith.constant 2 : index
    %c0_15 = arith.constant 0 : index
    %c0_16 = arith.constant 0 : index
    %23 = vector.load %arg3[%c2, %c0_15, %c0_16] : memref<4x64x128xbf16, #tpu.memory_space<vmem>>, vector<1x64x128xbf16>
    %24 = vector.shape_cast %23 : vector<1x64x128xbf16> to vector<64x128xbf16>
    %cst_17 = arith.constant dense<0.000000e+00> : vector<16x128xf32>
    %25 = tpu.matmul %22, %24, %cst_17 {dimension_numbers = #tpu.dot_dimension_numbers<[1], [0], [0], [1], [0, 0, 1, 1], [], []>} : vector<16x64xbf16>, vector<64x128xbf16>, vector<16x128xf32> -> vector<16x128xf32>
    %26 = arith.addf %17, %25 : vector<16x128xf32>
    %c1_i32_18 = arith.constant 1 : i32
    %27 = arith.addi %0, %c1_i32_18 : i32
    %c0_19 = arith.constant 0 : index
    %28 = arith.index_cast %27 : i32 to index
    %c1_20 = arith.constant 1 : index
    %c0_21 = arith.constant 0 : index
    %29 = vector.load %arg2[%c0_19, %28, %c1_20, %c0_21] : memref<1x5x5x64xbf16, #tpu.memory_space<vmem>>, vector<1x4x4x64xbf16>
    %30 = vector.shape_cast %29 : vector<1x4x4x64xbf16> to vector<4x4x64xbf16>
    %31 = vector.shape_cast %30 : vector<4x4x64xbf16> to vector<16x64xbf16>
    %c3 = arith.constant 3 : index
    %c0_22 = arith.constant 0 : index
    %c0_23 = arith.constant 0 : index
    %32 = vector.load %arg3[%c3, %c0_22, %c0_23] : memref<4x64x128xbf16, #tpu.memory_space<vmem>>, vector<1x64x128xbf16>
    %33 = vector.shape_cast %32 : vector<1x64x128xbf16> to vector<64x128xbf16>
    %cst_24 = arith.constant dense<0.000000e+00> : vector<16x128xf32>
    %34 = tpu.matmul %31, %33, %cst_24 {dimension_numbers = #tpu.dot_dimension_numbers<[1], [0], [0], [1], [0, 0, 1, 1], [], []>} : vector<16x64xbf16>, vector<64x128xbf16>, vector<16x128xf32> -> vector<16x128xf32>
    %35 = arith.addf %26, %34 : vector<16x128xf32>
    %36 = vector.extract_strided_slice %35 {offsets = [0, 0], sizes = [16, 32], strides = [1, 1]} : vector<16x128xf32> to vector<16x32xf32>
    %37 = vector.shape_cast %36 : vector<16x32xf32> to vector<4x4x32xf32>
    %38 = arith.truncf %37 : vector<4x4x32xf32> to vector<4x4x32xbf16>
    %c0_25 = arith.constant 0 : index
    %c0_26 = arith.constant 0 : index
    %c0_27 = arith.constant 0 : index
    %c0_28 = arith.constant 0 : index
    %39 = vector.load %arg4[%c0_25, %c0_26, %c0_27, %c0_28] : memref<1x4x4x32xbf16, #tpu.memory_space<vmem>>, vector<1x4x4x32xbf16>
    %40 = vector.shape_cast %39 : vector<1x4x4x32xbf16> to vector<4x4x32xbf16>
    %41 = vector.shape_cast %38 : vector<4x4x32xbf16> to vector<1x4x4x32xbf16>
    tpu.vector_store %arg4[%c0_25, %c0_26, %c0_27, %c0_28], %41 {strides = array<i32>} : memref<1x4x4x32xbf16, #tpu.memory_space<vmem>>, vector<1x4x4x32xbf16>,
    %cst_29 = arith.constant dense<0.000000e+00> : vector<32xf32>
    %42 = vector.multi_reduction <add>, %36, %cst_29 [0] : vector<16x32xf32> to vector<32xf32>
    %43 = vector.shape_cast %42 : vector<32xf32> to vector<1x32xf32>
    %c0_30 = arith.constant 0 : index
    %c0_31 = arith.constant 0 : index
    %c0_32 = arith.constant 0 : index
    %c0_33 = arith.constant 0 : index
    %44 = vector.load %arg5[%c0_30, %c0_31, %c0_32, %c0_33] : memref<1x1x1x32xf32, #tpu.memory_space<vmem>>, vector<1x1x1x32xf32>
    %45 = vector.shape_cast %44 : vector<1x1x1x32xf32> to vector<1x32xf32>
    %46 = vector.shape_cast %43 : vector<1x32xf32> to vector<1x1x1x32xf32>
    tpu.vector_store %arg5[%c0_30, %c0_31, %c0_32, %c0_33], %46 {strides = array<i32>} : memref<1x1x1x32xf32, #tpu.memory_space<vmem>>, vector<1x1x1x32xf32>,
    %47 = arith.mulf %36, %36 : vector<16x32xf32>
    %cst_34 = arith.constant dense<0.000000e+00> : vector<32xf32>
    %48 = vector.multi_reduction <add>, %47, %cst_34 [0] : vector<16x32xf32> to vector<32xf32>
    %49 = vector.shape_cast %48 : vector<32xf32> to vector<1x32xf32>
    %c0_35 = arith.constant 0 : index
    %c0_36 = arith.constant 0 : index
    %c0_37 = arith.constant 0 : index
    %c0_38 = arith.constant 0 : index
    %50 = vector.load %arg6[%c0_35, %c0_36, %c0_37, %c0_38] : memref<1x1x1x32xf32, #tpu.memory_space<vmem>>, vector<1x1x1x32xf32>
    %51 = vector.shape_cast %50 : vector<1x1x1x32xf32> to vector<1x32xf32>
    %52 = vector.shape_cast %49 : vector<1x32xf32> to vector<1x1x1x32xf32>
    tpu.vector_store %arg6[%c0_35, %c0_36, %c0_37, %c0_38], %52 {strides = array<i32>} : memref<1x1x1x32xf32, #tpu.memory_space<vmem>>, vector<1x1x1x32xf32>,
    return
  }
  func.func @transform_0(%arg0: i32, %arg1: i32) -> (i32, i32, i32, i32) {
    %c0_i32 = arith.constant 0 : i32
    %c0_i32_0 = arith.constant 0 : i32
    %c0_i32_1 = arith.constant 0 : i32
    %c0_i32_2 = arith.constant 0 : i32
    return %arg0, %c0_i32, %c0_i32_0, %c0_i32_1 : i32, i32, i32, i32
  }
  func.func @transform_1(%arg0: i32, %arg1: i32) -> (i32, i32, i32) {
    %c0_i32 = arith.constant 0 : i32
    %c0_i32_0 = arith.constant 0 : i32
    %c0_i32_1 = arith.constant 0 : i32
    %c0_i32_2 = arith.constant 0 : i32
    return %c0_i32, %c0_i32_0, %c0_i32_1 : i32, i32, i32
  }
  func.func @transform_2(%arg0: i32, %arg1: i32) -> (i32, i32, i32, i32) {
    %c0_i32 = arith.constant 0 : i32
    %c0_i32_0 = arith.constant 0 : i32
    %c0_i32_1 = arith.constant 0 : i32
    return %arg0, %arg1, %c0_i32, %c0_i32_0 : i32, i32, i32, i32
  }
  func.func @transform_3(%arg0: i32, %arg1: i32) -> (i32, i32, i32, i32) {
    %c0_i32 = arith.constant 0 : i32
    %c0_i32_0 = arith.constant 0 : i32
    %c0_i32_1 = arith.constant 0 : i32
    return %arg0, %arg1, %c0_i32, %c0_i32_0 : i32, i32, i32, i32
  }
  func.func @transform_4(%arg0: i32, %arg1: i32) -> (i32, i32, i32, i32) {
    %c0_i32 = arith.constant 0 : i32
    %c0_i32_0 = arith.constant 0 : i32
    %c0_i32_1 = arith.constant 0 : i32
    return %arg0, %arg1, %c0_i32, %c0_i32_0 : i32, i32, i32, i32
  }
}

module attributes {stable_mosaic.version = 11 : i64} {
  func.func @kernel(%arg0: i32, %arg1: i32, %arg2: memref<1x6x6x32xbf16, #tpu.memory_space<vmem>>, %arg3: memref<16x32x128xbf16, #tpu.memory_space<vmem>>, %arg4: memref<1x3x3x64xbf16, #tpu.memory_space<vmem>>, %arg5: memref<1x1x1x64xf32, #tpu.memory_space<vmem>>, %arg6: memref<1x1x1x64xf32, #tpu.memory_space<vmem>>) attributes {dimension_semantics = [#tpu.dimension_semantics<parallel>, #tpu.dimension_semantics<parallel>], iteration_bounds = array<i64: 2, 1>, scalar_prefetch = 0 : i64, scratch_operands = 0 : i64, tpu.core_type = #tpu.core_type<tc>, window_params = [{transform_indices = @transform_0, window_bounds = array<i64: 1, 6, 6, 32>}, {pipeline_mode = #tpu.pipeline_mode<synchronous>, transform_indices = @transform_1, window_bounds = array<i64: 16, 32, 128>}, {transform_indices = @transform_2, window_bounds = array<i64: 1, 3, 3, 64>}, {transform_indices = @transform_3, window_bounds = array<i64: 1, 1, 1, 64>}, {transform_indices = @transform_4, window_bounds = array<i64: 1, 1, 1, 64>}]} {
    %c3_i32 = arith.constant 3 : i32
    %0 = arith.muli %arg1, %c3_i32 : i32
    %c0_i32 = arith.constant 0 : i32
    %1 = arith.addi %0, %c0_i32 : i32
    %c0 = arith.constant 0 : index
    %2 = arith.index_cast %1 : i32 to index
    %c0_0 = arith.constant 0 : index
    %c0_1 = arith.constant 0 : index
    %3 = vector.load %arg2[%c0, %2, %c0_0, %c0_1] : memref<1x6x6x32xbf16, #tpu.memory_space<vmem>>, vector<1x3x3x32xbf16>
    %4 = vector.shape_cast %3 : vector<1x3x3x32xbf16> to vector<3x3x32xbf16>
    %5 = vector.shape_cast %4 : vector<3x3x32xbf16> to vector<9x32xbf16>
    %c0_2 = arith.constant 0 : index
    %c0_3 = arith.constant 0 : index
    %c0_4 = arith.constant 0 : index
    %6 = vector.load %arg3[%c0_2, %c0_3, %c0_4] : memref<16x32x128xbf16, #tpu.memory_space<vmem>>, vector<1x32x128xbf16>
    %7 = vector.shape_cast %6 : vector<1x32x128xbf16> to vector<32x128xbf16>
    %cst = arith.constant dense<0.000000e+00> : vector<9x128xf32>
    %8 = tpu.matmul %5, %7, %cst {dimension_numbers = #tpu.dot_dimension_numbers<[1], [0], [0], [1], [0, 0, 1, 1], [], []>} : vector<9x32xbf16>, vector<32x128xbf16>, vector<9x128xf32> -> vector<9x128xf32>
    %c0_i32_5 = arith.constant 0 : i32
    %9 = arith.addi %0, %c0_i32_5 : i32
    %c0_6 = arith.constant 0 : index
    %10 = arith.index_cast %9 : i32 to index
    %c1 = arith.constant 1 : index
    %c0_7 = arith.constant 0 : index
    %11 = vector.load %arg2[%c0_6, %10, %c1, %c0_7] : memref<1x6x6x32xbf16, #tpu.memory_space<vmem>>, vector<1x3x3x32xbf16>
    %12 = vector.shape_cast %11 : vector<1x3x3x32xbf16> to vector<3x3x32xbf16>
    %13 = vector.shape_cast %12 : vector<3x3x32xbf16> to vector<9x32xbf16>
    %c1_8 = arith.constant 1 : index
    %c0_9 = arith.constant 0 : index
    %c0_10 = arith.constant 0 : index
    %14 = vector.load %arg3[%c1_8, %c0_9, %c0_10] : memref<16x32x128xbf16, #tpu.memory_space<vmem>>, vector<1x32x128xbf16>
    %15 = vector.shape_cast %14 : vector<1x32x128xbf16> to vector<32x128xbf16>
    %cst_11 = arith.constant dense<0.000000e+00> : vector<9x128xf32>
    %16 = tpu.matmul %13, %15, %cst_11 {dimension_numbers = #tpu.dot_dimension_numbers<[1], [0], [0], [1], [0, 0, 1, 1], [], []>} : vector<9x32xbf16>, vector<32x128xbf16>, vector<9x128xf32> -> vector<9x128xf32>
    %17 = arith.addf %8, %16 : vector<9x128xf32>
    %c0_i32_12 = arith.constant 0 : i32
    %18 = arith.addi %0, %c0_i32_12 : i32
    %c0_13 = arith.constant 0 : index
    %19 = arith.index_cast %18 : i32 to index
    %c2 = arith.constant 2 : index
    %c0_14 = arith.constant 0 : index
    %20 = vector.load %arg2[%c0_13, %19, %c2, %c0_14] : memref<1x6x6x32xbf16, #tpu.memory_space<vmem>>, vector<1x3x3x32xbf16>
    %21 = vector.shape_cast %20 : vector<1x3x3x32xbf16> to vector<3x3x32xbf16>
    %22 = vector.shape_cast %21 : vector<3x3x32xbf16> to vector<9x32xbf16>
    %c2_15 = arith.constant 2 : index
    %c0_16 = arith.constant 0 : index
    %c0_17 = arith.constant 0 : index
    %23 = vector.load %arg3[%c2_15, %c0_16, %c0_17] : memref<16x32x128xbf16, #tpu.memory_space<vmem>>, vector<1x32x128xbf16>
    %24 = vector.shape_cast %23 : vector<1x32x128xbf16> to vector<32x128xbf16>
    %cst_18 = arith.constant dense<0.000000e+00> : vector<9x128xf32>
    %25 = tpu.matmul %22, %24, %cst_18 {dimension_numbers = #tpu.dot_dimension_numbers<[1], [0], [0], [1], [0, 0, 1, 1], [], []>} : vector<9x32xbf16>, vector<32x128xbf16>, vector<9x128xf32> -> vector<9x128xf32>
    %26 = arith.addf %17, %25 : vector<9x128xf32>
    %c0_i32_19 = arith.constant 0 : i32
    %27 = arith.addi %0, %c0_i32_19 : i32
    %c0_20 = arith.constant 0 : index
    %28 = arith.index_cast %27 : i32 to index
    %c3 = arith.constant 3 : index
    %c0_21 = arith.constant 0 : index
    %29 = vector.load %arg2[%c0_20, %28, %c3, %c0_21] : memref<1x6x6x32xbf16, #tpu.memory_space<vmem>>, vector<1x3x3x32xbf16>
    %30 = vector.shape_cast %29 : vector<1x3x3x32xbf16> to vector<3x3x32xbf16>
    %31 = vector.shape_cast %30 : vector<3x3x32xbf16> to vector<9x32xbf16>
    %c3_22 = arith.constant 3 : index
    %c0_23 = arith.constant 0 : index
    %c0_24 = arith.constant 0 : index
    %32 = vector.load %arg3[%c3_22, %c0_23, %c0_24] : memref<16x32x128xbf16, #tpu.memory_space<vmem>>, vector<1x32x128xbf16>
    %33 = vector.shape_cast %32 : vector<1x32x128xbf16> to vector<32x128xbf16>
    %cst_25 = arith.constant dense<0.000000e+00> : vector<9x128xf32>
    %34 = tpu.matmul %31, %33, %cst_25 {dimension_numbers = #tpu.dot_dimension_numbers<[1], [0], [0], [1], [0, 0, 1, 1], [], []>} : vector<9x32xbf16>, vector<32x128xbf16>, vector<9x128xf32> -> vector<9x128xf32>
    %35 = arith.addf %26, %34 : vector<9x128xf32>
    %c1_i32 = arith.constant 1 : i32
    %36 = arith.addi %0, %c1_i32 : i32
    %c0_26 = arith.constant 0 : index
    %37 = arith.index_cast %36 : i32 to index
    %c0_27 = arith.constant 0 : index
    %c0_28 = arith.constant 0 : index
    %38 = vector.load %arg2[%c0_26, %37, %c0_27, %c0_28] : memref<1x6x6x32xbf16, #tpu.memory_space<vmem>>, vector<1x3x3x32xbf16>
    %39 = vector.shape_cast %38 : vector<1x3x3x32xbf16> to vector<3x3x32xbf16>
    %40 = vector.shape_cast %39 : vector<3x3x32xbf16> to vector<9x32xbf16>
    %c4 = arith.constant 4 : index
    %c0_29 = arith.constant 0 : index
    %c0_30 = arith.constant 0 : index
    %41 = vector.load %arg3[%c4, %c0_29, %c0_30] : memref<16x32x128xbf16, #tpu.memory_space<vmem>>, vector<1x32x128xbf16>
    %42 = vector.shape_cast %41 : vector<1x32x128xbf16> to vector<32x128xbf16>
    %cst_31 = arith.constant dense<0.000000e+00> : vector<9x128xf32>
    %43 = tpu.matmul %40, %42, %cst_31 {dimension_numbers = #tpu.dot_dimension_numbers<[1], [0], [0], [1], [0, 0, 1, 1], [], []>} : vector<9x32xbf16>, vector<32x128xbf16>, vector<9x128xf32> -> vector<9x128xf32>
    %44 = arith.addf %35, %43 : vector<9x128xf32>
    %c1_i32_32 = arith.constant 1 : i32
    %45 = arith.addi %0, %c1_i32_32 : i32
    %c0_33 = arith.constant 0 : index
    %46 = arith.index_cast %45 : i32 to index
    %c1_34 = arith.constant 1 : index
    %c0_35 = arith.constant 0 : index
    %47 = vector.load %arg2[%c0_33, %46, %c1_34, %c0_35] : memref<1x6x6x32xbf16, #tpu.memory_space<vmem>>, vector<1x3x3x32xbf16>
    %48 = vector.shape_cast %47 : vector<1x3x3x32xbf16> to vector<3x3x32xbf16>
    %49 = vector.shape_cast %48 : vector<3x3x32xbf16> to vector<9x32xbf16>
    %c5 = arith.constant 5 : index
    %c0_36 = arith.constant 0 : index
    %c0_37 = arith.constant 0 : index
    %50 = vector.load %arg3[%c5, %c0_36, %c0_37] : memref<16x32x128xbf16, #tpu.memory_space<vmem>>, vector<1x32x128xbf16>
    %51 = vector.shape_cast %50 : vector<1x32x128xbf16> to vector<32x128xbf16>
    %cst_38 = arith.constant dense<0.000000e+00> : vector<9x128xf32>
    %52 = tpu.matmul %49, %51, %cst_38 {dimension_numbers = #tpu.dot_dimension_numbers<[1], [0], [0], [1], [0, 0, 1, 1], [], []>} : vector<9x32xbf16>, vector<32x128xbf16>, vector<9x128xf32> -> vector<9x128xf32>
    %53 = arith.addf %44, %52 : vector<9x128xf32>
    %c1_i32_39 = arith.constant 1 : i32
    %54 = arith.addi %0, %c1_i32_39 : i32
    %c0_40 = arith.constant 0 : index
    %55 = arith.index_cast %54 : i32 to index
    %c2_41 = arith.constant 2 : index
    %c0_42 = arith.constant 0 : index
    %56 = vector.load %arg2[%c0_40, %55, %c2_41, %c0_42] : memref<1x6x6x32xbf16, #tpu.memory_space<vmem>>, vector<1x3x3x32xbf16>
    %57 = vector.shape_cast %56 : vector<1x3x3x32xbf16> to vector<3x3x32xbf16>
    %58 = vector.shape_cast %57 : vector<3x3x32xbf16> to vector<9x32xbf16>
    %c6 = arith.constant 6 : index
    %c0_43 = arith.constant 0 : index
    %c0_44 = arith.constant 0 : index
    %59 = vector.load %arg3[%c6, %c0_43, %c0_44] : memref<16x32x128xbf16, #tpu.memory_space<vmem>>, vector<1x32x128xbf16>
    %60 = vector.shape_cast %59 : vector<1x32x128xbf16> to vector<32x128xbf16>
    %cst_45 = arith.constant dense<0.000000e+00> : vector<9x128xf32>
    %61 = tpu.matmul %58, %60, %cst_45 {dimension_numbers = #tpu.dot_dimension_numbers<[1], [0], [0], [1], [0, 0, 1, 1], [], []>} : vector<9x32xbf16>, vector<32x128xbf16>, vector<9x128xf32> -> vector<9x128xf32>
    %62 = arith.addf %53, %61 : vector<9x128xf32>
    %c1_i32_46 = arith.constant 1 : i32
    %63 = arith.addi %0, %c1_i32_46 : i32
    %c0_47 = arith.constant 0 : index
    %64 = arith.index_cast %63 : i32 to index
    %c3_48 = arith.constant 3 : index
    %c0_49 = arith.constant 0 : index
    %65 = vector.load %arg2[%c0_47, %64, %c3_48, %c0_49] : memref<1x6x6x32xbf16, #tpu.memory_space<vmem>>, vector<1x3x3x32xbf16>
    %66 = vector.shape_cast %65 : vector<1x3x3x32xbf16> to vector<3x3x32xbf16>
    %67 = vector.shape_cast %66 : vector<3x3x32xbf16> to vector<9x32xbf16>
    %c7 = arith.constant 7 : index
    %c0_50 = arith.constant 0 : index
    %c0_51 = arith.constant 0 : index
    %68 = vector.load %arg3[%c7, %c0_50, %c0_51] : memref<16x32x128xbf16, #tpu.memory_space<vmem>>, vector<1x32x128xbf16>
    %69 = vector.shape_cast %68 : vector<1x32x128xbf16> to vector<32x128xbf16>
    %cst_52 = arith.constant dense<0.000000e+00> : vector<9x128xf32>
    %70 = tpu.matmul %67, %69, %cst_52 {dimension_numbers = #tpu.dot_dimension_numbers<[1], [0], [0], [1], [0, 0, 1, 1], [], []>} : vector<9x32xbf16>, vector<32x128xbf16>, vector<9x128xf32> -> vector<9x128xf32>
    %71 = arith.addf %62, %70 : vector<9x128xf32>
    %c2_i32 = arith.constant 2 : i32
    %72 = arith.addi %0, %c2_i32 : i32
    %c0_53 = arith.constant 0 : index
    %73 = arith.index_cast %72 : i32 to index
    %c0_54 = arith.constant 0 : index
    %c0_55 = arith.constant 0 : index
    %74 = vector.load %arg2[%c0_53, %73, %c0_54, %c0_55] : memref<1x6x6x32xbf16, #tpu.memory_space<vmem>>, vector<1x3x3x32xbf16>
    %75 = vector.shape_cast %74 : vector<1x3x3x32xbf16> to vector<3x3x32xbf16>
    %76 = vector.shape_cast %75 : vector<3x3x32xbf16> to vector<9x32xbf16>
    %c8 = arith.constant 8 : index
    %c0_56 = arith.constant 0 : index
    %c0_57 = arith.constant 0 : index
    %77 = vector.load %arg3[%c8, %c0_56, %c0_57] : memref<16x32x128xbf16, #tpu.memory_space<vmem>>, vector<1x32x128xbf16>
    %78 = vector.shape_cast %77 : vector<1x32x128xbf16> to vector<32x128xbf16>
    %cst_58 = arith.constant dense<0.000000e+00> : vector<9x128xf32>
    %79 = tpu.matmul %76, %78, %cst_58 {dimension_numbers = #tpu.dot_dimension_numbers<[1], [0], [0], [1], [0, 0, 1, 1], [], []>} : vector<9x32xbf16>, vector<32x128xbf16>, vector<9x128xf32> -> vector<9x128xf32>
    %80 = arith.addf %71, %79 : vector<9x128xf32>
    %c2_i32_59 = arith.constant 2 : i32
    %81 = arith.addi %0, %c2_i32_59 : i32
    %c0_60 = arith.constant 0 : index
    %82 = arith.index_cast %81 : i32 to index
    %c1_61 = arith.constant 1 : index
    %c0_62 = arith.constant 0 : index
    %83 = vector.load %arg2[%c0_60, %82, %c1_61, %c0_62] : memref<1x6x6x32xbf16, #tpu.memory_space<vmem>>, vector<1x3x3x32xbf16>
    %84 = vector.shape_cast %83 : vector<1x3x3x32xbf16> to vector<3x3x32xbf16>
    %85 = vector.shape_cast %84 : vector<3x3x32xbf16> to vector<9x32xbf16>
    %c9 = arith.constant 9 : index
    %c0_63 = arith.constant 0 : index
    %c0_64 = arith.constant 0 : index
    %86 = vector.load %arg3[%c9, %c0_63, %c0_64] : memref<16x32x128xbf16, #tpu.memory_space<vmem>>, vector<1x32x128xbf16>
    %87 = vector.shape_cast %86 : vector<1x32x128xbf16> to vector<32x128xbf16>
    %cst_65 = arith.constant dense<0.000000e+00> : vector<9x128xf32>
    %88 = tpu.matmul %85, %87, %cst_65 {dimension_numbers = #tpu.dot_dimension_numbers<[1], [0], [0], [1], [0, 0, 1, 1], [], []>} : vector<9x32xbf16>, vector<32x128xbf16>, vector<9x128xf32> -> vector<9x128xf32>
    %89 = arith.addf %80, %88 : vector<9x128xf32>
    %c2_i32_66 = arith.constant 2 : i32
    %90 = arith.addi %0, %c2_i32_66 : i32
    %c0_67 = arith.constant 0 : index
    %91 = arith.index_cast %90 : i32 to index
    %c2_68 = arith.constant 2 : index
    %c0_69 = arith.constant 0 : index
    %92 = vector.load %arg2[%c0_67, %91, %c2_68, %c0_69] : memref<1x6x6x32xbf16, #tpu.memory_space<vmem>>, vector<1x3x3x32xbf16>
    %93 = vector.shape_cast %92 : vector<1x3x3x32xbf16> to vector<3x3x32xbf16>
    %94 = vector.shape_cast %93 : vector<3x3x32xbf16> to vector<9x32xbf16>
    %c10 = arith.constant 10 : index
    %c0_70 = arith.constant 0 : index
    %c0_71 = arith.constant 0 : index
    %95 = vector.load %arg3[%c10, %c0_70, %c0_71] : memref<16x32x128xbf16, #tpu.memory_space<vmem>>, vector<1x32x128xbf16>
    %96 = vector.shape_cast %95 : vector<1x32x128xbf16> to vector<32x128xbf16>
    %cst_72 = arith.constant dense<0.000000e+00> : vector<9x128xf32>
    %97 = tpu.matmul %94, %96, %cst_72 {dimension_numbers = #tpu.dot_dimension_numbers<[1], [0], [0], [1], [0, 0, 1, 1], [], []>} : vector<9x32xbf16>, vector<32x128xbf16>, vector<9x128xf32> -> vector<9x128xf32>
    %98 = arith.addf %89, %97 : vector<9x128xf32>
    %c2_i32_73 = arith.constant 2 : i32
    %99 = arith.addi %0, %c2_i32_73 : i32
    %c0_74 = arith.constant 0 : index
    %100 = arith.index_cast %99 : i32 to index
    %c3_75 = arith.constant 3 : index
    %c0_76 = arith.constant 0 : index
    %101 = vector.load %arg2[%c0_74, %100, %c3_75, %c0_76] : memref<1x6x6x32xbf16, #tpu.memory_space<vmem>>, vector<1x3x3x32xbf16>
    %102 = vector.shape_cast %101 : vector<1x3x3x32xbf16> to vector<3x3x32xbf16>
    %103 = vector.shape_cast %102 : vector<3x3x32xbf16> to vector<9x32xbf16>
    %c11 = arith.constant 11 : index
    %c0_77 = arith.constant 0 : index
    %c0_78 = arith.constant 0 : index
    %104 = vector.load %arg3[%c11, %c0_77, %c0_78] : memref<16x32x128xbf16, #tpu.memory_space<vmem>>, vector<1x32x128xbf16>
    %105 = vector.shape_cast %104 : vector<1x32x128xbf16> to vector<32x128xbf16>
    %cst_79 = arith.constant dense<0.000000e+00> : vector<9x128xf32>
    %106 = tpu.matmul %103, %105, %cst_79 {dimension_numbers = #tpu.dot_dimension_numbers<[1], [0], [0], [1], [0, 0, 1, 1], [], []>} : vector<9x32xbf16>, vector<32x128xbf16>, vector<9x128xf32> -> vector<9x128xf32>
    %107 = arith.addf %98, %106 : vector<9x128xf32>
    %c3_i32_80 = arith.constant 3 : i32
    %108 = arith.addi %0, %c3_i32_80 : i32
    %c0_81 = arith.constant 0 : index
    %109 = arith.index_cast %108 : i32 to index
    %c0_82 = arith.constant 0 : index
    %c0_83 = arith.constant 0 : index
    %110 = vector.load %arg2[%c0_81, %109, %c0_82, %c0_83] : memref<1x6x6x32xbf16, #tpu.memory_space<vmem>>, vector<1x3x3x32xbf16>
    %111 = vector.shape_cast %110 : vector<1x3x3x32xbf16> to vector<3x3x32xbf16>
    %112 = vector.shape_cast %111 : vector<3x3x32xbf16> to vector<9x32xbf16>
    %c12 = arith.constant 12 : index
    %c0_84 = arith.constant 0 : index
    %c0_85 = arith.constant 0 : index
    %113 = vector.load %arg3[%c12, %c0_84, %c0_85] : memref<16x32x128xbf16, #tpu.memory_space<vmem>>, vector<1x32x128xbf16>
    %114 = vector.shape_cast %113 : vector<1x32x128xbf16> to vector<32x128xbf16>
    %cst_86 = arith.constant dense<0.000000e+00> : vector<9x128xf32>
    %115 = tpu.matmul %112, %114, %cst_86 {dimension_numbers = #tpu.dot_dimension_numbers<[1], [0], [0], [1], [0, 0, 1, 1], [], []>} : vector<9x32xbf16>, vector<32x128xbf16>, vector<9x128xf32> -> vector<9x128xf32>
    %116 = arith.addf %107, %115 : vector<9x128xf32>
    %c3_i32_87 = arith.constant 3 : i32
    %117 = arith.addi %0, %c3_i32_87 : i32
    %c0_88 = arith.constant 0 : index
    %118 = arith.index_cast %117 : i32 to index
    %c1_89 = arith.constant 1 : index
    %c0_90 = arith.constant 0 : index
    %119 = vector.load %arg2[%c0_88, %118, %c1_89, %c0_90] : memref<1x6x6x32xbf16, #tpu.memory_space<vmem>>, vector<1x3x3x32xbf16>
    %120 = vector.shape_cast %119 : vector<1x3x3x32xbf16> to vector<3x3x32xbf16>
    %121 = vector.shape_cast %120 : vector<3x3x32xbf16> to vector<9x32xbf16>
    %c13 = arith.constant 13 : index
    %c0_91 = arith.constant 0 : index
    %c0_92 = arith.constant 0 : index
    %122 = vector.load %arg3[%c13, %c0_91, %c0_92] : memref<16x32x128xbf16, #tpu.memory_space<vmem>>, vector<1x32x128xbf16>
    %123 = vector.shape_cast %122 : vector<1x32x128xbf16> to vector<32x128xbf16>
    %cst_93 = arith.constant dense<0.000000e+00> : vector<9x128xf32>
    %124 = tpu.matmul %121, %123, %cst_93 {dimension_numbers = #tpu.dot_dimension_numbers<[1], [0], [0], [1], [0, 0, 1, 1], [], []>} : vector<9x32xbf16>, vector<32x128xbf16>, vector<9x128xf32> -> vector<9x128xf32>
    %125 = arith.addf %116, %124 : vector<9x128xf32>
    %c3_i32_94 = arith.constant 3 : i32
    %126 = arith.addi %0, %c3_i32_94 : i32
    %c0_95 = arith.constant 0 : index
    %127 = arith.index_cast %126 : i32 to index
    %c2_96 = arith.constant 2 : index
    %c0_97 = arith.constant 0 : index
    %128 = vector.load %arg2[%c0_95, %127, %c2_96, %c0_97] : memref<1x6x6x32xbf16, #tpu.memory_space<vmem>>, vector<1x3x3x32xbf16>
    %129 = vector.shape_cast %128 : vector<1x3x3x32xbf16> to vector<3x3x32xbf16>
    %130 = vector.shape_cast %129 : vector<3x3x32xbf16> to vector<9x32xbf16>
    %c14 = arith.constant 14 : index
    %c0_98 = arith.constant 0 : index
    %c0_99 = arith.constant 0 : index
    %131 = vector.load %arg3[%c14, %c0_98, %c0_99] : memref<16x32x128xbf16, #tpu.memory_space<vmem>>, vector<1x32x128xbf16>
    %132 = vector.shape_cast %131 : vector<1x32x128xbf16> to vector<32x128xbf16>
    %cst_100 = arith.constant dense<0.000000e+00> : vector<9x128xf32>
    %133 = tpu.matmul %130, %132, %cst_100 {dimension_numbers = #tpu.dot_dimension_numbers<[1], [0], [0], [1], [0, 0, 1, 1], [], []>} : vector<9x32xbf16>, vector<32x128xbf16>, vector<9x128xf32> -> vector<9x128xf32>
    %134 = arith.addf %125, %133 : vector<9x128xf32>
    %c3_i32_101 = arith.constant 3 : i32
    %135 = arith.addi %0, %c3_i32_101 : i32
    %c0_102 = arith.constant 0 : index
    %136 = arith.index_cast %135 : i32 to index
    %c3_103 = arith.constant 3 : index
    %c0_104 = arith.constant 0 : index
    %137 = vector.load %arg2[%c0_102, %136, %c3_103, %c0_104] : memref<1x6x6x32xbf16, #tpu.memory_space<vmem>>, vector<1x3x3x32xbf16>
    %138 = vector.shape_cast %137 : vector<1x3x3x32xbf16> to vector<3x3x32xbf16>
    %139 = vector.shape_cast %138 : vector<3x3x32xbf16> to vector<9x32xbf16>
    %c15 = arith.constant 15 : index
    %c0_105 = arith.constant 0 : index
    %c0_106 = arith.constant 0 : index
    %140 = vector.load %arg3[%c15, %c0_105, %c0_106] : memref<16x32x128xbf16, #tpu.memory_space<vmem>>, vector<1x32x128xbf16>
    %141 = vector.shape_cast %140 : vector<1x32x128xbf16> to vector<32x128xbf16>
    %cst_107 = arith.constant dense<0.000000e+00> : vector<9x128xf32>
    %142 = tpu.matmul %139, %141, %cst_107 {dimension_numbers = #tpu.dot_dimension_numbers<[1], [0], [0], [1], [0, 0, 1, 1], [], []>} : vector<9x32xbf16>, vector<32x128xbf16>, vector<9x128xf32> -> vector<9x128xf32>
    %143 = arith.addf %134, %142 : vector<9x128xf32>
    %144 = vector.extract_strided_slice %143 {offsets = [0, 0], sizes = [9, 64], strides = [1, 1]} : vector<9x128xf32> to vector<9x64xf32>
    %145 = vector.shape_cast %144 : vector<9x64xf32> to vector<3x3x64xf32>
    %146 = arith.truncf %145 : vector<3x3x64xf32> to vector<3x3x64xbf16>
    %c0_108 = arith.constant 0 : index
    %c0_109 = arith.constant 0 : index
    %c0_110 = arith.constant 0 : index
    %c0_111 = arith.constant 0 : index
    %147 = vector.load %arg4[%c0_108, %c0_109, %c0_110, %c0_111] : memref<1x3x3x64xbf16, #tpu.memory_space<vmem>>, vector<1x3x3x64xbf16>
    %148 = vector.shape_cast %147 : vector<1x3x3x64xbf16> to vector<3x3x64xbf16>
    %149 = vector.shape_cast %146 : vector<3x3x64xbf16> to vector<1x3x3x64xbf16>
    tpu.vector_store %arg4[%c0_108, %c0_109, %c0_110, %c0_111], %149 {strides = array<i32>} : memref<1x3x3x64xbf16, #tpu.memory_space<vmem>>, vector<1x3x3x64xbf16>,
    %cst_112 = arith.constant dense<0.000000e+00> : vector<64xf32>
    %150 = vector.multi_reduction <add>, %144, %cst_112 [0] : vector<9x64xf32> to vector<64xf32>
    %151 = vector.shape_cast %150 : vector<64xf32> to vector<1x64xf32>
    %c0_113 = arith.constant 0 : index
    %c0_114 = arith.constant 0 : index
    %c0_115 = arith.constant 0 : index
    %c0_116 = arith.constant 0 : index
    %152 = vector.load %arg5[%c0_113, %c0_114, %c0_115, %c0_116] : memref<1x1x1x64xf32, #tpu.memory_space<vmem>>, vector<1x1x1x64xf32>
    %153 = vector.shape_cast %152 : vector<1x1x1x64xf32> to vector<1x64xf32>
    %154 = vector.shape_cast %151 : vector<1x64xf32> to vector<1x1x1x64xf32>
    tpu.vector_store %arg5[%c0_113, %c0_114, %c0_115, %c0_116], %154 {strides = array<i32>} : memref<1x1x1x64xf32, #tpu.memory_space<vmem>>, vector<1x1x1x64xf32>,
    %155 = arith.mulf %144, %144 : vector<9x64xf32>
    %cst_117 = arith.constant dense<0.000000e+00> : vector<64xf32>
    %156 = vector.multi_reduction <add>, %155, %cst_117 [0] : vector<9x64xf32> to vector<64xf32>
    %157 = vector.shape_cast %156 : vector<64xf32> to vector<1x64xf32>
    %c0_118 = arith.constant 0 : index
    %c0_119 = arith.constant 0 : index
    %c0_120 = arith.constant 0 : index
    %c0_121 = arith.constant 0 : index
    %158 = vector.load %arg6[%c0_118, %c0_119, %c0_120, %c0_121] : memref<1x1x1x64xf32, #tpu.memory_space<vmem>>, vector<1x1x1x64xf32>
    %159 = vector.shape_cast %158 : vector<1x1x1x64xf32> to vector<1x64xf32>
    %160 = vector.shape_cast %157 : vector<1x64xf32> to vector<1x1x1x64xf32>
    tpu.vector_store %arg6[%c0_118, %c0_119, %c0_120, %c0_121], %160 {strides = array<i32>} : memref<1x1x1x64xf32, #tpu.memory_space<vmem>>, vector<1x1x1x64xf32>,
    return
  }
  func.func @transform_0(%arg0: i32, %arg1: i32) -> (i32, i32, i32, i32) {
    %c0_i32 = arith.constant 0 : i32
    %c0_i32_0 = arith.constant 0 : i32
    %c0_i32_1 = arith.constant 0 : i32
    %c0_i32_2 = arith.constant 0 : i32
    return %arg0, %c0_i32, %c0_i32_0, %c0_i32_1 : i32, i32, i32, i32
  }
  func.func @transform_1(%arg0: i32, %arg1: i32) -> (i32, i32, i32) {
    %c0_i32 = arith.constant 0 : i32
    %c0_i32_0 = arith.constant 0 : i32
    %c0_i32_1 = arith.constant 0 : i32
    %c0_i32_2 = arith.constant 0 : i32
    return %c0_i32, %c0_i32_0, %c0_i32_1 : i32, i32, i32
  }
  func.func @transform_2(%arg0: i32, %arg1: i32) -> (i32, i32, i32, i32) {
    %c0_i32 = arith.constant 0 : i32
    %c0_i32_0 = arith.constant 0 : i32
    %c0_i32_1 = arith.constant 0 : i32
    return %arg0, %arg1, %c0_i32, %c0_i32_0 : i32, i32, i32, i32
  }
  func.func @transform_3(%arg0: i32, %arg1: i32) -> (i32, i32, i32, i32) {
    %c0_i32 = arith.constant 0 : i32
    %c0_i32_0 = arith.constant 0 : i32
    %c0_i32_1 = arith.constant 0 : i32
    return %arg0, %arg1, %c0_i32, %c0_i32_0 : i32, i32, i32, i32
  }
  func.func @transform_4(%arg0: i32, %arg1: i32) -> (i32, i32, i32, i32) {
    %c0_i32 = arith.constant 0 : i32
    %c0_i32_0 = arith.constant 0 : i32
    %c0_i32_1 = arith.constant 0 : i32
    return %arg0, %arg1, %c0_i32, %c0_i32_0 : i32, i32, i32, i32
  }
}

module attributes {stable_mosaic.version = 11 : i64} {
  func.func @kernel(%arg0: i32, %arg1: i32, %arg2: memref<1x5x5x64xbf16, #tpu.memory_space<vmem>>, %arg3: memref<16x64x128xbf16, #tpu.memory_space<vmem>>, %arg4: memref<1x128xf32, #tpu.memory_space<vmem>>, %arg5: memref<1x2x2x1xf32, #tpu.memory_space<vmem>>) attributes {dimension_semantics = [#tpu.dimension_semantics<parallel>, #tpu.dimension_semantics<parallel>], iteration_bounds = array<i64: 2, 1>, scalar_prefetch = 0 : i64, scratch_operands = 0 : i64, tpu.core_type = #tpu.core_type<tc>, window_params = [{transform_indices = @transform_0, window_bounds = array<i64: 1, 5, 5, 64>}, {pipeline_mode = #tpu.pipeline_mode<synchronous>, transform_indices = @transform_1, window_bounds = array<i64: 16, 64, 128>}, {pipeline_mode = #tpu.pipeline_mode<synchronous>, transform_indices = @transform_2, window_bounds = array<i64: 1, 128>}, {transform_indices = @transform_3, window_bounds = array<i64: 1, 2, 2, 1>}]} {
    %c2_i32 = arith.constant 2 : i32
    %0 = arith.muli %arg1, %c2_i32 : i32
    %c0_i32 = arith.constant 0 : i32
    %1 = arith.addi %0, %c0_i32 : i32
    %c0 = arith.constant 0 : index
    %2 = arith.index_cast %1 : i32 to index
    %c0_0 = arith.constant 0 : index
    %c0_1 = arith.constant 0 : index
    %3 = vector.load %arg2[%c0, %2, %c0_0, %c0_1] : memref<1x5x5x64xbf16, #tpu.memory_space<vmem>>, vector<1x2x2x64xbf16>
    %4 = vector.shape_cast %3 : vector<1x2x2x64xbf16> to vector<2x2x64xbf16>
    %5 = vector.shape_cast %4 : vector<2x2x64xbf16> to vector<4x64xbf16>
    %c0_2 = arith.constant 0 : index
    %c0_3 = arith.constant 0 : index
    %c0_4 = arith.constant 0 : index
    %6 = vector.load %arg3[%c0_2, %c0_3, %c0_4] : memref<16x64x128xbf16, #tpu.memory_space<vmem>>, vector<1x64x128xbf16>
    %7 = vector.shape_cast %6 : vector<1x64x128xbf16> to vector<64x128xbf16>
    %cst = arith.constant dense<0.000000e+00> : vector<4x128xf32>
    %8 = tpu.matmul %5, %7, %cst {dimension_numbers = #tpu.dot_dimension_numbers<[1], [0], [0], [1], [0, 0, 1, 1], [], []>} : vector<4x64xbf16>, vector<64x128xbf16>, vector<4x128xf32> -> vector<4x128xf32>
    %c0_i32_5 = arith.constant 0 : i32
    %9 = arith.addi %0, %c0_i32_5 : i32
    %c0_6 = arith.constant 0 : index
    %10 = arith.index_cast %9 : i32 to index
    %c1 = arith.constant 1 : index
    %c0_7 = arith.constant 0 : index
    %11 = vector.load %arg2[%c0_6, %10, %c1, %c0_7] : memref<1x5x5x64xbf16, #tpu.memory_space<vmem>>, vector<1x2x2x64xbf16>
    %12 = vector.shape_cast %11 : vector<1x2x2x64xbf16> to vector<2x2x64xbf16>
    %13 = vector.shape_cast %12 : vector<2x2x64xbf16> to vector<4x64xbf16>
    %c1_8 = arith.constant 1 : index
    %c0_9 = arith.constant 0 : index
    %c0_10 = arith.constant 0 : index
    %14 = vector.load %arg3[%c1_8, %c0_9, %c0_10] : memref<16x64x128xbf16, #tpu.memory_space<vmem>>, vector<1x64x128xbf16>
    %15 = vector.shape_cast %14 : vector<1x64x128xbf16> to vector<64x128xbf16>
    %cst_11 = arith.constant dense<0.000000e+00> : vector<4x128xf32>
    %16 = tpu.matmul %13, %15, %cst_11 {dimension_numbers = #tpu.dot_dimension_numbers<[1], [0], [0], [1], [0, 0, 1, 1], [], []>} : vector<4x64xbf16>, vector<64x128xbf16>, vector<4x128xf32> -> vector<4x128xf32>
    %17 = arith.addf %8, %16 : vector<4x128xf32>
    %c0_i32_12 = arith.constant 0 : i32
    %18 = arith.addi %0, %c0_i32_12 : i32
    %c0_13 = arith.constant 0 : index
    %19 = arith.index_cast %18 : i32 to index
    %c2 = arith.constant 2 : index
    %c0_14 = arith.constant 0 : index
    %20 = vector.load %arg2[%c0_13, %19, %c2, %c0_14] : memref<1x5x5x64xbf16, #tpu.memory_space<vmem>>, vector<1x2x2x64xbf16>
    %21 = vector.shape_cast %20 : vector<1x2x2x64xbf16> to vector<2x2x64xbf16>
    %22 = vector.shape_cast %21 : vector<2x2x64xbf16> to vector<4x64xbf16>
    %c2_15 = arith.constant 2 : index
    %c0_16 = arith.constant 0 : index
    %c0_17 = arith.constant 0 : index
    %23 = vector.load %arg3[%c2_15, %c0_16, %c0_17] : memref<16x64x128xbf16, #tpu.memory_space<vmem>>, vector<1x64x128xbf16>
    %24 = vector.shape_cast %23 : vector<1x64x128xbf16> to vector<64x128xbf16>
    %cst_18 = arith.constant dense<0.000000e+00> : vector<4x128xf32>
    %25 = tpu.matmul %22, %24, %cst_18 {dimension_numbers = #tpu.dot_dimension_numbers<[1], [0], [0], [1], [0, 0, 1, 1], [], []>} : vector<4x64xbf16>, vector<64x128xbf16>, vector<4x128xf32> -> vector<4x128xf32>
    %26 = arith.addf %17, %25 : vector<4x128xf32>
    %c0_i32_19 = arith.constant 0 : i32
    %27 = arith.addi %0, %c0_i32_19 : i32
    %c0_20 = arith.constant 0 : index
    %28 = arith.index_cast %27 : i32 to index
    %c3 = arith.constant 3 : index
    %c0_21 = arith.constant 0 : index
    %29 = vector.load %arg2[%c0_20, %28, %c3, %c0_21] : memref<1x5x5x64xbf16, #tpu.memory_space<vmem>>, vector<1x2x2x64xbf16>
    %30 = vector.shape_cast %29 : vector<1x2x2x64xbf16> to vector<2x2x64xbf16>
    %31 = vector.shape_cast %30 : vector<2x2x64xbf16> to vector<4x64xbf16>
    %c3_22 = arith.constant 3 : index
    %c0_23 = arith.constant 0 : index
    %c0_24 = arith.constant 0 : index
    %32 = vector.load %arg3[%c3_22, %c0_23, %c0_24] : memref<16x64x128xbf16, #tpu.memory_space<vmem>>, vector<1x64x128xbf16>
    %33 = vector.shape_cast %32 : vector<1x64x128xbf16> to vector<64x128xbf16>
    %cst_25 = arith.constant dense<0.000000e+00> : vector<4x128xf32>
    %34 = tpu.matmul %31, %33, %cst_25 {dimension_numbers = #tpu.dot_dimension_numbers<[1], [0], [0], [1], [0, 0, 1, 1], [], []>} : vector<4x64xbf16>, vector<64x128xbf16>, vector<4x128xf32> -> vector<4x128xf32>
    %35 = arith.addf %26, %34 : vector<4x128xf32>
    %c1_i32 = arith.constant 1 : i32
    %36 = arith.addi %0, %c1_i32 : i32
    %c0_26 = arith.constant 0 : index
    %37 = arith.index_cast %36 : i32 to index
    %c0_27 = arith.constant 0 : index
    %c0_28 = arith.constant 0 : index
    %38 = vector.load %arg2[%c0_26, %37, %c0_27, %c0_28] : memref<1x5x5x64xbf16, #tpu.memory_space<vmem>>, vector<1x2x2x64xbf16>
    %39 = vector.shape_cast %38 : vector<1x2x2x64xbf16> to vector<2x2x64xbf16>
    %40 = vector.shape_cast %39 : vector<2x2x64xbf16> to vector<4x64xbf16>
    %c4 = arith.constant 4 : index
    %c0_29 = arith.constant 0 : index
    %c0_30 = arith.constant 0 : index
    %41 = vector.load %arg3[%c4, %c0_29, %c0_30] : memref<16x64x128xbf16, #tpu.memory_space<vmem>>, vector<1x64x128xbf16>
    %42 = vector.shape_cast %41 : vector<1x64x128xbf16> to vector<64x128xbf16>
    %cst_31 = arith.constant dense<0.000000e+00> : vector<4x128xf32>
    %43 = tpu.matmul %40, %42, %cst_31 {dimension_numbers = #tpu.dot_dimension_numbers<[1], [0], [0], [1], [0, 0, 1, 1], [], []>} : vector<4x64xbf16>, vector<64x128xbf16>, vector<4x128xf32> -> vector<4x128xf32>
    %44 = arith.addf %35, %43 : vector<4x128xf32>
    %c1_i32_32 = arith.constant 1 : i32
    %45 = arith.addi %0, %c1_i32_32 : i32
    %c0_33 = arith.constant 0 : index
    %46 = arith.index_cast %45 : i32 to index
    %c1_34 = arith.constant 1 : index
    %c0_35 = arith.constant 0 : index
    %47 = vector.load %arg2[%c0_33, %46, %c1_34, %c0_35] : memref<1x5x5x64xbf16, #tpu.memory_space<vmem>>, vector<1x2x2x64xbf16>
    %48 = vector.shape_cast %47 : vector<1x2x2x64xbf16> to vector<2x2x64xbf16>
    %49 = vector.shape_cast %48 : vector<2x2x64xbf16> to vector<4x64xbf16>
    %c5 = arith.constant 5 : index
    %c0_36 = arith.constant 0 : index
    %c0_37 = arith.constant 0 : index
    %50 = vector.load %arg3[%c5, %c0_36, %c0_37] : memref<16x64x128xbf16, #tpu.memory_space<vmem>>, vector<1x64x128xbf16>
    %51 = vector.shape_cast %50 : vector<1x64x128xbf16> to vector<64x128xbf16>
    %cst_38 = arith.constant dense<0.000000e+00> : vector<4x128xf32>
    %52 = tpu.matmul %49, %51, %cst_38 {dimension_numbers = #tpu.dot_dimension_numbers<[1], [0], [0], [1], [0, 0, 1, 1], [], []>} : vector<4x64xbf16>, vector<64x128xbf16>, vector<4x128xf32> -> vector<4x128xf32>
    %53 = arith.addf %44, %52 : vector<4x128xf32>
    %c1_i32_39 = arith.constant 1 : i32
    %54 = arith.addi %0, %c1_i32_39 : i32
    %c0_40 = arith.constant 0 : index
    %55 = arith.index_cast %54 : i32 to index
    %c2_41 = arith.constant 2 : index
    %c0_42 = arith.constant 0 : index
    %56 = vector.load %arg2[%c0_40, %55, %c2_41, %c0_42] : memref<1x5x5x64xbf16, #tpu.memory_space<vmem>>, vector<1x2x2x64xbf16>
    %57 = vector.shape_cast %56 : vector<1x2x2x64xbf16> to vector<2x2x64xbf16>
    %58 = vector.shape_cast %57 : vector<2x2x64xbf16> to vector<4x64xbf16>
    %c6 = arith.constant 6 : index
    %c0_43 = arith.constant 0 : index
    %c0_44 = arith.constant 0 : index
    %59 = vector.load %arg3[%c6, %c0_43, %c0_44] : memref<16x64x128xbf16, #tpu.memory_space<vmem>>, vector<1x64x128xbf16>
    %60 = vector.shape_cast %59 : vector<1x64x128xbf16> to vector<64x128xbf16>
    %cst_45 = arith.constant dense<0.000000e+00> : vector<4x128xf32>
    %61 = tpu.matmul %58, %60, %cst_45 {dimension_numbers = #tpu.dot_dimension_numbers<[1], [0], [0], [1], [0, 0, 1, 1], [], []>} : vector<4x64xbf16>, vector<64x128xbf16>, vector<4x128xf32> -> vector<4x128xf32>
    %62 = arith.addf %53, %61 : vector<4x128xf32>
    %c1_i32_46 = arith.constant 1 : i32
    %63 = arith.addi %0, %c1_i32_46 : i32
    %c0_47 = arith.constant 0 : index
    %64 = arith.index_cast %63 : i32 to index
    %c3_48 = arith.constant 3 : index
    %c0_49 = arith.constant 0 : index
    %65 = vector.load %arg2[%c0_47, %64, %c3_48, %c0_49] : memref<1x5x5x64xbf16, #tpu.memory_space<vmem>>, vector<1x2x2x64xbf16>
    %66 = vector.shape_cast %65 : vector<1x2x2x64xbf16> to vector<2x2x64xbf16>
    %67 = vector.shape_cast %66 : vector<2x2x64xbf16> to vector<4x64xbf16>
    %c7 = arith.constant 7 : index
    %c0_50 = arith.constant 0 : index
    %c0_51 = arith.constant 0 : index
    %68 = vector.load %arg3[%c7, %c0_50, %c0_51] : memref<16x64x128xbf16, #tpu.memory_space<vmem>>, vector<1x64x128xbf16>
    %69 = vector.shape_cast %68 : vector<1x64x128xbf16> to vector<64x128xbf16>
    %cst_52 = arith.constant dense<0.000000e+00> : vector<4x128xf32>
    %70 = tpu.matmul %67, %69, %cst_52 {dimension_numbers = #tpu.dot_dimension_numbers<[1], [0], [0], [1], [0, 0, 1, 1], [], []>} : vector<4x64xbf16>, vector<64x128xbf16>, vector<4x128xf32> -> vector<4x128xf32>
    %71 = arith.addf %62, %70 : vector<4x128xf32>
    %c2_i32_53 = arith.constant 2 : i32
    %72 = arith.addi %0, %c2_i32_53 : i32
    %c0_54 = arith.constant 0 : index
    %73 = arith.index_cast %72 : i32 to index
    %c0_55 = arith.constant 0 : index
    %c0_56 = arith.constant 0 : index
    %74 = vector.load %arg2[%c0_54, %73, %c0_55, %c0_56] : memref<1x5x5x64xbf16, #tpu.memory_space<vmem>>, vector<1x2x2x64xbf16>
    %75 = vector.shape_cast %74 : vector<1x2x2x64xbf16> to vector<2x2x64xbf16>
    %76 = vector.shape_cast %75 : vector<2x2x64xbf16> to vector<4x64xbf16>
    %c8 = arith.constant 8 : index
    %c0_57 = arith.constant 0 : index
    %c0_58 = arith.constant 0 : index
    %77 = vector.load %arg3[%c8, %c0_57, %c0_58] : memref<16x64x128xbf16, #tpu.memory_space<vmem>>, vector<1x64x128xbf16>
    %78 = vector.shape_cast %77 : vector<1x64x128xbf16> to vector<64x128xbf16>
    %cst_59 = arith.constant dense<0.000000e+00> : vector<4x128xf32>
    %79 = tpu.matmul %76, %78, %cst_59 {dimension_numbers = #tpu.dot_dimension_numbers<[1], [0], [0], [1], [0, 0, 1, 1], [], []>} : vector<4x64xbf16>, vector<64x128xbf16>, vector<4x128xf32> -> vector<4x128xf32>
    %80 = arith.addf %71, %79 : vector<4x128xf32>
    %c2_i32_60 = arith.constant 2 : i32
    %81 = arith.addi %0, %c2_i32_60 : i32
    %c0_61 = arith.constant 0 : index
    %82 = arith.index_cast %81 : i32 to index
    %c1_62 = arith.constant 1 : index
    %c0_63 = arith.constant 0 : index
    %83 = vector.load %arg2[%c0_61, %82, %c1_62, %c0_63] : memref<1x5x5x64xbf16, #tpu.memory_space<vmem>>, vector<1x2x2x64xbf16>
    %84 = vector.shape_cast %83 : vector<1x2x2x64xbf16> to vector<2x2x64xbf16>
    %85 = vector.shape_cast %84 : vector<2x2x64xbf16> to vector<4x64xbf16>
    %c9 = arith.constant 9 : index
    %c0_64 = arith.constant 0 : index
    %c0_65 = arith.constant 0 : index
    %86 = vector.load %arg3[%c9, %c0_64, %c0_65] : memref<16x64x128xbf16, #tpu.memory_space<vmem>>, vector<1x64x128xbf16>
    %87 = vector.shape_cast %86 : vector<1x64x128xbf16> to vector<64x128xbf16>
    %cst_66 = arith.constant dense<0.000000e+00> : vector<4x128xf32>
    %88 = tpu.matmul %85, %87, %cst_66 {dimension_numbers = #tpu.dot_dimension_numbers<[1], [0], [0], [1], [0, 0, 1, 1], [], []>} : vector<4x64xbf16>, vector<64x128xbf16>, vector<4x128xf32> -> vector<4x128xf32>
    %89 = arith.addf %80, %88 : vector<4x128xf32>
    %c2_i32_67 = arith.constant 2 : i32
    %90 = arith.addi %0, %c2_i32_67 : i32
    %c0_68 = arith.constant 0 : index
    %91 = arith.index_cast %90 : i32 to index
    %c2_69 = arith.constant 2 : index
    %c0_70 = arith.constant 0 : index
    %92 = vector.load %arg2[%c0_68, %91, %c2_69, %c0_70] : memref<1x5x5x64xbf16, #tpu.memory_space<vmem>>, vector<1x2x2x64xbf16>
    %93 = vector.shape_cast %92 : vector<1x2x2x64xbf16> to vector<2x2x64xbf16>
    %94 = vector.shape_cast %93 : vector<2x2x64xbf16> to vector<4x64xbf16>
    %c10 = arith.constant 10 : index
    %c0_71 = arith.constant 0 : index
    %c0_72 = arith.constant 0 : index
    %95 = vector.load %arg3[%c10, %c0_71, %c0_72] : memref<16x64x128xbf16, #tpu.memory_space<vmem>>, vector<1x64x128xbf16>
    %96 = vector.shape_cast %95 : vector<1x64x128xbf16> to vector<64x128xbf16>
    %cst_73 = arith.constant dense<0.000000e+00> : vector<4x128xf32>
    %97 = tpu.matmul %94, %96, %cst_73 {dimension_numbers = #tpu.dot_dimension_numbers<[1], [0], [0], [1], [0, 0, 1, 1], [], []>} : vector<4x64xbf16>, vector<64x128xbf16>, vector<4x128xf32> -> vector<4x128xf32>
    %98 = arith.addf %89, %97 : vector<4x128xf32>
    %c2_i32_74 = arith.constant 2 : i32
    %99 = arith.addi %0, %c2_i32_74 : i32
    %c0_75 = arith.constant 0 : index
    %100 = arith.index_cast %99 : i32 to index
    %c3_76 = arith.constant 3 : index
    %c0_77 = arith.constant 0 : index
    %101 = vector.load %arg2[%c0_75, %100, %c3_76, %c0_77] : memref<1x5x5x64xbf16, #tpu.memory_space<vmem>>, vector<1x2x2x64xbf16>
    %102 = vector.shape_cast %101 : vector<1x2x2x64xbf16> to vector<2x2x64xbf16>
    %103 = vector.shape_cast %102 : vector<2x2x64xbf16> to vector<4x64xbf16>
    %c11 = arith.constant 11 : index
    %c0_78 = arith.constant 0 : index
    %c0_79 = arith.constant 0 : index
    %104 = vector.load %arg3[%c11, %c0_78, %c0_79] : memref<16x64x128xbf16, #tpu.memory_space<vmem>>, vector<1x64x128xbf16>
    %105 = vector.shape_cast %104 : vector<1x64x128xbf16> to vector<64x128xbf16>
    %cst_80 = arith.constant dense<0.000000e+00> : vector<4x128xf32>
    %106 = tpu.matmul %103, %105, %cst_80 {dimension_numbers = #tpu.dot_dimension_numbers<[1], [0], [0], [1], [0, 0, 1, 1], [], []>} : vector<4x64xbf16>, vector<64x128xbf16>, vector<4x128xf32> -> vector<4x128xf32>
    %107 = arith.addf %98, %106 : vector<4x128xf32>
    %c3_i32 = arith.constant 3 : i32
    %108 = arith.addi %0, %c3_i32 : i32
    %c0_81 = arith.constant 0 : index
    %109 = arith.index_cast %108 : i32 to index
    %c0_82 = arith.constant 0 : index
    %c0_83 = arith.constant 0 : index
    %110 = vector.load %arg2[%c0_81, %109, %c0_82, %c0_83] : memref<1x5x5x64xbf16, #tpu.memory_space<vmem>>, vector<1x2x2x64xbf16>
    %111 = vector.shape_cast %110 : vector<1x2x2x64xbf16> to vector<2x2x64xbf16>
    %112 = vector.shape_cast %111 : vector<2x2x64xbf16> to vector<4x64xbf16>
    %c12 = arith.constant 12 : index
    %c0_84 = arith.constant 0 : index
    %c0_85 = arith.constant 0 : index
    %113 = vector.load %arg3[%c12, %c0_84, %c0_85] : memref<16x64x128xbf16, #tpu.memory_space<vmem>>, vector<1x64x128xbf16>
    %114 = vector.shape_cast %113 : vector<1x64x128xbf16> to vector<64x128xbf16>
    %cst_86 = arith.constant dense<0.000000e+00> : vector<4x128xf32>
    %115 = tpu.matmul %112, %114, %cst_86 {dimension_numbers = #tpu.dot_dimension_numbers<[1], [0], [0], [1], [0, 0, 1, 1], [], []>} : vector<4x64xbf16>, vector<64x128xbf16>, vector<4x128xf32> -> vector<4x128xf32>
    %116 = arith.addf %107, %115 : vector<4x128xf32>
    %c3_i32_87 = arith.constant 3 : i32
    %117 = arith.addi %0, %c3_i32_87 : i32
    %c0_88 = arith.constant 0 : index
    %118 = arith.index_cast %117 : i32 to index
    %c1_89 = arith.constant 1 : index
    %c0_90 = arith.constant 0 : index
    %119 = vector.load %arg2[%c0_88, %118, %c1_89, %c0_90] : memref<1x5x5x64xbf16, #tpu.memory_space<vmem>>, vector<1x2x2x64xbf16>
    %120 = vector.shape_cast %119 : vector<1x2x2x64xbf16> to vector<2x2x64xbf16>
    %121 = vector.shape_cast %120 : vector<2x2x64xbf16> to vector<4x64xbf16>
    %c13 = arith.constant 13 : index
    %c0_91 = arith.constant 0 : index
    %c0_92 = arith.constant 0 : index
    %122 = vector.load %arg3[%c13, %c0_91, %c0_92] : memref<16x64x128xbf16, #tpu.memory_space<vmem>>, vector<1x64x128xbf16>
    %123 = vector.shape_cast %122 : vector<1x64x128xbf16> to vector<64x128xbf16>
    %cst_93 = arith.constant dense<0.000000e+00> : vector<4x128xf32>
    %124 = tpu.matmul %121, %123, %cst_93 {dimension_numbers = #tpu.dot_dimension_numbers<[1], [0], [0], [1], [0, 0, 1, 1], [], []>} : vector<4x64xbf16>, vector<64x128xbf16>, vector<4x128xf32> -> vector<4x128xf32>
    %125 = arith.addf %116, %124 : vector<4x128xf32>
    %c3_i32_94 = arith.constant 3 : i32
    %126 = arith.addi %0, %c3_i32_94 : i32
    %c0_95 = arith.constant 0 : index
    %127 = arith.index_cast %126 : i32 to index
    %c2_96 = arith.constant 2 : index
    %c0_97 = arith.constant 0 : index
    %128 = vector.load %arg2[%c0_95, %127, %c2_96, %c0_97] : memref<1x5x5x64xbf16, #tpu.memory_space<vmem>>, vector<1x2x2x64xbf16>
    %129 = vector.shape_cast %128 : vector<1x2x2x64xbf16> to vector<2x2x64xbf16>
    %130 = vector.shape_cast %129 : vector<2x2x64xbf16> to vector<4x64xbf16>
    %c14 = arith.constant 14 : index
    %c0_98 = arith.constant 0 : index
    %c0_99 = arith.constant 0 : index
    %131 = vector.load %arg3[%c14, %c0_98, %c0_99] : memref<16x64x128xbf16, #tpu.memory_space<vmem>>, vector<1x64x128xbf16>
    %132 = vector.shape_cast %131 : vector<1x64x128xbf16> to vector<64x128xbf16>
    %cst_100 = arith.constant dense<0.000000e+00> : vector<4x128xf32>
    %133 = tpu.matmul %130, %132, %cst_100 {dimension_numbers = #tpu.dot_dimension_numbers<[1], [0], [0], [1], [0, 0, 1, 1], [], []>} : vector<4x64xbf16>, vector<64x128xbf16>, vector<4x128xf32> -> vector<4x128xf32>
    %134 = arith.addf %125, %133 : vector<4x128xf32>
    %c3_i32_101 = arith.constant 3 : i32
    %135 = arith.addi %0, %c3_i32_101 : i32
    %c0_102 = arith.constant 0 : index
    %136 = arith.index_cast %135 : i32 to index
    %c3_103 = arith.constant 3 : index
    %c0_104 = arith.constant 0 : index
    %137 = vector.load %arg2[%c0_102, %136, %c3_103, %c0_104] : memref<1x5x5x64xbf16, #tpu.memory_space<vmem>>, vector<1x2x2x64xbf16>
    %138 = vector.shape_cast %137 : vector<1x2x2x64xbf16> to vector<2x2x64xbf16>
    %139 = vector.shape_cast %138 : vector<2x2x64xbf16> to vector<4x64xbf16>
    %c15 = arith.constant 15 : index
    %c0_105 = arith.constant 0 : index
    %c0_106 = arith.constant 0 : index
    %140 = vector.load %arg3[%c15, %c0_105, %c0_106] : memref<16x64x128xbf16, #tpu.memory_space<vmem>>, vector<1x64x128xbf16>
    %141 = vector.shape_cast %140 : vector<1x64x128xbf16> to vector<64x128xbf16>
    %cst_107 = arith.constant dense<0.000000e+00> : vector<4x128xf32>
    %142 = tpu.matmul %139, %141, %cst_107 {dimension_numbers = #tpu.dot_dimension_numbers<[1], [0], [0], [1], [0, 0, 1, 1], [], []>} : vector<4x64xbf16>, vector<64x128xbf16>, vector<4x128xf32> -> vector<4x128xf32>
    %143 = arith.addf %134, %142 : vector<4x128xf32>
    %c0_108 = arith.constant 0 : index
    %c0_109 = arith.constant 0 : index
    %144 = vector.load %arg4[%c0_108, %c0_109] : memref<1x128xf32, #tpu.memory_space<vmem>>, vector<1x128xf32>
    %145 = vector.broadcast %144 : vector<1x128xf32> to vector<4x128xf32>
    %146 = arith.addf %143, %145 : vector<4x128xf32>
    %147 = vector.extract_strided_slice %146 {offsets = [0, 0], sizes = [4, 1], strides = [1, 1]} : vector<4x128xf32> to vector<4x1xf32>
    %148 = vector.shape_cast %147 : vector<4x1xf32> to vector<2x2x1xf32>
    %c0_110 = arith.constant 0 : index
    %c0_111 = arith.constant 0 : index
    %c0_112 = arith.constant 0 : index
    %c0_113 = arith.constant 0 : index
    %149 = vector.load %arg5[%c0_110, %c0_111, %c0_112, %c0_113] : memref<1x2x2x1xf32, #tpu.memory_space<vmem>>, vector<1x2x2x1xf32>
    %150 = vector.shape_cast %149 : vector<1x2x2x1xf32> to vector<2x2x1xf32>
    %151 = vector.shape_cast %148 : vector<2x2x1xf32> to vector<1x2x2x1xf32>
    tpu.vector_store %arg5[%c0_110, %c0_111, %c0_112, %c0_113], %151 {strides = array<i32>} : memref<1x2x2x1xf32, #tpu.memory_space<vmem>>, vector<1x2x2x1xf32>,
    return
  }
  func.func @transform_0(%arg0: i32, %arg1: i32) -> (i32, i32, i32, i32) {
    %c0_i32 = arith.constant 0 : i32
    %c0_i32_0 = arith.constant 0 : i32
    %c0_i32_1 = arith.constant 0 : i32
    %c0_i32_2 = arith.constant 0 : i32
    return %arg0, %c0_i32, %c0_i32_0, %c0_i32_1 : i32, i32, i32, i32
  }
  func.func @transform_1(%arg0: i32, %arg1: i32) -> (i32, i32, i32) {
    %c0_i32 = arith.constant 0 : i32
    %c0_i32_0 = arith.constant 0 : i32
    %c0_i32_1 = arith.constant 0 : i32
    %c0_i32_2 = arith.constant 0 : i32
    return %c0_i32, %c0_i32_0, %c0_i32_1 : i32, i32, i32
  }
  func.func @transform_2(%arg0: i32, %arg1: i32) -> (i32, i32) {
    %c0_i32 = arith.constant 0 : i32
    %c0_i32_0 = arith.constant 0 : i32
    %c0_i32_1 = arith.constant 0 : i32
    return %c0_i32, %c0_i32_0 : i32, i32
  }
  func.func @transform_3(%arg0: i32, %arg1: i32) -> (i32, i32, i32, i32) {
    %c0_i32 = arith.constant 0 : i32
    %c0_i32_0 = arith.constant 0 : i32
    %c0_i32_1 = arith.constant 0 : i32
    return %arg0, %arg1, %c0_i32, %c0_i32_0 : i32, i32, i32, i32
  }
}

</mosaic_0001>

<llo_original>
// kernel: nlayer_discriminator_forward.5
$region0: #{nlayer_discriminator_forward.5}
  #allocation0 [shape = 'u32[]', space=smem, size = 0x4, offset = 0x4, fixed_abs, tag = 'smem constant byte address 0x4 - core index']
  #allocation1 [shape = 'u32[144,128]{1,0:T(1,128)}', space=vmem, size = 0x12000, scoped, tag = 'internal scratch']
  %s0 = inlined_call_operand.vmem [shape: bf16[2,17,17,12], index: 0, kind: input, shape index: {}]
  %s1 = inlined_call_operand.vmem [shape: bf16[4,12,128], index: 1, kind: input, shape index: {}]
  %s2 = inlined_call_operand.vmem [shape: f32[1,128], index: 2, kind: input, shape index: {}]
  %s3 = inlined_call_operand.vmem [shape: bf16[2,16,16,8], index: 3, kind: output, shape index: {}]
  %s4 = sld [smem:[#allocation0]]
  $region45: #{nlayer_discriminator_forward.5} parent=0
    _
  %s6 = ssub.s32 1, %s4
  %s7 = scalar_select 0, %s6, %s4
  loop: start=0, step=1, limit=4
  $region2: #{nlayer_discriminator_forward.5} parent=0 // loop_pre_header
    _
  $region3: #{nlayer_discriminator_forward.5} parent=0 // loop_header
    %s9 = sphi 0, %s13
    %p10 = scmp.ge.s32.totalorder %s9, 4
    %s16 = sphi 0, %s28
    %s17 = sphi 0, %s24
    %s18 = sphi 0, %s16
    %s19 = sphi 0, %s17
    %s20 = sphi 0, %s18
    %s21 = sphi 0, %s19
    %s31 = sphi 0, %s33
    %s34 = sphi 0, %s31
    %s35 = sphi 0, %s34
    %s51 = sphi 0, %s35
    %s55 = sphi 0, %s55
    %s57 = sphi 0, %s55
    %s58 = sphi 0, %s57
    %s72 = sphi 0, %s58
    %s76 = sphi 0, %s76
    %s78 = sphi 0, %s76
    %s79 = sphi 0, %s78
    %s93 = sphi 0, %s79
    %s101 = sphi 0, %s103
    %s104 = sphi 0, %s101
    %s105 = sphi 0, %s104
    %s121 = sphi 0, %s105
  $region4: #{nlayer_discriminator_forward.5} parent=0 // loop_header_branch
    %12 = sbr.rel (%p10) target = $region8
  $region5: #{nlayer_discriminator_forward.5} parent=0 // loop_body
    %s14 = ssub.s32 %s9, 1
    %s15 = ssub.s32 %s9, 2
    %s22 = sadd.s32 1, %s17
    %p23 = scmp.ge.s32.totalorder %s22, 1
    %s24 = scalar_select %p23, 0, %s22
    %s25 = sadd.s32 1, %s16
    %s26 = scalar_select %p23, %s25, %s16
    %p27 = scmp.ge.s32.totalorder %s26, 2
    %s28 = scalar_select %p27, 0, %s26
    %s29 = ssub.s32 %s16, %s28
    %p30 = scmp.eq.s32.totalorder %s29, 0
    %s32 = sadd.s32 %s31, 1
    %s33 = scalar_select %p30, %s31, %s32
    %p36 = pneg %p30
    %p37 = scmp.eq.s32.totalorder %s9, 1
    %p38 = por %p36, %p37
    %p39 = scmp.ne.s32.totalorder %s31, %s34
    %p40 = scmp.eq.s32.totalorder %s9, 0
    %p41 = por %p39, %p40
    %p42 = scmp.ne.s32.totalorder %s31, %s34
    %p43 = scmp.eq.s32.totalorder %s14, 1
    %p44 = por %p42, %p43
    %p45 = scmp.ne.s32.totalorder %s34, %s35
    %p46 = scmp.eq.s32.totalorder %s14, 0
    %p47 = por %p45, %p46
    %p48 = scmp.ne.s32.totalorder %s34, %s35
    %p49 = scmp.eq.s32.totalorder %s15, 1
    %p50 = por %p48, %p49
    %p52 = scmp.ne.s32.totalorder %s35, %s51
    %p53 = scmp.eq.s32.totalorder %s15, 0
    %p54 = por %p52, %p53
    %s56 = sadd.s32 %s55, 1
    %p59 = scmp.eq.s32.totalorder %s9, 1
    %p60 = scmp.ne.s32.totalorder %s55, %s57
    %p61 = scmp.eq.s32.totalorder %s9, 0
    %p62 = por %p60, %p61
    %p63 = scmp.ne.s32.totalorder %s55, %s57
    %p64 = scmp.eq.s32.totalorder %s14, 1
    %p65 = por %p63, %p64
    %p66 = scmp.ne.s32.totalorder %s57, %s58
    %p67 = scmp.eq.s32.totalorder %s14, 0
    %p68 = por %p66, %p67
    %p69 = scmp.ne.s32.totalorder %s57, %s58
    %p70 = scmp.eq.s32.totalorder %s15, 1
    %p71 = por %p69, %p70
    %p73 = scmp.ne.s32.totalorder %s58, %s72
    %p74 = scmp.eq.s32.totalorder %s15, 0
    %p75 = por %p73, %p74
    %s77 = sadd.s32 %s76, 1
    %p80 = scmp.eq.s32.totalorder %s9, 1
    %p81 = scmp.ne.s32.totalorder %s76, %s78
    %p82 = scmp.eq.s32.totalorder %s9, 0
    %p83 = por %p81, %p82
    %p84 = scmp.ne.s32.totalorder %s76, %s78
    %p85 = scmp.eq.s32.totalorder %s14, 1
    %p86 = por %p84, %p85
    %p87 = scmp.ne.s32.totalorder %s78, %s79
    %p88 = scmp.eq.s32.totalorder %s14, 0
    %p89 = por %p87, %p88
    %p90 = scmp.ne.s32.totalorder %s78, %s79
    %p91 = scmp.eq.s32.totalorder %s15, 1
    %p92 = por %p90, %p91
    %p94 = scmp.ne.s32.totalorder %s79, %s93
    %p95 = scmp.eq.s32.totalorder %s15, 0
    %p96 = por %p94, %p95
    %s97 = ssub.s32 %s16, %s28
    %s98 = ssub.s32 %s17, %s24
    %s99 = sor.u32 %s97, %s98
    %p100 = scmp.eq.s32.totalorder %s99, 0
    %s102 = sadd.s32 %s101, 1
    %s103 = scalar_select %p100, %s101, %s102
    %p106 = pneg %p100
    %p107 = scmp.eq.s32.totalorder %s9, 1
    %p108 = por %p106, %p107
    %p109 = scmp.ne.s32.totalorder %s101, %s104
    %p110 = scmp.eq.s32.totalorder %s9, 0
    %p111 = por %p109, %p110
    %p112 = scmp.ne.s32.totalorder %s101, %s104
    %p113 = scmp.eq.s32.totalorder %s14, 1
    %p114 = por %p112, %p113
    %p115 = scmp.ne.s32.totalorder %s104, %s105
    %p116 = scmp.eq.s32.totalorder %s14, 0
    %p117 = por %p115, %p116
    %p118 = scmp.ne.s32.totalorder %s104, %s105
    %p119 = scmp.eq.s32.totalorder %s15, 1
    %p120 = por %p118, %p119
    %p122 = scmp.ne.s32.totalorder %s105, %s121
    %p123 = scmp.eq.s32.totalorder %s15, 0
    %p124 = por %p122, %p123
    %p125 = scmp.le.s32.totalorder 1, %s9
    %p126 = scmp.lt.s32.totalorder %s9, 3
    %p127 = pnand %p125, %p126
    %p128 = pneg %p127
    // Predicated region
    $region9: #{nlayer_discriminator_forward.5} parent=5 // pred_check
      _
    $region10: #{nlayer_discriminator_forward.5} parent=5 // pred_check_branch
      %130 = sbr.rel (%p127) target = $region12
    $region11: #{nlayer_discriminator_forward.5} parent=5 // pred_region
      %s131 = ssub.s32 %s9, 1
      // Predicated region
      $region13: #{nlayer_discriminator_forward.5} parent=11 // pred_check
        %p132 = pneg %p68
      $region14: #{nlayer_discriminator_forward.5} parent=11 // pred_check_branch
        %134 = sbr.rel (%p132) target = $region16
      $region15: #{nlayer_discriminator_forward.5} parent=11 // pred_region
        _
      $region16: #{nlayer_discriminator_forward.5} parent=11 // pred_fallthru
        _
      // Predicated region
      $region17: #{nlayer_discriminator_forward.5} parent=11 // pred_check
        %p135 = pneg %p89
      $region18: #{nlayer_discriminator_forward.5} parent=11 // pred_check_branch
        %137 = sbr.rel (%p135) target = $region20
      $region19: #{nlayer_discriminator_forward.5} parent=11 // pred_region
        _
      $region20: #{nlayer_discriminator_forward.5} parent=11 // pred_fallthru
        _
    $region12: #{nlayer_discriminator_forward.5} parent=5 // pred_fallthru
      _
    %p138 = scmp.lt.s32.totalorder %s9, 2
    // Predicated region
    $region21: #{nlayer_discriminator_forward.5} parent=5 // pred_check
      %p139 = pneg %p138
    $region22: #{nlayer_discriminator_forward.5} parent=5 // pred_check_branch
      %141 = sbr.rel (%p139) target = $region24
    $region23: #{nlayer_discriminator_forward.5} parent=5 // pred_region
      // Predicated region
      $region25: #{nlayer_discriminator_forward.5} parent=23 // pred_check
        %p142 = pneg %p41
      $region26: #{nlayer_discriminator_forward.5} parent=23 // pred_check_branch
        %144 = sbr.rel (%p142) target = $region28
      $region27: #{nlayer_discriminator_forward.5} parent=23 // pred_region
        %p145 = scmp.lt.s32.totalorder %s16, 1
        %s146 = scalar_select %p145, %s16, 1
        %s147 = smul.addr %s146, 51
        %s148 = smul.addr %s147, 4
        %s149 = scalar_lea.vmem %s0, %s148
      $region28: #{nlayer_discriminator_forward.5} parent=23 // pred_fallthru
        _
    $region24: #{nlayer_discriminator_forward.5} parent=5 // pred_fallthru
      _
    %p150 = scmp.le.s32.totalorder 1, %s9
    %p151 = scmp.lt.s32.totalorder %s9, 3
    %p152 = pnand %p150, %p151
    %p153 = pneg %p152
    // Predicated region
    $region29: #{nlayer_discriminator_forward.5} parent=5 // pred_check
      _
    $region30: #{nlayer_discriminator_forward.5} parent=5 // pred_check_branch
      %155 = sbr.rel (%p152) target = $region32
    $region31: #{nlayer_discriminator_forward.5} parent=5 // pred_region
      %s156 = ssub.s32 %s9, 1
      %p157 = scmp.lt.s32.totalorder %s18, 1
      %s158 = scalar_select %p157, %s18, 1
      %s159 = smul.addr %s158, 51
      %s160 = smul.addr %s159, 4
      %s161 = scalar_lea.vmem %s0, %s160
      %p162 = pneg %p47
      %p163 = pneg %p44
      %p164 = pneg %p68
      %p165 = pneg %p65
      %p166 = pneg %p89
      %p167 = pneg %p86
      %p168 = pneg %p117
      %p169 = pneg %p114
      %s170 = smul.u32 16, %s19
      %p171 = scmp.lt.s32.totalorder %s18, 1
      %s172 = scalar_select %p171, %s18, 1
      %p173 = scmp.lt.s32.totalorder %s170, 15
      %s174 = scalar_select %p173, %s170, 15
      %s175 = smul.addr %s174, 2
      %s176 = smul.addr %s172, 32
      %s177 = sadd.s32 %s175, %s176
      %s178 = smul.addr %s177, 4
      %s179 = scalar_lea.vmem %s3, %s178
      %p180 = scmp.lt.s32.totalorder %s18, 1
      %s181 = scalar_select %p180, %s18, 1
      %s182 = smul.addr %s181, 51
      %s183 = smul.addr %s182, 4
      %s184 = scalar_lea.vmem %s0, %s183
      %s185 = smul.u32 16, %s19
      %p186 = scmp.lt.s32.totalorder %s18, 1
      %s187 = scalar_select %p186, %s18, 1
      %p188 = scmp.lt.s32.totalorder %s185, 15
      %s189 = scalar_select %p188, %s185, 15
      %s190 = smul.addr %s189, 2
      %s191 = smul.addr %s187, 32
      %s192 = sadd.s32 %s190, %s191
      %s193 = smul.addr %s192, 4
      %s194 = scalar_lea.vmem %s3, %s193
      %s195 = smul.u32 16, %s19
      %s197 = smul.u32 %s19, 16
      %s198 = smul.u32 %s197, 3
      %s199 = smul.addr %s198, 4
      %s200 = scalar_lea.vmem %s184, %s199
      %v201 = vld [vmem:[%s200] sm:$0xf]
      %v202 = vld [vmem:[%s200 + $0x4] sm:$0xf]
      %v203 = vld [vmem:[%s200 + $0xc] sm:$0xf]
      %v204 = vld [vmem:[%s200 + $0x10] sm:$0xf]
      %v205 = vld [vmem:[%s200 + $0x18] sm:$0xf]
      %v206 = vld [vmem:[%s200 + $0x1c] sm:$0xf]
      %v207 = vld [vmem:[%s200 + $0x24] sm:$0xf]
      %v208 = vld [vmem:[%s200 + $0x28] sm:$0xf]
      %v209 = vld [vmem:[%s200 + $0x30] sm:$0xf]
      %v210 = vld [vmem:[%s200 + $0x34] sm:$0xf]
      %v211 = vld [vmem:[%s200 + $0x3c] sm:$0xf]
      %v212 = vld [vmem:[%s200 + $0x40] sm:$0xf]
      %v213 = vld [vmem:[%s200 + $0x48] sm:$0xf]
      %v214 = vld [vmem:[%s200 + $0x4c] sm:$0xf]
      %v215 = vld [vmem:[%s200 + $0x54] sm:$0xf]
      %v216 = vld [vmem:[%s200 + $0x58] sm:$0xf]
      %v217 = vld [vmem:[%s200 + $0x60] sm:$0xf]
      %v218 = vld [vmem:[%s200 + $0x64] sm:$0xf]
      %v219 = vld [vmem:[%s200 + $0x6c] sm:$0xf]
      %v220 = vld [vmem:[%s200 + $0x70] sm:$0xf]
      %v221 = vld [vmem:[%s200 + $0x78] sm:$0xf]
      %v222 = vld [vmem:[%s200 + $0x7c] sm:$0xf]
      %v223 = vld [vmem:[%s200 + $0x84] sm:$0xf]
      %v224 = vld [vmem:[%s200 + $0x88] sm:$0xf]
      %v225 = vld [vmem:[%s200 + $0x90] sm:$0xf]
      %v226 = vld [vmem:[%s200 + $0x94] sm:$0xf]
      %v227 = vld [vmem:[%s200 + $0x9c] sm:$0xf]
      %v228 = vld [vmem:[%s200 + $0xa0] sm:$0xf]
      %v229 = vld [vmem:[%s200 + $0xa8] sm:$0xf]
      %v230 = vld [vmem:[%s200 + $0xac] sm:$0xf]
      %v231 = vld [vmem:[%s200 + $0xb4] sm:$0xf]
      %v232 = vld [vmem:[%s200 + $0xb8] sm:$0xf]
      %v233 = vld [vmem:[%s1] sm:$0xf]
      %v234 = vld [vmem:[%s1 + $0x4] sm:$0x3]
      %v235 = vld [vmem:[%s200 + $0x8] sm:$0x1]
      %v236 = vld [vmem:[%s200 + $0x14] sm:$0x1]
      %v237 = vld [vmem:[%s200 + $0x20] sm:$0x1]
      %v238 = vld [vmem:[%s200 + $0x2c] sm:$0x1]
      %v239 = vld [vmem:[%s200 + $0x38] sm:$0x1]
      %v240 = vld [vmem:[%s200 + $0x44] sm:$0x1]
      %v241 = vld [vmem:[%s200 + $0x50] sm:$0x1]
      %v242 = vld [vmem:[%s200 + $0x5c] sm:$0x1]
      %v243 = vld [vmem:[%s200 + $0x68] sm:$0x1]
      %v244 = vld [vmem:[%s200 + $0x74] sm:$0x1]
      %v245 = vld [vmem:[%s200 + $0x80] sm:$0x1]
      %v246 = vld [vmem:[%s200 + $0x8c] sm:$0x1]
      %v247 = vld [vmem:[%s200 + $0x98] sm:$0x1]
      %v248 = vld [vmem:[%s200 + $0xa4] sm:$0x1]
      %v249 = vld [vmem:[%s200 + $0xb0] sm:$0x1]
      %v250 = vld [vmem:[%s200 + $0xbc] sm:$0x1]
      %vm251 = vsmask.f32 3328
      %vm252 = vsmask.f32 7440
      %vm253 = vmor %vm251, %vm252
      %v255 = vshrl.u32 %v201, 16
      %v257 = vrot.slane %v255, 4
      %v258 = vshll.u32 %v201, 16
      %v260 = vrot.slane %v258, 5
      %v261 = vor.u32 %v257, %v260
      %v262 = vrot.slane %v261, 4
      %v264 = vshll.u32 %v202, 16
      %v266 = vrot.slane %v264, 5
      %v267 = vsel %vm253, %v262, %v266
      %v268 = vshrl.u32 %v202, 16
      %v270 = vrot.slane %v268, 4
      %v271 = vor.u32 %v270, %v266
      %v272 = vrot.slane %v271, 4
      %v274 = vshll.u32 %v235, 16
      %v276 = vrot.slane %v274, 5
      %v277 = vsel %vm253, %v272, %v276
      %v279 = vshrl.u32 %v203, 16
      %v281 = vrot.slane %v279, 4
      %v282 = vshll.u32 %v203, 16
      %v284 = vrot.slane %v282, 5
      %v285 = vor.u32 %v281, %v284
      %v286 = vrot.slane %v285, 4
      %v288 = vshll.u32 %v204, 16
      %v290 = vrot.slane %v288, 5
      %v291 = vsel %vm253, %v286, %v290
      %v292 = vshrl.u32 %v204, 16
      %v294 = vrot.slane %v292, 4
      %v295 = vor.u32 %v294, %v290
      %v296 = vrot.slane %v295, 4
      %v298 = vshll.u32 %v236, 16
      %v300 = vrot.slane %v298, 5
      %v301 = vsel %vm253, %v296, %v300
      %v303 = vshrl.u32 %v205, 16
      %v305 = vrot.slane %v303, 4
      %v306 = vshll.u32 %v205, 16
      %v308 = vrot.slane %v306, 5
      %v309 = vor.u32 %v305, %v308
      %v310 = vrot.slane %v309, 4
      %v312 = vshll.u32 %v206, 16
      %v314 = vrot.slane %v312, 5
      %v315 = vsel %vm253, %v310, %v314
      %v316 = vshrl.u32 %v206, 16
      %v318 = vrot.slane %v316, 4
      %v319 = vor.u32 %v318, %v314
      %v320 = vrot.slane %v319, 4
      %v322 = vshll.u32 %v237, 16
      %v324 = vrot.slane %v322, 5
      %v325 = vsel %vm253, %v320, %v324
      %v327 = vshrl.u32 %v207, 16
      %v329 = vrot.slane %v327, 4
      %v330 = vshll.u32 %v207, 16
      %v332 = vrot.slane %v330, 5
      %v333 = vor.u32 %v329, %v332
      %v334 = vrot.slane %v333, 4
      %v336 = vshll.u32 %v208, 16
      %v338 = vrot.slane %v336, 5
      %v339 = vsel %vm253, %v334, %v338
      %v340 = vshrl.u32 %v208, 16
      %v342 = vrot.slane %v340, 4
      %v343 = vor.u32 %v342, %v338
      %v344 = vrot.slane %v343, 4
      %v346 = vshll.u32 %v238, 16
      %v348 = vrot.slane %v346, 5
      %v349 = vsel %vm253, %v344, %v348
      %v351 = vshrl.u32 %v209, 16
      %v353 = vrot.slane %v351, 4
      %v354 = vshll.u32 %v209, 16
      %v356 = vrot.slane %v354, 5
      %v357 = vor.u32 %v353, %v356
      %v358 = vrot.slane %v357, 4
      %v360 = vshll.u32 %v210, 16
      %v362 = vrot.slane %v360, 5
      %v363 = vsel %vm253, %v358, %v362
      %v364 = vshrl.u32 %v210, 16
      %v366 = vrot.slane %v364, 4
      %v367 = vor.u32 %v366, %v362
      %v368 = vrot.slane %v367, 4
      %v370 = vshll.u32 %v239, 16
      %v372 = vrot.slane %v370, 5
      %v373 = vsel %vm253, %v368, %v372
      %v375 = vshrl.u32 %v211, 16
      %v377 = vrot.slane %v375, 4
      %v378 = vshll.u32 %v211, 16
      %v380 = vrot.slane %v378, 5
      %v381 = vor.u32 %v377, %v380
      %v382 = vrot.slane %v381, 4
      %v384 = vshll.u32 %v212, 16
      %v386 = vrot.slane %v384, 5
      %v387 = vsel %vm253, %v382, %v386
      %v388 = vshrl.u32 %v212, 16
      %v390 = vrot.slane %v388, 4
      %v391 = vor.u32 %v390, %v386
      %v392 = vrot.slane %v391, 4
      %v394 = vshll.u32 %v240, 16
      %v396 = vrot.slane %v394, 5
      %v397 = vsel %vm253, %v392, %v396
      %v399 = vshrl.u32 %v213, 16
      %v401 = vrot.slane %v399, 4
      %v402 = vshll.u32 %v213, 16
      %v404 = vrot.slane %v402, 5
      %v405 = vor.u32 %v401, %v404
      %v406 = vrot.slane %v405, 4
      %v408 = vshll.u32 %v214, 16
      %v410 = vrot.slane %v408, 5
      %v411 = vsel %vm253, %v406, %v410
      %v412 = vshrl.u32 %v214, 16
      %v414 = vrot.slane %v412, 4
      %v415 = vor.u32 %v414, %v410
      %v416 = vrot.slane %v415, 4
      %v418 = vshll.u32 %v241, 16
      %v420 = vrot.slane %v418, 5
      %v421 = vsel %vm253, %v416, %v420
      %v423 = vshrl.u32 %v215, 16
      %v425 = vrot.slane %v423, 4
      %v426 = vshll.u32 %v215, 16
      %v428 = vrot.slane %v426, 5
      %v429 = vor.u32 %v425, %v428
      %v430 = vrot.slane %v429, 4
      %v432 = vshll.u32 %v216, 16
      %v434 = vrot.slane %v432, 5
      %v435 = vsel %vm253, %v430, %v434
      %v436 = vshrl.u32 %v216, 16
      %v438 = vrot.slane %v436, 4
      %v439 = vor.u32 %v438, %v434
      %v440 = vrot.slane %v439, 4
      %v442 = vshll.u32 %v242, 16
      %v444 = vrot.slane %v442, 5
      %v445 = vsel %vm253, %v440, %v444
      %v447 = vshrl.u32 %v217, 16
      %v449 = vrot.slane %v447, 4
      %v450 = vshll.u32 %v217, 16
      %v452 = vrot.slane %v450, 5
      %v453 = vor.u32 %v449, %v452
      %v454 = vrot.slane %v453, 4
      %v456 = vshll.u32 %v218, 16
      %v458 = vrot.slane %v456, 5
      %v459 = vsel %vm253, %v454, %v458
      %v460 = vshrl.u32 %v218, 16
      %v462 = vrot.slane %v460, 4
      %v463 = vor.u32 %v462, %v458
      %v464 = vrot.slane %v463, 4
      %v466 = vshll.u32 %v243, 16
      %v468 = vrot.slane %v466, 5
      %v469 = vsel %vm253, %v464, %v468
      %v471 = vshrl.u32 %v219, 16
      %v473 = vrot.slane %v471, 4
      %v474 = vshll.u32 %v219, 16
      %v476 = vrot.slane %v474, 5
      %v477 = vor.u32 %v473, %v476
      %v478 = vrot.slane %v477, 4
      %v480 = vshll.u32 %v220, 16
      %v482 = vrot.slane %v480, 5
      %v483 = vsel %vm253, %v478, %v482
      %v484 = vshrl.u32 %v220, 16
      %v486 = vrot.slane %v484, 4
      %v487 = vor.u32 %v486, %v482
      %v488 = vrot.slane %v487, 4
      %v490 = vshll.u32 %v244, 16
      %v492 = vrot.slane %v490, 5
      %v493 = vsel %vm253, %v488, %v492
      %v495 = vshrl.u32 %v221, 16
      %v497 = vrot.slane %v495, 4
      %v498 = vshll.u32 %v221, 16
      %v500 = vrot.slane %v498, 5
      %v501 = vor.u32 %v497, %v500
      %v502 = vrot.slane %v501, 4
      %v504 = vshll.u32 %v222, 16
      %v506 = vrot.slane %v504, 5
      %v507 = vsel %vm253, %v502, %v506
      %v508 = vshrl.u32 %v222, 16
      %v510 = vrot.slane %v508, 4
      %v511 = vor.u32 %v510, %v506
      %v512 = vrot.slane %v511, 4
      %v514 = vshll.u32 %v245, 16
      %v516 = vrot.slane %v514, 5
      %v517 = vsel %vm253, %v512, %v516
      %v519 = vshrl.u32 %v223, 16
      %v521 = vrot.slane %v519, 4
      %v522 = vshll.u32 %v223, 16
      %v524 = vrot.slane %v522, 5
      %v525 = vor.u32 %v521, %v524
      %v526 = vrot.slane %v525, 4
      %v528 = vshll.u32 %v224, 16
      %v530 = vrot.slane %v528, 5
      %v531 = vsel %vm253, %v526, %v530
      %v532 = vshrl.u32 %v224, 16
      %v534 = vrot.slane %v532, 4
      %v535 = vor.u32 %v534, %v530
      %v536 = vrot.slane %v535, 4
      %v538 = vshll.u32 %v246, 16
      %v540 = vrot.slane %v538, 5
      %v541 = vsel %vm253, %v536, %v540
      %v543 = vshrl.u32 %v225, 16
      %v545 = vrot.slane %v543, 4
      %v546 = vshll.u32 %v225, 16
      %v548 = vrot.slane %v546, 5
      %v549 = vor.u32 %v545, %v548
      %v550 = vrot.slane %v549, 4
      %v552 = vshll.u32 %v226, 16
      %v554 = vrot.slane %v552, 5
      %v555 = vsel %vm253, %v550, %v554
      %v556 = vshrl.u32 %v226, 16
      %v558 = vrot.slane %v556, 4
      %v559 = vor.u32 %v558, %v554
      %v560 = vrot.slane %v559, 4
      %v562 = vshll.u32 %v247, 16
      %v564 = vrot.slane %v562, 5
      %v565 = vsel %vm253, %v560, %v564
      %v567 = vshrl.u32 %v227, 16
      %v569 = vrot.slane %v567, 4
      %v570 = vshll.u32 %v227, 16
      %v572 = vrot.slane %v570, 5
      %v573 = vor.u32 %v569, %v572
      %v574 = vrot.slane %v573, 4
      %v576 = vshll.u32 %v228, 16
      %v578 = vrot.slane %v576, 5
      %v579 = vsel %vm253, %v574, %v578
      %v580 = vshrl.u32 %v228, 16
      %v582 = vrot.slane %v580, 4
      %v583 = vor.u32 %v582, %v578
      %v584 = vrot.slane %v583, 4
      %v586 = vshll.u32 %v248, 16
      %v588 = vrot.slane %v586, 5
      %v589 = vsel %vm253, %v584, %v588
      %v591 = vshrl.u32 %v229, 16
      %v593 = vrot.slane %v591, 4
      %v594 = vshll.u32 %v229, 16
      %v596 = vrot.slane %v594, 5
      %v597 = vor.u32 %v593, %v596
      %v598 = vrot.slane %v597, 4
      %v600 = vshll.u32 %v230, 16
      %v602 = vrot.slane %v600, 5
      %v603 = vsel %vm253, %v598, %v602
      %v604 = vshrl.u32 %v230, 16
      %v606 = vrot.slane %v604, 4
      %v607 = vor.u32 %v606, %v602
      %v608 = vrot.slane %v607, 4
      %v610 = vshll.u32 %v249, 16
      %v612 = vrot.slane %v610, 5
      %v613 = vsel %vm253, %v608, %v612
      %v615 = vshrl.u32 %v231, 16
      %v617 = vrot.slane %v615, 4
      %v618 = vshll.u32 %v231, 16
      %v620 = vrot.slane %v618, 5
      %v621 = vor.u32 %v617, %v620
      %v622 = vrot.slane %v621, 4
      %v624 = vshll.u32 %v232, 16
      %v626 = vrot.slane %v624, 5
      %v627 = vsel %vm253, %v622, %v626
      %v628 = vshrl.u32 %v232, 16
      %v630 = vrot.slane %v628, 4
      %v631 = vor.u32 %v630, %v626
      %v632 = vrot.slane %v631, 4
      %v634 = vshll.u32 %v250, 16
      %v636 = vrot.slane %v634, 5
      %v637 = vsel %vm253, %v632, %v636
      %s638 = scalar_lea.vmem %s1, 8
      %v639 = vld [vmem:[%s638] sm:$0xf]
      %v640 = vld [vmem:[%s638 + $0x4] sm:$0x3]
      %v641 = vunpack.c.l.b16 %v267
      %v642 = vunpack.c.l.b16 %v277
      %v643 = vunpack.c.l.b16 %v291
      %v644 = vunpack.c.l.b16 %v301
      %v645 = vunpack.c.l.b16 %v315
      %v646 = vunpack.c.l.b16 %v325
      %v647 = vunpack.c.l.b16 %v339
      %v648 = vunpack.c.l.b16 %v349
      %v649 = vunpack.c.l.b16 %v363
      %v650 = vunpack.c.l.b16 %v373
      %v651 = vunpack.c.l.b16 %v387
      %v652 = vunpack.c.l.b16 %v397
      %v653 = vunpack.c.l.b16 %v411
      %v654 = vunpack.c.l.b16 %v421
      %v655 = vunpack.c.l.b16 %v435
      %v656 = vunpack.c.l.b16 %v445
      %v657 = vunpack.c.l.b16 %v459
      %v658 = vunpack.c.l.b16 %v469
      %v659 = vunpack.c.l.b16 %v483
      %v660 = vunpack.c.l.b16 %v493
      %v661 = vunpack.c.l.b16 %v507
      %v662 = vunpack.c.l.b16 %v517
      %v663 = vunpack.c.l.b16 %v531
      %v664 = vunpack.c.l.b16 %v541
      %v665 = vunpack.c.l.b16 %v555
      %v666 = vunpack.c.l.b16 %v565
      %v667 = vunpack.c.l.b16 %v579
      %v668 = vunpack.c.l.b16 %v589
      %v669 = vunpack.c.l.b16 %v603
      %v670 = vunpack.c.l.b16 %v613
      %v671 = vunpack.c.l.b16 %v627
      %v672 = vunpack.c.l.b16 %v637
      %v673 = vpack.c.b16 %v642, %v641
      %v674 = vpack.c.b16 %v644, %v643
      %v675 = vpack.c.b16 %v646, %v645
      %v676 = vpack.c.b16 %v648, %v647
      %v677 = vpack.c.b16 %v650, %v649
      %v678 = vpack.c.b16 %v652, %v651
      %v679 = vpack.c.b16 %v654, %v653
      %v680 = vpack.c.b16 %v656, %v655
      %v681 = vpack.c.b16 %v658, %v657
      %v682 = vpack.c.b16 %v660, %v659
      %v683 = vpack.c.b16 %v662, %v661
      %v684 = vpack.c.b16 %v664, %v663
      %v685 = vpack.c.b16 %v666, %v665
      %v686 = vpack.c.b16 %v668, %v667
      %v687 = vpack.c.b16 %v670, %v669
      %v688 = vpack.c.b16 %v672, %v671
      %v691 = vunpack.c.l.b16 %v639
      %v692 = vunpack.c.l.b16 %v640
      %v693 = vpack.c.b16 %v692, %v691
      %vm694 = vcmask 97280
      %v696 = vsel %vm694, %v673, 0
      %v699 = vsel %vm694, %v674, 0
      %v702 = vsel %vm694, %v675, 0
      %v705 = vsel %vm694, %v676, 0
      %v708 = vsel %vm694, %v677, 0
      %v711 = vsel %vm694, %v678, 0
      %v714 = vsel %vm694, %v679, 0
      %v717 = vsel %vm694, %v680, 0
      %v720 = vsel %vm694, %v681, 0
      %v723 = vsel %vm694, %v682, 0
      %v726 = vsel %vm694, %v683, 0
      %v729 = vsel %vm694, %v684, 0
      %v732 = vsel %vm694, %v685, 0
      %v735 = vsel %vm694, %v686, 0
      %v738 = vsel %vm694, %v687, 0
      %v741 = vsel %vm694, %v688, 0
      %vm743 = vcmask 1045504
      %v745 = vsel %vm743, %v693, 0
      %747 = vmatprep.subr.bf16.mxu0 0
      %748 = vmatpush1.bf16.msra.mxu0 0
      %749 = vmatprep.subr.bf16.mxu0 0
      %750 = vmatpush1.bf16.msra.mxu0 0
      %751 = vmatprep.subr.bf16.mxu0 0
      %752 = vmatpush1.bf16.msra.mxu0 0
      %753 = vmatprep.subr.bf16.mxu0 0
      %754 = vmatpush1.bf16.msra.mxu0 0
      %755 = vmatprep.subr.bf16.mxu0 0
      %756 = vmatpush1.bf16.msra.mxu0 0
      %757 = vmatprep.subr.bf16.mxu0 0
      %758 = vmatpush1.bf16.msra.mxu0 0
      %759 = vmatprep.subr.bf16.mxu0 0
      %760 = vmatpush1.bf16.msra.mxu0 0
      %761 = vmatprep.subr.bf16.mxu0 0
      %762 = vmatpush1.bf16.msra.mxu0 %v745
      %763 = vmatprep.subr.bf16.mxu0 0
      %764 = vmatpush2.bf16.msra.mxu0 0
      %765 = vmatprep.subr.bf16.mxu0 0
      %766 = vmatpush2.bf16.msra.mxu0 0
      %767 = vmatprep.subr.bf16.mxu0 0
      %768 = vmatpush2.bf16.msra.mxu0 0
      %769 = vmatprep.subr.bf16.mxu0 0
      %770 = vmatpush2.bf16.msra.mxu0 0
      %771 = vmatprep.subr.bf16.mxu0 0
      %772 = vmatpush2.bf16.msra.mxu0 0
      %773 = vmatprep.subr.bf16.mxu0 0
      %774 = vmatpush2.bf16.msra.mxu0 0
      %775 = vmatprep.subr.bf16.mxu0 0
      %776 = vmatpush2.bf16.msra.mxu0 0
      %777 = vmatprep.subr.bf16.mxu0 0
      %778 = vmatpush2.bf16.msra.mxu0 0
      %779 = vmatprep.mubr.bf16.mxu0 0
      %780 = vmatmul.mubr.bf16.gmra.mxu0 %v696
      %v781 = vpop.f32.mrf.mxu0
      %v782 = vadd.f32 0.0, %v781
      %v783 = vpop.f32.mrf.mxu0
      %v784 = vpop.f32.mrf.mxu0
      %v785 = vadd.f32 0.0, %v784
      %v786 = vpop.f32.mrf.mxu0
      %787 = vmatprep.mubr.bf16.mxu0 0
      %788 = vmatmul.mubr.bf16.gmra.mxu0 %v699
      %v789 = vpop.f32.mrf.mxu0
      %v790 = vadd.f32 0.0, %v789
      %v791 = vpop.f32.mrf.mxu0
      %v792 = vpop.f32.mrf.mxu0
      %v793 = vadd.f32 0.0, %v792
      %v794 = vpop.f32.mrf.mxu0
      %795 = vmatprep.mubr.bf16.mxu0 0
      %796 = vmatmul.mubr.bf16.gmra.mxu0 %v702
      %v797 = vpop.f32.mrf.mxu0
      %v798 = vadd.f32 0.0, %v797
      %v799 = vpop.f32.mrf.mxu0
      %v800 = vpop.f32.mrf.mxu0
      %v801 = vadd.f32 0.0, %v800
      %v802 = vpop.f32.mrf.mxu0
      %803 = vmatprep.mubr.bf16.mxu0 0
      %804 = vmatmul.mubr.bf16.gmra.mxu0 %v705
      %v805 = vpop.f32.mrf.mxu0
      %v806 = vadd.f32 0.0, %v805
      %v807 = vpop.f32.mrf.mxu0
      %v808 = vpop.f32.mrf.mxu0
      %v809 = vadd.f32 0.0, %v808
      %v810 = vpop.f32.mrf.mxu0
      %811 = vmatprep.mubr.bf16.mxu0 0
      %812 = vmatmul.mubr.bf16.gmra.mxu0 %v708
      %v813 = vpop.f32.mrf.mxu0
      %v814 = vadd.f32 0.0, %v813
      %v815 = vpop.f32.mrf.mxu0
      %v816 = vpop.f32.mrf.mxu0
      %v817 = vadd.f32 0.0, %v816
      %v818 = vpop.f32.mrf.mxu0
      %819 = vmatprep.mubr.bf16.mxu0 0
      %820 = vmatmul.mubr.bf16.gmra.mxu0 %v711
      %v821 = vpop.f32.mrf.mxu0
      %v822 = vadd.f32 0.0, %v821
      %v823 = vpop.f32.mrf.mxu0
      %v824 = vpop.f32.mrf.mxu0
      %v825 = vadd.f32 0.0, %v824
      %v826 = vpop.f32.mrf.mxu0
      %827 = vmatprep.mubr.bf16.mxu0 0
      %828 = vmatmul.mubr.bf16.gmra.mxu0 %v714
      %v829 = vpop.f32.mrf.mxu0
      %v830 = vadd.f32 0.0, %v829
      %v831 = vpop.f32.mrf.mxu0
      %v832 = vpop.f32.mrf.mxu0
      %v833 = vadd.f32 0.0, %v832
      %v834 = vpop.f32.mrf.mxu0
      %835 = vmatprep.mubr.bf16.mxu0 0
      %836 = vmatmul.mubr.bf16.gmra.mxu0 %v717
      %v837 = vpop.f32.mrf.mxu0
      %v838 = vadd.f32 0.0, %v837
      %v839 = vpop.f32.mrf.mxu0
      %v840 = vpop.f32.mrf.mxu0
      %v841 = vadd.f32 0.0, %v840
      %v842 = vpop.f32.mrf.mxu0
      %843 = vmatprep.mubr.bf16.mxu0 0
      %844 = vmatmul.mubr.bf16.gmra.mxu0 %v720
      %v845 = vpop.f32.mrf.mxu0
      %v846 = vadd.f32 0.0, %v845
      %v847 = vpop.f32.mrf.mxu0
      %v848 = vpop.f32.mrf.mxu0
      %v849 = vadd.f32 0.0, %v848
      %v850 = vpop.f32.mrf.mxu0
      %851 = vmatprep.mubr.bf16.mxu0 0
      %852 = vmatmul.mubr.bf16.gmra.mxu0 %v723
      %v853 = vpop.f32.mrf.mxu0
      %v854 = vadd.f32 0.0, %v853
      %v855 = vpop.f32.mrf.mxu0
      %v856 = vpop.f32.mrf.mxu0
      %v857 = vadd.f32 0.0, %v856
      %v858 = vpop.f32.mrf.mxu0
      %859 = vmatprep.mubr.bf16.mxu0 0
      %860 = vmatmul.mubr.bf16.gmra.mxu0 %v726
      %v861 = vpop.f32.mrf.mxu0
      %v862 = vadd.f32 0.0, %v861
      %v863 = vpop.f32.mrf.mxu0
      %v864 = vpop.f32.mrf.mxu0
      %v865 = vadd.f32 0.0, %v864
      %v866 = vpop.f32.mrf.mxu0
      %867 = vmatprep.mubr.bf16.mxu0 0
      %868 = vmatmul.mubr.bf16.gmra.mxu0 %v729
      %v869 = vpop.f32.mrf.mxu0
      %v870 = vadd.f32 0.0, %v869
      %v871 = vpop.f32.mrf.mxu0
      %v872 = vpop.f32.mrf.mxu0
      %v873 = vadd.f32 0.0, %v872
      %v874 = vpop.f32.mrf.mxu0
      %875 = vmatprep.mubr.bf16.mxu0 0
      %876 = vmatmul.mubr.bf16.gmra.mxu0 %v732
      %v877 = vpop.f32.mrf.mxu0
      %v878 = vadd.f32 0.0, %v877
      %v879 = vpop.f32.mrf.mxu0
      %v880 = vpop.f32.mrf.mxu0
      %v881 = vadd.f32 0.0, %v880
      %v882 = vpop.f32.mrf.mxu0
      %883 = vmatprep.mubr.bf16.mxu0 0
      %884 = vmatmul.mubr.bf16.gmra.mxu0 %v735
      %v885 = vpop.f32.mrf.mxu0
      %v886 = vadd.f32 0.0, %v885
      %v887 = vpop.f32.mrf.mxu0
      %v888 = vpop.f32.mrf.mxu0
      %v889 = vadd.f32 0.0, %v888
      %v890 = vpop.f32.mrf.mxu0
      %891 = vmatprep.mubr.bf16.mxu0 0
      %892 = vmatmul.mubr.bf16.gmra.mxu0 %v738
      %v893 = vpop.f32.mrf.mxu0
      %v894 = vadd.f32 0.0, %v893
      %v895 = vpop.f32.mrf.mxu0
      %v896 = vpop.f32.mrf.mxu0
      %v897 = vadd.f32 0.0, %v896
      %v898 = vpop.f32.mrf.mxu0
      %899 = vmatprep.mubr.bf16.mxu0 0
      %900 = vmatmul.mubr.bf16.gmra.mxu0 %v741
      %v901 = vpop.f32.mrf.mxu0
      %v902 = vadd.f32 0.0, %v901
      %v903 = vpop.f32.mrf.mxu0
      %v904 = vpop.f32.mrf.mxu0
      %v905 = vadd.f32 0.0, %v904
      %v906 = vpop.f32.mrf.mxu0
      %907 = vdwg.mxu0
      %v940 = vunpack.c.l.b16 %v201
      %v941 = vunpack.c.l.b16 %v202
      %v942 = vunpack.c.l.b16 %v203
      %v943 = vunpack.c.l.b16 %v204
      %v944 = vunpack.c.l.b16 %v205
      %v945 = vunpack.c.l.b16 %v206
      %v946 = vunpack.c.l.b16 %v207
      %v947 = vunpack.c.l.b16 %v208
      %v948 = vunpack.c.l.b16 %v209
      %v949 = vunpack.c.l.b16 %v210
      %v950 = vunpack.c.l.b16 %v211
      %v951 = vunpack.c.l.b16 %v212
      %v952 = vunpack.c.l.b16 %v213
      %v953 = vunpack.c.l.b16 %v214
      %v954 = vunpack.c.l.b16 %v215
      %v955 = vunpack.c.l.b16 %v216
      %v956 = vunpack.c.l.b16 %v217
      %v957 = vunpack.c.l.b16 %v218
      %v958 = vunpack.c.l.b16 %v219
      %v959 = vunpack.c.l.b16 %v220
      %v960 = vunpack.c.l.b16 %v221
      %v961 = vunpack.c.l.b16 %v222
      %v962 = vunpack.c.l.b16 %v223
      %v963 = vunpack.c.l.b16 %v224
      %v964 = vunpack.c.l.b16 %v225
      %v965 = vunpack.c.l.b16 %v226
      %v966 = vunpack.c.l.b16 %v227
      %v967 = vunpack.c.l.b16 %v228
      %v968 = vunpack.c.l.b16 %v229
      %v969 = vunpack.c.l.b16 %v230
      %v970 = vunpack.c.l.b16 %v231
      %v971 = vunpack.c.l.b16 %v232
      %v972 = vpack.c.b16 %v941, %v940
      %v973 = vpack.c.b16 %v943, %v942
      %v974 = vpack.c.b16 %v945, %v944
      %v975 = vpack.c.b16 %v947, %v946
      %v976 = vpack.c.b16 %v949, %v948
      %v977 = vpack.c.b16 %v951, %v950
      %v978 = vpack.c.b16 %v953, %v952
      %v979 = vpack.c.b16 %v955, %v954
      %v980 = vpack.c.b16 %v957, %v956
      %v981 = vpack.c.b16 %v959, %v958
      %v982 = vpack.c.b16 %v961, %v960
      %v983 = vpack.c.b16 %v963, %v962
      %v984 = vpack.c.b16 %v965, %v964
      %v985 = vpack.c.b16 %v967, %v966
      %v986 = vpack.c.b16 %v969, %v968
      %v987 = vpack.c.b16 %v971, %v970
      %v990 = vunpack.c.l.b16 %v233
      %v991 = vunpack.c.l.b16 %v234
      %v992 = vpack.c.b16 %v991, %v990
      %v994 = vsel %vm694, %v972, 0
      %v997 = vsel %vm694, %v973, 0
      %v1000 = vsel %vm694, %v974, 0
      %v1003 = vsel %vm694, %v975, 0
      %v1006 = vsel %vm694, %v976, 0
      %v1009 = vsel %vm694, %v977, 0
      %v1012 = vsel %vm694, %v978, 0
      %v1015 = vsel %vm694, %v979, 0
      %v1018 = vsel %vm694, %v980, 0
      %v1021 = vsel %vm694, %v981, 0
      %v1024 = vsel %vm694, %v982, 0
      %v1027 = vsel %vm694, %v983, 0
      %v1030 = vsel %vm694, %v984, 0
      %v1033 = vsel %vm694, %v985, 0
      %v1036 = vsel %vm694, %v986, 0
      %v1039 = vsel %vm694, %v987, 0
      %v1042 = vsel %vm743, %v992, 0
      %1044 = vmatprep.subr.bf16.mxu0 0
      %1045 = vmatpush1.bf16.msra.mxu0 0
      %1046 = vmatprep.subr.bf16.mxu0 0
      %1047 = vmatpush1.bf16.msra.mxu0 0
      %1048 = vmatprep.subr.bf16.mxu0 0
      %1049 = vmatpush1.bf16.msra.mxu0 0
      %1050 = vmatprep.subr.bf16.mxu0 0
      %1051 = vmatpush1.bf16.msra.mxu0 0
      %1052 = vmatprep.subr.bf16.mxu0 0
      %1053 = vmatpush1.bf16.msra.mxu0 0
      %1054 = vmatprep.subr.bf16.mxu0 0
      %1055 = vmatpush1.bf16.msra.mxu0 0
      %1056 = vmatprep.subr.bf16.mxu0 0
      %1057 = vmatpush1.bf16.msra.mxu0 0
      %1058 = vmatprep.subr.bf16.mxu0 0
      %1059 = vmatpush1.bf16.msra.mxu0 %v1042
      %1060 = vmatprep.subr.bf16.mxu0 0
      %1061 = vmatpush2.bf16.msra.mxu0 0
      %1062 = vmatprep.subr.bf16.mxu0 0
      %1063 = vmatpush2.bf16.msra.mxu0 0
      %1064 = vmatprep.subr.bf16.mxu0 0
      %1065 = vmatpush2.bf16.msra.mxu0 0
      %1066 = vmatprep.subr.bf16.mxu0 0
      %1067 = vmatpush2.bf16.msra.mxu0 0
      %1068 = vmatprep.subr.bf16.mxu0 0
      %1069 = vmatpush2.bf16.msra.mxu0 0
      %1070 = vmatprep.subr.bf16.mxu0 0
      %1071 = vmatpush2.bf16.msra.mxu0 0
      %1072 = vmatprep.subr.bf16.mxu0 0
      %1073 = vmatpush2.bf16.msra.mxu0 0
      %1074 = vmatprep.subr.bf16.mxu0 0
      %1075 = vmatpush2.bf16.msra.mxu0 0
      %1076 = vmatprep.mubr.bf16.mxu0 0
      %1077 = vmatmul.mubr.bf16.gmra.mxu0 %v994
      %v1078 = vpop.f32.mrf.mxu0
      %v1079 = vadd.f32 %v782, %v1078
      %v1080 = vpop.f32.mrf.mxu0
      %v1081 = vpop.f32.mrf.mxu0
      %v1082 = vadd.f32 %v785, %v1081
      %v1083 = vpop.f32.mrf.mxu0
      %1084 = vmatprep.mubr.bf16.mxu0 0
      %1085 = vmatmul.mubr.bf16.gmra.mxu0 %v997
      %v1086 = vpop.f32.mrf.mxu0
      %v1087 = vadd.f32 %v790, %v1086
      %v1088 = vpop.f32.mrf.mxu0
      %v1089 = vpop.f32.mrf.mxu0
      %v1090 = vadd.f32 %v793, %v1089
      %v1091 = vpop.f32.mrf.mxu0
      %1092 = vmatprep.mubr.bf16.mxu0 0
      %1093 = vmatmul.mubr.bf16.gmra.mxu0 %v1000
      %v1094 = vpop.f32.mrf.mxu0
      %v1095 = vadd.f32 %v798, %v1094
      %v1096 = vpop.f32.mrf.mxu0
      %v1097 = vpop.f32.mrf.mxu0
      %v1098 = vadd.f32 %v801, %v1097
      %v1099 = vpop.f32.mrf.mxu0
      %1100 = vmatprep.mubr.bf16.mxu0 0
      %1101 = vmatmul.mubr.bf16.gmra.mxu0 %v1003
      %v1102 = vpop.f32.mrf.mxu0
      %v1103 = vadd.f32 %v806, %v1102
      %v1104 = vpop.f32.mrf.mxu0
      %v1105 = vpop.f32.mrf.mxu0
      %v1106 = vadd.f32 %v809, %v1105
      %v1107 = vpop.f32.mrf.mxu0
      %1108 = vmatprep.mubr.bf16.mxu0 0
      %1109 = vmatmul.mubr.bf16.gmra.mxu0 %v1006
      %v1110 = vpop.f32.mrf.mxu0
      %v1111 = vadd.f32 %v814, %v1110
      %v1112 = vpop.f32.mrf.mxu0
      %v1113 = vpop.f32.mrf.mxu0
      %v1114 = vadd.f32 %v817, %v1113
      %v1115 = vpop.f32.mrf.mxu0
      %1116 = vmatprep.mubr.bf16.mxu0 0
      %1117 = vmatmul.mubr.bf16.gmra.mxu0 %v1009
      %v1118 = vpop.f32.mrf.mxu0
      %v1119 = vadd.f32 %v822, %v1118
      %v1120 = vpop.f32.mrf.mxu0
      %v1121 = vpop.f32.mrf.mxu0
      %v1122 = vadd.f32 %v825, %v1121
      %v1123 = vpop.f32.mrf.mxu0
      %1124 = vmatprep.mubr.bf16.mxu0 0
      %1125 = vmatmul.mubr.bf16.gmra.mxu0 %v1012
      %v1126 = vpop.f32.mrf.mxu0
      %v1127 = vadd.f32 %v830, %v1126
      %v1128 = vpop.f32.mrf.mxu0
      %v1129 = vpop.f32.mrf.mxu0
      %v1130 = vadd.f32 %v833, %v1129
      %v1131 = vpop.f32.mrf.mxu0
      %1132 = vmatprep.mubr.bf16.mxu0 0
      %1133 = vmatmul.mubr.bf16.gmra.mxu0 %v1015
      %v1134 = vpop.f32.mrf.mxu0
      %v1135 = vadd.f32 %v838, %v1134
      %v1136 = vpop.f32.mrf.mxu0
      %v1137 = vpop.f32.mrf.mxu0
      %v1138 = vadd.f32 %v841, %v1137
      %v1139 = vpop.f32.mrf.mxu0
      %1140 = vmatprep.mubr.bf16.mxu0 0
      %1141 = vmatmul.mubr.bf16.gmra.mxu0 %v1018
      %v1142 = vpop.f32.mrf.mxu0
      %v1143 = vadd.f32 %v846, %v1142
      %v1144 = vpop.f32.mrf.mxu0
      %v1145 = vpop.f32.mrf.mxu0
      %v1146 = vadd.f32 %v849, %v1145
      %v1147 = vpop.f32.mrf.mxu0
      %1148 = vmatprep.mubr.bf16.mxu0 0
      %1149 = vmatmul.mubr.bf16.gmra.mxu0 %v1021
      %v1150 = vpop.f32.mrf.mxu0
      %v1151 = vadd.f32 %v854, %v1150
      %v1152 = vpop.f32.mrf.mxu0
      %v1153 = vpop.f32.mrf.mxu0
      %v1154 = vadd.f32 %v857, %v1153
      %v1155 = vpop.f32.mrf.mxu0
      %1156 = vmatprep.mubr.bf16.mxu0 0
      %1157 = vmatmul.mubr.bf16.gmra.mxu0 %v1024
      %v1158 = vpop.f32.mrf.mxu0
      %v1159 = vadd.f32 %v862, %v1158
      %v1160 = vpop.f32.mrf.mxu0
      %v1161 = vpop.f32.mrf.mxu0
      %v1162 = vadd.f32 %v865, %v1161
      %v1163 = vpop.f32.mrf.mxu0
      %1164 = vmatprep.mubr.bf16.mxu0 0
      %1165 = vmatmul.mubr.bf16.gmra.mxu0 %v1027
      %v1166 = vpop.f32.mrf.mxu0
      %v1167 = vadd.f32 %v870, %v1166
      %v1168 = vpop.f32.mrf.mxu0
      %v1169 = vpop.f32.mrf.mxu0
      %v1170 = vadd.f32 %v873, %v1169
      %v1171 = vpop.f32.mrf.mxu0
      %1172 = vmatprep.mubr.bf16.mxu0 0
      %1173 = vmatmul.mubr.bf16.gmra.mxu0 %v1030
      %v1174 = vpop.f32.mrf.mxu0
      %v1175 = vadd.f32 %v878, %v1174
      %v1176 = vpop.f32.mrf.mxu0
      %v1177 = vpop.f32.mrf.mxu0
      %v1178 = vadd.f32 %v881, %v1177
      %v1179 = vpop.f32.mrf.mxu0
      %1180 = vmatprep.mubr.bf16.mxu0 0
      %1181 = vmatmul.mubr.bf16.gmra.mxu0 %v1033
      %v1182 = vpop.f32.mrf.mxu0
      %v1183 = vadd.f32 %v886, %v1182
      %v1184 = vpop.f32.mrf.mxu0
      %v1185 = vpop.f32.mrf.mxu0
      %v1186 = vadd.f32 %v889, %v1185
      %v1187 = vpop.f32.mrf.mxu0
      %1188 = vmatprep.mubr.bf16.mxu0 0
      %1189 = vmatmul.mubr.bf16.gmra.mxu0 %v1036
      %v1190 = vpop.f32.mrf.mxu0
      %v1191 = vadd.f32 %v894, %v1190
      %v1192 = vpop.f32.mrf.mxu0
      %v1193 = vpop.f32.mrf.mxu0
      %v1194 = vadd.f32 %v897, %v1193
      %v1195 = vpop.f32.mrf.mxu0
      %1196 = vmatprep.mubr.bf16.mxu0 0
      %1197 = vmatmul.mubr.bf16.gmra.mxu0 %v1039
      %v1198 = vpop.f32.mrf.mxu0
      %v1199 = vadd.f32 %v902, %v1198
      %v1200 = vpop.f32.mrf.mxu0
      %v1201 = vpop.f32.mrf.mxu0
      %v1202 = vadd.f32 %v905, %v1201
      %v1203 = vpop.f32.mrf.mxu0
      %1204 = vdwg.mxu0
      %s1205 = sadd.s32 %s197, 1
      %s1206 = smul.u32 %s1205, 3
      %s1207 = smul.addr %s1206, 4
      %s1208 = scalar_lea.vmem %s184, %s1207
      %v1209 = vld [vmem:[%s1208] sm:$0xf]
      %v1210 = vld [vmem:[%s1208 + $0x4] sm:$0xf]
      %v1211 = vld [vmem:[%s1208 + $0xc] sm:$0xf]
      %v1212 = vld [vmem:[%s1208 + $0x10] sm:$0xf]
      %v1213 = vld [vmem:[%s1208 + $0x18] sm:$0xf]
      %v1214 = vld [vmem:[%s1208 + $0x1c] sm:$0xf]
      %v1215 = vld [vmem:[%s1208 + $0x24] sm:$0xf]
      %v1216 = vld [vmem:[%s1208 + $0x28] sm:$0xf]
      %v1217 = vld [vmem:[%s1208 + $0x30] sm:$0xf]
      %v1218 = vld [vmem:[%s1208 + $0x34] sm:$0xf]
      %v1219 = vld [vmem:[%s1208 + $0x3c] sm:$0xf]
      %v1220 = vld [vmem:[%s1208 + $0x40] sm:$0xf]
      %v1221 = vld [vmem:[%s1208 + $0x48] sm:$0xf]
      %v1222 = vld [vmem:[%s1208 + $0x4c] sm:$0xf]
      %v1223 = vld [vmem:[%s1208 + $0x54] sm:$0xf]
      %v1224 = vld [vmem:[%s1208 + $0x58] sm:$0xf]
      %v1225 = vld [vmem:[%s1208 + $0x60] sm:$0xf]
      %v1226 = vld [vmem:[%s1208 + $0x64] sm:$0xf]
      %v1227 = vld [vmem:[%s1208 + $0x6c] sm:$0xf]
      %v1228 = vld [vmem:[%s1208 + $0x70] sm:$0xf]
      %v1229 = vld [vmem:[%s1208 + $0x78] sm:$0xf]
      %v1230 = vld [vmem:[%s1208 + $0x7c] sm:$0xf]
      %v1231 = vld [vmem:[%s1208 + $0x84] sm:$0xf]
      %v1232 = vld [vmem:[%s1208 + $0x88] sm:$0xf]
      %v1233 = vld [vmem:[%s1208 + $0x90] sm:$0xf]
      %v1234 = vld [vmem:[%s1208 + $0x94] sm:$0xf]
      %v1235 = vld [vmem:[%s1208 + $0x9c] sm:$0xf]
      %v1236 = vld [vmem:[%s1208 + $0xa0] sm:$0xf]
      %v1237 = vld [vmem:[%s1208 + $0xa8] sm:$0xf]
      %v1238 = vld [vmem:[%s1208 + $0xac] sm:$0xf]
      %v1239 = vld [vmem:[%s1208 + $0xb4] sm:$0xf]
      %v1240 = vld [vmem:[%s1208 + $0xb8] sm:$0xf]
      %s1241 = scalar_lea.vmem %s1, 16
      %v1242 = vld [vmem:[%s1241] sm:$0xf]
      %v1243 = vld [vmem:[%s1241 + $0x4] sm:$0x3]
      %v1276 = vunpack.c.l.b16 %v1209
      %v1277 = vunpack.c.l.b16 %v1210
      %v1278 = vunpack.c.l.b16 %v1211
      %v1279 = vunpack.c.l.b16 %v1212
      %v1280 = vunpack.c.l.b16 %v1213
      %v1281 = vunpack.c.l.b16 %v1214
      %v1282 = vunpack.c.l.b16 %v1215
      %v1283 = vunpack.c.l.b16 %v1216
      %v1284 = vunpack.c.l.b16 %v1217
      %v1285 = vunpack.c.l.b16 %v1218
      %v1286 = vunpack.c.l.b16 %v1219
      %v1287 = vunpack.c.l.b16 %v1220
      %v1288 = vunpack.c.l.b16 %v1221
      %v1289 = vunpack.c.l.b16 %v1222
      %v1290 = vunpack.c.l.b16 %v1223
      %v1291 = vunpack.c.l.b16 %v1224
      %v1292 = vunpack.c.l.b16 %v1225
      %v1293 = vunpack.c.l.b16 %v1226
      %v1294 = vunpack.c.l.b16 %v1227
      %v1295 = vunpack.c.l.b16 %v1228
      %v1296 = vunpack.c.l.b16 %v1229
      %v1297 = vunpack.c.l.b16 %v1230
      %v1298 = vunpack.c.l.b16 %v1231
      %v1299 = vunpack.c.l.b16 %v1232
      %v1300 = vunpack.c.l.b16 %v1233
      %v1301 = vunpack.c.l.b16 %v1234
      %v1302 = vunpack.c.l.b16 %v1235
      %v1303 = vunpack.c.l.b16 %v1236
      %v1304 = vunpack.c.l.b16 %v1237
      %v1305 = vunpack.c.l.b16 %v1238
      %v1306 = vunpack.c.l.b16 %v1239
      %v1307 = vunpack.c.l.b16 %v1240
      %v1308 = vpack.c.b16 %v1277, %v1276
      %v1309 = vpack.c.b16 %v1279, %v1278
      %v1310 = vpack.c.b16 %v1281, %v1280
      %v1311 = vpack.c.b16 %v1283, %v1282
      %v1312 = vpack.c.b16 %v1285, %v1284
      %v1313 = vpack.c.b16 %v1287, %v1286
      %v1314 = vpack.c.b16 %v1289, %v1288
      %v1315 = vpack.c.b16 %v1291, %v1290
      %v1316 = vpack.c.b16 %v1293, %v1292
      %v1317 = vpack.c.b16 %v1295, %v1294
      %v1318 = vpack.c.b16 %v1297, %v1296
      %v1319 = vpack.c.b16 %v1299, %v1298
      %v1320 = vpack.c.b16 %v1301, %v1300
      %v1321 = vpack.c.b16 %v1303, %v1302
      %v1322 = vpack.c.b16 %v1305, %v1304
      %v1323 = vpack.c.b16 %v1307, %v1306
      %v1326 = vunpack.c.l.b16 %v1242
      %v1327 = vunpack.c.l.b16 %v1243
      %v1328 = vpack.c.b16 %v1327, %v1326
      %v1330 = vsel %vm694, %v1308, 0
      %v1333 = vsel %vm694, %v1309, 0
      %v1336 = vsel %vm694, %v1310, 0
      %v1339 = vsel %vm694, %v1311, 0
      %v1342 = vsel %vm694, %v1312, 0
      %v1345 = vsel %vm694, %v1313, 0
      %v1348 = vsel %vm694, %v1314, 0
      %v1351 = vsel %vm694, %v1315, 0
      %v1354 = vsel %vm694, %v1316, 0
      %v1357 = vsel %vm694, %v1317, 0
      %v1360 = vsel %vm694, %v1318, 0
      %v1363 = vsel %vm694, %v1319, 0
      %v1366 = vsel %vm694, %v1320, 0
      %v1369 = vsel %vm694, %v1321, 0
      %v1372 = vsel %vm694, %v1322, 0
      %v1375 = vsel %vm694, %v1323, 0
      %v1378 = vsel %vm743, %v1328, 0
      %1380 = vmatprep.subr.bf16.mxu0 0
      %1381 = vmatpush1.bf16.msra.mxu0 0
      %1382 = vmatprep.subr.bf16.mxu0 0
      %1383 = vmatpush1.bf16.msra.mxu0 0
      %1384 = vmatprep.subr.bf16.mxu0 0
      %1385 = vmatpush1.bf16.msra.mxu0 0
      %1386 = vmatprep.subr.bf16.mxu0 0
      %1387 = vmatpush1.bf16.msra.mxu0 0
      %1388 = vmatprep.subr.bf16.mxu0 0
      %1389 = vmatpush1.bf16.msra.mxu0 0
      %1390 = vmatprep.subr.bf16.mxu0 0
      %1391 = vmatpush1.bf16.msra.mxu0 0
      %1392 = vmatprep.subr.bf16.mxu0 0
      %1393 = vmatpush1.bf16.msra.mxu0 0
      %1394 = vmatprep.subr.bf16.mxu0 0
      %1395 = vmatpush1.bf16.msra.mxu0 %v1378
      %1396 = vmatprep.subr.bf16.mxu0 0
      %1397 = vmatpush2.bf16.msra.mxu0 0
      %1398 = vmatprep.subr.bf16.mxu0 0
      %1399 = vmatpush2.bf16.msra.mxu0 0
      %1400 = vmatprep.subr.bf16.mxu0 0
      %1401 = vmatpush2.bf16.msra.mxu0 0
      %1402 = vmatprep.subr.bf16.mxu0 0
      %1403 = vmatpush2.bf16.msra.mxu0 0
      %1404 = vmatprep.subr.bf16.mxu0 0
      %1405 = vmatpush2.bf16.msra.mxu0 0
      %1406 = vmatprep.subr.bf16.mxu0 0
      %1407 = vmatpush2.bf16.msra.mxu0 0
      %1408 = vmatprep.subr.bf16.mxu0 0
      %1409 = vmatpush2.bf16.msra.mxu0 0
      %1410 = vmatprep.subr.bf16.mxu0 0
      %1411 = vmatpush2.bf16.msra.mxu0 0
      %1412 = vmatprep.mubr.bf16.mxu0 0
      %1413 = vmatmul.mubr.bf16.gmra.mxu0 %v1330
      %v1414 = vpop.f32.mrf.mxu0
      %v1415 = vadd.f32 0.0, %v1414
      %v1416 = vpop.f32.mrf.mxu0
      %v1417 = vpop.f32.mrf.mxu0
      %v1418 = vadd.f32 0.0, %v1417
      %v1419 = vpop.f32.mrf.mxu0
      %1420 = vmatprep.mubr.bf16.mxu0 0
      %1421 = vmatmul.mubr.bf16.gmra.mxu0 %v1333
      %v1422 = vpop.f32.mrf.mxu0
      %v1423 = vadd.f32 0.0, %v1422
      %v1424 = vpop.f32.mrf.mxu0
      %v1425 = vpop.f32.mrf.mxu0
      %v1426 = vadd.f32 0.0, %v1425
      %v1427 = vpop.f32.mrf.mxu0
      %1428 = vmatprep.mubr.bf16.mxu0 0
      %1429 = vmatmul.mubr.bf16.gmra.mxu0 %v1336
      %v1430 = vpop.f32.mrf.mxu0
      %v1431 = vadd.f32 0.0, %v1430
      %v1432 = vpop.f32.mrf.mxu0
      %v1433 = vpop.f32.mrf.mxu0
      %v1434 = vadd.f32 0.0, %v1433
      %v1435 = vpop.f32.mrf.mxu0
      %1436 = vmatprep.mubr.bf16.mxu0 0
      %1437 = vmatmul.mubr.bf16.gmra.mxu0 %v1339
      %v1438 = vpop.f32.mrf.mxu0
      %v1439 = vadd.f32 0.0, %v1438
      %v1440 = vpop.f32.mrf.mxu0
      %v1441 = vpop.f32.mrf.mxu0
      %v1442 = vadd.f32 0.0, %v1441
      %v1443 = vpop.f32.mrf.mxu0
      %1444 = vmatprep.mubr.bf16.mxu0 0
      %1445 = vmatmul.mubr.bf16.gmra.mxu0 %v1342
      %v1446 = vpop.f32.mrf.mxu0
      %v1447 = vadd.f32 0.0, %v1446
      %v1448 = vpop.f32.mrf.mxu0
      %v1449 = vpop.f32.mrf.mxu0
      %v1450 = vadd.f32 0.0, %v1449
      %v1451 = vpop.f32.mrf.mxu0
      %1452 = vmatprep.mubr.bf16.mxu0 0
      %1453 = vmatmul.mubr.bf16.gmra.mxu0 %v1345
      %v1454 = vpop.f32.mrf.mxu0
      %v1455 = vadd.f32 0.0, %v1454
      %v1456 = vpop.f32.mrf.mxu0
      %v1457 = vpop.f32.mrf.mxu0
      %v1458 = vadd.f32 0.0, %v1457
      %v1459 = vpop.f32.mrf.mxu0
      %1460 = vmatprep.mubr.bf16.mxu0 0
      %1461 = vmatmul.mubr.bf16.gmra.mxu0 %v1348
      %v1462 = vpop.f32.mrf.mxu0
      %v1463 = vadd.f32 0.0, %v1462
      %v1464 = vpop.f32.mrf.mxu0
      %v1465 = vpop.f32.mrf.mxu0
      %v1466 = vadd.f32 0.0, %v1465
      %v1467 = vpop.f32.mrf.mxu0
      %1468 = vmatprep.mubr.bf16.mxu0 0
      %1469 = vmatmul.mubr.bf16.gmra.mxu0 %v1351
      %v1470 = vpop.f32.mrf.mxu0
      %v1471 = vadd.f32 0.0, %v1470
      %v1472 = vpop.f32.mrf.mxu0
      %v1473 = vpop.f32.mrf.mxu0
      %v1474 = vadd.f32 0.0, %v1473
      %v1475 = vpop.f32.mrf.mxu0
      %1476 = vmatprep.mubr.bf16.mxu0 0
      %1477 = vmatmul.mubr.bf16.gmra.mxu0 %v1354
      %v1478 = vpop.f32.mrf.mxu0
      %v1479 = vadd.f32 0.0, %v1478
      %v1480 = vpop.f32.mrf.mxu0
      %v1481 = vpop.f32.mrf.mxu0
      %v1482 = vadd.f32 0.0, %v1481
      %v1483 = vpop.f32.mrf.mxu0
      %1484 = vmatprep.mubr.bf16.mxu0 0
      %1485 = vmatmul.mubr.bf16.gmra.mxu0 %v1357
      %v1486 = vpop.f32.mrf.mxu0
      %v1487 = vadd.f32 0.0, %v1486
      %v1488 = vpop.f32.mrf.mxu0
      %v1489 = vpop.f32.mrf.mxu0
      %v1490 = vadd.f32 0.0, %v1489
      %v1491 = vpop.f32.mrf.mxu0
      %1492 = vmatprep.mubr.bf16.mxu0 0
      %1493 = vmatmul.mubr.bf16.gmra.mxu0 %v1360
      %v1494 = vpop.f32.mrf.mxu0
      %v1495 = vadd.f32 0.0, %v1494
      %v1496 = vpop.f32.mrf.mxu0
      %v1497 = vpop.f32.mrf.mxu0
      %v1498 = vadd.f32 0.0, %v1497
      %v1499 = vpop.f32.mrf.mxu0
      %1500 = vmatprep.mubr.bf16.mxu0 0
      %1501 = vmatmul.mubr.bf16.gmra.mxu0 %v1363
      %v1502 = vpop.f32.mrf.mxu0
      %v1503 = vadd.f32 0.0, %v1502
      %v1504 = vpop.f32.mrf.mxu0
      %v1505 = vpop.f32.mrf.mxu0
      %v1506 = vadd.f32 0.0, %v1505
      %v1507 = vpop.f32.mrf.mxu0
      %1508 = vmatprep.mubr.bf16.mxu0 0
      %1509 = vmatmul.mubr.bf16.gmra.mxu0 %v1366
      %v1510 = vpop.f32.mrf.mxu0
      %v1511 = vadd.f32 0.0, %v1510
      %v1512 = vpop.f32.mrf.mxu0
      %v1513 = vpop.f32.mrf.mxu0
      %v1514 = vadd.f32 0.0, %v1513
      %v1515 = vpop.f32.mrf.mxu0
      %1516 = vmatprep.mubr.bf16.mxu0 0
      %1517 = vmatmul.mubr.bf16.gmra.mxu0 %v1369
      %v1518 = vpop.f32.mrf.mxu0
      %v1519 = vadd.f32 0.0, %v1518
      %v1520 = vpop.f32.mrf.mxu0
      %v1521 = vpop.f32.mrf.mxu0
      %v1522 = vadd.f32 0.0, %v1521
      %v1523 = vpop.f32.mrf.mxu0
      %1524 = vmatprep.mubr.bf16.mxu0 0
      %1525 = vmatmul.mubr.bf16.gmra.mxu0 %v1372
      %v1526 = vpop.f32.mrf.mxu0
      %v1527 = vadd.f32 0.0, %v1526
      %v1528 = vpop.f32.mrf.mxu0
      %v1529 = vpop.f32.mrf.mxu0
      %v1530 = vadd.f32 0.0, %v1529
      %v1531 = vpop.f32.mrf.mxu0
      %1532 = vmatprep.mubr.bf16.mxu0 0
      %1533 = vmatmul.mubr.bf16.gmra.mxu0 %v1375
      %v1534 = vpop.f32.mrf.mxu0
      %v1535 = vadd.f32 0.0, %v1534
      %v1536 = vpop.f32.mrf.mxu0
      %v1537 = vpop.f32.mrf.mxu0
      %v1538 = vadd.f32 0.0, %v1537
      %v1539 = vpop.f32.mrf.mxu0
      %1540 = vdwg.mxu0
      %v1541 = vadd.f32 %v1079, %v1415
      %v1542 = vadd.f32 %v1082, %v1418
      %v1543 = vadd.f32 %v1087, %v1423
      %v1544 = vadd.f32 %v1090, %v1426
      %v1545 = vadd.f32 %v1095, %v1431
      %v1546 = vadd.f32 %v1098, %v1434
      %v1547 = vadd.f32 %v1103, %v1439
      %v1548 = vadd.f32 %v1106, %v1442
      %v1549 = vadd.f32 %v1111, %v1447
      %v1550 = vadd.f32 %v1114, %v1450
      %v1551 = vadd.f32 %v1119, %v1455
      %v1552 = vadd.f32 %v1122, %v1458
      %v1553 = vadd.f32 %v1127, %v1463
      %v1554 = vadd.f32 %v1130, %v1466
      %v1555 = vadd.f32 %v1135, %v1471
      %v1556 = vadd.f32 %v1138, %v1474
      %v1557 = vadd.f32 %v1143, %v1479
      %v1558 = vadd.f32 %v1146, %v1482
      %v1559 = vadd.f32 %v1151, %v1487
      %v1560 = vadd.f32 %v1154, %v1490
      %v1561 = vadd.f32 %v1159, %v1495
      %v1562 = vadd.f32 %v1162, %v1498
      %v1563 = vadd.f32 %v1167, %v1503
      %v1564 = vadd.f32 %v1170, %v1506
      %v1565 = vadd.f32 %v1175, %v1511
      %v1566 = vadd.f32 %v1178, %v1514
      %v1567 = vadd.f32 %v1183, %v1519
      %v1568 = vadd.f32 %v1186, %v1522
      %v1569 = vadd.f32 %v1191, %v1527
      %v1570 = vadd.f32 %v1194, %v1530
      %v1571 = vadd.f32 %v1199, %v1535
      %v1572 = vadd.f32 %v1202, %v1538
      %v1573 = vld [vmem:[%s1208] sm:$0xf]
      %v1574 = vld [vmem:[%s1208 + $0x4] sm:$0xf]
      %v1575 = vld [vmem:[%s1208 + $0x8] sm:$0x1]
      %v1576 = vld [vmem:[%s1208 + $0xc] sm:$0xf]
      %v1577 = vld [vmem:[%s1208 + $0x10] sm:$0xf]
      %v1578 = vld [vmem:[%s1208 + $0x14] sm:$0x1]
      %v1579 = vld [vmem:[%s1208 + $0x18] sm:$0xf]
      %v1580 = vld [vmem:[%s1208 + $0x1c] sm:$0xf]
      %v1581 = vld [vmem:[%s1208 + $0x20] sm:$0x1]
      %v1582 = vld [vmem:[%s1208 + $0x24] sm:$0xf]
      %v1583 = vld [vmem:[%s1208 + $0x28] sm:$0xf]
      %v1584 = vld [vmem:[%s1208 + $0x2c] sm:$0x1]
      %v1585 = vld [vmem:[%s1208 + $0x30] sm:$0xf]
      %v1586 = vld [vmem:[%s1208 + $0x34] sm:$0xf]
      %v1587 = vld [vmem:[%s1208 + $0x38] sm:$0x1]
      %v1588 = vld [vmem:[%s1208 + $0x3c] sm:$0xf]
      %v1589 = vld [vmem:[%s1208 + $0x40] sm:$0xf]
      %v1590 = vld [vmem:[%s1208 + $0x44] sm:$0x1]
      %v1591 = vld [vmem:[%s1208 + $0x48] sm:$0xf]
      %v1592 = vld [vmem:[%s1208 + $0x4c] sm:$0xf]
      %v1593 = vld [vmem:[%s1208 + $0x50] sm:$0x1]
      %v1594 = vld [vmem:[%s1208 + $0x54] sm:$0xf]
      %v1595 = vld [vmem:[%s1208 + $0x58] sm:$0xf]
      %v1596 = vld [vmem:[%s1208 + $0x5c] sm:$0x1]
      %v1597 = vld [vmem:[%s1208 + $0x60] sm:$0xf]
      %v1598 = vld [vmem:[%s1208 + $0x64] sm:$0xf]
      %v1599 = vld [vmem:[%s1208 + $0x68] sm:$0x1]
      %v1600 = vld [vmem:[%s1208 + $0x6c] sm:$0xf]
      %v1601 = vld [vmem:[%s1208 + $0x70] sm:$0xf]
      %v1602 = vld [vmem:[%s1208 + $0x74] sm:$0x1]
      %v1603 = vld [vmem:[%s1208 + $0x78] sm:$0xf]
      %v1604 = vld [vmem:[%s1208 + $0x7c] sm:$0xf]
      %v1605 = vld [vmem:[%s1208 + $0x80] sm:$0x1]
      %v1606 = vld [vmem:[%s1208 + $0x84] sm:$0xf]
      %v1607 = vld [vmem:[%s1208 + $0x88] sm:$0xf]
      %v1608 = vld [vmem:[%s1208 + $0x8c] sm:$0x1]
      %v1609 = vld [vmem:[%s1208 + $0x90] sm:$0xf]
      %v1610 = vld [vmem:[%s1208 + $0x94] sm:$0xf]
      %v1611 = vld [vmem:[%s1208 + $0x98] sm:$0x1]
      %v1612 = vld [vmem:[%s1208 + $0x9c] sm:$0xf]
      %v1613 = vld [vmem:[%s1208 + $0xa0] sm:$0xf]
      %v1614 = vld [vmem:[%s1208 + $0xa4] sm:$0x1]
      %v1615 = vld [vmem:[%s1208 + $0xa8] sm:$0xf]
      %v1616 = vld [vmem:[%s1208 + $0xac] sm:$0xf]
      %v1617 = vld [vmem:[%s1208 + $0xb0] sm:$0x1]
      %v1618 = vld [vmem:[%s1208 + $0xb4] sm:$0xf]
      %v1619 = vld [vmem:[%s1208 + $0xb8] sm:$0xf]
      %v1620 = vld [vmem:[%s1208 + $0xbc] sm:$0x1]
      %v1622 = vshrl.u32 %v1573, 16
      %v1624 = vrot.slane %v1622, 4
      %v1625 = vshll.u32 %v1573, 16
      %v1627 = vrot.slane %v1625, 5
      %v1628 = vor.u32 %v1624, %v1627
      %v1629 = vrot.slane %v1628, 4
      %v1631 = vshll.u32 %v1574, 16
      %v1633 = vrot.slane %v1631, 5
      %v1634 = vsel %vm253, %v1629, %v1633
      %v1635 = vshrl.u32 %v1574, 16
      %v1637 = vrot.slane %v1635, 4
      %v1638 = vor.u32 %v1637, %v1633
      %v1639 = vrot.slane %v1638, 4
      %v1641 = vshll.u32 %v1575, 16
      %v1643 = vrot.slane %v1641, 5
      %v1644 = vsel %vm253, %v1639, %v1643
      %v1646 = vshrl.u32 %v1576, 16
      %v1648 = vrot.slane %v1646, 4
      %v1649 = vshll.u32 %v1576, 16
      %v1651 = vrot.slane %v1649, 5
      %v1652 = vor.u32 %v1648, %v1651
      %v1653 = vrot.slane %v1652, 4
      %v1655 = vshll.u32 %v1577, 16
      %v1657 = vrot.slane %v1655, 5
      %v1658 = vsel %vm253, %v1653, %v1657
      %v1659 = vshrl.u32 %v1577, 16
      %v1661 = vrot.slane %v1659, 4
      %v1662 = vor.u32 %v1661, %v1657
      %v1663 = vrot.slane %v1662, 4
      %v1665 = vshll.u32 %v1578, 16
      %v1667 = vrot.slane %v1665, 5
      %v1668 = vsel %vm253, %v1663, %v1667
      %v1670 = vshrl.u32 %v1579, 16
      %v1672 = vrot.slane %v1670, 4
      %v1673 = vshll.u32 %v1579, 16
      %v1675 = vrot.slane %v1673, 5
      %v1676 = vor.u32 %v1672, %v1675
      %v1677 = vrot.slane %v1676, 4
      %v1679 = vshll.u32 %v1580, 16
      %v1681 = vrot.slane %v1679, 5
      %v1682 = vsel %vm253, %v1677, %v1681
      %v1683 = vshrl.u32 %v1580, 16
      %v1685 = vrot.slane %v1683, 4
      %v1686 = vor.u32 %v1685, %v1681
      %v1687 = vrot.slane %v1686, 4
      %v1689 = vshll.u32 %v1581, 16
      %v1691 = vrot.slane %v1689, 5
      %v1692 = vsel %vm253, %v1687, %v1691
      %v1694 = vshrl.u32 %v1582, 16
      %v1696 = vrot.slane %v1694, 4
      %v1697 = vshll.u32 %v1582, 16
      %v1699 = vrot.slane %v1697, 5
      %v1700 = vor.u32 %v1696, %v1699
      %v1701 = vrot.slane %v1700, 4
      %v1703 = vshll.u32 %v1583, 16
      %v1705 = vrot.slane %v1703, 5
      %v1706 = vsel %vm253, %v1701, %v1705
      %v1707 = vshrl.u32 %v1583, 16
      %v1709 = vrot.slane %v1707, 4
      %v1710 = vor.u32 %v1709, %v1705
      %v1711 = vrot.slane %v1710, 4
      %v1713 = vshll.u32 %v1584, 16
      %v1715 = vrot.slane %v1713, 5
      %v1716 = vsel %vm253, %v1711, %v1715
      %v1718 = vshrl.u32 %v1585, 16
      %v1720 = vrot.slane %v1718, 4
      %v1721 = vshll.u32 %v1585, 16
      %v1723 = vrot.slane %v1721, 5
      %v1724 = vor.u32 %v1720, %v1723
      %v1725 = vrot.slane %v1724, 4
      %v1727 = vshll.u32 %v1586, 16
      %v1729 = vrot.slane %v1727, 5
      %v1730 = vsel %vm253, %v1725, %v1729
      %v1731 = vshrl.u32 %v1586, 16
      %v1733 = vrot.slane %v1731, 4
      %v1734 = vor.u32 %v1733, %v1729
      %v1735 = vrot.slane %v1734, 4
      %v1737 = vshll.u32 %v1587, 16
      %v1739 = vrot.slane %v1737, 5
      %v1740 = vsel %vm253, %v1735, %v1739
      %v1742 = vshrl.u32 %v1588, 16
      %v1744 = vrot.slane %v1742, 4
      %v1745 = vshll.u32 %v1588, 16
      %v1747 = vrot.slane %v1745, 5
      %v1748 = vor.u32 %v1744, %v1747
      %v1749 = vrot.slane %v1748, 4
      %v1751 = vshll.u32 %v1589, 16
      %v1753 = vrot.slane %v1751, 5
      %v1754 = vsel %vm253, %v1749, %v1753
      %v1755 = vshrl.u32 %v1589, 16
      %v1757 = vrot.slane %v1755, 4
      %v1758 = vor.u32 %v1757, %v1753
      %v1759 = vrot.slane %v1758, 4
      %v1761 = vshll.u32 %v1590, 16
      %v1763 = vrot.slane %v1761, 5
      %v1764 = vsel %vm253, %v1759, %v1763
      %v1766 = vshrl.u32 %v1591, 16
      %v1768 = vrot.slane %v1766, 4
      %v1769 = vshll.u32 %v1591, 16
      %v1771 = vrot.slane %v1769, 5
      %v1772 = vor.u32 %v1768, %v1771
      %v1773 = vrot.slane %v1772, 4
      %v1775 = vshll.u32 %v1592, 16
      %v1777 = vrot.slane %v1775, 5
      %v1778 = vsel %vm253, %v1773, %v1777
      %v1779 = vshrl.u32 %v1592, 16
      %v1781 = vrot.slane %v1779, 4
      %v1782 = vor.u32 %v1781, %v1777
      %v1783 = vrot.slane %v1782, 4
      %v1785 = vshll.u32 %v1593, 16
      %v1787 = vrot.slane %v1785, 5
      %v1788 = vsel %vm253, %v1783, %v1787
      %v1790 = vshrl.u32 %v1594, 16
      %v1792 = vrot.slane %v1790, 4
      %v1793 = vshll.u32 %v1594, 16
      %v1795 = vrot.slane %v1793, 5
      %v1796 = vor.u32 %v1792, %v1795
      %v1797 = vrot.slane %v1796, 4
      %v1799 = vshll.u32 %v1595, 16
      %v1801 = vrot.slane %v1799, 5
      %v1802 = vsel %vm253, %v1797, %v1801
      %v1803 = vshrl.u32 %v1595, 16
      %v1805 = vrot.slane %v1803, 4
      %v1806 = vor.u32 %v1805, %v1801
      %v1807 = vrot.slane %v1806, 4
      %v1809 = vshll.u32 %v1596, 16
      %v1811 = vrot.slane %v1809, 5
      %v1812 = vsel %vm253, %v1807, %v1811
      %v1814 = vshrl.u32 %v1597, 16
      %v1816 = vrot.slane %v1814, 4
      %v1817 = vshll.u32 %v1597, 16
      %v1819 = vrot.slane %v1817, 5
      %v1820 = vor.u32 %v1816, %v1819
      %v1821 = vrot.slane %v1820, 4
      %v1823 = vshll.u32 %v1598, 16
      %v1825 = vrot.slane %v1823, 5
      %v1826 = vsel %vm253, %v1821, %v1825
      %v1827 = vshrl.u32 %v1598, 16
      %v1829 = vrot.slane %v1827, 4
      %v1830 = vor.u32 %v1829, %v1825
      %v1831 = vrot.slane %v1830, 4
      %v1833 = vshll.u32 %v1599, 16
      %v1835 = vrot.slane %v1833, 5
      %v1836 = vsel %vm253, %v1831, %v1835
      %v1838 = vshrl.u32 %v1600, 16
      %v1840 = vrot.slane %v1838, 4
      %v1841 = vshll.u32 %v1600, 16
      %v1843 = vrot.slane %v1841, 5
      %v1844 = vor.u32 %v1840, %v1843
      %v1845 = vrot.slane %v1844, 4
      %v1847 = vshll.u32 %v1601, 16
      %v1849 = vrot.slane %v1847, 5
      %v1850 = vsel %vm253, %v1845, %v1849
      %v1851 = vshrl.u32 %v1601, 16
      %v1853 = vrot.slane %v1851, 4
      %v1854 = vor.u32 %v1853, %v1849
      %v1855 = vrot.slane %v1854, 4
      %v1857 = vshll.u32 %v1602, 16
      %v1859 = vrot.slane %v1857, 5
      %v1860 = vsel %vm253, %v1855, %v1859
      %v1862 = vshrl.u32 %v1603, 16
      %v1864 = vrot.slane %v1862, 4
      %v1865 = vshll.u32 %v1603, 16
      %v1867 = vrot.slane %v1865, 5
      %v1868 = vor.u32 %v1864, %v1867
      %v1869 = vrot.slane %v1868, 4
      %v1871 = vshll.u32 %v1604, 16
      %v1873 = vrot.slane %v1871, 5
      %v1874 = vsel %vm253, %v1869, %v1873
      %v1875 = vshrl.u32 %v1604, 16
      %v1877 = vrot.slane %v1875, 4
      %v1878 = vor.u32 %v1877, %v1873
      %v1879 = vrot.slane %v1878, 4
      %v1881 = vshll.u32 %v1605, 16
      %v1883 = vrot.slane %v1881, 5
      %v1884 = vsel %vm253, %v1879, %v1883
      %v1886 = vshrl.u32 %v1606, 16
      %v1888 = vrot.slane %v1886, 4
      %v1889 = vshll.u32 %v1606, 16
      %v1891 = vrot.slane %v1889, 5
      %v1892 = vor.u32 %v1888, %v1891
      %v1893 = vrot.slane %v1892, 4
      %v1895 = vshll.u32 %v1607, 16
      %v1897 = vrot.slane %v1895, 5
      %v1898 = vsel %vm253, %v1893, %v1897
      %v1899 = vshrl.u32 %v1607, 16
      %v1901 = vrot.slane %v1899, 4
      %v1902 = vor.u32 %v1901, %v1897
      %v1903 = vrot.slane %v1902, 4
      %v1905 = vshll.u32 %v1608, 16
      %v1907 = vrot.slane %v1905, 5
      %v1908 = vsel %vm253, %v1903, %v1907
      %v1910 = vshrl.u32 %v1609, 16
      %v1912 = vrot.slane %v1910, 4
      %v1913 = vshll.u32 %v1609, 16
      %v1915 = vrot.slane %v1913, 5
      %v1916 = vor.u32 %v1912, %v1915
      %v1917 = vrot.slane %v1916, 4
      %v1919 = vshll.u32 %v1610, 16
      %v1921 = vrot.slane %v1919, 5
      %v1922 = vsel %vm253, %v1917, %v1921
      %v1923 = vshrl.u32 %v1610, 16
      %v1925 = vrot.slane %v1923, 4
      %v1926 = vor.u32 %v1925, %v1921
      %v1927 = vrot.slane %v1926, 4
      %v1929 = vshll.u32 %v1611, 16
      %v1931 = vrot.slane %v1929, 5
      %v1932 = vsel %vm253, %v1927, %v1931
      %v1934 = vshrl.u32 %v1612, 16
      %v1936 = vrot.slane %v1934, 4
      %v1937 = vshll.u32 %v1612, 16
      %v1939 = vrot.slane %v1937, 5
      %v1940 = vor.u32 %v1936, %v1939
      %v1941 = vrot.slane %v1940, 4
      %v1943 = vshll.u32 %v1613, 16
      %v1945 = vrot.slane %v1943, 5
      %v1946 = vsel %vm253, %v1941, %v1945
      %v1947 = vshrl.u32 %v1613, 16
      %v1949 = vrot.slane %v1947, 4
      %v1950 = vor.u32 %v1949, %v1945
      %v1951 = vrot.slane %v1950, 4
      %v1953 = vshll.u32 %v1614, 16
      %v1955 = vrot.slane %v1953, 5
      %v1956 = vsel %vm253, %v1951, %v1955
      %v1958 = vshrl.u32 %v1615, 16
      %v1960 = vrot.slane %v1958, 4
      %v1961 = vshll.u32 %v1615, 16
      %v1963 = vrot.slane %v1961, 5
      %v1964 = vor.u32 %v1960, %v1963
      %v1965 = vrot.slane %v1964, 4
      %v1967 = vshll.u32 %v1616, 16
      %v1969 = vrot.slane %v1967, 5
      %v1970 = vsel %vm253, %v1965, %v1969
      %v1971 = vshrl.u32 %v1616, 16
      %v1973 = vrot.slane %v1971, 4
      %v1974 = vor.u32 %v1973, %v1969
      %v1975 = vrot.slane %v1974, 4
      %v1977 = vshll.u32 %v1617, 16
      %v1979 = vrot.slane %v1977, 5
      %v1980 = vsel %vm253, %v1975, %v1979
      %v1982 = vshrl.u32 %v1618, 16
      %v1984 = vrot.slane %v1982, 4
      %v1985 = vshll.u32 %v1618, 16
      %v1987 = vrot.slane %v1985, 5
      %v1988 = vor.u32 %v1984, %v1987
      %v1989 = vrot.slane %v1988, 4
      %v1991 = vshll.u32 %v1619, 16
      %v1993 = vrot.slane %v1991, 5
      %v1994 = vsel %vm253, %v1989, %v1993
      %v1995 = vshrl.u32 %v1619, 16
      %v1997 = vrot.slane %v1995, 4
      %v1998 = vor.u32 %v1997, %v1993
      %v1999 = vrot.slane %v1998, 4
      %v2001 = vshll.u32 %v1620, 16
      %v2003 = vrot.slane %v2001, 5
      %v2004 = vsel %vm253, %v1999, %v2003
      %s2005 = scalar_lea.vmem %s1, 24
      %v2006 = vld [vmem:[%s2005] sm:$0xf]
      %v2007 = vld [vmem:[%s2005 + $0x4] sm:$0x3]
      %v2008 = vunpack.c.l.b16 %v1634
      %v2009 = vunpack.c.l.b16 %v1644
      %v2010 = vunpack.c.l.b16 %v1658
      %v2011 = vunpack.c.l.b16 %v1668
      %v2012 = vunpack.c.l.b16 %v1682
      %v2013 = vunpack.c.l.b16 %v1692
      %v2014 = vunpack.c.l.b16 %v1706
      %v2015 = vunpack.c.l.b16 %v1716
      %v2016 = vunpack.c.l.b16 %v1730
      %v2017 = vunpack.c.l.b16 %v1740
      %v2018 = vunpack.c.l.b16 %v1754
      %v2019 = vunpack.c.l.b16 %v1764
      %v2020 = vunpack.c.l.b16 %v1778
      %v2021 = vunpack.c.l.b16 %v1788
      %v2022 = vunpack.c.l.b16 %v1802
      %v2023 = vunpack.c.l.b16 %v1812
      %v2024 = vunpack.c.l.b16 %v1826
      %v2025 = vunpack.c.l.b16 %v1836
      %v2026 = vunpack.c.l.b16 %v1850
      %v2027 = vunpack.c.l.b16 %v1860
      %v2028 = vunpack.c.l.b16 %v1874
      %v2029 = vunpack.c.l.b16 %v1884
      %v2030 = vunpack.c.l.b16 %v1898
      %v2031 = vunpack.c.l.b16 %v1908
      %v2032 = vunpack.c.l.b16 %v1922
      %v2033 = vunpack.c.l.b16 %v1932
      %v2034 = vunpack.c.l.b16 %v1946
      %v2035 = vunpack.c.l.b16 %v1956
      %v2036 = vunpack.c.l.b16 %v1970
      %v2037 = vunpack.c.l.b16 %v1980
      %v2038 = vunpack.c.l.b16 %v1994
      %v2039 = vunpack.c.l.b16 %v2004
      %v2040 = vpack.c.b16 %v2009, %v2008
      %v2041 = vpack.c.b16 %v2011, %v2010
      %v2042 = vpack.c.b16 %v2013, %v2012
      %v2043 = vpack.c.b16 %v2015, %v2014
      %v2044 = vpack.c.b16 %v2017, %v2016
      %v2045 = vpack.c.b16 %v2019, %v2018
      %v2046 = vpack.c.b16 %v2021, %v2020
      %v2047 = vpack.c.b16 %v2023, %v2022
      %v2048 = vpack.c.b16 %v2025, %v2024
      %v2049 = vpack.c.b16 %v2027, %v2026
      %v2050 = vpack.c.b16 %v2029, %v2028
      %v2051 = vpack.c.b16 %v2031, %v2030
      %v2052 = vpack.c.b16 %v2033, %v2032
      %v2053 = vpack.c.b16 %v2035, %v2034
      %v2054 = vpack.c.b16 %v2037, %v2036
      %v2055 = vpack.c.b16 %v2039, %v2038
      %v2058 = vunpack.c.l.b16 %v2006
      %v2059 = vunpack.c.l.b16 %v2007
      %v2060 = vpack.c.b16 %v2059, %v2058
      %v2062 = vsel %vm694, %v2040, 0
      %v2065 = vsel %vm694, %v2041, 0
      %v2068 = vsel %vm694, %v2042, 0
      %v2071 = vsel %vm694, %v2043, 0
      %v2074 = vsel %vm694, %v2044, 0
      %v2077 = vsel %vm694, %v2045, 0
      %v2080 = vsel %vm694, %v2046, 0
      %v2083 = vsel %vm694, %v2047, 0
      %v2086 = vsel %vm694, %v2048, 0
      %v2089 = vsel %vm694, %v2049, 0
      %v2092 = vsel %vm694, %v2050, 0
      %v2095 = vsel %vm694, %v2051, 0
      %v2098 = vsel %vm694, %v2052, 0
      %v2101 = vsel %vm694, %v2053, 0
      %v2104 = vsel %vm694, %v2054, 0
      %v2107 = vsel %vm694, %v2055, 0
      %v2110 = vsel %vm743, %v2060, 0
      %2112 = vmatprep.subr.bf16.mxu0 0
      %2113 = vmatpush1.bf16.msra.mxu0 0
      %2114 = vmatprep.subr.bf16.mxu0 0
      %2115 = vmatpush1.bf16.msra.mxu0 0
      %2116 = vmatprep.subr.bf16.mxu0 0
      %2117 = vmatpush1.bf16.msra.mxu0 0
      %2118 = vmatprep.subr.bf16.mxu0 0
      %2119 = vmatpush1.bf16.msra.mxu0 0
      %2120 = vmatprep.subr.bf16.mxu0 0
      %2121 = vmatpush1.bf16.msra.mxu0 0
      %2122 = vmatprep.subr.bf16.mxu0 0
      %2123 = vmatpush1.bf16.msra.mxu0 0
      %2124 = vmatprep.subr.bf16.mxu0 0
      %2125 = vmatpush1.bf16.msra.mxu0 0
      %2126 = vmatprep.subr.bf16.mxu0 0
      %2127 = vmatpush1.bf16.msra.mxu0 %v2110
      %2128 = vmatprep.subr.bf16.mxu0 0
      %2129 = vmatpush2.bf16.msra.mxu0 0
      %2130 = vmatprep.subr.bf16.mxu0 0
      %2131 = vmatpush2.bf16.msra.mxu0 0
      %2132 = vmatprep.subr.bf16.mxu0 0
      %2133 = vmatpush2.bf16.msra.mxu0 0
      %2134 = vmatprep.subr.bf16.mxu0 0
      %2135 = vmatpush2.bf16.msra.mxu0 0
      %2136 = vmatprep.subr.bf16.mxu0 0
      %2137 = vmatpush2.bf16.msra.mxu0 0
      %2138 = vmatprep.subr.bf16.mxu0 0
      %2139 = vmatpush2.bf16.msra.mxu0 0
      %2140 = vmatprep.subr.bf16.mxu0 0
      %2141 = vmatpush2.bf16.msra.mxu0 0
      %2142 = vmatprep.subr.bf16.mxu0 0
      %2143 = vmatpush2.bf16.msra.mxu0 0
      %2144 = vmatprep.mubr.bf16.mxu0 0
      %2145 = vmatmul.mubr.bf16.gmra.mxu0 %v2062
      %v2146 = vpop.f32.mrf.mxu0
      %v2147 = vadd.f32 0.0, %v2146
      %v2148 = vpop.f32.mrf.mxu0
      %v2149 = vpop.f32.mrf.mxu0
      %v2150 = vadd.f32 0.0, %v2149
      %v2151 = vpop.f32.mrf.mxu0
      %2152 = vmatprep.mubr.bf16.mxu0 0
      %2153 = vmatmul.mubr.bf16.gmra.mxu0 %v2065
      %v2154 = vpop.f32.mrf.mxu0
      %v2155 = vadd.f32 0.0, %v2154
      %v2156 = vpop.f32.mrf.mxu0
      %v2157 = vpop.f32.mrf.mxu0
      %v2158 = vadd.f32 0.0, %v2157
      %v2159 = vpop.f32.mrf.mxu0
      %2160 = vmatprep.mubr.bf16.mxu0 0
      %2161 = vmatmul.mubr.bf16.gmra.mxu0 %v2068
      %v2162 = vpop.f32.mrf.mxu0
      %v2163 = vadd.f32 0.0, %v2162
      %v2164 = vpop.f32.mrf.mxu0
      %v2165 = vpop.f32.mrf.mxu0
      %v2166 = vadd.f32 0.0, %v2165
      %v2167 = vpop.f32.mrf.mxu0
      %2168 = vmatprep.mubr.bf16.mxu0 0
      %2169 = vmatmul.mubr.bf16.gmra.mxu0 %v2071
      %v2170 = vpop.f32.mrf.mxu0
      %v2171 = vadd.f32 0.0, %v2170
      %v2172 = vpop.f32.mrf.mxu0
      %v2173 = vpop.f32.mrf.mxu0
      %v2174 = vadd.f32 0.0, %v2173
      %v2175 = vpop.f32.mrf.mxu0
      %2176 = vmatprep.mubr.bf16.mxu0 0
      %2177 = vmatmul.mubr.bf16.gmra.mxu0 %v2074
      %v2178 = vpop.f32.mrf.mxu0
      %v2179 = vadd.f32 0.0, %v2178
      %v2180 = vpop.f32.mrf.mxu0
      %v2181 = vpop.f32.mrf.mxu0
      %v2182 = vadd.f32 0.0, %v2181
      %v2183 = vpop.f32.mrf.mxu0
      %2184 = vmatprep.mubr.bf16.mxu0 0
      %2185 = vmatmul.mubr.bf16.gmra.mxu0 %v2077
      %v2186 = vpop.f32.mrf.mxu0
      %v2187 = vadd.f32 0.0, %v2186
      %v2188 = vpop.f32.mrf.mxu0
      %v2189 = vpop.f32.mrf.mxu0
      %v2190 = vadd.f32 0.0, %v2189
      %v2191 = vpop.f32.mrf.mxu0
      %2192 = vmatprep.mubr.bf16.mxu0 0
      %2193 = vmatmul.mubr.bf16.gmra.mxu0 %v2080
      %v2194 = vpop.f32.mrf.mxu0
      %v2195 = vadd.f32 0.0, %v2194
      %v2196 = vpop.f32.mrf.mxu0
      %v2197 = vpop.f32.mrf.mxu0
      %v2198 = vadd.f32 0.0, %v2197
      %v2199 = vpop.f32.mrf.mxu0
      %2200 = vmatprep.mubr.bf16.mxu0 0
      %2201 = vmatmul.mubr.bf16.gmra.mxu0 %v2083
      %v2202 = vpop.f32.mrf.mxu0
      %v2203 = vadd.f32 0.0, %v2202
      %v2204 = vpop.f32.mrf.mxu0
      %v2205 = vpop.f32.mrf.mxu0
      %v2206 = vadd.f32 0.0, %v2205
      %v2207 = vpop.f32.mrf.mxu0
      %2208 = vmatprep.mubr.bf16.mxu0 0
      %2209 = vmatmul.mubr.bf16.gmra.mxu0 %v2086
      %v2210 = vpop.f32.mrf.mxu0
      %v2211 = vadd.f32 0.0, %v2210
      %v2212 = vpop.f32.mrf.mxu0
      %v2213 = vpop.f32.mrf.mxu0
      %v2214 = vadd.f32 0.0, %v2213
      %v2215 = vpop.f32.mrf.mxu0
      %2216 = vmatprep.mubr.bf16.mxu0 0
      %2217 = vmatmul.mubr.bf16.gmra.mxu0 %v2089
      %v2218 = vpop.f32.mrf.mxu0
      %v2219 = vadd.f32 0.0, %v2218
      %v2220 = vpop.f32.mrf.mxu0
      %v2221 = vpop.f32.mrf.mxu0
      %v2222 = vadd.f32 0.0, %v2221
      %v2223 = vpop.f32.mrf.mxu0
      %2224 = vmatprep.mubr.bf16.mxu0 0
      %2225 = vmatmul.mubr.bf16.gmra.mxu0 %v2092
      %v2226 = vpop.f32.mrf.mxu0
      %v2227 = vadd.f32 0.0, %v2226
      %v2228 = vpop.f32.mrf.mxu0
      %v2229 = vpop.f32.mrf.mxu0
      %v2230 = vadd.f32 0.0, %v2229
      %v2231 = vpop.f32.mrf.mxu0
      %2232 = vmatprep.mubr.bf16.mxu0 0
      %2233 = vmatmul.mubr.bf16.gmra.mxu0 %v2095
      %v2234 = vpop.f32.mrf.mxu0
      %v2235 = vadd.f32 0.0, %v2234
      %v2236 = vpop.f32.mrf.mxu0
      %v2237 = vpop.f32.mrf.mxu0
      %v2238 = vadd.f32 0.0, %v2237
      %v2239 = vpop.f32.mrf.mxu0
      %2240 = vmatprep.mubr.bf16.mxu0 0
      %2241 = vmatmul.mubr.bf16.gmra.mxu0 %v2098
      %v2242 = vpop.f32.mrf.mxu0
      %v2243 = vadd.f32 0.0, %v2242
      %v2244 = vpop.f32.mrf.mxu0
      %v2245 = vpop.f32.mrf.mxu0
      %v2246 = vadd.f32 0.0, %v2245
      %v2247 = vpop.f32.mrf.mxu0
      %2248 = vmatprep.mubr.bf16.mxu0 0
      %2249 = vmatmul.mubr.bf16.gmra.mxu0 %v2101
      %v2250 = vpop.f32.mrf.mxu0
      %v2251 = vadd.f32 0.0, %v2250
      %v2252 = vpop.f32.mrf.mxu0
      %v2253 = vpop.f32.mrf.mxu0
      %v2254 = vadd.f32 0.0, %v2253
      %v2255 = vpop.f32.mrf.mxu0
      %2256 = vmatprep.mubr.bf16.mxu0 0
      %2257 = vmatmul.mubr.bf16.gmra.mxu0 %v2104
      %v2258 = vpop.f32.mrf.mxu0
      %v2259 = vadd.f32 0.0, %v2258
      %v2260 = vpop.f32.mrf.mxu0
      %v2261 = vpop.f32.mrf.mxu0
      %v2262 = vadd.f32 0.0, %v2261
      %v2263 = vpop.f32.mrf.mxu0
      %2264 = vmatprep.mubr.bf16.mxu0 0
      %2265 = vmatmul.mubr.bf16.gmra.mxu0 %v2107
      %v2266 = vpop.f32.mrf.mxu0
      %v2267 = vadd.f32 0.0, %v2266
      %v2268 = vpop.f32.mrf.mxu0
      %v2269 = vpop.f32.mrf.mxu0
      %v2270 = vadd.f32 0.0, %v2269
      %v2271 = vpop.f32.mrf.mxu0
      %2272 = vdwg.mxu0
      %v2273 = vadd.f32 %v1541, %v2147
      %v2274 = vadd.f32 %v1542, %v2150
      %v2275 = vadd.f32 %v1543, %v2155
      %v2276 = vadd.f32 %v1544, %v2158
      %v2277 = vadd.f32 %v1545, %v2163
      %v2278 = vadd.f32 %v1546, %v2166
      %v2279 = vadd.f32 %v1547, %v2171
      %v2280 = vadd.f32 %v1548, %v2174
      %v2281 = vadd.f32 %v1549, %v2179
      %v2282 = vadd.f32 %v1550, %v2182
      %v2283 = vadd.f32 %v1551, %v2187
      %v2284 = vadd.f32 %v1552, %v2190
      %v2285 = vadd.f32 %v1553, %v2195
      %v2286 = vadd.f32 %v1554, %v2198
      %v2287 = vadd.f32 %v1555, %v2203
      %v2288 = vadd.f32 %v1556, %v2206
      %v2289 = vadd.f32 %v1557, %v2211
      %v2290 = vadd.f32 %v1558, %v2214
      %v2291 = vadd.f32 %v1559, %v2219
      %v2292 = vadd.f32 %v1560, %v2222
      %v2293 = vadd.f32 %v1561, %v2227
      %v2294 = vadd.f32 %v1562, %v2230
      %v2295 = vadd.f32 %v1563, %v2235
      %v2296 = vadd.f32 %v1564, %v2238
      %v2297 = vadd.f32 %v1565, %v2243
      %v2298 = vadd.f32 %v1566, %v2246
      %v2299 = vadd.f32 %v1567, %v2251
      %v2300 = vadd.f32 %v1568, %v2254
      %v2301 = vadd.f32 %v1569, %v2259
      %v2302 = vadd.f32 %v1570, %v2262
      %v2303 = vadd.f32 %v1571, %v2267
      %v2304 = vadd.f32 %v1572, %v2270
      %v2305 = vld [vmem:[%s2] sm:$0x1]
      %v2307 = vlaneseq
      %v2308 = vshrl.u32 %v2307, 7
      %v2309 = vsub.s32 0, %v2308
      %v2310 = vrot.slane %v2305, %v2309
      %v2312 = vadd.f32 %v2273, %v2310
      %v2313 = vadd.f32 %v2274, %v2310
      %v2314 = vadd.f32 %v2275, %v2310
      %v2315 = vadd.f32 %v2276, %v2310
      %v2316 = vadd.f32 %v2277, %v2310
      %v2317 = vadd.f32 %v2278, %v2310
      %v2318 = vadd.f32 %v2279, %v2310
      %v2319 = vadd.f32 %v2280, %v2310
      %v2320 = vadd.f32 %v2281, %v2310
      %v2321 = vadd.f32 %v2282, %v2310
      %v2322 = vadd.f32 %v2283, %v2310
      %v2323 = vadd.f32 %v2284, %v2310
      %v2324 = vadd.f32 %v2285, %v2310
      %v2325 = vadd.f32 %v2286, %v2310
      %v2326 = vadd.f32 %v2287, %v2310
      %v2327 = vadd.f32 %v2288, %v2310
      %v2328 = vadd.f32 %v2289, %v2310
      %v2329 = vadd.f32 %v2290, %v2310
      %v2330 = vadd.f32 %v2291, %v2310
      %v2331 = vadd.f32 %v2292, %v2310
      %v2332 = vadd.f32 %v2293, %v2310
      %v2333 = vadd.f32 %v2294, %v2310
      %v2334 = vadd.f32 %v2295, %v2310
      %v2335 = vadd.f32 %v2296, %v2310
      %v2336 = vadd.f32 %v2297, %v2310
      %v2337 = vadd.f32 %v2298, %v2310
      %v2338 = vadd.f32 %v2299, %v2310
      %v2339 = vadd.f32 %v2300, %v2310
      %v2340 = vadd.f32 %v2301, %v2310
      %v2341 = vadd.f32 %v2302, %v2310
      %v2342 = vadd.f32 %v2303, %v2310
      %v2343 = vadd.f32 %v2304, %v2310
      %vm2344 = vcmp.gt.f32.partialorder %v2312, 0.0
      %vm2345 = vcmp.gt.f32.partialorder %v2313, 0.0
      %vm2346 = vcmp.gt.f32.partialorder %v2314, 0.0
      %vm2347 = vcmp.gt.f32.partialorder %v2315, 0.0
      %vm2348 = vcmp.gt.f32.partialorder %v2316, 0.0
      %vm2349 = vcmp.gt.f32.partialorder %v2317, 0.0
      %vm2350 = vcmp.gt.f32.partialorder %v2318, 0.0
      %vm2351 = vcmp.gt.f32.partialorder %v2319, 0.0
      %vm2352 = vcmp.gt.f32.partialorder %v2320, 0.0
      %vm2353 = vcmp.gt.f32.partialorder %v2321, 0.0
      %vm2354 = vcmp.gt.f32.partialorder %v2322, 0.0
      %vm2355 = vcmp.gt.f32.partialorder %v2323, 0.0
      %vm2356 = vcmp.gt.f32.partialorder %v2324, 0.0
      %vm2357 = vcmp.gt.f32.partialorder %v2325, 0.0
      %vm2358 = vcmp.gt.f32.partialorder %v2326, 0.0
      %vm2359 = vcmp.gt.f32.partialorder %v2327, 0.0
      %vm2360 = vcmp.gt.f32.partialorder %v2328, 0.0
      %vm2361 = vcmp.gt.f32.partialorder %v2329, 0.0
      %vm2362 = vcmp.gt.f32.partialorder %v2330, 0.0
      %vm2363 = vcmp.gt.f32.partialorder %v2331, 0.0
      %vm2364 = vcmp.gt.f32.partialorder %v2332, 0.0
      %vm2365 = vcmp.gt.f32.partialorder %v2333, 0.0
      %vm2366 = vcmp.gt.f32.partialorder %v2334, 0.0
      %vm2367 = vcmp.gt.f32.partialorder %v2335, 0.0
      %vm2368 = vcmp.gt.f32.partialorder %v2336, 0.0
      %vm2369 = vcmp.gt.f32.partialorder %v2337, 0.0
      %vm2370 = vcmp.gt.f32.partialorder %v2338, 0.0
      %vm2371 = vcmp.gt.f32.partialorder %v2339, 0.0
      %vm2372 = vcmp.gt.f32.partialorder %v2340, 0.0
      %vm2373 = vcmp.gt.f32.partialorder %v2341, 0.0
      %vm2374 = vcmp.gt.f32.partialorder %v2342, 0.0
      %vm2375 = vcmp.gt.f32.partialorder %v2343, 0.0
      %v2376 = vmul.f32 %v2312, 0.2
      %v2377 = vmul.f32 %v2313, 0.2
      %v2378 = vmul.f32 %v2314, 0.2
      %v2379 = vmul.f32 %v2315, 0.2
      %v2380 = vmul.f32 %v2316, 0.2
      %v2381 = vmul.f32 %v2317, 0.2
      %v2382 = vmul.f32 %v2318, 0.2
      %v2383 = vmul.f32 %v2319, 0.2
      %v2384 = vmul.f32 %v2320, 0.2
      %v2385 = vmul.f32 %v2321, 0.2
      %v2386 = vmul.f32 %v2322, 0.2
      %v2387 = vmul.f32 %v2323, 0.2
      %v2388 = vmul.f32 %v2324, 0.2
      %v2389 = vmul.f32 %v2325, 0.2
      %v2390 = vmul.f32 %v2326, 0.2
      %v2391 = vmul.f32 %v2327, 0.2
      %v2392 = vmul.f32 %v2328, 0.2
      %v2393 = vmul.f32 %v2329, 0.2
      %v2394 = vmul.f32 %v2330, 0.2
      %v2395 = vmul.f32 %v2331, 0.2
      %v2396 = vmul.f32 %v2332, 0.2
      %v2397 = vmul.f32 %v2333, 0.2
      %v2398 = vmul.f32 %v2334, 0.2
      %v2399 = vmul.f32 %v2335, 0.2
      %v2400 = vmul.f32 %v2336, 0.2
      %v2401 = vmul.f32 %v2337, 0.2
      %v2402 = vmul.f32 %v2338, 0.2
      %v2403 = vmul.f32 %v2339, 0.2
      %v2404 = vmul.f32 %v2340, 0.2
      %v2405 = vmul.f32 %v2341, 0.2
      %v2406 = vmul.f32 %v2342, 0.2
      %v2407 = vmul.f32 %v2343, 0.2
      %v2408 = vsel %vm2344, %v2312, %v2376
      %v2409 = vsel %vm2345, %v2313, %v2377
      %v2410 = vsel %vm2346, %v2314, %v2378
      %v2411 = vsel %vm2347, %v2315, %v2379
      %v2412 = vsel %vm2348, %v2316, %v2380
      %v2413 = vsel %vm2349, %v2317, %v2381
      %v2414 = vsel %vm2350, %v2318, %v2382
      %v2415 = vsel %vm2351, %v2319, %v2383
      %v2416 = vsel %vm2352, %v2320, %v2384
      %v2417 = vsel %vm2353, %v2321, %v2385
      %v2418 = vsel %vm2354, %v2322, %v2386
      %v2419 = vsel %vm2355, %v2323, %v2387
      %v2420 = vsel %vm2356, %v2324, %v2388
      %v2421 = vsel %vm2357, %v2325, %v2389
      %v2422 = vsel %vm2358, %v2326, %v2390
      %v2423 = vsel %vm2359, %v2327, %v2391
      %v2424 = vsel %vm2360, %v2328, %v2392
      %v2425 = vsel %vm2361, %v2329, %v2393
      %v2426 = vsel %vm2362, %v2330, %v2394
      %v2427 = vsel %vm2363, %v2331, %v2395
      %v2428 = vsel %vm2364, %v2332, %v2396
      %v2429 = vsel %vm2365, %v2333, %v2397
      %v2430 = vsel %vm2366, %v2334, %v2398
      %v2431 = vsel %vm2367, %v2335, %v2399
      %v2432 = vsel %vm2368, %v2336, %v2400
      %v2433 = vsel %vm2369, %v2337, %v2401
      %v2434 = vsel %vm2370, %v2338, %v2402
      %v2435 = vsel %vm2371, %v2339, %v2403
      %v2436 = vsel %vm2372, %v2340, %v2404
      %v2437 = vsel %vm2373, %v2341, %v2405
      %v2438 = vsel %vm2374, %v2342, %v2406
      %v2439 = vsel %vm2375, %v2343, %v2407
      %v2440 = vpack.c.bf16 %v2409, %v2408
      %v2441 = vpack.c.bf16 %v2411, %v2410
      %v2442 = vpack.c.bf16 %v2413, %v2412
      %v2443 = vpack.c.bf16 %v2415, %v2414
      %v2444 = vpack.c.bf16 %v2417, %v2416
      %v2445 = vpack.c.bf16 %v2419, %v2418
      %v2446 = vpack.c.bf16 %v2421, %v2420
      %v2447 = vpack.c.bf16 %v2423, %v2422
      %v2448 = vpack.c.bf16 %v2425, %v2424
      %v2449 = vpack.c.bf16 %v2427, %v2426
      %v2450 = vpack.c.bf16 %v2429, %v2428
      %v2451 = vpack.c.bf16 %v2431, %v2430
      %v2452 = vpack.c.bf16 %v2433, %v2432
      %v2453 = vpack.c.bf16 %v2435, %v2434
      %v2454 = vpack.c.bf16 %v2437, %v2436
      %v2455 = vpack.c.bf16 %v2439, %v2438
      %v2472 = vunpack.c.l.b16 %v2440
      %v2473 = vunpack.c.h.b16 %v2440
      %v2474 = vunpack.c.l.b16 %v2441
      %v2475 = vunpack.c.h.b16 %v2441
      %v2476 = vunpack.c.l.b16 %v2442
      %v2477 = vunpack.c.h.b16 %v2442
      %v2478 = vunpack.c.l.b16 %v2443
      %v2479 = vunpack.c.h.b16 %v2443
      %v2480 = vunpack.c.l.b16 %v2444
      %v2481 = vunpack.c.h.b16 %v2444
      %v2482 = vunpack.c.l.b16 %v2445
      %v2483 = vunpack.c.h.b16 %v2445
      %v2484 = vunpack.c.l.b16 %v2446
      %v2485 = vunpack.c.h.b16 %v2446
      %v2486 = vunpack.c.l.b16 %v2447
      %v2487 = vunpack.c.h.b16 %v2447
      %v2488 = vunpack.c.l.b16 %v2448
      %v2489 = vunpack.c.h.b16 %v2448
      %v2490 = vunpack.c.l.b16 %v2449
      %v2491 = vunpack.c.h.b16 %v2449
      %v2492 = vunpack.c.l.b16 %v2450
      %v2493 = vunpack.c.h.b16 %v2450
      %v2494 = vunpack.c.l.b16 %v2451
      %v2495 = vunpack.c.h.b16 %v2451
      %v2496 = vunpack.c.l.b16 %v2452
      %v2497 = vunpack.c.h.b16 %v2452
      %v2498 = vunpack.c.l.b16 %v2453
      %v2499 = vunpack.c.h.b16 %v2453
      %v2500 = vunpack.c.l.b16 %v2454
      %v2501 = vunpack.c.h.b16 %v2454
      %v2502 = vunpack.c.l.b16 %v2455
      %v2503 = vunpack.c.h.b16 %v2455
      %v2504 = vpack.c.b16 %v2472, %v2472
      %v2505 = vpack.c.b16 %v2473, %v2473
      %v2506 = vpack.c.b16 %v2474, %v2474
      %v2507 = vpack.c.b16 %v2475, %v2475
      %v2508 = vpack.c.b16 %v2476, %v2476
      %v2509 = vpack.c.b16 %v2477, %v2477
      %v2510 = vpack.c.b16 %v2478, %v2478
      %v2511 = vpack.c.b16 %v2479, %v2479
      %v2512 = vpack.c.b16 %v2480, %v2480
      %v2513 = vpack.c.b16 %v2481, %v2481
      %v2514 = vpack.c.b16 %v2482, %v2482
      %v2515 = vpack.c.b16 %v2483, %v2483
      %v2516 = vpack.c.b16 %v2484, %v2484
      %v2517 = vpack.c.b16 %v2485, %v2485
      %v2518 = vpack.c.b16 %v2486, %v2486
      %v2519 = vpack.c.b16 %v2487, %v2487
      %v2520 = vpack.c.b16 %v2488, %v2488
      %v2521 = vpack.c.b16 %v2489, %v2489
      %v2522 = vpack.c.b16 %v2490, %v2490
      %v2523 = vpack.c.b16 %v2491, %v2491
      %v2524 = vpack.c.b16 %v2492, %v2492
      %v2525 = vpack.c.b16 %v2493, %v2493
      %v2526 = vpack.c.b16 %v2494, %v2494
      %v2527 = vpack.c.b16 %v2495, %v2495
      %v2528 = vpack.c.b16 %v2496, %v2496
      %v2529 = vpack.c.b16 %v2497, %v2497
      %v2530 = vpack.c.b16 %v2498, %v2498
      %v2531 = vpack.c.b16 %v2499, %v2499
      %v2532 = vpack.c.b16 %v2500, %v2500
      %v2533 = vpack.c.b16 %v2501, %v2501
      %v2534 = vpack.c.b16 %v2502, %v2502
      %v2535 = vpack.c.b16 %v2503, %v2503
      %vm2568 = vcmask 60416
      %2569 = vst.msk [vmem:[%s194] sm:$0xf] %vm2568, %v2504
      %2570 = vst.msk [vmem:[%s194 + $0x4] sm:$0xf] %vm2568, %v2505
      %2571 = vst.msk [vmem:[%s194 + $0x8] sm:$0xf] %vm2568, %v2506
      %2572 = vst.msk [vmem:[%s194 + $0xc] sm:$0xf] %vm2568, %v2507
      %2573 = vst.msk [vmem:[%s194 + $0x10] sm:$0xf] %vm2568, %v2508
      %2574 = vst.msk [vmem:[%s194 + $0x14] sm:$0xf] %vm2568, %v2509
      %2575 = vst.msk [vmem:[%s194 + $0x18] sm:$0xf] %vm2568, %v2510
      %2576 = vst.msk [vmem:[%s194 + $0x1c] sm:$0xf] %vm2568, %v2511
      %2577 = vst.msk [vmem:[%s194 + $0x20] sm:$0xf] %vm2568, %v2512
      %2578 = vst.msk [vmem:[%s194 + $0x24] sm:$0xf] %vm2568, %v2513
      %2579 = vst.msk [vmem:[%s194 + $0x28] sm:$0xf] %vm2568, %v2514
      %2580 = vst.msk [vmem:[%s194 + $0x2c] sm:$0xf] %vm2568, %v2515
      %2581 = vst.msk [vmem:[%s194 + $0x30] sm:$0xf] %vm2568, %v2516
      %2582 = vst.msk [vmem:[%s194 + $0x34] sm:$0xf] %vm2568, %v2517
      %2583 = vst.msk [vmem:[%s194 + $0x38] sm:$0xf] %vm2568, %v2518
      %2584 = vst.msk [vmem:[%s194 + $0x3c] sm:$0xf] %vm2568, %v2519
      %2585 = vst.msk [vmem:[%s194 + $0x40] sm:$0xf] %vm2568, %v2520
      %2586 = vst.msk [vmem:[%s194 + $0x44] sm:$0xf] %vm2568, %v2521
      %2587 = vst.msk [vmem:[%s194 + $0x48] sm:$0xf] %vm2568, %v2522
      %2588 = vst.msk [vmem:[%s194 + $0x4c] sm:$0xf] %vm2568, %v2523
      %2589 = vst.msk [vmem:[%s194 + $0x50] sm:$0xf] %vm2568, %v2524
      %2590 = vst.msk [vmem:[%s194 + $0x54] sm:$0xf] %vm2568, %v2525
      %2591 = vst.msk [vmem:[%s194 + $0x58] sm:$0xf] %vm2568, %v2526
      %2592 = vst.msk [vmem:[%s194 + $0x5c] sm:$0xf] %vm2568, %v2527
      %2593 = vst.msk [vmem:[%s194 + $0x60] sm:$0xf] %vm2568, %v2528
      %2594 = vst.msk [vmem:[%s194 + $0x64] sm:$0xf] %vm2568, %v2529
      %2595 = vst.msk [vmem:[%s194 + $0x68] sm:$0xf] %vm2568, %v2530
      %2596 = vst.msk [vmem:[%s194 + $0x6c] sm:$0xf] %vm2568, %v2531
      %2597 = vst.msk [vmem:[%s194 + $0x70] sm:$0xf] %vm2568, %v2532
      %2598 = vst.msk [vmem:[%s194 + $0x74] sm:$0xf] %vm2568, %v2533
      %2599 = vst.msk [vmem:[%s194 + $0x78] sm:$0xf] %vm2568, %v2534
      %2600 = vst.msk [vmem:[%s194 + $0x7c] sm:$0xf] %vm2568, %v2535
      %s2601 = smul.u32 16, %s19
      %p2602 = scmp.lt.s32.totalorder %s18, 1
      %s2603 = scalar_select %p2602, %s18, 1
      %p2604 = scmp.lt.s32.totalorder %s2601, 15
      %s2605 = scalar_select %p2604, %s2601, 15
      %s2606 = smul.addr %s2605, 2
      %s2607 = smul.addr %s2603, 32
      %s2608 = sadd.s32 %s2606, %s2607
      %s2609 = smul.addr %s2608, 4
      %s2610 = scalar_lea.vmem %s3, %s2609
      // Predicated region
      $region33: #{nlayer_discriminator_forward.5} parent=31 // pred_check
        %p2611 = pneg %p114
      $region34: #{nlayer_discriminator_forward.5} parent=31 // pred_check_branch
        %2613 = sbr.rel (%p2611) target = $region36
      $region35: #{nlayer_discriminator_forward.5} parent=31 // pred_region
        %s2614 = smul.u32 16, %s19
      $region36: #{nlayer_discriminator_forward.5} parent=31 // pred_fallthru
        _
    $region32: #{nlayer_discriminator_forward.5} parent=5 // pred_fallthru
      _
    %p2615 = scmp.le.s32.totalorder 2, %s9
    // Predicated region
    $region37: #{nlayer_discriminator_forward.5} parent=5 // pred_check
      %p2616 = pneg %p2615
    $region38: #{nlayer_discriminator_forward.5} parent=5 // pred_check_branch
      %2618 = sbr.rel (%p2616) target = $region40
    $region39: #{nlayer_discriminator_forward.5} parent=5 // pred_region
      %s2619 = ssub.s32 %s9, 2
      // Predicated region
      $region41: #{nlayer_discriminator_forward.5} parent=39 // pred_check
        %p2620 = pneg %p120
      $region42: #{nlayer_discriminator_forward.5} parent=39 // pred_check_branch
        %2622 = sbr.rel (%p2620) target = $region44
      $region43: #{nlayer_discriminator_forward.5} parent=39 // pred_region
        %s2623 = smul.u32 16, %s21
        %p2624 = scmp.lt.s32.totalorder %s20, 1
        %s2625 = scalar_select %p2624, %s20, 1
        %p2626 = scmp.lt.s32.totalorder %s2623, 15
        %s2627 = scalar_select %p2626, %s2623, 15
        %s2628 = smul.addr %s2627, 2
        %s2629 = smul.addr %s2625, 32
        %s2630 = sadd.s32 %s2628, %s2629
        %s2631 = smul.addr %s2630, 4
        %s2632 = scalar_lea.vmem %s3, %s2631
      $region44: #{nlayer_discriminator_forward.5} parent=39 // pred_fallthru
        _
    $region40: #{nlayer_discriminator_forward.5} parent=5 // pred_fallthru
      _
  $region6: #{nlayer_discriminator_forward.5} parent=0 // loop_footer
    %s13 = sadd.s32 1, %s9
  $region7: #{nlayer_discriminator_forward.5} parent=0 // loop_footer_branch
    %8 = sbr.rel target = $region3
  $region8: #{nlayer_discriminator_forward.5} parent=0 // loop_exit
    _

// kernel: nlayer_discriminator_forward.6
$region0: #{nlayer_discriminator_forward.6}
  #allocation0 [shape = 'u32[]', space=smem, size = 0x4, offset = 0x4, fixed_abs, tag = 'smem constant byte address 0x4 - core index']
  #allocation1 [shape = 'u32[144,128]{1,0:T(1,128)}', space=vmem, size = 0x12000, scoped, tag = 'internal scratch']
  %s0 = inlined_call_operand.vmem [shape: bf16[2,9,9,32], index: 0, kind: input, shape index: {}]
  %s1 = inlined_call_operand.vmem [shape: bf16[4,32,128], index: 1, kind: input, shape index: {}]
  %s2 = inlined_call_operand.vmem [shape: bf16[2,8,8,16], index: 2, kind: output, shape index: {0}]
  %s3 = inlined_call_operand.vmem [shape: f32[2,1,1,16], index: 3, kind: output, shape index: {1}]
  %s4 = inlined_call_operand.vmem [shape: f32[2,1,1,16], index: 4, kind: output, shape index: {2}]
  %5 = xla_tuple %s2, %s3, %s4
  %s6 = sld [smem:[#allocation0]]
  $region57: #{nlayer_discriminator_forward.6} parent=0
    _
  %s8 = ssub.s32 1, %s6
  %s9 = scalar_select 0, %s8, %s6
  loop: start=0, step=1, limit=4
  $region2: #{nlayer_discriminator_forward.6} parent=0 // loop_pre_header
    _
  $region3: #{nlayer_discriminator_forward.6} parent=0 // loop_header
    %s11 = sphi 0, %s15
    %p12 = scmp.ge.s32.totalorder %s11, 4
    %s18 = sphi 0, %s30
    %s19 = sphi 0, %s26
    %s20 = sphi 0, %s18
    %s21 = sphi 0, %s19
    %s22 = sphi 0, %s20
    %s23 = sphi 0, %s21
    %s33 = sphi 0, %s35
    %s36 = sphi 0, %s33
    %s37 = sphi 0, %s36
    %s53 = sphi 0, %s37
    %s57 = sphi 0, %s57
    %s59 = sphi 0, %s57
    %s60 = sphi 0, %s59
    %s74 = sphi 0, %s60
    %s82 = sphi 0, %s84
    %s85 = sphi 0, %s82
    %s86 = sphi 0, %s85
    %s102 = sphi 0, %s86
    %s110 = sphi 0, %s112
    %s113 = sphi 0, %s110
    %s114 = sphi 0, %s113
    %s130 = sphi 0, %s114
    %s138 = sphi 0, %s140
    %s141 = sphi 0, %s138
    %s142 = sphi 0, %s141
    %s158 = sphi 0, %s142
  $region4: #{nlayer_discriminator_forward.6} parent=0 // loop_header_branch
    %14 = sbr.rel (%p12) target = $region8
  $region5: #{nlayer_discriminator_forward.6} parent=0 // loop_body
    %s16 = ssub.s32 %s11, 1
    %s17 = ssub.s32 %s11, 2
    %s24 = sadd.s32 1, %s19
    %p25 = scmp.ge.s32.totalorder %s24, 1
    %s26 = scalar_select %p25, 0, %s24
    %s27 = sadd.s32 1, %s18
    %s28 = scalar_select %p25, %s27, %s18
    %p29 = scmp.ge.s32.totalorder %s28, 2
    %s30 = scalar_select %p29, 0, %s28
    %s31 = ssub.s32 %s18, %s30
    %p32 = scmp.eq.s32.totalorder %s31, 0
    %s34 = sadd.s32 %s33, 1
    %s35 = scalar_select %p32, %s33, %s34
    %p38 = pneg %p32
    %p39 = scmp.eq.s32.totalorder %s11, 1
    %p40 = por %p38, %p39
    %p41 = scmp.ne.s32.totalorder %s33, %s36
    %p42 = scmp.eq.s32.totalorder %s11, 0
    %p43 = por %p41, %p42
    %p44 = scmp.ne.s32.totalorder %s33, %s36
    %p45 = scmp.eq.s32.totalorder %s16, 1
    %p46 = por %p44, %p45
    %p47 = scmp.ne.s32.totalorder %s36, %s37
    %p48 = scmp.eq.s32.totalorder %s16, 0
    %p49 = por %p47, %p48
    %p50 = scmp.ne.s32.totalorder %s36, %s37
    %p51 = scmp.eq.s32.totalorder %s17, 1
    %p52 = por %p50, %p51
    %p54 = scmp.ne.s32.totalorder %s37, %s53
    %p55 = scmp.eq.s32.totalorder %s17, 0
    %p56 = por %p54, %p55
    %s58 = sadd.s32 %s57, 1
    %p61 = scmp.eq.s32.totalorder %s11, 1
    %p62 = scmp.ne.s32.totalorder %s57, %s59
    %p63 = scmp.eq.s32.totalorder %s11, 0
    %p64 = por %p62, %p63
    %p65 = scmp.ne.s32.totalorder %s57, %s59
    %p66 = scmp.eq.s32.totalorder %s16, 1
    %p67 = por %p65, %p66
    %p68 = scmp.ne.s32.totalorder %s59, %s60
    %p69 = scmp.eq.s32.totalorder %s16, 0
    %p70 = por %p68, %p69
    %p71 = scmp.ne.s32.totalorder %s59, %s60
    %p72 = scmp.eq.s32.totalorder %s17, 1
    %p73 = por %p71, %p72
    %p75 = scmp.ne.s32.totalorder %s60, %s74
    %p76 = scmp.eq.s32.totalorder %s17, 0
    %p77 = por %p75, %p76
    %s78 = ssub.s32 %s18, %s30
    %s79 = ssub.s32 %s19, %s26
    %s80 = sor.u32 %s78, %s79
    %p81 = scmp.eq.s32.totalorder %s80, 0
    %s83 = sadd.s32 %s82, 1
    %s84 = scalar_select %p81, %s82, %s83
    %p87 = pneg %p81
    %p88 = scmp.eq.s32.totalorder %s11, 1
    %p89 = por %p87, %p88
    %p90 = scmp.ne.s32.totalorder %s82, %s85
    %p91 = scmp.eq.s32.totalorder %s11, 0
    %p92 = por %p90, %p91
    %p93 = scmp.ne.s32.totalorder %s82, %s85
    %p94 = scmp.eq.s32.totalorder %s16, 1
    %p95 = por %p93, %p94
    %p96 = scmp.ne.s32.totalorder %s85, %s86
    %p97 = scmp.eq.s32.totalorder %s16, 0
    %p98 = por %p96, %p97
    %p99 = scmp.ne.s32.totalorder %s85, %s86
    %p100 = scmp.eq.s32.totalorder %s17, 1
    %p101 = por %p99, %p100
    %p103 = scmp.ne.s32.totalorder %s86, %s102
    %p104 = scmp.eq.s32.totalorder %s17, 0
    %p105 = por %p103, %p104
    %s106 = ssub.s32 %s18, %s30
    %s107 = ssub.s32 %s19, %s26
    %s108 = sor.u32 %s106, %s107
    %p109 = scmp.eq.s32.totalorder %s108, 0
    %s111 = sadd.s32 %s110, 1
    %s112 = scalar_select %p109, %s110, %s111
    %p115 = pneg %p109
    %p116 = scmp.eq.s32.totalorder %s11, 1
    %p117 = por %p115, %p116
    %p118 = scmp.ne.s32.totalorder %s110, %s113
    %p119 = scmp.eq.s32.totalorder %s11, 0
    %p120 = por %p118, %p119
    %p121 = scmp.ne.s32.totalorder %s110, %s113
    %p122 = scmp.eq.s32.totalorder %s16, 1
    %p123 = por %p121, %p122
    %p124 = scmp.ne.s32.totalorder %s113, %s114
    %p125 = scmp.eq.s32.totalorder %s16, 0
    %p126 = por %p124, %p125
    %p127 = scmp.ne.s32.totalorder %s113, %s114
    %p128 = scmp.eq.s32.totalorder %s17, 1
    %p129 = por %p127, %p128
    %p131 = scmp.ne.s32.totalorder %s114, %s130
    %p132 = scmp.eq.s32.totalorder %s17, 0
    %p133 = por %p131, %p132
    %s134 = ssub.s32 %s18, %s30
    %s135 = ssub.s32 %s19, %s26
    %s136 = sor.u32 %s134, %s135
    %p137 = scmp.eq.s32.totalorder %s136, 0
    %s139 = sadd.s32 %s138, 1
    %s140 = scalar_select %p137, %s138, %s139
    %p143 = pneg %p137
    %p144 = scmp.eq.s32.totalorder %s11, 1
    %p145 = por %p143, %p144
    %p146 = scmp.ne.s32.totalorder %s138, %s141
    %p147 = scmp.eq.s32.totalorder %s11, 0
    %p148 = por %p146, %p147
    %p149 = scmp.ne.s32.totalorder %s138, %s141
    %p150 = scmp.eq.s32.totalorder %s16, 1
    %p151 = por %p149, %p150
    %p152 = scmp.ne.s32.totalorder %s141, %s142
    %p153 = scmp.eq.s32.totalorder %s16, 0
    %p154 = por %p152, %p153
    %p155 = scmp.ne.s32.totalorder %s141, %s142
    %p156 = scmp.eq.s32.totalorder %s17, 1
    %p157 = por %p155, %p156
    %p159 = scmp.ne.s32.totalorder %s142, %s158
    %p160 = scmp.eq.s32.totalorder %s17, 0
    %p161 = por %p159, %p160
    %p162 = scmp.le.s32.totalorder 1, %s11
    %p163 = scmp.lt.s32.totalorder %s11, 3
    %p164 = pnand %p162, %p163
    %p165 = pneg %p164
    // Predicated region
    $region9: #{nlayer_discriminator_forward.6} parent=5 // pred_check
      _
    $region10: #{nlayer_discriminator_forward.6} parent=5 // pred_check_branch
      %167 = sbr.rel (%p164) target = $region12
    $region11: #{nlayer_discriminator_forward.6} parent=5 // pred_region
      %s168 = ssub.s32 %s11, 1
      // Predicated region
      $region13: #{nlayer_discriminator_forward.6} parent=11 // pred_check
        %p169 = pneg %p70
      $region14: #{nlayer_discriminator_forward.6} parent=11 // pred_check_branch
        %171 = sbr.rel (%p169) target = $region16
      $region15: #{nlayer_discriminator_forward.6} parent=11 // pred_region
        _
      $region16: #{nlayer_discriminator_forward.6} parent=11 // pred_fallthru
        _
    $region12: #{nlayer_discriminator_forward.6} parent=5 // pred_fallthru
      _
    %p172 = scmp.lt.s32.totalorder %s11, 2
    // Predicated region
    $region17: #{nlayer_discriminator_forward.6} parent=5 // pred_check
      %p173 = pneg %p172
    $region18: #{nlayer_discriminator_forward.6} parent=5 // pred_check_branch
      %175 = sbr.rel (%p173) target = $region20
    $region19: #{nlayer_discriminator_forward.6} parent=5 // pred_region
      // Predicated region
      $region21: #{nlayer_discriminator_forward.6} parent=19 // pred_check
        %p176 = pneg %p43
      $region22: #{nlayer_discriminator_forward.6} parent=19 // pred_check_branch
        %178 = sbr.rel (%p176) target = $region24
      $region23: #{nlayer_discriminator_forward.6} parent=19 // pred_region
        %p179 = scmp.lt.s32.totalorder %s18, 1
        %s180 = scalar_select %p179, %s18, 1
        %s181 = smul.addr %s180, 18
        %s182 = smul.addr %s181, 4
        %s183 = scalar_lea.vmem %s0, %s182
      $region24: #{nlayer_discriminator_forward.6} parent=19 // pred_fallthru
        _
    $region20: #{nlayer_discriminator_forward.6} parent=5 // pred_fallthru
      _
    %p184 = scmp.le.s32.totalorder 1, %s11
    %p185 = scmp.lt.s32.totalorder %s11, 3
    %p186 = pnand %p184, %p185
    %p187 = pneg %p186
    // Predicated region
    $region25: #{nlayer_discriminator_forward.6} parent=5 // pred_check
      _
    $region26: #{nlayer_discriminator_forward.6} parent=5 // pred_check_branch
      %189 = sbr.rel (%p186) target = $region28
    $region27: #{nlayer_discriminator_forward.6} parent=5 // pred_region
      %s190 = ssub.s32 %s11, 1
      %p191 = scmp.lt.s32.totalorder %s20, 1
      %s192 = scalar_select %p191, %s20, 1
      %s193 = smul.addr %s192, 18
      %s194 = smul.addr %s193, 4
      %s195 = scalar_lea.vmem %s0, %s194
      %p196 = pneg %p49
      %p197 = pneg %p46
      %p198 = pneg %p70
      %p199 = pneg %p67
      %p200 = pneg %p98
      %p201 = pneg %p95
      %s202 = smul.u32 8, %s21
      %p203 = scmp.lt.s32.totalorder %s20, 1
      %s204 = scalar_select %p203, %s20, 1
      %p205 = scmp.lt.s32.totalorder %s202, 7
      %s206 = scalar_select %p205, %s202, 7
      %s207 = smul.addr %s204, 8
      %s208 = sadd.s32 %s206, %s207
      %s209 = smul.addr %s208, 4
      %s210 = scalar_lea.vmem %s2, %s209
      %p211 = pneg %p126
      %p212 = pneg %p123
      %p213 = scmp.lt.s32.totalorder %s20, 1
      %s214 = scalar_select %p213, %s20, 1
      %p215 = scmp.lt.s32.totalorder %s21, 0
      %s216 = scalar_select %p215, %s21, 0
      %s217 = sadd.s32 %s216, %s214
      %s218 = scalar_lea.vmem %s3, %s217
      %p219 = pneg %p154
      %p220 = pneg %p151
      %p221 = scmp.lt.s32.totalorder %s20, 1
      %s222 = scalar_select %p221, %s20, 1
      %p223 = scmp.lt.s32.totalorder %s21, 0
      %s224 = scalar_select %p223, %s21, 0
      %s225 = sadd.s32 %s224, %s222
      %s226 = scalar_lea.vmem %s4, %s225
      %p227 = scmp.lt.s32.totalorder %s20, 1
      %s228 = scalar_select %p227, %s20, 1
      %s229 = smul.addr %s228, 18
      %s230 = smul.addr %s229, 4
      %s231 = scalar_lea.vmem %s0, %s230
      %s232 = smul.u32 8, %s21
      %p233 = scmp.lt.s32.totalorder %s20, 1
      %s234 = scalar_select %p233, %s20, 1
      %p235 = scmp.lt.s32.totalorder %s232, 7
      %s236 = scalar_select %p235, %s232, 7
      %s237 = smul.addr %s234, 8
      %s238 = sadd.s32 %s236, %s237
      %s239 = smul.addr %s238, 4
      %s240 = scalar_lea.vmem %s2, %s239
      %s241 = smul.u32 8, %s21
      %p242 = scmp.lt.s32.totalorder %s20, 1
      %s243 = scalar_select %p242, %s20, 1
      %p244 = scmp.lt.s32.totalorder %s21, 0
      %s245 = scalar_select %p244, %s21, 0
      %s246 = sadd.s32 %s245, %s243
      %s247 = scalar_lea.vmem %s3, %s246
      %p248 = scmp.lt.s32.totalorder %s20, 1
      %s249 = scalar_select %p248, %s20, 1
      %p250 = scmp.lt.s32.totalorder %s21, 0
      %s251 = scalar_select %p250, %s21, 0
      %s252 = sadd.s32 %s251, %s249
      %s253 = scalar_lea.vmem %s4, %s252
      %s255 = smul.u32 %s21, 8
      %s256 = smul.u32 %s255, 2
      %s257 = smul.addr %s256, 4
      %s258 = scalar_lea.vmem %s231, %s257
      %v259 = vld [vmem:[%s258] sm:$0xf]
      %v260 = vld [vmem:[%s258 + $0x8] sm:$0xf]
      %v261 = vld [vmem:[%s258 + $0x10] sm:$0xf]
      %v262 = vld [vmem:[%s258 + $0x18] sm:$0xf]
      %v263 = vld [vmem:[%s258 + $0x20] sm:$0xf]
      %v264 = vld [vmem:[%s258 + $0x28] sm:$0xf]
      %v265 = vld [vmem:[%s258 + $0x30] sm:$0xf]
      %v266 = vld [vmem:[%s258 + $0x38] sm:$0xf]
      %v267 = vld [vmem:[%s1] sm:$0xf]
      %v268 = vld [vmem:[%s1 + $0x4] sm:$0xf]
      %v269 = vld [vmem:[%s1 + $0x8] sm:$0xf]
      %v270 = vld [vmem:[%s1 + $0xc] sm:$0xf]
      %v271 = vld [vmem:[%s258 + $0x4] sm:$0x1]
      %v272 = vld [vmem:[%s258 + $0xc] sm:$0x1]
      %v273 = vld [vmem:[%s258 + $0x14] sm:$0x1]
      %v274 = vld [vmem:[%s258 + $0x1c] sm:$0x1]
      %v275 = vld [vmem:[%s258 + $0x24] sm:$0x1]
      %v276 = vld [vmem:[%s258 + $0x2c] sm:$0x1]
      %v277 = vld [vmem:[%s258 + $0x34] sm:$0x1]
      %v278 = vld [vmem:[%s258 + $0x3c] sm:$0x1]
      %vm279 = vsmask.f32 3328
      %vm280 = vsmask.f32 7440
      %vm281 = vmor %vm279, %vm280
      %v283 = vshrl.u32 %v259, 16
      %v285 = vrot.slane %v283, 4
      %v286 = vshll.u32 %v259, 16
      %v288 = vrot.slane %v286, 5
      %v289 = vor.u32 %v285, %v288
      %v290 = vrot.slane %v289, 4
      %v292 = vshll.u32 %v271, 16
      %v294 = vrot.slane %v292, 5
      %v295 = vsel %vm281, %v290, %v294
      %v297 = vshrl.u32 %v260, 16
      %v299 = vrot.slane %v297, 4
      %v300 = vshll.u32 %v260, 16
      %v302 = vrot.slane %v300, 5
      %v303 = vor.u32 %v299, %v302
      %v304 = vrot.slane %v303, 4
      %v306 = vshll.u32 %v272, 16
      %v308 = vrot.slane %v306, 5
      %v309 = vsel %vm281, %v304, %v308
      %v311 = vshrl.u32 %v261, 16
      %v313 = vrot.slane %v311, 4
      %v314 = vshll.u32 %v261, 16
      %v316 = vrot.slane %v314, 5
      %v317 = vor.u32 %v313, %v316
      %v318 = vrot.slane %v317, 4
      %v320 = vshll.u32 %v273, 16
      %v322 = vrot.slane %v320, 5
      %v323 = vsel %vm281, %v318, %v322
      %v325 = vshrl.u32 %v262, 16
      %v327 = vrot.slane %v325, 4
      %v328 = vshll.u32 %v262, 16
      %v330 = vrot.slane %v328, 5
      %v331 = vor.u32 %v327, %v330
      %v332 = vrot.slane %v331, 4
      %v334 = vshll.u32 %v274, 16
      %v336 = vrot.slane %v334, 5
      %v337 = vsel %vm281, %v332, %v336
      %v339 = vshrl.u32 %v263, 16
      %v341 = vrot.slane %v339, 4
      %v342 = vshll.u32 %v263, 16
      %v344 = vrot.slane %v342, 5
      %v345 = vor.u32 %v341, %v344
      %v346 = vrot.slane %v345, 4
      %v348 = vshll.u32 %v275, 16
      %v350 = vrot.slane %v348, 5
      %v351 = vsel %vm281, %v346, %v350
      %v353 = vshrl.u32 %v264, 16
      %v355 = vrot.slane %v353, 4
      %v356 = vshll.u32 %v264, 16
      %v358 = vrot.slane %v356, 5
      %v359 = vor.u32 %v355, %v358
      %v360 = vrot.slane %v359, 4
      %v362 = vshll.u32 %v276, 16
      %v364 = vrot.slane %v362, 5
      %v365 = vsel %vm281, %v360, %v364
      %v367 = vshrl.u32 %v265, 16
      %v369 = vrot.slane %v367, 4
      %v370 = vshll.u32 %v265, 16
      %v372 = vrot.slane %v370, 5
      %v373 = vor.u32 %v369, %v372
      %v374 = vrot.slane %v373, 4
      %v376 = vshll.u32 %v277, 16
      %v378 = vrot.slane %v376, 5
      %v379 = vsel %vm281, %v374, %v378
      %v381 = vshrl.u32 %v266, 16
      %v383 = vrot.slane %v381, 4
      %v384 = vshll.u32 %v266, 16
      %v386 = vrot.slane %v384, 5
      %v387 = vor.u32 %v383, %v386
      %v388 = vrot.slane %v387, 4
      %v390 = vshll.u32 %v278, 16
      %v392 = vrot.slane %v390, 5
      %v393 = vsel %vm281, %v388, %v392
      %s394 = scalar_lea.vmem %s1, 16
      %v395 = vld [vmem:[%s394] sm:$0xf]
      %v396 = vld [vmem:[%s394 + $0x4] sm:$0xf]
      %v397 = vld [vmem:[%s394 + $0x8] sm:$0xf]
      %v398 = vld [vmem:[%s394 + $0xc] sm:$0xf]
      %v399 = vunpack.c.l.b16 %v295
      %v400 = vunpack.c.l.b16 %v309
      %v401 = vunpack.c.l.b16 %v323
      %v402 = vunpack.c.l.b16 %v337
      %v403 = vunpack.c.l.b16 %v351
      %v404 = vunpack.c.l.b16 %v365
      %v405 = vunpack.c.l.b16 %v379
      %v406 = vunpack.c.l.b16 %v393
      %v407 = vpack.c.b16 %v400, %v399
      %v408 = vpack.c.b16 %v402, %v401
      %v409 = vpack.c.b16 %v404, %v403
      %v410 = vpack.c.b16 %v406, %v405
      %v415 = vunpack.c.l.b16 %v395
      %v416 = vunpack.c.l.b16 %v396
      %v417 = vunpack.c.l.b16 %v397
      %v418 = vunpack.c.l.b16 %v398
      %v419 = vpack.c.b16 %v416, %v415
      %v420 = vpack.c.b16 %v418, %v417
      %vm423 = vcmask 261120
      %v425 = vsel %vm423, %v407, 0
      %v428 = vsel %vm423, %v408, 0
      %v431 = vsel %vm423, %v409, 0
      %v434 = vsel %vm423, %v410, 0
      %436 = vmatprep.subr.bf16.mxu0 0
      %437 = vmatpush1.bf16.msra.mxu0 0
      %438 = vmatprep.subr.bf16.mxu0 0
      %439 = vmatpush1.bf16.msra.mxu0 0
      %440 = vmatprep.subr.bf16.mxu0 0
      %441 = vmatpush1.bf16.msra.mxu0 0
      %442 = vmatprep.subr.bf16.mxu0 0
      %443 = vmatpush1.bf16.msra.mxu0 0
      %444 = vmatprep.subr.bf16.mxu0 0
      %445 = vmatpush1.bf16.msra.mxu0 0
      %446 = vmatprep.subr.bf16.mxu0 0
      %447 = vmatpush1.bf16.msra.mxu0 0
      %448 = vmatprep.subr.bf16.mxu0 0
      %449 = vmatpush1.bf16.msra.mxu0 %v420
      %450 = vmatprep.subr.bf16.mxu0 0
      %451 = vmatpush1.bf16.msra.mxu0 %v419
      %452 = vmatprep.subr.bf16.mxu0 0
      %453 = vmatpush2.bf16.msra.mxu0 0
      %454 = vmatprep.subr.bf16.mxu0 0
      %455 = vmatpush2.bf16.msra.mxu0 0
      %456 = vmatprep.subr.bf16.mxu0 0
      %457 = vmatpush2.bf16.msra.mxu0 0
      %458 = vmatprep.subr.bf16.mxu0 0
      %459 = vmatpush2.bf16.msra.mxu0 0
      %460 = vmatprep.subr.bf16.mxu0 0
      %461 = vmatpush2.bf16.msra.mxu0 0
      %462 = vmatprep.subr.bf16.mxu0 0
      %463 = vmatpush2.bf16.msra.mxu0 0
      %464 = vmatprep.subr.bf16.mxu0 0
      %465 = vmatpush2.bf16.msra.mxu0 0
      %466 = vmatprep.subr.bf16.mxu0 0
      %467 = vmatpush2.bf16.msra.mxu0 0
      %468 = vmatprep.mubr.bf16.mxu0 0
      %469 = vmatmul.mubr.bf16.gmra.mxu0 %v425
      %v470 = vpop.f32.mrf.mxu0
      %v471 = vadd.f32 0.0, %v470
      %v472 = vpop.f32.mrf.mxu0
      %v473 = vpop.f32.mrf.mxu0
      %v474 = vadd.f32 0.0, %v473
      %v475 = vpop.f32.mrf.mxu0
      %476 = vmatprep.mubr.bf16.mxu0 0
      %477 = vmatmul.mubr.bf16.gmra.mxu0 %v428
      %v478 = vpop.f32.mrf.mxu0
      %v479 = vadd.f32 0.0, %v478
      %v480 = vpop.f32.mrf.mxu0
      %v481 = vpop.f32.mrf.mxu0
      %v482 = vadd.f32 0.0, %v481
      %v483 = vpop.f32.mrf.mxu0
      %484 = vmatprep.mubr.bf16.mxu0 0
      %485 = vmatmul.mubr.bf16.gmra.mxu0 %v431
      %v486 = vpop.f32.mrf.mxu0
      %v487 = vadd.f32 0.0, %v486
      %v488 = vpop.f32.mrf.mxu0
      %v489 = vpop.f32.mrf.mxu0
      %v490 = vadd.f32 0.0, %v489
      %v491 = vpop.f32.mrf.mxu0
      %492 = vmatprep.mubr.bf16.mxu0 0
      %493 = vmatmul.mubr.bf16.gmra.mxu0 %v434
      %v494 = vpop.f32.mrf.mxu0
      %v495 = vadd.f32 0.0, %v494
      %v496 = vpop.f32.mrf.mxu0
      %v497 = vpop.f32.mrf.mxu0
      %v498 = vadd.f32 0.0, %v497
      %v499 = vpop.f32.mrf.mxu0
      %500 = vdwg.mxu0
      %v509 = vunpack.c.l.b16 %v259
      %v510 = vunpack.c.l.b16 %v260
      %v511 = vunpack.c.l.b16 %v261
      %v512 = vunpack.c.l.b16 %v262
      %v513 = vunpack.c.l.b16 %v263
      %v514 = vunpack.c.l.b16 %v264
      %v515 = vunpack.c.l.b16 %v265
      %v516 = vunpack.c.l.b16 %v266
      %v517 = vpack.c.b16 %v510, %v509
      %v518 = vpack.c.b16 %v512, %v511
      %v519 = vpack.c.b16 %v514, %v513
      %v520 = vpack.c.b16 %v516, %v515
      %v525 = vunpack.c.l.b16 %v267
      %v526 = vunpack.c.l.b16 %v268
      %v527 = vunpack.c.l.b16 %v269
      %v528 = vunpack.c.l.b16 %v270
      %v529 = vpack.c.b16 %v526, %v525
      %v530 = vpack.c.b16 %v528, %v527
      %v534 = vsel %vm423, %v517, 0
      %v537 = vsel %vm423, %v518, 0
      %v540 = vsel %vm423, %v519, 0
      %v543 = vsel %vm423, %v520, 0
      %545 = vmatprep.subr.bf16.mxu0 0
      %546 = vmatpush1.bf16.msra.mxu0 0
      %547 = vmatprep.subr.bf16.mxu0 0
      %548 = vmatpush1.bf16.msra.mxu0 0
      %549 = vmatprep.subr.bf16.mxu0 0
      %550 = vmatpush1.bf16.msra.mxu0 0
      %551 = vmatprep.subr.bf16.mxu0 0
      %552 = vmatpush1.bf16.msra.mxu0 0
      %553 = vmatprep.subr.bf16.mxu0 0
      %554 = vmatpush1.bf16.msra.mxu0 0
      %555 = vmatprep.subr.bf16.mxu0 0
      %556 = vmatpush1.bf16.msra.mxu0 0
      %557 = vmatprep.subr.bf16.mxu0 0
      %558 = vmatpush1.bf16.msra.mxu0 %v530
      %559 = vmatprep.subr.bf16.mxu0 0
      %560 = vmatpush1.bf16.msra.mxu0 %v529
      %561 = vmatprep.subr.bf16.mxu0 0
      %562 = vmatpush2.bf16.msra.mxu0 0
      %563 = vmatprep.subr.bf16.mxu0 0
      %564 = vmatpush2.bf16.msra.mxu0 0
      %565 = vmatprep.subr.bf16.mxu0 0
      %566 = vmatpush2.bf16.msra.mxu0 0
      %567 = vmatprep.subr.bf16.mxu0 0
      %568 = vmatpush2.bf16.msra.mxu0 0
      %569 = vmatprep.subr.bf16.mxu0 0
      %570 = vmatpush2.bf16.msra.mxu0 0
      %571 = vmatprep.subr.bf16.mxu0 0
      %572 = vmatpush2.bf16.msra.mxu0 0
      %573 = vmatprep.subr.bf16.mxu0 0
      %574 = vmatpush2.bf16.msra.mxu0 0
      %575 = vmatprep.subr.bf16.mxu0 0
      %576 = vmatpush2.bf16.msra.mxu0 0
      %577 = vmatprep.mubr.bf16.mxu0 0
      %578 = vmatmul.mubr.bf16.gmra.mxu0 %v534
      %v579 = vpop.f32.mrf.mxu0
      %v580 = vadd.f32 %v471, %v579
      %v581 = vpop.f32.mrf.mxu0
      %v582 = vpop.f32.mrf.mxu0
      %v583 = vadd.f32 %v474, %v582
      %v584 = vpop.f32.mrf.mxu0
      %585 = vmatprep.mubr.bf16.mxu0 0
      %586 = vmatmul.mubr.bf16.gmra.mxu0 %v537
      %v587 = vpop.f32.mrf.mxu0
      %v588 = vadd.f32 %v479, %v587
      %v589 = vpop.f32.mrf.mxu0
      %v590 = vpop.f32.mrf.mxu0
      %v591 = vadd.f32 %v482, %v590
      %v592 = vpop.f32.mrf.mxu0
      %593 = vmatprep.mubr.bf16.mxu0 0
      %594 = vmatmul.mubr.bf16.gmra.mxu0 %v540
      %v595 = vpop.f32.mrf.mxu0
      %v596 = vadd.f32 %v487, %v595
      %v597 = vpop.f32.mrf.mxu0
      %v598 = vpop.f32.mrf.mxu0
      %v599 = vadd.f32 %v490, %v598
      %v600 = vpop.f32.mrf.mxu0
      %601 = vmatprep.mubr.bf16.mxu0 0
      %602 = vmatmul.mubr.bf16.gmra.mxu0 %v543
      %v603 = vpop.f32.mrf.mxu0
      %v604 = vadd.f32 %v495, %v603
      %v605 = vpop.f32.mrf.mxu0
      %v606 = vpop.f32.mrf.mxu0
      %v607 = vadd.f32 %v498, %v606
      %v608 = vpop.f32.mrf.mxu0
      %609 = vdwg.mxu0
      %s610 = sadd.s32 %s255, 1
      %s611 = smul.u32 %s610, 2
      %s612 = smul.addr %s611, 4
      %s613 = scalar_lea.vmem %s231, %s612
      %v614 = vld [vmem:[%s613] sm:$0xf]
      %v615 = vld [vmem:[%s613 + $0x8] sm:$0xf]
      %v616 = vld [vmem:[%s613 + $0x10] sm:$0xf]
      %v617 = vld [vmem:[%s613 + $0x18] sm:$0xf]
      %v618 = vld [vmem:[%s613 + $0x20] sm:$0xf]
      %v619 = vld [vmem:[%s613 + $0x28] sm:$0xf]
      %v620 = vld [vmem:[%s613 + $0x30] sm:$0xf]
      %v621 = vld [vmem:[%s613 + $0x38] sm:$0xf]
      %s622 = scalar_lea.vmem %s1, 32
      %v623 = vld [vmem:[%s622] sm:$0xf]
      %v624 = vld [vmem:[%s622 + $0x4] sm:$0xf]
      %v625 = vld [vmem:[%s622 + $0x8] sm:$0xf]
      %v626 = vld [vmem:[%s622 + $0xc] sm:$0xf]
      %v635 = vunpack.c.l.b16 %v614
      %v636 = vunpack.c.l.b16 %v615
      %v637 = vunpack.c.l.b16 %v616
      %v638 = vunpack.c.l.b16 %v617
      %v639 = vunpack.c.l.b16 %v618
      %v640 = vunpack.c.l.b16 %v619
      %v641 = vunpack.c.l.b16 %v620
      %v642 = vunpack.c.l.b16 %v621
      %v643 = vpack.c.b16 %v636, %v635
      %v644 = vpack.c.b16 %v638, %v637
      %v645 = vpack.c.b16 %v640, %v639
      %v646 = vpack.c.b16 %v642, %v641
      %v651 = vunpack.c.l.b16 %v623
      %v652 = vunpack.c.l.b16 %v624
      %v653 = vunpack.c.l.b16 %v625
      %v654 = vunpack.c.l.b16 %v626
      %v655 = vpack.c.b16 %v652, %v651
      %v656 = vpack.c.b16 %v654, %v653
      %v660 = vsel %vm423, %v643, 0
      %v663 = vsel %vm423, %v644, 0
      %v666 = vsel %vm423, %v645, 0
      %v669 = vsel %vm423, %v646, 0
      %671 = vmatprep.subr.bf16.mxu0 0
      %672 = vmatpush1.bf16.msra.mxu0 0
      %673 = vmatprep.subr.bf16.mxu0 0
      %674 = vmatpush1.bf16.msra.mxu0 0
      %675 = vmatprep.subr.bf16.mxu0 0
      %676 = vmatpush1.bf16.msra.mxu0 0
      %677 = vmatprep.subr.bf16.mxu0 0
      %678 = vmatpush1.bf16.msra.mxu0 0
      %679 = vmatprep.subr.bf16.mxu0 0
      %680 = vmatpush1.bf16.msra.mxu0 0
      %681 = vmatprep.subr.bf16.mxu0 0
      %682 = vmatpush1.bf16.msra.mxu0 0
      %683 = vmatprep.subr.bf16.mxu0 0
      %684 = vmatpush1.bf16.msra.mxu0 %v656
      %685 = vmatprep.subr.bf16.mxu0 0
      %686 = vmatpush1.bf16.msra.mxu0 %v655
      %687 = vmatprep.subr.bf16.mxu0 0
      %688 = vmatpush2.bf16.msra.mxu0 0
      %689 = vmatprep.subr.bf16.mxu0 0
      %690 = vmatpush2.bf16.msra.mxu0 0
      %691 = vmatprep.subr.bf16.mxu0 0
      %692 = vmatpush2.bf16.msra.mxu0 0
      %693 = vmatprep.subr.bf16.mxu0 0
      %694 = vmatpush2.bf16.msra.mxu0 0
      %695 = vmatprep.subr.bf16.mxu0 0
      %696 = vmatpush2.bf16.msra.mxu0 0
      %697 = vmatprep.subr.bf16.mxu0 0
      %698 = vmatpush2.bf16.msra.mxu0 0
      %699 = vmatprep.subr.bf16.mxu0 0
      %700 = vmatpush2.bf16.msra.mxu0 0
      %701 = vmatprep.subr.bf16.mxu0 0
      %702 = vmatpush2.bf16.msra.mxu0 0
      %703 = vmatprep.mubr.bf16.mxu0 0
      %704 = vmatmul.mubr.bf16.gmra.mxu0 %v660
      %v705 = vpop.f32.mrf.mxu0
      %v706 = vadd.f32 0.0, %v705
      %v707 = vpop.f32.mrf.mxu0
      %v708 = vpop.f32.mrf.mxu0
      %v709 = vadd.f32 0.0, %v708
      %v710 = vpop.f32.mrf.mxu0
      %711 = vmatprep.mubr.bf16.mxu0 0
      %712 = vmatmul.mubr.bf16.gmra.mxu0 %v663
      %v713 = vpop.f32.mrf.mxu0
      %v714 = vadd.f32 0.0, %v713
      %v715 = vpop.f32.mrf.mxu0
      %v716 = vpop.f32.mrf.mxu0
      %v717 = vadd.f32 0.0, %v716
      %v718 = vpop.f32.mrf.mxu0
      %719 = vmatprep.mubr.bf16.mxu0 0
      %720 = vmatmul.mubr.bf16.gmra.mxu0 %v666
      %v721 = vpop.f32.mrf.mxu0
      %v722 = vadd.f32 0.0, %v721
      %v723 = vpop.f32.mrf.mxu0
      %v724 = vpop.f32.mrf.mxu0
      %v725 = vadd.f32 0.0, %v724
      %v726 = vpop.f32.mrf.mxu0
      %727 = vmatprep.mubr.bf16.mxu0 0
      %728 = vmatmul.mubr.bf16.gmra.mxu0 %v669
      %v729 = vpop.f32.mrf.mxu0
      %v730 = vadd.f32 0.0, %v729
      %v731 = vpop.f32.mrf.mxu0
      %v732 = vpop.f32.mrf.mxu0
      %v733 = vadd.f32 0.0, %v732
      %v734 = vpop.f32.mrf.mxu0
      %735 = vdwg.mxu0
      %v736 = vadd.f32 %v580, %v706
      %v737 = vadd.f32 %v583, %v709
      %v738 = vadd.f32 %v588, %v714
      %v739 = vadd.f32 %v591, %v717
      %v740 = vadd.f32 %v596, %v722
      %v741 = vadd.f32 %v599, %v725
      %v742 = vadd.f32 %v604, %v730
      %v743 = vadd.f32 %v607, %v733
      %v744 = vld [vmem:[%s613] sm:$0xf]
      %v745 = vld [vmem:[%s613 + $0x4] sm:$0x1]
      %v746 = vld [vmem:[%s613 + $0x8] sm:$0xf]
      %v747 = vld [vmem:[%s613 + $0xc] sm:$0x1]
      %v748 = vld [vmem:[%s613 + $0x10] sm:$0xf]
      %v749 = vld [vmem:[%s613 + $0x14] sm:$0x1]
      %v750 = vld [vmem:[%s613 + $0x18] sm:$0xf]
      %v751 = vld [vmem:[%s613 + $0x1c] sm:$0x1]
      %v752 = vld [vmem:[%s613 + $0x20] sm:$0xf]
      %v753 = vld [vmem:[%s613 + $0x24] sm:$0x1]
      %v754 = vld [vmem:[%s613 + $0x28] sm:$0xf]
      %v755 = vld [vmem:[%s613 + $0x2c] sm:$0x1]
      %v756 = vld [vmem:[%s613 + $0x30] sm:$0xf]
      %v757 = vld [vmem:[%s613 + $0x34] sm:$0x1]
      %v758 = vld [vmem:[%s613 + $0x38] sm:$0xf]
      %v759 = vld [vmem:[%s613 + $0x3c] sm:$0x1]
      %v761 = vshrl.u32 %v744, 16
      %v763 = vrot.slane %v761, 4
      %v764 = vshll.u32 %v744, 16
      %v766 = vrot.slane %v764, 5
      %v767 = vor.u32 %v763, %v766
      %v768 = vrot.slane %v767, 4
      %v770 = vshll.u32 %v745, 16
      %v772 = vrot.slane %v770, 5
      %v773 = vsel %vm281, %v768, %v772
      %v775 = vshrl.u32 %v746, 16
      %v777 = vrot.slane %v775, 4
      %v778 = vshll.u32 %v746, 16
      %v780 = vrot.slane %v778, 5
      %v781 = vor.u32 %v777, %v780
      %v782 = vrot.slane %v781, 4
      %v784 = vshll.u32 %v747, 16
      %v786 = vrot.slane %v784, 5
      %v787 = vsel %vm281, %v782, %v786
      %v789 = vshrl.u32 %v748, 16
      %v791 = vrot.slane %v789, 4
      %v792 = vshll.u32 %v748, 16
      %v794 = vrot.slane %v792, 5
      %v795 = vor.u32 %v791, %v794
      %v796 = vrot.slane %v795, 4
      %v798 = vshll.u32 %v749, 16
      %v800 = vrot.slane %v798, 5
      %v801 = vsel %vm281, %v796, %v800
      %v803 = vshrl.u32 %v750, 16
      %v805 = vrot.slane %v803, 4
      %v806 = vshll.u32 %v750, 16
      %v808 = vrot.slane %v806, 5
      %v809 = vor.u32 %v805, %v808
      %v810 = vrot.slane %v809, 4
      %v812 = vshll.u32 %v751, 16
      %v814 = vrot.slane %v812, 5
      %v815 = vsel %vm281, %v810, %v814
      %v817 = vshrl.u32 %v752, 16
      %v819 = vrot.slane %v817, 4
      %v820 = vshll.u32 %v752, 16
      %v822 = vrot.slane %v820, 5
      %v823 = vor.u32 %v819, %v822
      %v824 = vrot.slane %v823, 4
      %v826 = vshll.u32 %v753, 16
      %v828 = vrot.slane %v826, 5
      %v829 = vsel %vm281, %v824, %v828
      %v831 = vshrl.u32 %v754, 16
      %v833 = vrot.slane %v831, 4
      %v834 = vshll.u32 %v754, 16
      %v836 = vrot.slane %v834, 5
      %v837 = vor.u32 %v833, %v836
      %v838 = vrot.slane %v837, 4
      %v840 = vshll.u32 %v755, 16
      %v842 = vrot.slane %v840, 5
      %v843 = vsel %vm281, %v838, %v842
      %v845 = vshrl.u32 %v756, 16
      %v847 = vrot.slane %v845, 4
      %v848 = vshll.u32 %v756, 16
      %v850 = vrot.slane %v848, 5
      %v851 = vor.u32 %v847, %v850
      %v852 = vrot.slane %v851, 4
      %v854 = vshll.u32 %v757, 16
      %v856 = vrot.slane %v854, 5
      %v857 = vsel %vm281, %v852, %v856
      %v859 = vshrl.u32 %v758, 16
      %v861 = vrot.slane %v859, 4
      %v862 = vshll.u32 %v758, 16
      %v864 = vrot.slane %v862, 5
      %v865 = vor.u32 %v861, %v864
      %v866 = vrot.slane %v865, 4
      %v868 = vshll.u32 %v759, 16
      %v870 = vrot.slane %v868, 5
      %v871 = vsel %vm281, %v866, %v870
      %s872 = scalar_lea.vmem %s1, 48
      %v873 = vld [vmem:[%s872] sm:$0xf]
      %v874 = vld [vmem:[%s872 + $0x4] sm:$0xf]
      %v875 = vld [vmem:[%s872 + $0x8] sm:$0xf]
      %v876 = vld [vmem:[%s872 + $0xc] sm:$0xf]
      %v877 = vunpack.c.l.b16 %v773
      %v878 = vunpack.c.l.b16 %v787
      %v879 = vunpack.c.l.b16 %v801
      %v880 = vunpack.c.l.b16 %v815
      %v881 = vunpack.c.l.b16 %v829
      %v882 = vunpack.c.l.b16 %v843
      %v883 = vunpack.c.l.b16 %v857
      %v884 = vunpack.c.l.b16 %v871
      %v885 = vpack.c.b16 %v878, %v877
      %v886 = vpack.c.b16 %v880, %v879
      %v887 = vpack.c.b16 %v882, %v881
      %v888 = vpack.c.b16 %v884, %v883
      %v893 = vunpack.c.l.b16 %v873
      %v894 = vunpack.c.l.b16 %v874
      %v895 = vunpack.c.l.b16 %v875
      %v896 = vunpack.c.l.b16 %v876
      %v897 = vpack.c.b16 %v894, %v893
      %v898 = vpack.c.b16 %v896, %v895
      %v902 = vsel %vm423, %v885, 0
      %v905 = vsel %vm423, %v886, 0
      %v908 = vsel %vm423, %v887, 0
      %v911 = vsel %vm423, %v888, 0
      %913 = vmatprep.subr.bf16.mxu0 0
      %914 = vmatpush1.bf16.msra.mxu0 0
      %915 = vmatprep.subr.bf16.mxu0 0
      %916 = vmatpush1.bf16.msra.mxu0 0
      %917 = vmatprep.subr.bf16.mxu0 0
      %918 = vmatpush1.bf16.msra.mxu0 0
      %919 = vmatprep.subr.bf16.mxu0 0
      %920 = vmatpush1.bf16.msra.mxu0 0
      %921 = vmatprep.subr.bf16.mxu0 0
      %922 = vmatpush1.bf16.msra.mxu0 0
      %923 = vmatprep.subr.bf16.mxu0 0
      %924 = vmatpush1.bf16.msra.mxu0 0
      %925 = vmatprep.subr.bf16.mxu0 0
      %926 = vmatpush1.bf16.msra.mxu0 %v898
      %927 = vmatprep.subr.bf16.mxu0 0
      %928 = vmatpush1.bf16.msra.mxu0 %v897
      %929 = vmatprep.subr.bf16.mxu0 0
      %930 = vmatpush2.bf16.msra.mxu0 0
      %931 = vmatprep.subr.bf16.mxu0 0
      %932 = vmatpush2.bf16.msra.mxu0 0
      %933 = vmatprep.subr.bf16.mxu0 0
      %934 = vmatpush2.bf16.msra.mxu0 0
      %935 = vmatprep.subr.bf16.mxu0 0
      %936 = vmatpush2.bf16.msra.mxu0 0
      %937 = vmatprep.subr.bf16.mxu0 0
      %938 = vmatpush2.bf16.msra.mxu0 0
      %939 = vmatprep.subr.bf16.mxu0 0
      %940 = vmatpush2.bf16.msra.mxu0 0
      %941 = vmatprep.subr.bf16.mxu0 0
      %942 = vmatpush2.bf16.msra.mxu0 0
      %943 = vmatprep.subr.bf16.mxu0 0
      %944 = vmatpush2.bf16.msra.mxu0 0
      %945 = vmatprep.mubr.bf16.mxu0 0
      %946 = vmatmul.mubr.bf16.gmra.mxu0 %v902
      %v947 = vpop.f32.mrf.mxu0
      %v948 = vadd.f32 0.0, %v947
      %v949 = vpop.f32.mrf.mxu0
      %v950 = vpop.f32.mrf.mxu0
      %v951 = vadd.f32 0.0, %v950
      %v952 = vpop.f32.mrf.mxu0
      %953 = vmatprep.mubr.bf16.mxu0 0
      %954 = vmatmul.mubr.bf16.gmra.mxu0 %v905
      %v955 = vpop.f32.mrf.mxu0
      %v956 = vadd.f32 0.0, %v955
      %v957 = vpop.f32.mrf.mxu0
      %v958 = vpop.f32.mrf.mxu0
      %v959 = vadd.f32 0.0, %v958
      %v960 = vpop.f32.mrf.mxu0
      %961 = vmatprep.mubr.bf16.mxu0 0
      %962 = vmatmul.mubr.bf16.gmra.mxu0 %v908
      %v963 = vpop.f32.mrf.mxu0
      %v964 = vadd.f32 0.0, %v963
      %v965 = vpop.f32.mrf.mxu0
      %v966 = vpop.f32.mrf.mxu0
      %v967 = vadd.f32 0.0, %v966
      %v968 = vpop.f32.mrf.mxu0
      %969 = vmatprep.mubr.bf16.mxu0 0
      %970 = vmatmul.mubr.bf16.gmra.mxu0 %v911
      %v971 = vpop.f32.mrf.mxu0
      %v972 = vadd.f32 0.0, %v971
      %v973 = vpop.f32.mrf.mxu0
      %v974 = vpop.f32.mrf.mxu0
      %v975 = vadd.f32 0.0, %v974
      %v976 = vpop.f32.mrf.mxu0
      %977 = vdwg.mxu0
      %v978 = vadd.f32 %v736, %v948
      %v979 = vadd.f32 %v737, %v951
      %v980 = vadd.f32 %v738, %v956
      %v981 = vadd.f32 %v739, %v959
      %v982 = vadd.f32 %v740, %v964
      %v983 = vadd.f32 %v741, %v967
      %v984 = vadd.f32 %v742, %v972
      %v985 = vadd.f32 %v743, %v975
      %v986 = vpack.c.bf16 %v978, %v978
      %v987 = vpack.c.bf16 %v979, %v979
      %v988 = vpack.c.bf16 %v980, %v980
      %v989 = vpack.c.bf16 %v981, %v981
      %v990 = vpack.c.bf16 %v982, %v982
      %v991 = vpack.c.bf16 %v983, %v983
      %v992 = vpack.c.bf16 %v984, %v984
      %v993 = vpack.c.bf16 %v985, %v985
      %vm994 = vcmask 125952
      %995 = vst.msk [vmem:[%s240] sm:$0xf] %vm994, %v986
      %996 = vst.msk [vmem:[%s240 + $0x4] sm:$0xf] %vm994, %v987
      %997 = vst.msk [vmem:[%s240 + $0x8] sm:$0xf] %vm994, %v988
      %998 = vst.msk [vmem:[%s240 + $0xc] sm:$0xf] %vm994, %v989
      %999 = vst.msk [vmem:[%s240 + $0x10] sm:$0xf] %vm994, %v990
      %1000 = vst.msk [vmem:[%s240 + $0x14] sm:$0xf] %vm994, %v991
      %1001 = vst.msk [vmem:[%s240 + $0x18] sm:$0xf] %vm994, %v992
      %1002 = vst.msk [vmem:[%s240 + $0x1c] sm:$0xf] %vm994, %v993
      %vm1003 = vcmask 130048
      %v1004 = vsel %vm1003, %v978, 0.0
      %v1005 = vsel %vm1003, %v979, 0.0
      %v1006 = vadd.f32 %v1004, %v1005
      %v1007 = vsel %vm1003, %v980, 0.0
      %v1008 = vadd.f32 %v1006, %v1007
      %v1009 = vsel %vm1003, %v981, 0.0
      %v1010 = vadd.f32 %v1008, %v1009
      %v1011 = vsel %vm1003, %v982, 0.0
      %v1012 = vadd.f32 %v1010, %v1011
      %v1013 = vsel %vm1003, %v983, 0.0
      %v1014 = vadd.f32 %v1012, %v1013
      %v1015 = vsel %vm1003, %v984, 0.0
      %v1016 = vadd.f32 %v1014, %v1015
      %v1017 = vsel %vm1003, %v985, 0.0
      %v1018 = vadd.f32 %v1016, %v1017
      %v1019 = vrot.slane %v1018, 4
      %v1020 = vadd.f32 %v1018, %v1019
      %v1021 = vrot.slane %v1020, 2
      %v1022 = vadd.f32 %v1020, %v1021
      %v1023 = vrot.slane %v1022, 1
      %v1024 = vadd.f32 %v1022, %v1023
      %vm1025 = vcmask 122880
      %1026 = vst.msk [vmem:[%s247] sm:$0x1] %vm1025, %v1024
      %v1027 = vmul.f32 %v978, %v978
      %v1028 = vmul.f32 %v979, %v979
      %v1029 = vmul.f32 %v980, %v980
      %v1030 = vmul.f32 %v981, %v981
      %v1031 = vmul.f32 %v982, %v982
      %v1032 = vmul.f32 %v983, %v983
      %v1033 = vmul.f32 %v984, %v984
      %v1034 = vmul.f32 %v985, %v985
      %v1035 = vsel %vm1003, %v1027, 0.0
      %v1036 = vsel %vm1003, %v1028, 0.0
      %v1037 = vadd.f32 %v1035, %v1036
      %v1038 = vsel %vm1003, %v1029, 0.0
      %v1039 = vadd.f32 %v1037, %v1038
      %v1040 = vsel %vm1003, %v1030, 0.0
      %v1041 = vadd.f32 %v1039, %v1040
      %v1042 = vsel %vm1003, %v1031, 0.0
      %v1043 = vadd.f32 %v1041, %v1042
      %v1044 = vsel %vm1003, %v1032, 0.0
      %v1045 = vadd.f32 %v1043, %v1044
      %v1046 = vsel %vm1003, %v1033, 0.0
      %v1047 = vadd.f32 %v1045, %v1046
      %v1048 = vsel %vm1003, %v1034, 0.0
      %v1049 = vadd.f32 %v1047, %v1048
      %v1050 = vrot.slane %v1049, 4
      %v1051 = vadd.f32 %v1049, %v1050
      %v1052 = vrot.slane %v1051, 2
      %v1053 = vadd.f32 %v1051, %v1052
      %v1054 = vrot.slane %v1053, 1
      %v1055 = vadd.f32 %v1053, %v1054
      %1056 = vst.msk [vmem:[%s253] sm:$0x1] %vm1025, %v1055
      %s1057 = smul.u32 8, %s21
      %p1058 = scmp.lt.s32.totalorder %s20, 1
      %s1059 = scalar_select %p1058, %s20, 1
      %p1060 = scmp.lt.s32.totalorder %s1057, 7
      %s1061 = scalar_select %p1060, %s1057, 7
      %s1062 = smul.addr %s1059, 8
      %s1063 = sadd.s32 %s1061, %s1062
      %s1064 = smul.addr %s1063, 4
      %s1065 = scalar_lea.vmem %s2, %s1064
      %p1066 = scmp.lt.s32.totalorder %s20, 1
      %s1067 = scalar_select %p1066, %s20, 1
      %p1068 = scmp.lt.s32.totalorder %s21, 0
      %s1069 = scalar_select %p1068, %s21, 0
      %s1070 = sadd.s32 %s1069, %s1067
      %s1071 = scalar_lea.vmem %s3, %s1070
      %p1072 = scmp.lt.s32.totalorder %s20, 1
      %s1073 = scalar_select %p1072, %s20, 1
      %p1074 = scmp.lt.s32.totalorder %s21, 0
      %s1075 = scalar_select %p1074, %s21, 0
      %s1076 = sadd.s32 %s1075, %s1073
      %s1077 = scalar_lea.vmem %s4, %s1076
      // Predicated region
      $region29: #{nlayer_discriminator_forward.6} parent=27 // pred_check
        %p1078 = pneg %p95
      $region30: #{nlayer_discriminator_forward.6} parent=27 // pred_check_branch
        %1080 = sbr.rel (%p1078) target = $region32
      $region31: #{nlayer_discriminator_forward.6} parent=27 // pred_region
        %s1081 = smul.u32 8, %s21
      $region32: #{nlayer_discriminator_forward.6} parent=27 // pred_fallthru
        _
      // Predicated region
      $region33: #{nlayer_discriminator_forward.6} parent=27 // pred_check
        %p1082 = pneg %p123
      $region34: #{nlayer_discriminator_forward.6} parent=27 // pred_check_branch
        %1084 = sbr.rel (%p1082) target = $region36
      $region35: #{nlayer_discriminator_forward.6} parent=27 // pred_region
        _
      $region36: #{nlayer_discriminator_forward.6} parent=27 // pred_fallthru
        _
      // Predicated region
      $region37: #{nlayer_discriminator_forward.6} parent=27 // pred_check
        %p1085 = pneg %p151
      $region38: #{nlayer_discriminator_forward.6} parent=27 // pred_check_branch
        %1087 = sbr.rel (%p1085) target = $region40
      $region39: #{nlayer_discriminator_forward.6} parent=27 // pred_region
        _
      $region40: #{nlayer_discriminator_forward.6} parent=27 // pred_fallthru
        _
    $region28: #{nlayer_discriminator_forward.6} parent=5 // pred_fallthru
      _
    %p1088 = scmp.le.s32.totalorder 2, %s11
    // Predicated region
    $region41: #{nlayer_discriminator_forward.6} parent=5 // pred_check
      %p1089 = pneg %p1088
    $region42: #{nlayer_discriminator_forward.6} parent=5 // pred_check_branch
      %1091 = sbr.rel (%p1089) target = $region44
    $region43: #{nlayer_discriminator_forward.6} parent=5 // pred_region
      %s1092 = ssub.s32 %s11, 2
      // Predicated region
      $region45: #{nlayer_discriminator_forward.6} parent=43 // pred_check
        %p1093 = pneg %p101
      $region46: #{nlayer_discriminator_forward.6} parent=43 // pred_check_branch
        %1095 = sbr.rel (%p1093) target = $region48
      $region47: #{nlayer_discriminator_forward.6} parent=43 // pred_region
        %s1096 = smul.u32 8, %s23
        %p1097 = scmp.lt.s32.totalorder %s22, 1
        %s1098 = scalar_select %p1097, %s22, 1
        %p1099 = scmp.lt.s32.totalorder %s1096, 7
        %s1100 = scalar_select %p1099, %s1096, 7
        %s1101 = smul.addr %s1098, 8
        %s1102 = sadd.s32 %s1100, %s1101
        %s1103 = smul.addr %s1102, 4
        %s1104 = scalar_lea.vmem %s2, %s1103
      $region48: #{nlayer_discriminator_forward.6} parent=43 // pred_fallthru
        _
      // Predicated region
      $region49: #{nlayer_discriminator_forward.6} parent=43 // pred_check
        %p1105 = pneg %p129
      $region50: #{nlayer_discriminator_forward.6} parent=43 // pred_check_branch
        %1107 = sbr.rel (%p1105) target = $region52
      $region51: #{nlayer_discriminator_forward.6} parent=43 // pred_region
        %p1108 = scmp.lt.s32.totalorder %s22, 1
        %s1109 = scalar_select %p1108, %s22, 1
        %p1110 = scmp.lt.s32.totalorder %s23, 0
        %s1111 = scalar_select %p1110, %s23, 0
        %s1112 = sadd.s32 %s1111, %s1109
        %s1113 = scalar_lea.vmem %s3, %s1112
      $region52: #{nlayer_discriminator_forward.6} parent=43 // pred_fallthru
        _
      // Predicated region
      $region53: #{nlayer_discriminator_forward.6} parent=43 // pred_check
        %p1114 = pneg %p157
      $region54: #{nlayer_discriminator_forward.6} parent=43 // pred_check_branch
        %1116 = sbr.rel (%p1114) target = $region56
      $region55: #{nlayer_discriminator_forward.6} parent=43 // pred_region
        %p1117 = scmp.lt.s32.totalorder %s22, 1
        %s1118 = scalar_select %p1117, %s22, 1
        %p1119 = scmp.lt.s32.totalorder %s23, 0
        %s1120 = scalar_select %p1119, %s23, 0
        %s1121 = sadd.s32 %s1120, %s1118
        %s1122 = scalar_lea.vmem %s4, %s1121
      $region56: #{nlayer_discriminator_forward.6} parent=43 // pred_fallthru
        _
    $region44: #{nlayer_discriminator_forward.6} parent=5 // pred_fallthru
      _
  $region6: #{nlayer_discriminator_forward.6} parent=0 // loop_footer
    %s15 = sadd.s32 1, %s11
  $region7: #{nlayer_discriminator_forward.6} parent=0 // loop_footer_branch
    %10 = sbr.rel target = $region3
  $region8: #{nlayer_discriminator_forward.6} parent=0 // loop_exit
    _

// kernel: nlayer_discriminator_forward.7
$region0: #{nlayer_discriminator_forward.7}
  #allocation0 [shape = 'u32[]', space=smem, size = 0x4, offset = 0x4, fixed_abs, tag = 'smem constant byte address 0x4 - core index']
  #allocation1 [shape = 'u32[144,128]{1,0:T(1,128)}', space=vmem, size = 0x12000, scoped, tag = 'internal scratch']
  %s0 = inlined_call_operand.vmem [shape: bf16[2,5,5,64], index: 0, kind: input, shape index: {}]
  %s1 = inlined_call_operand.vmem [shape: bf16[4,64,128], index: 1, kind: input, shape index: {}]
  %s2 = inlined_call_operand.vmem [shape: bf16[2,4,4,32], index: 2, kind: output, shape index: {0}]
  %s3 = inlined_call_operand.vmem [shape: f32[2,1,1,32], index: 3, kind: output, shape index: {1}]
  %s4 = inlined_call_operand.vmem [shape: f32[2,1,1,32], index: 4, kind: output, shape index: {2}]
  %5 = xla_tuple %s2, %s3, %s4
  %s6 = sld [smem:[#allocation0]]
  $region57: #{nlayer_discriminator_forward.7} parent=0
    _
  %s8 = ssub.s32 1, %s6
  %s9 = scalar_select 0, %s8, %s6
  loop: start=0, step=1, limit=4
  $region2: #{nlayer_discriminator_forward.7} parent=0 // loop_pre_header
    _
  $region3: #{nlayer_discriminator_forward.7} parent=0 // loop_header
    %s11 = sphi 0, %s15
    %p12 = scmp.ge.s32.totalorder %s11, 4
    %s18 = sphi 0, %s30
    %s19 = sphi 0, %s26
    %s20 = sphi 0, %s18
    %s21 = sphi 0, %s19
    %s22 = sphi 0, %s20
    %s23 = sphi 0, %s21
    %s33 = sphi 0, %s35
    %s36 = sphi 0, %s33
    %s37 = sphi 0, %s36
    %s53 = sphi 0, %s37
    %s57 = sphi 0, %s57
    %s59 = sphi 0, %s57
    %s60 = sphi 0, %s59
    %s74 = sphi 0, %s60
    %s82 = sphi 0, %s84
    %s85 = sphi 0, %s82
    %s86 = sphi 0, %s85
    %s102 = sphi 0, %s86
    %s110 = sphi 0, %s112
    %s113 = sphi 0, %s110
    %s114 = sphi 0, %s113
    %s130 = sphi 0, %s114
    %s138 = sphi 0, %s140
    %s141 = sphi 0, %s138
    %s142 = sphi 0, %s141
    %s158 = sphi 0, %s142
  $region4: #{nlayer_discriminator_forward.7} parent=0 // loop_header_branch
    %14 = sbr.rel (%p12) target = $region8
  $region5: #{nlayer_discriminator_forward.7} parent=0 // loop_body
    %s16 = ssub.s32 %s11, 1
    %s17 = ssub.s32 %s11, 2
    %s24 = sadd.s32 1, %s19
    %p25 = scmp.ge.s32.totalorder %s24, 1
    %s26 = scalar_select %p25, 0, %s24
    %s27 = sadd.s32 1, %s18
    %s28 = scalar_select %p25, %s27, %s18
    %p29 = scmp.ge.s32.totalorder %s28, 2
    %s30 = scalar_select %p29, 0, %s28
    %s31 = ssub.s32 %s18, %s30
    %p32 = scmp.eq.s32.totalorder %s31, 0
    %s34 = sadd.s32 %s33, 1
    %s35 = scalar_select %p32, %s33, %s34
    %p38 = pneg %p32
    %p39 = scmp.eq.s32.totalorder %s11, 1
    %p40 = por %p38, %p39
    %p41 = scmp.ne.s32.totalorder %s33, %s36
    %p42 = scmp.eq.s32.totalorder %s11, 0
    %p43 = por %p41, %p42
    %p44 = scmp.ne.s32.totalorder %s33, %s36
    %p45 = scmp.eq.s32.totalorder %s16, 1
    %p46 = por %p44, %p45
    %p47 = scmp.ne.s32.totalorder %s36, %s37
    %p48 = scmp.eq.s32.totalorder %s16, 0
    %p49 = por %p47, %p48
    %p50 = scmp.ne.s32.totalorder %s36, %s37
    %p51 = scmp.eq.s32.totalorder %s17, 1
    %p52 = por %p50, %p51
    %p54 = scmp.ne.s32.totalorder %s37, %s53
    %p55 = scmp.eq.s32.totalorder %s17, 0
    %p56 = por %p54, %p55
    %s58 = sadd.s32 %s57, 1
    %p61 = scmp.eq.s32.totalorder %s11, 1
    %p62 = scmp.ne.s32.totalorder %s57, %s59
    %p63 = scmp.eq.s32.totalorder %s11, 0
    %p64 = por %p62, %p63
    %p65 = scmp.ne.s32.totalorder %s57, %s59
    %p66 = scmp.eq.s32.totalorder %s16, 1
    %p67 = por %p65, %p66
    %p68 = scmp.ne.s32.totalorder %s59, %s60
    %p69 = scmp.eq.s32.totalorder %s16, 0
    %p70 = por %p68, %p69
    %p71 = scmp.ne.s32.totalorder %s59, %s60
    %p72 = scmp.eq.s32.totalorder %s17, 1
    %p73 = por %p71, %p72
    %p75 = scmp.ne.s32.totalorder %s60, %s74
    %p76 = scmp.eq.s32.totalorder %s17, 0
    %p77 = por %p75, %p76
    %s78 = ssub.s32 %s18, %s30
    %s79 = ssub.s32 %s19, %s26
    %s80 = sor.u32 %s78, %s79
    %p81 = scmp.eq.s32.totalorder %s80, 0
    %s83 = sadd.s32 %s82, 1
    %s84 = scalar_select %p81, %s82, %s83
    %p87 = pneg %p81
    %p88 = scmp.eq.s32.totalorder %s11, 1
    %p89 = por %p87, %p88
    %p90 = scmp.ne.s32.totalorder %s82, %s85
    %p91 = scmp.eq.s32.totalorder %s11, 0
    %p92 = por %p90, %p91
    %p93 = scmp.ne.s32.totalorder %s82, %s85
    %p94 = scmp.eq.s32.totalorder %s16, 1
    %p95 = por %p93, %p94
    %p96 = scmp.ne.s32.totalorder %s85, %s86
    %p97 = scmp.eq.s32.totalorder %s16, 0
    %p98 = por %p96, %p97
    %p99 = scmp.ne.s32.totalorder %s85, %s86
    %p100 = scmp.eq.s32.totalorder %s17, 1
    %p101 = por %p99, %p100
    %p103 = scmp.ne.s32.totalorder %s86, %s102
    %p104 = scmp.eq.s32.totalorder %s17, 0
    %p105 = por %p103, %p104
    %s106 = ssub.s32 %s18, %s30
    %s107 = ssub.s32 %s19, %s26
    %s108 = sor.u32 %s106, %s107
    %p109 = scmp.eq.s32.totalorder %s108, 0
    %s111 = sadd.s32 %s110, 1
    %s112 = scalar_select %p109, %s110, %s111
    %p115 = pneg %p109
    %p116 = scmp.eq.s32.totalorder %s11, 1
    %p117 = por %p115, %p116
    %p118 = scmp.ne.s32.totalorder %s110, %s113
    %p119 = scmp.eq.s32.totalorder %s11, 0
    %p120 = por %p118, %p119
    %p121 = scmp.ne.s32.totalorder %s110, %s113
    %p122 = scmp.eq.s32.totalorder %s16, 1
    %p123 = por %p121, %p122
    %p124 = scmp.ne.s32.totalorder %s113, %s114
    %p125 = scmp.eq.s32.totalorder %s16, 0
    %p126 = por %p124, %p125
    %p127 = scmp.ne.s32.totalorder %s113, %s114
    %p128 = scmp.eq.s32.totalorder %s17, 1
    %p129 = por %p127, %p128
    %p131 = scmp.ne.s32.totalorder %s114, %s130
    %p132 = scmp.eq.s32.totalorder %s17, 0
    %p133 = por %p131, %p132
    %s134 = ssub.s32 %s18, %s30
    %s135 = ssub.s32 %s19, %s26
    %s136 = sor.u32 %s134, %s135
    %p137 = scmp.eq.s32.totalorder %s136, 0
    %s139 = sadd.s32 %s138, 1
    %s140 = scalar_select %p137, %s138, %s139
    %p143 = pneg %p137
    %p144 = scmp.eq.s32.totalorder %s11, 1
    %p145 = por %p143, %p144
    %p146 = scmp.ne.s32.totalorder %s138, %s141
    %p147 = scmp.eq.s32.totalorder %s11, 0
    %p148 = por %p146, %p147
    %p149 = scmp.ne.s32.totalorder %s138, %s141
    %p150 = scmp.eq.s32.totalorder %s16, 1
    %p151 = por %p149, %p150
    %p152 = scmp.ne.s32.totalorder %s141, %s142
    %p153 = scmp.eq.s32.totalorder %s16, 0
    %p154 = por %p152, %p153
    %p155 = scmp.ne.s32.totalorder %s141, %s142
    %p156 = scmp.eq.s32.totalorder %s17, 1
    %p157 = por %p155, %p156
    %p159 = scmp.ne.s32.totalorder %s142, %s158
    %p160 = scmp.eq.s32.totalorder %s17, 0
    %p161 = por %p159, %p160
    %p162 = scmp.le.s32.totalorder 1, %s11
    %p163 = scmp.lt.s32.totalorder %s11, 3
    %p164 = pnand %p162, %p163
    %p165 = pneg %p164
    // Predicated region
    $region9: #{nlayer_discriminator_forward.7} parent=5 // pred_check
      _
    $region10: #{nlayer_discriminator_forward.7} parent=5 // pred_check_branch
      %167 = sbr.rel (%p164) target = $region12
    $region11: #{nlayer_discriminator_forward.7} parent=5 // pred_region
      %s168 = ssub.s32 %s11, 1
      // Predicated region
      $region13: #{nlayer_discriminator_forward.7} parent=11 // pred_check
        %p169 = pneg %p70
      $region14: #{nlayer_discriminator_forward.7} parent=11 // pred_check_branch
        %171 = sbr.rel (%p169) target = $region16
      $region15: #{nlayer_discriminator_forward.7} parent=11 // pred_region
        _
      $region16: #{nlayer_discriminator_forward.7} parent=11 // pred_fallthru
        _
    $region12: #{nlayer_discriminator_forward.7} parent=5 // pred_fallthru
      _
    %p172 = scmp.lt.s32.totalorder %s11, 2
    // Predicated region
    $region17: #{nlayer_discriminator_forward.7} parent=5 // pred_check
      %p173 = pneg %p172
    $region18: #{nlayer_discriminator_forward.7} parent=5 // pred_check_branch
      %175 = sbr.rel (%p173) target = $region20
    $region19: #{nlayer_discriminator_forward.7} parent=5 // pred_region
      // Predicated region
      $region21: #{nlayer_discriminator_forward.7} parent=19 // pred_check
        %p176 = pneg %p43
      $region22: #{nlayer_discriminator_forward.7} parent=19 // pred_check_branch
        %178 = sbr.rel (%p176) target = $region24
      $region23: #{nlayer_discriminator_forward.7} parent=19 // pred_region
        %p179 = scmp.lt.s32.totalorder %s18, 1
        %s180 = scalar_select %p179, %s18, 1
        %s181 = smul.addr %s180, 5
        %s182 = smul.addr %s181, 4
        %s183 = scalar_lea.vmem %s0, %s182
      $region24: #{nlayer_discriminator_forward.7} parent=19 // pred_fallthru
        _
    $region20: #{nlayer_discriminator_forward.7} parent=5 // pred_fallthru
      _
    %p184 = scmp.le.s32.totalorder 1, %s11
    %p185 = scmp.lt.s32.totalorder %s11, 3
    %p186 = pnand %p184, %p185
    %p187 = pneg %p186
    // Predicated region
    $region25: #{nlayer_discriminator_forward.7} parent=5 // pred_check
      _
    $region26: #{nlayer_discriminator_forward.7} parent=5 // pred_check_branch
      %189 = sbr.rel (%p186) target = $region28
    $region27: #{nlayer_discriminator_forward.7} parent=5 // pred_region
      %s190 = ssub.s32 %s11, 1
      %p191 = scmp.lt.s32.totalorder %s20, 1
      %s192 = scalar_select %p191, %s20, 1
      %s193 = smul.addr %s192, 5
      %s194 = smul.addr %s193, 4
      %s195 = scalar_lea.vmem %s0, %s194
      %p196 = pneg %p49
      %p197 = pneg %p46
      %p198 = pneg %p70
      %p199 = pneg %p67
      %p200 = pneg %p98
      %p201 = pneg %p95
      %s202 = smul.u32 4, %s21
      %p203 = scmp.lt.s32.totalorder %s20, 1
      %s204 = scalar_select %p203, %s20, 1
      %p205 = scmp.lt.s32.totalorder %s202, 3
      %s206 = scalar_select %p205, %s202, 3
      %s207 = smul.addr %s204, 4
      %s208 = sadd.s32 %s206, %s207
      %s209 = smul.addr %s208, 2
      %s210 = scalar_lea.vmem %s2, %s209
      %p211 = pneg %p126
      %p212 = pneg %p123
      %p213 = scmp.lt.s32.totalorder %s20, 1
      %s214 = scalar_select %p213, %s20, 1
      %p215 = scmp.lt.s32.totalorder %s21, 0
      %s216 = scalar_select %p215, %s21, 0
      %s217 = sadd.s32 %s216, %s214
      %s218 = scalar_lea.vmem %s3, %s217
      %p219 = pneg %p154
      %p220 = pneg %p151
      %p221 = scmp.lt.s32.totalorder %s20, 1
      %s222 = scalar_select %p221, %s20, 1
      %p223 = scmp.lt.s32.totalorder %s21, 0
      %s224 = scalar_select %p223, %s21, 0
      %s225 = sadd.s32 %s224, %s222
      %s226 = scalar_lea.vmem %s4, %s225
      %p227 = scmp.lt.s32.totalorder %s20, 1
      %s228 = scalar_select %p227, %s20, 1
      %s229 = smul.addr %s228, 5
      %s230 = smul.addr %s229, 4
      %s231 = scalar_lea.vmem %s0, %s230
      %s232 = smul.u32 4, %s21
      %p233 = scmp.lt.s32.totalorder %s20, 1
      %s234 = scalar_select %p233, %s20, 1
      %p235 = scmp.lt.s32.totalorder %s232, 3
      %s236 = scalar_select %p235, %s232, 3
      %s237 = smul.addr %s234, 4
      %s238 = sadd.s32 %s236, %s237
      %s239 = smul.addr %s238, 2
      %s240 = scalar_lea.vmem %s2, %s239
      %s241 = smul.u32 4, %s21
      %p242 = scmp.lt.s32.totalorder %s20, 1
      %s243 = scalar_select %p242, %s20, 1
      %p244 = scmp.lt.s32.totalorder %s21, 0
      %s245 = scalar_select %p244, %s21, 0
      %s246 = sadd.s32 %s245, %s243
      %s247 = scalar_lea.vmem %s3, %s246
      %p248 = scmp.lt.s32.totalorder %s20, 1
      %s249 = scalar_select %p248, %s20, 1
      %p250 = scmp.lt.s32.totalorder %s21, 0
      %s251 = scalar_select %p250, %s21, 0
      %s252 = sadd.s32 %s251, %s249
      %s253 = scalar_lea.vmem %s4, %s252
      %s255 = smul.u32 %s21, 4
      %s256 = smul.addr %s255, 4
      %s257 = scalar_lea.vmem %s231, %s256
      %v258 = vld [vmem:[%s257] sm:$0x3]
      %v259 = vld [vmem:[%s257 + $0x4] sm:$0x3]
      %v260 = vld [vmem:[%s257 + $0x8] sm:$0x3]
      %v261 = vld [vmem:[%s257 + $0xc] sm:$0x3]
      %v262 = vld [vmem:[%s1] sm:$0xf]
      %v263 = vld [vmem:[%s1 + $0x4] sm:$0xf]
      %v264 = vld [vmem:[%s1 + $0x8] sm:$0xf]
      %v265 = vld [vmem:[%s1 + $0xc] sm:$0xf]
      %v266 = vld [vmem:[%s1 + $0x10] sm:$0xf]
      %v267 = vld [vmem:[%s1 + $0x14] sm:$0xf]
      %v268 = vld [vmem:[%s1 + $0x18] sm:$0xf]
      %v269 = vld [vmem:[%s1 + $0x1c] sm:$0xf]
      %v270 = vld [vmem:[%s257] sm:$0x7]
      %v271 = vld [vmem:[%s257 + $0x4] sm:$0x7]
      %v272 = vld [vmem:[%s257 + $0x8] sm:$0x7]
      %v273 = vld [vmem:[%s257 + $0xc] sm:$0x7]
      %v279 = vunpack.c.l.s4 1983009808
      %v280 = vunpack.c.0.s8 %v279
      %v281 = vlaneseq
      %v282 = vshrl.u32 %v281, 7
      %v283 = vsub.s32 %v280, %v282
      %v284 = vrot.slane %v270, %v283
      %v285 = vcombine.high %v284, %v284
      %v287 = vunpack.c.l.s4 1983009808
      %v288 = vunpack.c.0.s8 %v287
      %v289 = vlaneseq
      %v290 = vshrl.u32 %v289, 7
      %v291 = vsub.s32 %v288, %v290
      %v292 = vrot.slane %v271, %v291
      %v293 = vcombine.high %v292, %v292
      %v295 = vunpack.c.l.s4 1983009808
      %v296 = vunpack.c.0.s8 %v295
      %v297 = vlaneseq
      %v298 = vshrl.u32 %v297, 7
      %v299 = vsub.s32 %v296, %v298
      %v300 = vrot.slane %v272, %v299
      %v301 = vcombine.high %v300, %v300
      %v303 = vunpack.c.l.s4 1983009808
      %v304 = vunpack.c.0.s8 %v303
      %v305 = vlaneseq
      %v306 = vshrl.u32 %v305, 7
      %v307 = vsub.s32 %v304, %v306
      %v308 = vrot.slane %v273, %v307
      %v309 = vcombine.high %v308, %v308
      %vm310 = vsmask.f32 1280
      %vm311 = vsmask.f32 3336
      %vm312 = vmor %vm310, %vm311
      %vm313 = vsmask.f32 5392
      %vm314 = vmor %vm312, %vm313
      %vm315 = vsmask.f32 7448
      %vm316 = vmor %vm314, %vm315
      %v318 = vshrl.u32 %v284, 16
      %v320 = vrot.slane %v318, 6
      %v321 = vshll.u32 %v284, 16
      %v323 = vrot.slane %v321, 7
      %v324 = vor.u32 %v320, %v323
      %v325 = vrot.slane %v324, 2
      %v327 = vshll.u32 %v285, 16
      %v329 = vrot.slane %v327, 7
      %v330 = vsel %vm316, %v325, %v329
      %v332 = vshrl.u32 %v292, 16
      %v334 = vrot.slane %v332, 6
      %v335 = vshll.u32 %v292, 16
      %v337 = vrot.slane %v335, 7
      %v338 = vor.u32 %v334, %v337
      %v339 = vrot.slane %v338, 2
      %v341 = vshll.u32 %v293, 16
      %v343 = vrot.slane %v341, 7
      %v344 = vsel %vm316, %v339, %v343
      %v346 = vshrl.u32 %v300, 16
      %v348 = vrot.slane %v346, 6
      %v349 = vshll.u32 %v300, 16
      %v351 = vrot.slane %v349, 7
      %v352 = vor.u32 %v348, %v351
      %v353 = vrot.slane %v352, 2
      %v355 = vshll.u32 %v301, 16
      %v357 = vrot.slane %v355, 7
      %v358 = vsel %vm316, %v353, %v357
      %v360 = vshrl.u32 %v308, 16
      %v362 = vrot.slane %v360, 6
      %v363 = vshll.u32 %v308, 16
      %v365 = vrot.slane %v363, 7
      %v366 = vor.u32 %v362, %v365
      %v367 = vrot.slane %v366, 2
      %v369 = vshll.u32 %v309, 16
      %v371 = vrot.slane %v369, 7
      %v372 = vsel %vm316, %v367, %v371
      %s373 = scalar_lea.vmem %s1, 32
      %v374 = vld [vmem:[%s373] sm:$0xf]
      %v375 = vld [vmem:[%s373 + $0x4] sm:$0xf]
      %v376 = vld [vmem:[%s373 + $0x8] sm:$0xf]
      %v377 = vld [vmem:[%s373 + $0xc] sm:$0xf]
      %v378 = vld [vmem:[%s373 + $0x10] sm:$0xf]
      %v379 = vld [vmem:[%s373 + $0x14] sm:$0xf]
      %v380 = vld [vmem:[%s373 + $0x18] sm:$0xf]
      %v381 = vld [vmem:[%s373 + $0x1c] sm:$0xf]
      %v382 = vcombine.low %v330, %v344
      %v383 = vcombine.low %v358, %v372
      %v385 = vunpack.c.l.s4 1983009808
      %v386 = vunpack.c.0.s8 %v385
      %v387 = vlaneseq
      %v388 = vshrl.u32 %v387, 7
      %v389 = vsub.s32 %v386, %v388
      %v390 = vrot.slane %v382, %v389
      %v392 = vunpack.c.l.s4 1983009808
      %v393 = vunpack.c.0.s8 %v392
      %v394 = vlaneseq
      %v395 = vshrl.u32 %v394, 7
      %v396 = vsub.s32 %v393, %v395
      %v397 = vrot.slane %v383, %v396
      %v398 = vcombine.low %v390, %v397
      %v407 = vunpack.c.l.b16 %v374
      %v408 = vunpack.c.l.b16 %v375
      %v409 = vunpack.c.l.b16 %v376
      %v410 = vunpack.c.l.b16 %v377
      %v411 = vunpack.c.l.b16 %v378
      %v412 = vunpack.c.l.b16 %v379
      %v413 = vunpack.c.l.b16 %v380
      %v414 = vunpack.c.l.b16 %v381
      %v415 = vpack.c.b16 %v408, %v407
      %v416 = vpack.c.b16 %v410, %v409
      %v417 = vpack.c.b16 %v412, %v411
      %v418 = vpack.c.b16 %v414, %v413
      %vm423 = vcmask 523264
      %v425 = vsel %vm423, %v398, 0
      %427 = vmatprep.subr.bf16.mxu0 0
      %428 = vmatpush1.bf16.msra.mxu0 0
      %429 = vmatprep.subr.bf16.mxu0 0
      %430 = vmatpush1.bf16.msra.mxu0 0
      %431 = vmatprep.subr.bf16.mxu0 0
      %432 = vmatpush1.bf16.msra.mxu0 0
      %433 = vmatprep.subr.bf16.mxu0 0
      %434 = vmatpush1.bf16.msra.mxu0 0
      %435 = vmatprep.subr.bf16.mxu0 0
      %436 = vmatpush1.bf16.msra.mxu0 %v418
      %437 = vmatprep.subr.bf16.mxu0 0
      %438 = vmatpush1.bf16.msra.mxu0 %v417
      %439 = vmatprep.subr.bf16.mxu0 0
      %440 = vmatpush1.bf16.msra.mxu0 %v416
      %441 = vmatprep.subr.bf16.mxu0 0
      %442 = vmatpush1.bf16.msra.mxu0 %v415
      %443 = vmatprep.subr.bf16.mxu0 0
      %444 = vmatpush2.bf16.msra.mxu0 0
      %445 = vmatprep.subr.bf16.mxu0 0
      %446 = vmatpush2.bf16.msra.mxu0 0
      %447 = vmatprep.subr.bf16.mxu0 0
      %448 = vmatpush2.bf16.msra.mxu0 0
      %449 = vmatprep.subr.bf16.mxu0 0
      %450 = vmatpush2.bf16.msra.mxu0 0
      %451 = vmatprep.subr.bf16.mxu0 0
      %452 = vmatpush2.bf16.msra.mxu0 0
      %453 = vmatprep.subr.bf16.mxu0 0
      %454 = vmatpush2.bf16.msra.mxu0 0
      %455 = vmatprep.subr.bf16.mxu0 0
      %456 = vmatpush2.bf16.msra.mxu0 0
      %457 = vmatprep.subr.bf16.mxu0 0
      %458 = vmatpush2.bf16.msra.mxu0 0
      %459 = vmatprep.mubr.bf16.mxu0 0
      %460 = vmatmul.mubr.bf16.gmra.mxu0 %v425
      %v461 = vpop.f32.mrf.mxu0
      %v462 = vadd.f32 0.0, %v461
      %v463 = vpop.f32.mrf.mxu0
      %v464 = vpop.f32.mrf.mxu0
      %v465 = vadd.f32 0.0, %v464
      %v466 = vpop.f32.mrf.mxu0
      %467 = vdwg.mxu0
      %v472 = vcombine.low %v258, %v259
      %v473 = vcombine.low %v260, %v261
      %v475 = vunpack.c.l.s4 1983009808
      %v476 = vunpack.c.0.s8 %v475
      %v477 = vlaneseq
      %v478 = vshrl.u32 %v477, 7
      %v479 = vsub.s32 %v476, %v478
      %v480 = vrot.slane %v472, %v479
      %v482 = vunpack.c.l.s4 1983009808
      %v483 = vunpack.c.0.s8 %v482
      %v484 = vlaneseq
      %v485 = vshrl.u32 %v484, 7
      %v486 = vsub.s32 %v483, %v485
      %v487 = vrot.slane %v473, %v486
      %v488 = vcombine.low %v480, %v487
      %v497 = vunpack.c.l.b16 %v262
      %v498 = vunpack.c.l.b16 %v263
      %v499 = vunpack.c.l.b16 %v264
      %v500 = vunpack.c.l.b16 %v265
      %v501 = vunpack.c.l.b16 %v266
      %v502 = vunpack.c.l.b16 %v267
      %v503 = vunpack.c.l.b16 %v268
      %v504 = vunpack.c.l.b16 %v269
      %v505 = vpack.c.b16 %v498, %v497
      %v506 = vpack.c.b16 %v500, %v499
      %v507 = vpack.c.b16 %v502, %v501
      %v508 = vpack.c.b16 %v504, %v503
      %v514 = vsel %vm423, %v488, 0
      %516 = vmatprep.subr.bf16.mxu0 0
      %517 = vmatpush1.bf16.msra.mxu0 0
      %518 = vmatprep.subr.bf16.mxu0 0
      %519 = vmatpush1.bf16.msra.mxu0 0
      %520 = vmatprep.subr.bf16.mxu0 0
      %521 = vmatpush1.bf16.msra.mxu0 0
      %522 = vmatprep.subr.bf16.mxu0 0
      %523 = vmatpush1.bf16.msra.mxu0 0
      %524 = vmatprep.subr.bf16.mxu0 0
      %525 = vmatpush1.bf16.msra.mxu0 %v508
      %526 = vmatprep.subr.bf16.mxu0 0
      %527 = vmatpush1.bf16.msra.mxu0 %v507
      %528 = vmatprep.subr.bf16.mxu0 0
      %529 = vmatpush1.bf16.msra.mxu0 %v506
      %530 = vmatprep.subr.bf16.mxu0 0
      %531 = vmatpush1.bf16.msra.mxu0 %v505
      %532 = vmatprep.subr.bf16.mxu0 0
      %533 = vmatpush2.bf16.msra.mxu0 0
      %534 = vmatprep.subr.bf16.mxu0 0
      %535 = vmatpush2.bf16.msra.mxu0 0
      %536 = vmatprep.subr.bf16.mxu0 0
      %537 = vmatpush2.bf16.msra.mxu0 0
      %538 = vmatprep.subr.bf16.mxu0 0
      %539 = vmatpush2.bf16.msra.mxu0 0
      %540 = vmatprep.subr.bf16.mxu0 0
      %541 = vmatpush2.bf16.msra.mxu0 0
      %542 = vmatprep.subr.bf16.mxu0 0
      %543 = vmatpush2.bf16.msra.mxu0 0
      %544 = vmatprep.subr.bf16.mxu0 0
      %545 = vmatpush2.bf16.msra.mxu0 0
      %546 = vmatprep.subr.bf16.mxu0 0
      %547 = vmatpush2.bf16.msra.mxu0 0
      %548 = vmatprep.mubr.bf16.mxu0 0
      %549 = vmatmul.mubr.bf16.gmra.mxu0 %v514
      %v550 = vpop.f32.mrf.mxu0
      %v551 = vadd.f32 %v462, %v550
      %v552 = vpop.f32.mrf.mxu0
      %v553 = vpop.f32.mrf.mxu0
      %v554 = vadd.f32 %v465, %v553
      %v555 = vpop.f32.mrf.mxu0
      %556 = vdwg.mxu0
      %s557 = sadd.s32 %s255, 1
      %s558 = smul.addr %s557, 4
      %s559 = scalar_lea.vmem %s231, %s558
      %v560 = vld [vmem:[%s559] sm:$0x3]
      %v561 = vld [vmem:[%s559 + $0x4] sm:$0x3]
      %v562 = vld [vmem:[%s559 + $0x8] sm:$0x3]
      %v563 = vld [vmem:[%s559 + $0xc] sm:$0x3]
      %s564 = scalar_lea.vmem %s1, 64
      %v565 = vld [vmem:[%s564] sm:$0xf]
      %v566 = vld [vmem:[%s564 + $0x4] sm:$0xf]
      %v567 = vld [vmem:[%s564 + $0x8] sm:$0xf]
      %v568 = vld [vmem:[%s564 + $0xc] sm:$0xf]
      %v569 = vld [vmem:[%s564 + $0x10] sm:$0xf]
      %v570 = vld [vmem:[%s564 + $0x14] sm:$0xf]
      %v571 = vld [vmem:[%s564 + $0x18] sm:$0xf]
      %v572 = vld [vmem:[%s564 + $0x1c] sm:$0xf]
      %v577 = vcombine.low %v560, %v561
      %v578 = vcombine.low %v562, %v563
      %v580 = vunpack.c.l.s4 1983009808
      %v581 = vunpack.c.0.s8 %v580
      %v582 = vlaneseq
      %v583 = vshrl.u32 %v582, 7
      %v584 = vsub.s32 %v581, %v583
      %v585 = vrot.slane %v577, %v584
      %v587 = vunpack.c.l.s4 1983009808
      %v588 = vunpack.c.0.s8 %v587
      %v589 = vlaneseq
      %v590 = vshrl.u32 %v589, 7
      %v591 = vsub.s32 %v588, %v590
      %v592 = vrot.slane %v578, %v591
      %v593 = vcombine.low %v585, %v592
      %v602 = vunpack.c.l.b16 %v565
      %v603 = vunpack.c.l.b16 %v566
      %v604 = vunpack.c.l.b16 %v567
      %v605 = vunpack.c.l.b16 %v568
      %v606 = vunpack.c.l.b16 %v569
      %v607 = vunpack.c.l.b16 %v570
      %v608 = vunpack.c.l.b16 %v571
      %v609 = vunpack.c.l.b16 %v572
      %v610 = vpack.c.b16 %v603, %v602
      %v611 = vpack.c.b16 %v605, %v604
      %v612 = vpack.c.b16 %v607, %v606
      %v613 = vpack.c.b16 %v609, %v608
      %v619 = vsel %vm423, %v593, 0
      %621 = vmatprep.subr.bf16.mxu0 0
      %622 = vmatpush1.bf16.msra.mxu0 0
      %623 = vmatprep.subr.bf16.mxu0 0
      %624 = vmatpush1.bf16.msra.mxu0 0
      %625 = vmatprep.subr.bf16.mxu0 0
      %626 = vmatpush1.bf16.msra.mxu0 0
      %627 = vmatprep.subr.bf16.mxu0 0
      %628 = vmatpush1.bf16.msra.mxu0 0
      %629 = vmatprep.subr.bf16.mxu0 0
      %630 = vmatpush1.bf16.msra.mxu0 %v613
      %631 = vmatprep.subr.bf16.mxu0 0
      %632 = vmatpush1.bf16.msra.mxu0 %v612
      %633 = vmatprep.subr.bf16.mxu0 0
      %634 = vmatpush1.bf16.msra.mxu0 %v611
      %635 = vmatprep.subr.bf16.mxu0 0
      %636 = vmatpush1.bf16.msra.mxu0 %v610
      %637 = vmatprep.subr.bf16.mxu0 0
      %638 = vmatpush2.bf16.msra.mxu0 0
      %639 = vmatprep.subr.bf16.mxu0 0
      %640 = vmatpush2.bf16.msra.mxu0 0
      %641 = vmatprep.subr.bf16.mxu0 0
      %642 = vmatpush2.bf16.msra.mxu0 0
      %643 = vmatprep.subr.bf16.mxu0 0
      %644 = vmatpush2.bf16.msra.mxu0 0
      %645 = vmatprep.subr.bf16.mxu0 0
      %646 = vmatpush2.bf16.msra.mxu0 0
      %647 = vmatprep.subr.bf16.mxu0 0
      %648 = vmatpush2.bf16.msra.mxu0 0
      %649 = vmatprep.subr.bf16.mxu0 0
      %650 = vmatpush2.bf16.msra.mxu0 0
      %651 = vmatprep.subr.bf16.mxu0 0
      %652 = vmatpush2.bf16.msra.mxu0 0
      %653 = vmatprep.mubr.bf16.mxu0 0
      %654 = vmatmul.mubr.bf16.gmra.mxu0 %v619
      %v655 = vpop.f32.mrf.mxu0
      %v656 = vadd.f32 0.0, %v655
      %v657 = vpop.f32.mrf.mxu0
      %v658 = vpop.f32.mrf.mxu0
      %v659 = vadd.f32 0.0, %v658
      %v660 = vpop.f32.mrf.mxu0
      %661 = vdwg.mxu0
      %v662 = vadd.f32 %v551, %v656
      %v663 = vadd.f32 %v554, %v659
      %v664 = vld [vmem:[%s559] sm:$0x7]
      %v665 = vld [vmem:[%s559 + $0x4] sm:$0x7]
      %v666 = vld [vmem:[%s559 + $0x8] sm:$0x7]
      %v667 = vld [vmem:[%s559 + $0xc] sm:$0x7]
      %v673 = vunpack.c.l.s4 1983009808
      %v674 = vunpack.c.0.s8 %v673
      %v675 = vlaneseq
      %v676 = vshrl.u32 %v675, 7
      %v677 = vsub.s32 %v674, %v676
      %v678 = vrot.slane %v664, %v677
      %v679 = vcombine.high %v678, %v678
      %v681 = vunpack.c.l.s4 1983009808
      %v682 = vunpack.c.0.s8 %v681
      %v683 = vlaneseq
      %v684 = vshrl.u32 %v683, 7
      %v685 = vsub.s32 %v682, %v684
      %v686 = vrot.slane %v665, %v685
      %v687 = vcombine.high %v686, %v686
      %v689 = vunpack.c.l.s4 1983009808
      %v690 = vunpack.c.0.s8 %v689
      %v691 = vlaneseq
      %v692 = vshrl.u32 %v691, 7
      %v693 = vsub.s32 %v690, %v692
      %v694 = vrot.slane %v666, %v693
      %v695 = vcombine.high %v694, %v694
      %v697 = vunpack.c.l.s4 1983009808
      %v698 = vunpack.c.0.s8 %v697
      %v699 = vlaneseq
      %v700 = vshrl.u32 %v699, 7
      %v701 = vsub.s32 %v698, %v700
      %v702 = vrot.slane %v667, %v701
      %v703 = vcombine.high %v702, %v702
      %v705 = vshrl.u32 %v678, 16
      %v707 = vrot.slane %v705, 6
      %v708 = vshll.u32 %v678, 16
      %v710 = vrot.slane %v708, 7
      %v711 = vor.u32 %v707, %v710
      %v712 = vrot.slane %v711, 2
      %v714 = vshll.u32 %v679, 16
      %v716 = vrot.slane %v714, 7
      %v717 = vsel %vm316, %v712, %v716
      %v719 = vshrl.u32 %v686, 16
      %v721 = vrot.slane %v719, 6
      %v722 = vshll.u32 %v686, 16
      %v724 = vrot.slane %v722, 7
      %v725 = vor.u32 %v721, %v724
      %v726 = vrot.slane %v725, 2
      %v728 = vshll.u32 %v687, 16
      %v730 = vrot.slane %v728, 7
      %v731 = vsel %vm316, %v726, %v730
      %v733 = vshrl.u32 %v694, 16
      %v735 = vrot.slane %v733, 6
      %v736 = vshll.u32 %v694, 16
      %v738 = vrot.slane %v736, 7
      %v739 = vor.u32 %v735, %v738
      %v740 = vrot.slane %v739, 2
      %v742 = vshll.u32 %v695, 16
      %v744 = vrot.slane %v742, 7
      %v745 = vsel %vm316, %v740, %v744
      %v747 = vshrl.u32 %v702, 16
      %v749 = vrot.slane %v747, 6
      %v750 = vshll.u32 %v702, 16
      %v752 = vrot.slane %v750, 7
      %v753 = vor.u32 %v749, %v752
      %v754 = vrot.slane %v753, 2
      %v756 = vshll.u32 %v703, 16
      %v758 = vrot.slane %v756, 7
      %v759 = vsel %vm316, %v754, %v758
      %s760 = scalar_lea.vmem %s1, 96
      %v761 = vld [vmem:[%s760] sm:$0xf]
      %v762 = vld [vmem:[%s760 + $0x4] sm:$0xf]
      %v763 = vld [vmem:[%s760 + $0x8] sm:$0xf]
      %v764 = vld [vmem:[%s760 + $0xc] sm:$0xf]
      %v765 = vld [vmem:[%s760 + $0x10] sm:$0xf]
      %v766 = vld [vmem:[%s760 + $0x14] sm:$0xf]
      %v767 = vld [vmem:[%s760 + $0x18] sm:$0xf]
      %v768 = vld [vmem:[%s760 + $0x1c] sm:$0xf]
      %v769 = vcombine.low %v717, %v731
      %v770 = vcombine.low %v745, %v759
      %v772 = vunpack.c.l.s4 1983009808
      %v773 = vunpack.c.0.s8 %v772
      %v774 = vlaneseq
      %v775 = vshrl.u32 %v774, 7
      %v776 = vsub.s32 %v773, %v775
      %v777 = vrot.slane %v769, %v776
      %v779 = vunpack.c.l.s4 1983009808
      %v780 = vunpack.c.0.s8 %v779
      %v781 = vlaneseq
      %v782 = vshrl.u32 %v781, 7
      %v783 = vsub.s32 %v780, %v782
      %v784 = vrot.slane %v770, %v783
      %v785 = vcombine.low %v777, %v784
      %v794 = vunpack.c.l.b16 %v761
      %v795 = vunpack.c.l.b16 %v762
      %v796 = vunpack.c.l.b16 %v763
      %v797 = vunpack.c.l.b16 %v764
      %v798 = vunpack.c.l.b16 %v765
      %v799 = vunpack.c.l.b16 %v766
      %v800 = vunpack.c.l.b16 %v767
      %v801 = vunpack.c.l.b16 %v768
      %v802 = vpack.c.b16 %v795, %v794
      %v803 = vpack.c.b16 %v797, %v796
      %v804 = vpack.c.b16 %v799, %v798
      %v805 = vpack.c.b16 %v801, %v800
      %v811 = vsel %vm423, %v785, 0
      %813 = vmatprep.subr.bf16.mxu0 0
      %814 = vmatpush1.bf16.msra.mxu0 0
      %815 = vmatprep.subr.bf16.mxu0 0
      %816 = vmatpush1.bf16.msra.mxu0 0
      %817 = vmatprep.subr.bf16.mxu0 0
      %818 = vmatpush1.bf16.msra.mxu0 0
      %819 = vmatprep.subr.bf16.mxu0 0
      %820 = vmatpush1.bf16.msra.mxu0 0
      %821 = vmatprep.subr.bf16.mxu0 0
      %822 = vmatpush1.bf16.msra.mxu0 %v805
      %823 = vmatprep.subr.bf16.mxu0 0
      %824 = vmatpush1.bf16.msra.mxu0 %v804
      %825 = vmatprep.subr.bf16.mxu0 0
      %826 = vmatpush1.bf16.msra.mxu0 %v803
      %827 = vmatprep.subr.bf16.mxu0 0
      %828 = vmatpush1.bf16.msra.mxu0 %v802
      %829 = vmatprep.subr.bf16.mxu0 0
      %830 = vmatpush2.bf16.msra.mxu0 0
      %831 = vmatprep.subr.bf16.mxu0 0
      %832 = vmatpush2.bf16.msra.mxu0 0
      %833 = vmatprep.subr.bf16.mxu0 0
      %834 = vmatpush2.bf16.msra.mxu0 0
      %835 = vmatprep.subr.bf16.mxu0 0
      %836 = vmatpush2.bf16.msra.mxu0 0
      %837 = vmatprep.subr.bf16.mxu0 0
      %838 = vmatpush2.bf16.msra.mxu0 0
      %839 = vmatprep.subr.bf16.mxu0 0
      %840 = vmatpush2.bf16.msra.mxu0 0
      %841 = vmatprep.subr.bf16.mxu0 0
      %842 = vmatpush2.bf16.msra.mxu0 0
      %843 = vmatprep.subr.bf16.mxu0 0
      %844 = vmatpush2.bf16.msra.mxu0 0
      %845 = vmatprep.mubr.bf16.mxu0 0
      %846 = vmatmul.mubr.bf16.gmra.mxu0 %v811
      %v847 = vpop.f32.mrf.mxu0
      %v848 = vadd.f32 0.0, %v847
      %v849 = vpop.f32.mrf.mxu0
      %v850 = vpop.f32.mrf.mxu0
      %v851 = vadd.f32 0.0, %v850
      %v852 = vpop.f32.mrf.mxu0
      %853 = vdwg.mxu0
      %v854 = vadd.f32 %v662, %v848
      %v855 = vadd.f32 %v663, %v851
      %v858 = vcombine.high %v854, %v854
      %v859 = vcombine.high %v855, %v855
      %v862 = vpack.c.bf16 %v854, %v854
      %v863 = vpack.c.bf16 %v858, %v858
      %v864 = vpack.c.bf16 %v855, %v855
      %v865 = vpack.c.bf16 %v859, %v859
      %vm866 = vcmask 254976
      %867 = vst.msk [vmem:[%s240] sm:$0x3] %vm866, %v862
      %868 = vst.msk [vmem:[%s240 + $0x2] sm:$0x3] %vm866, %v863
      %869 = vst.msk [vmem:[%s240 + $0x4] sm:$0x3] %vm866, %v864
      %870 = vst.msk [vmem:[%s240 + $0x6] sm:$0x3] %vm866, %v865
      %vm871 = vcmask 261120
      %v872 = vsel %vm871, %v854, 0.0
      %v873 = vsel %vm871, %v855, 0.0
      %v874 = vadd.f32 %v872, %v873
      %v875 = vrot.slane %v874, 4
      %v876 = vadd.f32 %v874, %v875
      %v877 = vrot.slane %v876, 2
      %v878 = vadd.f32 %v876, %v877
      %v879 = vrot.slane %v878, 1
      %v880 = vadd.f32 %v878, %v879
      %vm881 = vcmask 253952
      %882 = vst.msk [vmem:[%s247] sm:$0x1] %vm881, %v880
      %v883 = vmul.f32 %v854, %v854
      %v884 = vmul.f32 %v855, %v855
      %v885 = vsel %vm871, %v883, 0.0
      %v886 = vsel %vm871, %v884, 0.0
      %v887 = vadd.f32 %v885, %v886
      %v888 = vrot.slane %v887, 4
      %v889 = vadd.f32 %v887, %v888
      %v890 = vrot.slane %v889, 2
      %v891 = vadd.f32 %v889, %v890
      %v892 = vrot.slane %v891, 1
      %v893 = vadd.f32 %v891, %v892
      %894 = vst.msk [vmem:[%s253] sm:$0x1] %vm881, %v893
      %s895 = smul.u32 4, %s21
      %p896 = scmp.lt.s32.totalorder %s20, 1
      %s897 = scalar_select %p896, %s20, 1
      %p898 = scmp.lt.s32.totalorder %s895, 3
      %s899 = scalar_select %p898, %s895, 3
      %s900 = smul.addr %s897, 4
      %s901 = sadd.s32 %s899, %s900
      %s902 = smul.addr %s901, 2
      %s903 = scalar_lea.vmem %s2, %s902
      %p904 = scmp.lt.s32.totalorder %s20, 1
      %s905 = scalar_select %p904, %s20, 1
      %p906 = scmp.lt.s32.totalorder %s21, 0
      %s907 = scalar_select %p906, %s21, 0
      %s908 = sadd.s32 %s907, %s905
      %s909 = scalar_lea.vmem %s3, %s908
      %p910 = scmp.lt.s32.totalorder %s20, 1
      %s911 = scalar_select %p910, %s20, 1
      %p912 = scmp.lt.s32.totalorder %s21, 0
      %s913 = scalar_select %p912, %s21, 0
      %s914 = sadd.s32 %s913, %s911
      %s915 = scalar_lea.vmem %s4, %s914
      // Predicated region
      $region29: #{nlayer_discriminator_forward.7} parent=27 // pred_check
        %p916 = pneg %p95
      $region30: #{nlayer_discriminator_forward.7} parent=27 // pred_check_branch
        %918 = sbr.rel (%p916) target = $region32
      $region31: #{nlayer_discriminator_forward.7} parent=27 // pred_region
        %s919 = smul.u32 4, %s21
      $region32: #{nlayer_discriminator_forward.7} parent=27 // pred_fallthru
        _
      // Predicated region
      $region33: #{nlayer_discriminator_forward.7} parent=27 // pred_check
        %p920 = pneg %p123
      $region34: #{nlayer_discriminator_forward.7} parent=27 // pred_check_branch
        %922 = sbr.rel (%p920) target = $region36
      $region35: #{nlayer_discriminator_forward.7} parent=27 // pred_region
        _
      $region36: #{nlayer_discriminator_forward.7} parent=27 // pred_fallthru
        _
      // Predicated region
      $region37: #{nlayer_discriminator_forward.7} parent=27 // pred_check
        %p923 = pneg %p151
      $region38: #{nlayer_discriminator_forward.7} parent=27 // pred_check_branch
        %925 = sbr.rel (%p923) target = $region40
      $region39: #{nlayer_discriminator_forward.7} parent=27 // pred_region
        _
      $region40: #{nlayer_discriminator_forward.7} parent=27 // pred_fallthru
        _
    $region28: #{nlayer_discriminator_forward.7} parent=5 // pred_fallthru
      _
    %p926 = scmp.le.s32.totalorder 2, %s11
    // Predicated region
    $region41: #{nlayer_discriminator_forward.7} parent=5 // pred_check
      %p927 = pneg %p926
    $region42: #{nlayer_discriminator_forward.7} parent=5 // pred_check_branch
      %929 = sbr.rel (%p927) target = $region44
    $region43: #{nlayer_discriminator_forward.7} parent=5 // pred_region
      %s930 = ssub.s32 %s11, 2
      // Predicated region
      $region45: #{nlayer_discriminator_forward.7} parent=43 // pred_check
        %p931 = pneg %p101
      $region46: #{nlayer_discriminator_forward.7} parent=43 // pred_check_branch
        %933 = sbr.rel (%p931) target = $region48
      $region47: #{nlayer_discriminator_forward.7} parent=43 // pred_region
        %s934 = smul.u32 4, %s23
        %p935 = scmp.lt.s32.totalorder %s22, 1
        %s936 = scalar_select %p935, %s22, 1
        %p937 = scmp.lt.s32.totalorder %s934, 3
        %s938 = scalar_select %p937, %s934, 3
        %s939 = smul.addr %s936, 4
        %s940 = sadd.s32 %s938, %s939
        %s941 = smul.addr %s940, 2
        %s942 = scalar_lea.vmem %s2, %s941
      $region48: #{nlayer_discriminator_forward.7} parent=43 // pred_fallthru
        _
      // Predicated region
      $region49: #{nlayer_discriminator_forward.7} parent=43 // pred_check
        %p943 = pneg %p129
      $region50: #{nlayer_discriminator_forward.7} parent=43 // pred_check_branch
        %945 = sbr.rel (%p943) target = $region52
      $region51: #{nlayer_discriminator_forward.7} parent=43 // pred_region
        %p946 = scmp.lt.s32.totalorder %s22, 1
        %s947 = scalar_select %p946, %s22, 1
        %p948 = scmp.lt.s32.totalorder %s23, 0
        %s949 = scalar_select %p948, %s23, 0
        %s950 = sadd.s32 %s949, %s947
        %s951 = scalar_lea.vmem %s3, %s950
      $region52: #{nlayer_discriminator_forward.7} parent=43 // pred_fallthru
        _
      // Predicated region
      $region53: #{nlayer_discriminator_forward.7} parent=43 // pred_check
        %p952 = pneg %p157
      $region54: #{nlayer_discriminator_forward.7} parent=43 // pred_check_branch
        %954 = sbr.rel (%p952) target = $region56
      $region55: #{nlayer_discriminator_forward.7} parent=43 // pred_region
        %p955 = scmp.lt.s32.totalorder %s22, 1
        %s956 = scalar_select %p955, %s22, 1
        %p957 = scmp.lt.s32.totalorder %s23, 0
        %s958 = scalar_select %p957, %s23, 0
        %s959 = sadd.s32 %s958, %s956
        %s960 = scalar_lea.vmem %s4, %s959
      $region56: #{nlayer_discriminator_forward.7} parent=43 // pred_fallthru
        _
    $region44: #{nlayer_discriminator_forward.7} parent=5 // pred_fallthru
      _
  $region6: #{nlayer_discriminator_forward.7} parent=0 // loop_footer
    %s15 = sadd.s32 1, %s11
  $region7: #{nlayer_discriminator_forward.7} parent=0 // loop_footer_branch
    %10 = sbr.rel target = $region3
  $region8: #{nlayer_discriminator_forward.7} parent=0 // loop_exit
    _

// kernel: nlayer_discriminator_forward.8
$region0: #{nlayer_discriminator_forward.8}
  #allocation0 [shape = 'u32[]', space=smem, size = 0x4, offset = 0x4, fixed_abs, tag = 'smem constant byte address 0x4 - core index']
  #allocation1 [shape = 'u32[144,128]{1,0:T(1,128)}', space=vmem, size = 0x12000, scoped, tag = 'internal scratch']
  %s0 = inlined_call_operand.vmem [shape: bf16[2,6,6,32], index: 0, kind: input, shape index: {}]
  %s1 = inlined_call_operand.vmem [shape: bf16[16,32,128], index: 1, kind: input, shape index: {}]
  %s2 = inlined_call_operand.vmem [shape: bf16[2,3,3,64], index: 2, kind: output, shape index: {0}]
  %s3 = inlined_call_operand.vmem [shape: f32[2,1,1,64], index: 3, kind: output, shape index: {1}]
  %s4 = inlined_call_operand.vmem [shape: f32[2,1,1,64], index: 4, kind: output, shape index: {2}]
  %5 = xla_tuple %s2, %s3, %s4
  %s6 = sld [smem:[#allocation0]]
  $region57: #{nlayer_discriminator_forward.8} parent=0
    _
  %s8 = ssub.s32 1, %s6
  %s9 = scalar_select 0, %s8, %s6
  loop: start=0, step=1, limit=4
  $region2: #{nlayer_discriminator_forward.8} parent=0 // loop_pre_header
    _
  $region3: #{nlayer_discriminator_forward.8} parent=0 // loop_header
    %s11 = sphi 0, %s15
    %p12 = scmp.ge.s32.totalorder %s11, 4
    %s18 = sphi 0, %s30
    %s19 = sphi 0, %s26
    %s20 = sphi 0, %s18
    %s21 = sphi 0, %s19
    %s22 = sphi 0, %s20
    %s23 = sphi 0, %s21
    %s33 = sphi 0, %s35
    %s36 = sphi 0, %s33
    %s37 = sphi 0, %s36
    %s53 = sphi 0, %s37
    %s57 = sphi 0, %s57
    %s59 = sphi 0, %s57
    %s60 = sphi 0, %s59
    %s74 = sphi 0, %s60
    %s82 = sphi 0, %s84
    %s85 = sphi 0, %s82
    %s86 = sphi 0, %s85
    %s102 = sphi 0, %s86
    %s110 = sphi 0, %s112
    %s113 = sphi 0, %s110
    %s114 = sphi 0, %s113
    %s130 = sphi 0, %s114
    %s138 = sphi 0, %s140
    %s141 = sphi 0, %s138
    %s142 = sphi 0, %s141
    %s158 = sphi 0, %s142
  $region4: #{nlayer_discriminator_forward.8} parent=0 // loop_header_branch
    %14 = sbr.rel (%p12) target = $region8
  $region5: #{nlayer_discriminator_forward.8} parent=0 // loop_body
    %s16 = ssub.s32 %s11, 1
    %s17 = ssub.s32 %s11, 2
    %s24 = sadd.s32 1, %s19
    %p25 = scmp.ge.s32.totalorder %s24, 1
    %s26 = scalar_select %p25, 0, %s24
    %s27 = sadd.s32 1, %s18
    %s28 = scalar_select %p25, %s27, %s18
    %p29 = scmp.ge.s32.totalorder %s28, 2
    %s30 = scalar_select %p29, 0, %s28
    %s31 = ssub.s32 %s18, %s30
    %p32 = scmp.eq.s32.totalorder %s31, 0
    %s34 = sadd.s32 %s33, 1
    %s35 = scalar_select %p32, %s33, %s34
    %p38 = pneg %p32
    %p39 = scmp.eq.s32.totalorder %s11, 1
    %p40 = por %p38, %p39
    %p41 = scmp.ne.s32.totalorder %s33, %s36
    %p42 = scmp.eq.s32.totalorder %s11, 0
    %p43 = por %p41, %p42
    %p44 = scmp.ne.s32.totalorder %s33, %s36
    %p45 = scmp.eq.s32.totalorder %s16, 1
    %p46 = por %p44, %p45
    %p47 = scmp.ne.s32.totalorder %s36, %s37
    %p48 = scmp.eq.s32.totalorder %s16, 0
    %p49 = por %p47, %p48
    %p50 = scmp.ne.s32.totalorder %s36, %s37
    %p51 = scmp.eq.s32.totalorder %s17, 1
    %p52 = por %p50, %p51
    %p54 = scmp.ne.s32.totalorder %s37, %s53
    %p55 = scmp.eq.s32.totalorder %s17, 0
    %p56 = por %p54, %p55
    %s58 = sadd.s32 %s57, 1
    %p61 = scmp.eq.s32.totalorder %s11, 1
    %p62 = scmp.ne.s32.totalorder %s57, %s59
    %p63 = scmp.eq.s32.totalorder %s11, 0
    %p64 = por %p62, %p63
    %p65 = scmp.ne.s32.totalorder %s57, %s59
    %p66 = scmp.eq.s32.totalorder %s16, 1
    %p67 = por %p65, %p66
    %p68 = scmp.ne.s32.totalorder %s59, %s60
    %p69 = scmp.eq.s32.totalorder %s16, 0
    %p70 = por %p68, %p69
    %p71 = scmp.ne.s32.totalorder %s59, %s60
    %p72 = scmp.eq.s32.totalorder %s17, 1
    %p73 = por %p71, %p72
    %p75 = scmp.ne.s32.totalorder %s60, %s74
    %p76 = scmp.eq.s32.totalorder %s17, 0
    %p77 = por %p75, %p76
    %s78 = ssub.s32 %s18, %s30
    %s79 = ssub.s32 %s19, %s26
    %s80 = sor.u32 %s78, %s79
    %p81 = scmp.eq.s32.totalorder %s80, 0
    %s83 = sadd.s32 %s82, 1
    %s84 = scalar_select %p81, %s82, %s83
    %p87 = pneg %p81
    %p88 = scmp.eq.s32.totalorder %s11, 1
    %p89 = por %p87, %p88
    %p90 = scmp.ne.s32.totalorder %s82, %s85
    %p91 = scmp.eq.s32.totalorder %s11, 0
    %p92 = por %p90, %p91
    %p93 = scmp.ne.s32.totalorder %s82, %s85
    %p94 = scmp.eq.s32.totalorder %s16, 1
    %p95 = por %p93, %p94
    %p96 = scmp.ne.s32.totalorder %s85, %s86
    %p97 = scmp.eq.s32.totalorder %s16, 0
    %p98 = por %p96, %p97
    %p99 = scmp.ne.s32.totalorder %s85, %s86
    %p100 = scmp.eq.s32.totalorder %s17, 1
    %p101 = por %p99, %p100
    %p103 = scmp.ne.s32.totalorder %s86, %s102
    %p104 = scmp.eq.s32.totalorder %s17, 0
    %p105 = por %p103, %p104
    %s106 = ssub.s32 %s18, %s30
    %s107 = ssub.s32 %s19, %s26
    %s108 = sor.u32 %s106, %s107
    %p109 = scmp.eq.s32.totalorder %s108, 0
    %s111 = sadd.s32 %s110, 1
    %s112 = scalar_select %p109, %s110, %s111
    %p115 = pneg %p109
    %p116 = scmp.eq.s32.totalorder %s11, 1
    %p117 = por %p115, %p116
    %p118 = scmp.ne.s32.totalorder %s110, %s113
    %p119 = scmp.eq.s32.totalorder %s11, 0
    %p120 = por %p118, %p119
    %p121 = scmp.ne.s32.totalorder %s110, %s113
    %p122 = scmp.eq.s32.totalorder %s16, 1
    %p123 = por %p121, %p122
    %p124 = scmp.ne.s32.totalorder %s113, %s114
    %p125 = scmp.eq.s32.totalorder %s16, 0
    %p126 = por %p124, %p125
    %p127 = scmp.ne.s32.totalorder %s113, %s114
    %p128 = scmp.eq.s32.totalorder %s17, 1
    %p129 = por %p127, %p128
    %p131 = scmp.ne.s32.totalorder %s114, %s130
    %p132 = scmp.eq.s32.totalorder %s17, 0
    %p133 = por %p131, %p132
    %s134 = ssub.s32 %s18, %s30
    %s135 = ssub.s32 %s19, %s26
    %s136 = sor.u32 %s134, %s135
    %p137 = scmp.eq.s32.totalorder %s136, 0
    %s139 = sadd.s32 %s138, 1
    %s140 = scalar_select %p137, %s138, %s139
    %p143 = pneg %p137
    %p144 = scmp.eq.s32.totalorder %s11, 1
    %p145 = por %p143, %p144
    %p146 = scmp.ne.s32.totalorder %s138, %s141
    %p147 = scmp.eq.s32.totalorder %s11, 0
    %p148 = por %p146, %p147
    %p149 = scmp.ne.s32.totalorder %s138, %s141
    %p150 = scmp.eq.s32.totalorder %s16, 1
    %p151 = por %p149, %p150
    %p152 = scmp.ne.s32.totalorder %s141, %s142
    %p153 = scmp.eq.s32.totalorder %s16, 0
    %p154 = por %p152, %p153
    %p155 = scmp.ne.s32.totalorder %s141, %s142
    %p156 = scmp.eq.s32.totalorder %s17, 1
    %p157 = por %p155, %p156
    %p159 = scmp.ne.s32.totalorder %s142, %s158
    %p160 = scmp.eq.s32.totalorder %s17, 0
    %p161 = por %p159, %p160
    %p162 = scmp.le.s32.totalorder 1, %s11
    %p163 = scmp.lt.s32.totalorder %s11, 3
    %p164 = pnand %p162, %p163
    %p165 = pneg %p164
    // Predicated region
    $region9: #{nlayer_discriminator_forward.8} parent=5 // pred_check
      _
    $region10: #{nlayer_discriminator_forward.8} parent=5 // pred_check_branch
      %167 = sbr.rel (%p164) target = $region12
    $region11: #{nlayer_discriminator_forward.8} parent=5 // pred_region
      %s168 = ssub.s32 %s11, 1
      // Predicated region
      $region13: #{nlayer_discriminator_forward.8} parent=11 // pred_check
        %p169 = pneg %p70
      $region14: #{nlayer_discriminator_forward.8} parent=11 // pred_check_branch
        %171 = sbr.rel (%p169) target = $region16
      $region15: #{nlayer_discriminator_forward.8} parent=11 // pred_region
        _
      $region16: #{nlayer_discriminator_forward.8} parent=11 // pred_fallthru
        _
    $region12: #{nlayer_discriminator_forward.8} parent=5 // pred_fallthru
      _
    %p172 = scmp.lt.s32.totalorder %s11, 2
    // Predicated region
    $region17: #{nlayer_discriminator_forward.8} parent=5 // pred_check
      %p173 = pneg %p172
    $region18: #{nlayer_discriminator_forward.8} parent=5 // pred_check_branch
      %175 = sbr.rel (%p173) target = $region20
    $region19: #{nlayer_discriminator_forward.8} parent=5 // pred_region
      // Predicated region
      $region21: #{nlayer_discriminator_forward.8} parent=19 // pred_check
        %p176 = pneg %p43
      $region22: #{nlayer_discriminator_forward.8} parent=19 // pred_check_branch
        %178 = sbr.rel (%p176) target = $region24
      $region23: #{nlayer_discriminator_forward.8} parent=19 // pred_region
        %p179 = scmp.lt.s32.totalorder %s18, 1
        %s180 = scalar_select %p179, %s18, 1
        %s181 = smul.addr %s180, 6
        %s182 = smul.addr %s181, 4
        %s183 = scalar_lea.vmem %s0, %s182
      $region24: #{nlayer_discriminator_forward.8} parent=19 // pred_fallthru
        _
    $region20: #{nlayer_discriminator_forward.8} parent=5 // pred_fallthru
      _
    %p184 = scmp.le.s32.totalorder 1, %s11
    %p185 = scmp.lt.s32.totalorder %s11, 3
    %p186 = pnand %p184, %p185
    %p187 = pneg %p186
    // Predicated region
    $region25: #{nlayer_discriminator_forward.8} parent=5 // pred_check
      _
    $region26: #{nlayer_discriminator_forward.8} parent=5 // pred_check_branch
      %189 = sbr.rel (%p186) target = $region28
    $region27: #{nlayer_discriminator_forward.8} parent=5 // pred_region
      %s190 = ssub.s32 %s11, 1
      %p191 = scmp.lt.s32.totalorder %s20, 1
      %s192 = scalar_select %p191, %s20, 1
      %s193 = smul.addr %s192, 6
      %s194 = smul.addr %s193, 4
      %s195 = scalar_lea.vmem %s0, %s194
      %p196 = pneg %p49
      %p197 = pneg %p46
      %p198 = pneg %p70
      %p199 = pneg %p67
      %p200 = pneg %p98
      %p201 = pneg %p95
      %s202 = smul.u32 3, %s21
      %p203 = scmp.lt.s32.totalorder %s20, 1
      %s204 = scalar_select %p203, %s20, 1
      %p205 = scmp.lt.s32.totalorder %s202, 2
      %s206 = scalar_select %p205, %s202, 2
      %s207 = smul.addr %s204, 3
      %s208 = sadd.s32 %s206, %s207
      %s209 = smul.addr %s208, 2
      %s210 = scalar_lea.vmem %s2, %s209
      %p211 = pneg %p126
      %p212 = pneg %p123
      %p213 = scmp.lt.s32.totalorder %s20, 1
      %s214 = scalar_select %p213, %s20, 1
      %p215 = scmp.lt.s32.totalorder %s21, 0
      %s216 = scalar_select %p215, %s21, 0
      %s217 = sadd.s32 %s216, %s214
      %s218 = scalar_lea.vmem %s3, %s217
      %p219 = pneg %p154
      %p220 = pneg %p151
      %p221 = scmp.lt.s32.totalorder %s20, 1
      %s222 = scalar_select %p221, %s20, 1
      %p223 = scmp.lt.s32.totalorder %s21, 0
      %s224 = scalar_select %p223, %s21, 0
      %s225 = sadd.s32 %s224, %s222
      %s226 = scalar_lea.vmem %s4, %s225
      %p227 = scmp.lt.s32.totalorder %s20, 1
      %s228 = scalar_select %p227, %s20, 1
      %s229 = smul.addr %s228, 6
      %s230 = smul.addr %s229, 4
      %s231 = scalar_lea.vmem %s0, %s230
      %s232 = smul.u32 3, %s21
      %p233 = scmp.lt.s32.totalorder %s20, 1
      %s234 = scalar_select %p233, %s20, 1
      %p235 = scmp.lt.s32.totalorder %s232, 2
      %s236 = scalar_select %p235, %s232, 2
      %s237 = smul.addr %s234, 3
      %s238 = sadd.s32 %s236, %s237
      %s239 = smul.addr %s238, 2
      %s240 = scalar_lea.vmem %s2, %s239
      %s241 = smul.u32 3, %s21
      %p242 = scmp.lt.s32.totalorder %s20, 1
      %s243 = scalar_select %p242, %s20, 1
      %p244 = scmp.lt.s32.totalorder %s21, 0
      %s245 = scalar_select %p244, %s21, 0
      %s246 = sadd.s32 %s245, %s243
      %s247 = scalar_lea.vmem %s3, %s246
      %p248 = scmp.lt.s32.totalorder %s20, 1
      %s249 = scalar_select %p248, %s20, 1
      %p250 = scmp.lt.s32.totalorder %s21, 0
      %s251 = scalar_select %p250, %s21, 0
      %s252 = sadd.s32 %s251, %s249
      %s253 = scalar_lea.vmem %s4, %s252
      %s255 = smul.u32 %s21, 3
      %s256 = smul.addr %s255, 4
      %s257 = scalar_lea.vmem %s231, %s256
      %v258 = vld [vmem:[%s257] sm:$0x3]
      %v259 = vld [vmem:[%s257 + $0x4] sm:$0x3]
      %v260 = vld [vmem:[%s257 + $0x8] sm:$0x3]
      %v265 = vunpack.c.l.s4 1966171168
      %v266 = vunpack.c.0.s8 %v265
      %v267 = vlaneseq
      %v268 = vshrl.u32 %v267, 7
      %v269 = vsub.s32 %v266, %v268
      %v270 = vrot.slane %v258, %v269
      %v271 = vcombine.high %v270, %v270
      %v273 = vunpack.c.l.s4 1966171168
      %v274 = vunpack.c.0.s8 %v273
      %v275 = vlaneseq
      %v276 = vshrl.u32 %v275, 7
      %v277 = vsub.s32 %v274, %v276
      %v278 = vrot.slane %v270, %v277
      %v280 = vunpack.c.l.s4 1966171168
      %v281 = vunpack.c.0.s8 %v280
      %v282 = vlaneseq
      %v283 = vshrl.u32 %v282, 7
      %v284 = vsub.s32 %v281, %v283
      %v285 = vrot.slane %v271, %v284
      %v287 = vunpack.c.l.s4 1966171168
      %v288 = vunpack.c.0.s8 %v287
      %v289 = vlaneseq
      %v290 = vshrl.u32 %v289, 7
      %v291 = vsub.s32 %v288, %v290
      %v292 = vrot.slane %v259, %v291
      %v293 = vcombine.high %v292, %v292
      %v295 = vunpack.c.l.s4 1966171168
      %v296 = vunpack.c.0.s8 %v295
      %v297 = vlaneseq
      %v298 = vshrl.u32 %v297, 7
      %v299 = vsub.s32 %v296, %v298
      %v300 = vrot.slane %v292, %v299
      %v302 = vunpack.c.l.s4 1966171168
      %v303 = vunpack.c.0.s8 %v302
      %v304 = vlaneseq
      %v305 = vshrl.u32 %v304, 7
      %v306 = vsub.s32 %v303, %v305
      %v307 = vrot.slane %v293, %v306
      %v309 = vunpack.c.l.s4 1966171168
      %v310 = vunpack.c.0.s8 %v309
      %v311 = vlaneseq
      %v312 = vshrl.u32 %v311, 7
      %v313 = vsub.s32 %v310, %v312
      %v314 = vrot.slane %v260, %v313
      %v315 = vcombine.high %v314, %v314
      %v317 = vunpack.c.l.s4 1966171168
      %v318 = vunpack.c.0.s8 %v317
      %v319 = vlaneseq
      %v320 = vshrl.u32 %v319, 7
      %v321 = vsub.s32 %v318, %v320
      %v322 = vrot.slane %v314, %v321
      %v324 = vunpack.c.l.s4 1966171168
      %v325 = vunpack.c.0.s8 %v324
      %v326 = vlaneseq
      %v327 = vshrl.u32 %v326, 7
      %v328 = vsub.s32 %v325, %v327
      %v329 = vrot.slane %v315, %v328
      %v330 = vunpack.i.l.s16 %v278
      %v331 = vunpack.i.h.s16 %v278
      %v332 = vunpack.i.l.s16 %v285
      %v333 = vunpack.i.l.s16 %v300
      %v334 = vunpack.i.h.s16 %v300
      %v335 = vunpack.i.l.s16 %v307
      %v336 = vunpack.i.l.s16 %v322
      %v337 = vunpack.i.h.s16 %v322
      %v338 = vunpack.i.l.s16 %v329
      %v339 = vld [vmem:[%s1] sm:$0xf]
      %v340 = vld [vmem:[%s1 + $0x4] sm:$0xf]
      %v341 = vld [vmem:[%s1 + $0x8] sm:$0xf]
      %v342 = vld [vmem:[%s1 + $0xc] sm:$0xf]
      %v343 = vunpack.i.h.s16 %v285
      %v344 = vunpack.i.h.s16 %v307
      %v345 = vunpack.i.h.s16 %v329
      %s346 = scalar_lea.vmem %s1, 16
      %v347 = vld [vmem:[%s346] sm:$0xf]
      %v348 = vld [vmem:[%s346 + $0x4] sm:$0xf]
      %v349 = vld [vmem:[%s346 + $0x8] sm:$0xf]
      %v350 = vld [vmem:[%s346 + $0xc] sm:$0xf]
      %v351 = vpack.i.b16 %v332, %v331
      %v352 = vpack.i.b16 %v334, %v343
      %v353 = vpack.i.b16 %v344, %v335
      %v354 = vpack.i.b16 %v338, %v337
      %v356 = vcombine.low %v351, %v352
      %v357 = vcombine.low %v353, %v354
      %v359 = vunpack.c.l.s4 1966171168
      %v360 = vunpack.c.0.s8 %v359
      %v361 = vlaneseq
      %v362 = vshrl.u32 %v361, 7
      %v363 = vsub.s32 %v360, %v362
      %v364 = vrot.slane %v356, %v363
      %v366 = vunpack.c.l.s4 1966171168
      %v367 = vunpack.c.0.s8 %v366
      %v368 = vlaneseq
      %v369 = vshrl.u32 %v368, 7
      %v370 = vsub.s32 %v367, %v369
      %v371 = vrot.slane %v357, %v370
      %v373 = vunpack.c.l.s4 1966171168
      %v374 = vunpack.c.0.s8 %v373
      %v375 = vlaneseq
      %v376 = vshrl.u32 %v375, 7
      %v377 = vsub.s32 %v374, %v376
      %v378 = vrot.slane %v345, %v377
      %v379 = vcombine.low %v364, %v371
      %v381 = vunpack.c.l.s4 1966171168
      %v382 = vunpack.c.0.s8 %v381
      %v383 = vlaneseq
      %v384 = vshrl.u32 %v383, 7
      %v385 = vsub.s32 %v382, %v384
      %v386 = vrot.slane %v379, %v385
      %v388 = vunpack.c.l.s4 1966171168
      %v389 = vunpack.c.0.s8 %v388
      %v390 = vlaneseq
      %v391 = vshrl.u32 %v390, 7
      %v392 = vsub.s32 %v389, %v391
      %v393 = vrot.slane %v378, %v392
      %v394 = vcombine.low %v386, %v393
      %v399 = vunpack.c.l.b16 %v347
      %v400 = vunpack.c.l.b16 %v348
      %v401 = vunpack.c.l.b16 %v349
      %v402 = vunpack.c.l.b16 %v350
      %v403 = vpack.c.b16 %v400, %v399
      %v404 = vpack.c.b16 %v402, %v401
      %vm407 = vcmask 261120
      %v409 = vsel %vm407, %v394, 0
      %411 = vmatprep.subr.bf16.mxu0 0
      %412 = vmatpush1.bf16.msra.mxu0 0
      %413 = vmatprep.subr.bf16.mxu0 0
      %414 = vmatpush1.bf16.msra.mxu0 0
      %415 = vmatprep.subr.bf16.mxu0 0
      %416 = vmatpush1.bf16.msra.mxu0 0
      %417 = vmatprep.subr.bf16.mxu0 0
      %418 = vmatpush1.bf16.msra.mxu0 0
      %419 = vmatprep.subr.bf16.mxu0 0
      %420 = vmatpush1.bf16.msra.mxu0 0
      %421 = vmatprep.subr.bf16.mxu0 0
      %422 = vmatpush1.bf16.msra.mxu0 0
      %423 = vmatprep.subr.bf16.mxu0 0
      %424 = vmatpush1.bf16.msra.mxu0 %v404
      %425 = vmatprep.subr.bf16.mxu0 0
      %426 = vmatpush1.bf16.msra.mxu0 %v403
      %427 = vmatprep.subr.bf16.mxu0 0
      %428 = vmatpush2.bf16.msra.mxu0 0
      %429 = vmatprep.subr.bf16.mxu0 0
      %430 = vmatpush2.bf16.msra.mxu0 0
      %431 = vmatprep.subr.bf16.mxu0 0
      %432 = vmatpush2.bf16.msra.mxu0 0
      %433 = vmatprep.subr.bf16.mxu0 0
      %434 = vmatpush2.bf16.msra.mxu0 0
      %435 = vmatprep.subr.bf16.mxu0 0
      %436 = vmatpush2.bf16.msra.mxu0 0
      %437 = vmatprep.subr.bf16.mxu0 0
      %438 = vmatpush2.bf16.msra.mxu0 0
      %439 = vmatprep.subr.bf16.mxu0 0
      %440 = vmatpush2.bf16.msra.mxu0 0
      %441 = vmatprep.subr.bf16.mxu0 0
      %442 = vmatpush2.bf16.msra.mxu0 0
      %443 = vmatprep.mubr.bf16.mxu0 0
      %444 = vmatmul.mubr.bf16.gmra.mxu0 %v409
      %v445 = vpop.f32.mrf.mxu0
      %v446 = vadd.f32 0.0, %v445
      %v447 = vpop.f32.mrf.mxu0
      %v448 = vpop.f32.mrf.mxu0
      %v449 = vadd.f32 0.0, %v448
      %v450 = vpop.f32.mrf.mxu0
      %451 = vdwg.mxu0
      %v452 = vpack.i.b16 %v331, %v330
      %v453 = vpack.i.b16 %v333, %v332
      %v454 = vpack.i.b16 %v335, %v334
      %v455 = vpack.i.b16 %v337, %v336
      %v457 = vcombine.low %v452, %v453
      %v458 = vcombine.low %v454, %v455
      %v460 = vunpack.c.l.s4 1966171168
      %v461 = vunpack.c.0.s8 %v460
      %v462 = vlaneseq
      %v463 = vshrl.u32 %v462, 7
      %v464 = vsub.s32 %v461, %v463
      %v465 = vrot.slane %v457, %v464
      %v467 = vunpack.c.l.s4 1966171168
      %v468 = vunpack.c.0.s8 %v467
      %v469 = vlaneseq
      %v470 = vshrl.u32 %v469, 7
      %v471 = vsub.s32 %v468, %v470
      %v472 = vrot.slane %v458, %v471
      %v474 = vunpack.c.l.s4 1966171168
      %v475 = vunpack.c.0.s8 %v474
      %v476 = vlaneseq
      %v477 = vshrl.u32 %v476, 7
      %v478 = vsub.s32 %v475, %v477
      %v479 = vrot.slane %v338, %v478
      %v480 = vcombine.low %v465, %v472
      %v482 = vunpack.c.l.s4 1966171168
      %v483 = vunpack.c.0.s8 %v482
      %v484 = vlaneseq
      %v485 = vshrl.u32 %v484, 7
      %v486 = vsub.s32 %v483, %v485
      %v487 = vrot.slane %v480, %v486
      %v489 = vunpack.c.l.s4 1966171168
      %v490 = vunpack.c.0.s8 %v489
      %v491 = vlaneseq
      %v492 = vshrl.u32 %v491, 7
      %v493 = vsub.s32 %v490, %v492
      %v494 = vrot.slane %v479, %v493
      %v495 = vcombine.low %v487, %v494
      %v500 = vunpack.c.l.b16 %v339
      %v501 = vunpack.c.l.b16 %v340
      %v502 = vunpack.c.l.b16 %v341
      %v503 = vunpack.c.l.b16 %v342
      %v504 = vpack.c.b16 %v501, %v500
      %v505 = vpack.c.b16 %v503, %v502
      %v509 = vsel %vm407, %v495, 0
      %511 = vmatprep.subr.bf16.mxu0 0
      %512 = vmatpush1.bf16.msra.mxu0 0
      %513 = vmatprep.subr.bf16.mxu0 0
      %514 = vmatpush1.bf16.msra.mxu0 0
      %515 = vmatprep.subr.bf16.mxu0 0
      %516 = vmatpush1.bf16.msra.mxu0 0
      %517 = vmatprep.subr.bf16.mxu0 0
      %518 = vmatpush1.bf16.msra.mxu0 0
      %519 = vmatprep.subr.bf16.mxu0 0
      %520 = vmatpush1.bf16.msra.mxu0 0
      %521 = vmatprep.subr.bf16.mxu0 0
      %522 = vmatpush1.bf16.msra.mxu0 0
      %523 = vmatprep.subr.bf16.mxu0 0
      %524 = vmatpush1.bf16.msra.mxu0 %v505
      %525 = vmatprep.subr.bf16.mxu0 0
      %526 = vmatpush1.bf16.msra.mxu0 %v504
      %527 = vmatprep.subr.bf16.mxu0 0
      %528 = vmatpush2.bf16.msra.mxu0 0
      %529 = vmatprep.subr.bf16.mxu0 0
      %530 = vmatpush2.bf16.msra.mxu0 0
      %531 = vmatprep.subr.bf16.mxu0 0
      %532 = vmatpush2.bf16.msra.mxu0 0
      %533 = vmatprep.subr.bf16.mxu0 0
      %534 = vmatpush2.bf16.msra.mxu0 0
      %535 = vmatprep.subr.bf16.mxu0 0
      %536 = vmatpush2.bf16.msra.mxu0 0
      %537 = vmatprep.subr.bf16.mxu0 0
      %538 = vmatpush2.bf16.msra.mxu0 0
      %539 = vmatprep.subr.bf16.mxu0 0
      %540 = vmatpush2.bf16.msra.mxu0 0
      %541 = vmatprep.subr.bf16.mxu0 0
      %542 = vmatpush2.bf16.msra.mxu0 0
      %543 = vmatprep.mubr.bf16.mxu0 0
      %544 = vmatmul.mubr.bf16.gmra.mxu0 %v509
      %v545 = vpop.f32.mrf.mxu0
      %v546 = vadd.f32 %v446, %v545
      %v547 = vpop.f32.mrf.mxu0
      %v548 = vpop.f32.mrf.mxu0
      %v549 = vadd.f32 %v449, %v548
      %v550 = vpop.f32.mrf.mxu0
      %551 = vdwg.mxu0
      %v552 = vld [vmem:[%s257] sm:$0x6]
      %v553 = vld [vmem:[%s257 + $0x4] sm:$0x6]
      %v554 = vld [vmem:[%s257 + $0x8] sm:$0x6]
      %v559 = vunpack.c.l.s4 1966171168
      %v560 = vunpack.c.0.s8 %v559
      %v561 = vlaneseq
      %v562 = vshrl.u32 %v561, 7
      %v563 = vsub.s32 %v560, %v562
      %v564 = vrot.slane %v552, %v563
      %v565 = vcombine.high %v564, %v564
      %v567 = vunpack.c.l.s4 1966171168
      %v568 = vunpack.c.0.s8 %v567
      %v569 = vlaneseq
      %v570 = vshrl.u32 %v569, 7
      %v571 = vsub.s32 %v568, %v570
      %v572 = vrot.slane %v564, %v571
      %v574 = vunpack.c.l.s4 1966171168
      %v575 = vunpack.c.0.s8 %v574
      %v576 = vlaneseq
      %v577 = vshrl.u32 %v576, 7
      %v578 = vsub.s32 %v575, %v577
      %v579 = vrot.slane %v565, %v578
      %v580 = vcombine.high %v572, %v572
      %v582 = vunpack.c.l.s4 1966171168
      %v583 = vunpack.c.0.s8 %v582
      %v584 = vlaneseq
      %v585 = vshrl.u32 %v584, 7
      %v586 = vsub.s32 %v583, %v585
      %v587 = vrot.slane %v553, %v586
      %v588 = vcombine.high %v587, %v587
      %v590 = vunpack.c.l.s4 1966171168
      %v591 = vunpack.c.0.s8 %v590
      %v592 = vlaneseq
      %v593 = vshrl.u32 %v592, 7
      %v594 = vsub.s32 %v591, %v593
      %v595 = vrot.slane %v587, %v594
      %v597 = vunpack.c.l.s4 1966171168
      %v598 = vunpack.c.0.s8 %v597
      %v599 = vlaneseq
      %v600 = vshrl.u32 %v599, 7
      %v601 = vsub.s32 %v598, %v600
      %v602 = vrot.slane %v588, %v601
      %v603 = vcombine.high %v595, %v595
      %v605 = vunpack.c.l.s4 1966171168
      %v606 = vunpack.c.0.s8 %v605
      %v607 = vlaneseq
      %v608 = vshrl.u32 %v607, 7
      %v609 = vsub.s32 %v606, %v608
      %v610 = vrot.slane %v554, %v609
      %v611 = vcombine.high %v610, %v610
      %v613 = vunpack.c.l.s4 1966171168
      %v614 = vunpack.c.0.s8 %v613
      %v615 = vlaneseq
      %v616 = vshrl.u32 %v615, 7
      %v617 = vsub.s32 %v614, %v616
      %v618 = vrot.slane %v610, %v617
      %v620 = vunpack.c.l.s4 1966171168
      %v621 = vunpack.c.0.s8 %v620
      %v622 = vlaneseq
      %v623 = vshrl.u32 %v622, 7
      %v624 = vsub.s32 %v621, %v623
      %v625 = vrot.slane %v611, %v624
      %v626 = vcombine.high %v618, %v618
      %v627 = vunpack.i.l.s16 %v579
      %v628 = vunpack.i.h.s16 %v579
      %v629 = vunpack.i.l.s16 %v580
      %v630 = vunpack.i.l.s16 %v602
      %v631 = vunpack.i.h.s16 %v602
      %v632 = vunpack.i.l.s16 %v603
      %v633 = vunpack.i.l.s16 %v625
      %v634 = vunpack.i.h.s16 %v625
      %v635 = vunpack.i.l.s16 %v626
      %s636 = scalar_lea.vmem %s1, 32
      %v637 = vld [vmem:[%s636] sm:$0xf]
      %v638 = vld [vmem:[%s636 + $0x4] sm:$0xf]
      %v639 = vld [vmem:[%s636 + $0x8] sm:$0xf]
      %v640 = vld [vmem:[%s636 + $0xc] sm:$0xf]
      %v641 = vpack.i.b16 %v628, %v627
      %v642 = vpack.i.b16 %v630, %v629
      %v643 = vpack.i.b16 %v632, %v631
      %v644 = vpack.i.b16 %v634, %v633
      %v646 = vcombine.low %v641, %v642
      %v647 = vcombine.low %v643, %v644
      %v649 = vunpack.c.l.s4 1966171168
      %v650 = vunpack.c.0.s8 %v649
      %v651 = vlaneseq
      %v652 = vshrl.u32 %v651, 7
      %v653 = vsub.s32 %v650, %v652
      %v654 = vrot.slane %v646, %v653
      %v656 = vunpack.c.l.s4 1966171168
      %v657 = vunpack.c.0.s8 %v656
      %v658 = vlaneseq
      %v659 = vshrl.u32 %v658, 7
      %v660 = vsub.s32 %v657, %v659
      %v661 = vrot.slane %v647, %v660
      %v663 = vunpack.c.l.s4 1966171168
      %v664 = vunpack.c.0.s8 %v663
      %v665 = vlaneseq
      %v666 = vshrl.u32 %v665, 7
      %v667 = vsub.s32 %v664, %v666
      %v668 = vrot.slane %v635, %v667
      %v669 = vcombine.low %v654, %v661
      %v671 = vunpack.c.l.s4 1966171168
      %v672 = vunpack.c.0.s8 %v671
      %v673 = vlaneseq
      %v674 = vshrl.u32 %v673, 7
      %v675 = vsub.s32 %v672, %v674
      %v676 = vrot.slane %v669, %v675
      %v678 = vunpack.c.l.s4 1966171168
      %v679 = vunpack.c.0.s8 %v678
      %v680 = vlaneseq
      %v681 = vshrl.u32 %v680, 7
      %v682 = vsub.s32 %v679, %v681
      %v683 = vrot.slane %v668, %v682
      %v684 = vcombine.low %v676, %v683
      %v689 = vunpack.c.l.b16 %v637
      %v690 = vunpack.c.l.b16 %v638
      %v691 = vunpack.c.l.b16 %v639
      %v692 = vunpack.c.l.b16 %v640
      %v693 = vpack.c.b16 %v690, %v689
      %v694 = vpack.c.b16 %v692, %v691
      %v698 = vsel %vm407, %v684, 0
      %700 = vmatprep.subr.bf16.mxu0 0
      %701 = vmatpush1.bf16.msra.mxu0 0
      %702 = vmatprep.subr.bf16.mxu0 0
      %703 = vmatpush1.bf16.msra.mxu0 0
      %704 = vmatprep.subr.bf16.mxu0 0
      %705 = vmatpush1.bf16.msra.mxu0 0
      %706 = vmatprep.subr.bf16.mxu0 0
      %707 = vmatpush1.bf16.msra.mxu0 0
      %708 = vmatprep.subr.bf16.mxu0 0
      %709 = vmatpush1.bf16.msra.mxu0 0
      %710 = vmatprep.subr.bf16.mxu0 0
      %711 = vmatpush1.bf16.msra.mxu0 0
      %712 = vmatprep.subr.bf16.mxu0 0
      %713 = vmatpush1.bf16.msra.mxu0 %v694
      %714 = vmatprep.subr.bf16.mxu0 0
      %715 = vmatpush1.bf16.msra.mxu0 %v693
      %716 = vmatprep.subr.bf16.mxu0 0
      %717 = vmatpush2.bf16.msra.mxu0 0
      %718 = vmatprep.subr.bf16.mxu0 0
      %719 = vmatpush2.bf16.msra.mxu0 0
      %720 = vmatprep.subr.bf16.mxu0 0
      %721 = vmatpush2.bf16.msra.mxu0 0
      %722 = vmatprep.subr.bf16.mxu0 0
      %723 = vmatpush2.bf16.msra.mxu0 0
      %724 = vmatprep.subr.bf16.mxu0 0
      %725 = vmatpush2.bf16.msra.mxu0 0
      %726 = vmatprep.subr.bf16.mxu0 0
      %727 = vmatpush2.bf16.msra.mxu0 0
      %728 = vmatprep.subr.bf16.mxu0 0
      %729 = vmatpush2.bf16.msra.mxu0 0
      %730 = vmatprep.subr.bf16.mxu0 0
      %731 = vmatpush2.bf16.msra.mxu0 0
      %732 = vmatprep.mubr.bf16.mxu0 0
      %733 = vmatmul.mubr.bf16.gmra.mxu0 %v698
      %v734 = vpop.f32.mrf.mxu0
      %v735 = vadd.f32 0.0, %v734
      %v736 = vpop.f32.mrf.mxu0
      %v737 = vpop.f32.mrf.mxu0
      %v738 = vadd.f32 0.0, %v737
      %v739 = vpop.f32.mrf.mxu0
      %740 = vdwg.mxu0
      %v741 = vadd.f32 %v546, %v735
      %v742 = vadd.f32 %v549, %v738
      %v743 = vld [vmem:[%s257] sm:$0x6]
      %v744 = vld [vmem:[%s257 + $0x4] sm:$0x6]
      %v745 = vld [vmem:[%s257 + $0x8] sm:$0x6]
      %v750 = vunpack.c.l.s4 1966171168
      %v751 = vunpack.c.0.s8 %v750
      %v752 = vlaneseq
      %v753 = vshrl.u32 %v752, 7
      %v754 = vsub.s32 %v751, %v753
      %v755 = vrot.slane %v743, %v754
      %v756 = vcombine.high %v755, %v755
      %v758 = vunpack.c.l.s4 1966171168
      %v759 = vunpack.c.0.s8 %v758
      %v760 = vlaneseq
      %v761 = vshrl.u32 %v760, 7
      %v762 = vsub.s32 %v759, %v761
      %v763 = vrot.slane %v755, %v762
      %v765 = vunpack.c.l.s4 1966171168
      %v766 = vunpack.c.0.s8 %v765
      %v767 = vlaneseq
      %v768 = vshrl.u32 %v767, 7
      %v769 = vsub.s32 %v766, %v768
      %v770 = vrot.slane %v756, %v769
      %v771 = vcombine.high %v763, %v763
      %v773 = vunpack.c.l.s4 1966171168
      %v774 = vunpack.c.0.s8 %v773
      %v775 = vlaneseq
      %v776 = vshrl.u32 %v775, 7
      %v777 = vsub.s32 %v774, %v776
      %v778 = vrot.slane %v744, %v777
      %v779 = vcombine.high %v778, %v778
      %v781 = vunpack.c.l.s4 1966171168
      %v782 = vunpack.c.0.s8 %v781
      %v783 = vlaneseq
      %v784 = vshrl.u32 %v783, 7
      %v785 = vsub.s32 %v782, %v784
      %v786 = vrot.slane %v778, %v785
      %v788 = vunpack.c.l.s4 1966171168
      %v789 = vunpack.c.0.s8 %v788
      %v790 = vlaneseq
      %v791 = vshrl.u32 %v790, 7
      %v792 = vsub.s32 %v789, %v791
      %v793 = vrot.slane %v779, %v792
      %v794 = vcombine.high %v786, %v786
      %v796 = vunpack.c.l.s4 1966171168
      %v797 = vunpack.c.0.s8 %v796
      %v798 = vlaneseq
      %v799 = vshrl.u32 %v798, 7
      %v800 = vsub.s32 %v797, %v799
      %v801 = vrot.slane %v745, %v800
      %v802 = vcombine.high %v801, %v801
      %v804 = vunpack.c.l.s4 1966171168
      %v805 = vunpack.c.0.s8 %v804
      %v806 = vlaneseq
      %v807 = vshrl.u32 %v806, 7
      %v808 = vsub.s32 %v805, %v807
      %v809 = vrot.slane %v801, %v808
      %v811 = vunpack.c.l.s4 1966171168
      %v812 = vunpack.c.0.s8 %v811
      %v813 = vlaneseq
      %v814 = vshrl.u32 %v813, 7
      %v815 = vsub.s32 %v812, %v814
      %v816 = vrot.slane %v802, %v815
      %v817 = vcombine.high %v809, %v809
      %v818 = vunpack.i.h.s16 %v770
      %v819 = vunpack.i.l.s16 %v771
      %v820 = vunpack.i.h.s16 %v771
      %v821 = vunpack.i.h.s16 %v793
      %v822 = vunpack.i.l.s16 %v794
      %v823 = vunpack.i.h.s16 %v794
      %v824 = vunpack.i.h.s16 %v816
      %v825 = vunpack.i.l.s16 %v817
      %v826 = vunpack.i.h.s16 %v817
      %s827 = scalar_lea.vmem %s1, 48
      %v828 = vld [vmem:[%s827] sm:$0xf]
      %v829 = vld [vmem:[%s827 + $0x4] sm:$0xf]
      %v830 = vld [vmem:[%s827 + $0x8] sm:$0xf]
      %v831 = vld [vmem:[%s827 + $0xc] sm:$0xf]
      %v832 = vpack.i.b16 %v819, %v818
      %v833 = vpack.i.b16 %v821, %v820
      %v834 = vpack.i.b16 %v823, %v822
      %v835 = vpack.i.b16 %v825, %v824
      %v837 = vcombine.low %v832, %v833
      %v838 = vcombine.low %v834, %v835
      %v840 = vunpack.c.l.s4 1966171168
      %v841 = vunpack.c.0.s8 %v840
      %v842 = vlaneseq
      %v843 = vshrl.u32 %v842, 7
      %v844 = vsub.s32 %v841, %v843
      %v845 = vrot.slane %v837, %v844
      %v847 = vunpack.c.l.s4 1966171168
      %v848 = vunpack.c.0.s8 %v847
      %v849 = vlaneseq
      %v850 = vshrl.u32 %v849, 7
      %v851 = vsub.s32 %v848, %v850
      %v852 = vrot.slane %v838, %v851
      %v854 = vunpack.c.l.s4 1966171168
      %v855 = vunpack.c.0.s8 %v854
      %v856 = vlaneseq
      %v857 = vshrl.u32 %v856, 7
      %v858 = vsub.s32 %v855, %v857
      %v859 = vrot.slane %v826, %v858
      %v860 = vcombine.low %v845, %v852
      %v862 = vunpack.c.l.s4 1966171168
      %v863 = vunpack.c.0.s8 %v862
      %v864 = vlaneseq
      %v865 = vshrl.u32 %v864, 7
      %v866 = vsub.s32 %v863, %v865
      %v867 = vrot.slane %v860, %v866
      %v869 = vunpack.c.l.s4 1966171168
      %v870 = vunpack.c.0.s8 %v869
      %v871 = vlaneseq
      %v872 = vshrl.u32 %v871, 7
      %v873 = vsub.s32 %v870, %v872
      %v874 = vrot.slane %v859, %v873
      %v875 = vcombine.low %v867, %v874
      %v880 = vunpack.c.l.b16 %v828
      %v881 = vunpack.c.l.b16 %v829
      %v882 = vunpack.c.l.b16 %v830
      %v883 = vunpack.c.l.b16 %v831
      %v884 = vpack.c.b16 %v881, %v880
      %v885 = vpack.c.b16 %v883, %v882
      %v889 = vsel %vm407, %v875, 0
      %891 = vmatprep.subr.bf16.mxu0 0
      %892 = vmatpush1.bf16.msra.mxu0 0
      %893 = vmatprep.subr.bf16.mxu0 0
      %894 = vmatpush1.bf16.msra.mxu0 0
      %895 = vmatprep.subr.bf16.mxu0 0
      %896 = vmatpush1.bf16.msra.mxu0 0
      %897 = vmatprep.subr.bf16.mxu0 0
      %898 = vmatpush1.bf16.msra.mxu0 0
      %899 = vmatprep.subr.bf16.mxu0 0
      %900 = vmatpush1.bf16.msra.mxu0 0
      %901 = vmatprep.subr.bf16.mxu0 0
      %902 = vmatpush1.bf16.msra.mxu0 0
      %903 = vmatprep.subr.bf16.mxu0 0
      %904 = vmatpush1.bf16.msra.mxu0 %v885
      %905 = vmatprep.subr.bf16.mxu0 0
      %906 = vmatpush1.bf16.msra.mxu0 %v884
      %907 = vmatprep.subr.bf16.mxu0 0
      %908 = vmatpush2.bf16.msra.mxu0 0
      %909 = vmatprep.subr.bf16.mxu0 0
      %910 = vmatpush2.bf16.msra.mxu0 0
      %911 = vmatprep.subr.bf16.mxu0 0
      %912 = vmatpush2.bf16.msra.mxu0 0
      %913 = vmatprep.subr.bf16.mxu0 0
      %914 = vmatpush2.bf16.msra.mxu0 0
      %915 = vmatprep.subr.bf16.mxu0 0
      %916 = vmatpush2.bf16.msra.mxu0 0
      %917 = vmatprep.subr.bf16.mxu0 0
      %918 = vmatpush2.bf16.msra.mxu0 0
      %919 = vmatprep.subr.bf16.mxu0 0
      %920 = vmatpush2.bf16.msra.mxu0 0
      %921 = vmatprep.subr.bf16.mxu0 0
      %922 = vmatpush2.bf16.msra.mxu0 0
      %923 = vmatprep.mubr.bf16.mxu0 0
      %924 = vmatmul.mubr.bf16.gmra.mxu0 %v889
      %v925 = vpop.f32.mrf.mxu0
      %v926 = vadd.f32 0.0, %v925
      %v927 = vpop.f32.mrf.mxu0
      %v928 = vpop.f32.mrf.mxu0
      %v929 = vadd.f32 0.0, %v928
      %v930 = vpop.f32.mrf.mxu0
      %931 = vdwg.mxu0
      %v932 = vadd.f32 %v741, %v926
      %v933 = vadd.f32 %v742, %v929
      %s934 = sadd.s32 %s255, 1
      %s935 = smul.addr %s934, 4
      %s936 = scalar_lea.vmem %s231, %s935
      %v937 = vld [vmem:[%s936] sm:$0x3]
      %v938 = vld [vmem:[%s936 + $0x4] sm:$0x3]
      %v939 = vld [vmem:[%s936 + $0x8] sm:$0x3]
      %v944 = vunpack.c.l.s4 1966171168
      %v945 = vunpack.c.0.s8 %v944
      %v946 = vlaneseq
      %v947 = vshrl.u32 %v946, 7
      %v948 = vsub.s32 %v945, %v947
      %v949 = vrot.slane %v937, %v948
      %v950 = vcombine.high %v949, %v949
      %v952 = vunpack.c.l.s4 1966171168
      %v953 = vunpack.c.0.s8 %v952
      %v954 = vlaneseq
      %v955 = vshrl.u32 %v954, 7
      %v956 = vsub.s32 %v953, %v955
      %v957 = vrot.slane %v949, %v956
      %v959 = vunpack.c.l.s4 1966171168
      %v960 = vunpack.c.0.s8 %v959
      %v961 = vlaneseq
      %v962 = vshrl.u32 %v961, 7
      %v963 = vsub.s32 %v960, %v962
      %v964 = vrot.slane %v950, %v963
      %v966 = vunpack.c.l.s4 1966171168
      %v967 = vunpack.c.0.s8 %v966
      %v968 = vlaneseq
      %v969 = vshrl.u32 %v968, 7
      %v970 = vsub.s32 %v967, %v969
      %v971 = vrot.slane %v938, %v970
      %v972 = vcombine.high %v971, %v971
      %v974 = vunpack.c.l.s4 1966171168
      %v975 = vunpack.c.0.s8 %v974
      %v976 = vlaneseq
      %v977 = vshrl.u32 %v976, 7
      %v978 = vsub.s32 %v975, %v977
      %v979 = vrot.slane %v971, %v978
      %v981 = vunpack.c.l.s4 1966171168
      %v982 = vunpack.c.0.s8 %v981
      %v983 = vlaneseq
      %v984 = vshrl.u32 %v983, 7
      %v985 = vsub.s32 %v982, %v984
      %v986 = vrot.slane %v972, %v985
      %v988 = vunpack.c.l.s4 1966171168
      %v989 = vunpack.c.0.s8 %v988
      %v990 = vlaneseq
      %v991 = vshrl.u32 %v990, 7
      %v992 = vsub.s32 %v989, %v991
      %v993 = vrot.slane %v939, %v992
      %v994 = vcombine.high %v993, %v993
      %v996 = vunpack.c.l.s4 1966171168
      %v997 = vunpack.c.0.s8 %v996
      %v998 = vlaneseq
      %v999 = vshrl.u32 %v998, 7
      %v1000 = vsub.s32 %v997, %v999
      %v1001 = vrot.slane %v993, %v1000
      %v1003 = vunpack.c.l.s4 1966171168
      %v1004 = vunpack.c.0.s8 %v1003
      %v1005 = vlaneseq
      %v1006 = vshrl.u32 %v1005, 7
      %v1007 = vsub.s32 %v1004, %v1006
      %v1008 = vrot.slane %v994, %v1007
      %v1009 = vunpack.i.l.s16 %v957
      %v1010 = vunpack.i.h.s16 %v957
      %v1011 = vunpack.i.l.s16 %v964
      %v1012 = vunpack.i.l.s16 %v979
      %v1013 = vunpack.i.h.s16 %v979
      %v1014 = vunpack.i.l.s16 %v986
      %v1015 = vunpack.i.l.s16 %v1001
      %v1016 = vunpack.i.h.s16 %v1001
      %v1017 = vunpack.i.l.s16 %v1008
      %s1018 = scalar_lea.vmem %s1, 64
      %v1019 = vld [vmem:[%s1018] sm:$0xf]
      %v1020 = vld [vmem:[%s1018 + $0x4] sm:$0xf]
      %v1021 = vld [vmem:[%s1018 + $0x8] sm:$0xf]
      %v1022 = vld [vmem:[%s1018 + $0xc] sm:$0xf]
      %v1023 = vpack.i.b16 %v1010, %v1009
      %v1024 = vpack.i.b16 %v1012, %v1011
      %v1025 = vpack.i.b16 %v1014, %v1013
      %v1026 = vpack.i.b16 %v1016, %v1015
      %v1028 = vcombine.low %v1023, %v1024
      %v1029 = vcombine.low %v1025, %v1026
      %v1031 = vunpack.c.l.s4 1966171168
      %v1032 = vunpack.c.0.s8 %v1031
      %v1033 = vlaneseq
      %v1034 = vshrl.u32 %v1033, 7
      %v1035 = vsub.s32 %v1032, %v1034
      %v1036 = vrot.slane %v1028, %v1035
      %v1038 = vunpack.c.l.s4 1966171168
      %v1039 = vunpack.c.0.s8 %v1038
      %v1040 = vlaneseq
      %v1041 = vshrl.u32 %v1040, 7
      %v1042 = vsub.s32 %v1039, %v1041
      %v1043 = vrot.slane %v1029, %v1042
      %v1045 = vunpack.c.l.s4 1966171168
      %v1046 = vunpack.c.0.s8 %v1045
      %v1047 = vlaneseq
      %v1048 = vshrl.u32 %v1047, 7
      %v1049 = vsub.s32 %v1046, %v1048
      %v1050 = vrot.slane %v1017, %v1049
      %v1051 = vcombine.low %v1036, %v1043
      %v1053 = vunpack.c.l.s4 1966171168
      %v1054 = vunpack.c.0.s8 %v1053
      %v1055 = vlaneseq
      %v1056 = vshrl.u32 %v1055, 7
      %v1057 = vsub.s32 %v1054, %v1056
      %v1058 = vrot.slane %v1051, %v1057
      %v1060 = vunpack.c.l.s4 1966171168
      %v1061 = vunpack.c.0.s8 %v1060
      %v1062 = vlaneseq
      %v1063 = vshrl.u32 %v1062, 7
      %v1064 = vsub.s32 %v1061, %v1063
      %v1065 = vrot.slane %v1050, %v1064
      %v1066 = vcombine.low %v1058, %v1065
      %v1071 = vunpack.c.l.b16 %v1019
      %v1072 = vunpack.c.l.b16 %v1020
      %v1073 = vunpack.c.l.b16 %v1021
      %v1074 = vunpack.c.l.b16 %v1022
      %v1075 = vpack.c.b16 %v1072, %v1071
      %v1076 = vpack.c.b16 %v1074, %v1073
      %v1080 = vsel %vm407, %v1066, 0
      %1082 = vmatprep.subr.bf16.mxu0 0
      %1083 = vmatpush1.bf16.msra.mxu0 0
      %1084 = vmatprep.subr.bf16.mxu0 0
      %1085 = vmatpush1.bf16.msra.mxu0 0
      %1086 = vmatprep.subr.bf16.mxu0 0
      %1087 = vmatpush1.bf16.msra.mxu0 0
      %1088 = vmatprep.subr.bf16.mxu0 0
      %1089 = vmatpush1.bf16.msra.mxu0 0
      %1090 = vmatprep.subr.bf16.mxu0 0
      %1091 = vmatpush1.bf16.msra.mxu0 0
      %1092 = vmatprep.subr.bf16.mxu0 0
      %1093 = vmatpush1.bf16.msra.mxu0 0
      %1094 = vmatprep.subr.bf16.mxu0 0
      %1095 = vmatpush1.bf16.msra.mxu0 %v1076
      %1096 = vmatprep.subr.bf16.mxu0 0
      %1097 = vmatpush1.bf16.msra.mxu0 %v1075
      %1098 = vmatprep.subr.bf16.mxu0 0
      %1099 = vmatpush2.bf16.msra.mxu0 0
      %1100 = vmatprep.subr.bf16.mxu0 0
      %1101 = vmatpush2.bf16.msra.mxu0 0
      %1102 = vmatprep.subr.bf16.mxu0 0
      %1103 = vmatpush2.bf16.msra.mxu0 0
      %1104 = vmatprep.subr.bf16.mxu0 0
      %1105 = vmatpush2.bf16.msra.mxu0 0
      %1106 = vmatprep.subr.bf16.mxu0 0
      %1107 = vmatpush2.bf16.msra.mxu0 0
      %1108 = vmatprep.subr.bf16.mxu0 0
      %1109 = vmatpush2.bf16.msra.mxu0 0
      %1110 = vmatprep.subr.bf16.mxu0 0
      %1111 = vmatpush2.bf16.msra.mxu0 0
      %1112 = vmatprep.subr.bf16.mxu0 0
      %1113 = vmatpush2.bf16.msra.mxu0 0
      %1114 = vmatprep.mubr.bf16.mxu0 0
      %1115 = vmatmul.mubr.bf16.gmra.mxu0 %v1080
      %v1116 = vpop.f32.mrf.mxu0
      %v1117 = vadd.f32 0.0, %v1116
      %v1118 = vpop.f32.mrf.mxu0
      %v1119 = vpop.f32.mrf.mxu0
      %v1120 = vadd.f32 0.0, %v1119
      %v1121 = vpop.f32.mrf.mxu0
      %1122 = vdwg.mxu0
      %v1123 = vadd.f32 %v932, %v1117
      %v1124 = vadd.f32 %v933, %v1120
      %v1125 = vld [vmem:[%s936] sm:$0x3]
      %v1126 = vld [vmem:[%s936 + $0x4] sm:$0x3]
      %v1127 = vld [vmem:[%s936 + $0x8] sm:$0x3]
      %v1132 = vunpack.c.l.s4 1966171168
      %v1133 = vunpack.c.0.s8 %v1132
      %v1134 = vlaneseq
      %v1135 = vshrl.u32 %v1134, 7
      %v1136 = vsub.s32 %v1133, %v1135
      %v1137 = vrot.slane %v1125, %v1136
      %v1138 = vcombine.high %v1137, %v1137
      %v1140 = vunpack.c.l.s4 1966171168
      %v1141 = vunpack.c.0.s8 %v1140
      %v1142 = vlaneseq
      %v1143 = vshrl.u32 %v1142, 7
      %v1144 = vsub.s32 %v1141, %v1143
      %v1145 = vrot.slane %v1137, %v1144
      %v1147 = vunpack.c.l.s4 1966171168
      %v1148 = vunpack.c.0.s8 %v1147
      %v1149 = vlaneseq
      %v1150 = vshrl.u32 %v1149, 7
      %v1151 = vsub.s32 %v1148, %v1150
      %v1152 = vrot.slane %v1138, %v1151
      %v1154 = vunpack.c.l.s4 1966171168
      %v1155 = vunpack.c.0.s8 %v1154
      %v1156 = vlaneseq
      %v1157 = vshrl.u32 %v1156, 7
      %v1158 = vsub.s32 %v1155, %v1157
      %v1159 = vrot.slane %v1126, %v1158
      %v1160 = vcombine.high %v1159, %v1159
      %v1162 = vunpack.c.l.s4 1966171168
      %v1163 = vunpack.c.0.s8 %v1162
      %v1164 = vlaneseq
      %v1165 = vshrl.u32 %v1164, 7
      %v1166 = vsub.s32 %v1163, %v1165
      %v1167 = vrot.slane %v1159, %v1166
      %v1169 = vunpack.c.l.s4 1966171168
      %v1170 = vunpack.c.0.s8 %v1169
      %v1171 = vlaneseq
      %v1172 = vshrl.u32 %v1171, 7
      %v1173 = vsub.s32 %v1170, %v1172
      %v1174 = vrot.slane %v1160, %v1173
      %v1176 = vunpack.c.l.s4 1966171168
      %v1177 = vunpack.c.0.s8 %v1176
      %v1178 = vlaneseq
      %v1179 = vshrl.u32 %v1178, 7
      %v1180 = vsub.s32 %v1177, %v1179
      %v1181 = vrot.slane %v1127, %v1180
      %v1182 = vcombine.high %v1181, %v1181
      %v1184 = vunpack.c.l.s4 1966171168
      %v1185 = vunpack.c.0.s8 %v1184
      %v1186 = vlaneseq
      %v1187 = vshrl.u32 %v1186, 7
      %v1188 = vsub.s32 %v1185, %v1187
      %v1189 = vrot.slane %v1181, %v1188
      %v1191 = vunpack.c.l.s4 1966171168
      %v1192 = vunpack.c.0.s8 %v1191
      %v1193 = vlaneseq
      %v1194 = vshrl.u32 %v1193, 7
      %v1195 = vsub.s32 %v1192, %v1194
      %v1196 = vrot.slane %v1182, %v1195
      %v1197 = vunpack.i.h.s16 %v1145
      %v1198 = vunpack.i.l.s16 %v1152
      %v1199 = vunpack.i.h.s16 %v1152
      %v1200 = vunpack.i.h.s16 %v1167
      %v1201 = vunpack.i.l.s16 %v1174
      %v1202 = vunpack.i.h.s16 %v1174
      %v1203 = vunpack.i.h.s16 %v1189
      %v1204 = vunpack.i.l.s16 %v1196
      %v1205 = vunpack.i.h.s16 %v1196
      %s1206 = scalar_lea.vmem %s1, 80
      %v1207 = vld [vmem:[%s1206] sm:$0xf]
      %v1208 = vld [vmem:[%s1206 + $0x4] sm:$0xf]
      %v1209 = vld [vmem:[%s1206 + $0x8] sm:$0xf]
      %v1210 = vld [vmem:[%s1206 + $0xc] sm:$0xf]
      %v1211 = vpack.i.b16 %v1198, %v1197
      %v1212 = vpack.i.b16 %v1200, %v1199
      %v1213 = vpack.i.b16 %v1202, %v1201
      %v1214 = vpack.i.b16 %v1204, %v1203
      %v1216 = vcombine.low %v1211, %v1212
      %v1217 = vcombine.low %v1213, %v1214
      %v1219 = vunpack.c.l.s4 1966171168
      %v1220 = vunpack.c.0.s8 %v1219
      %v1221 = vlaneseq
      %v1222 = vshrl.u32 %v1221, 7
      %v1223 = vsub.s32 %v1220, %v1222
      %v1224 = vrot.slane %v1216, %v1223
      %v1226 = vunpack.c.l.s4 1966171168
      %v1227 = vunpack.c.0.s8 %v1226
      %v1228 = vlaneseq
      %v1229 = vshrl.u32 %v1228, 7
      %v1230 = vsub.s32 %v1227, %v1229
      %v1231 = vrot.slane %v1217, %v1230
      %v1233 = vunpack.c.l.s4 1966171168
      %v1234 = vunpack.c.0.s8 %v1233
      %v1235 = vlaneseq
      %v1236 = vshrl.u32 %v1235, 7
      %v1237 = vsub.s32 %v1234, %v1236
      %v1238 = vrot.slane %v1205, %v1237
      %v1239 = vcombine.low %v1224, %v1231
      %v1241 = vunpack.c.l.s4 1966171168
      %v1242 = vunpack.c.0.s8 %v1241
      %v1243 = vlaneseq
      %v1244 = vshrl.u32 %v1243, 7
      %v1245 = vsub.s32 %v1242, %v1244
      %v1246 = vrot.slane %v1239, %v1245
      %v1248 = vunpack.c.l.s4 1966171168
      %v1249 = vunpack.c.0.s8 %v1248
      %v1250 = vlaneseq
      %v1251 = vshrl.u32 %v1250, 7
      %v1252 = vsub.s32 %v1249, %v1251
      %v1253 = vrot.slane %v1238, %v1252
      %v1254 = vcombine.low %v1246, %v1253
      %v1259 = vunpack.c.l.b16 %v1207
      %v1260 = vunpack.c.l.b16 %v1208
      %v1261 = vunpack.c.l.b16 %v1209
      %v1262 = vunpack.c.l.b16 %v1210
      %v1263 = vpack.c.b16 %v1260, %v1259
      %v1264 = vpack.c.b16 %v1262, %v1261
      %v1268 = vsel %vm407, %v1254, 0
      %1270 = vmatprep.subr.bf16.mxu0 0
      %1271 = vmatpush1.bf16.msra.mxu0 0
      %1272 = vmatprep.subr.bf16.mxu0 0
      %1273 = vmatpush1.bf16.msra.mxu0 0
      %1274 = vmatprep.subr.bf16.mxu0 0
      %1275 = vmatpush1.bf16.msra.mxu0 0
      %1276 = vmatprep.subr.bf16.mxu0 0
      %1277 = vmatpush1.bf16.msra.mxu0 0
      %1278 = vmatprep.subr.bf16.mxu0 0
      %1279 = vmatpush1.bf16.msra.mxu0 0
      %1280 = vmatprep.subr.bf16.mxu0 0
      %1281 = vmatpush1.bf16.msra.mxu0 0
      %1282 = vmatprep.subr.bf16.mxu0 0
      %1283 = vmatpush1.bf16.msra.mxu0 %v1264
      %1284 = vmatprep.subr.bf16.mxu0 0
      %1285 = vmatpush1.bf16.msra.mxu0 %v1263
      %1286 = vmatprep.subr.bf16.mxu0 0
      %1287 = vmatpush2.bf16.msra.mxu0 0
      %1288 = vmatprep.subr.bf16.mxu0 0
      %1289 = vmatpush2.bf16.msra.mxu0 0
      %1290 = vmatprep.subr.bf16.mxu0 0
      %1291 = vmatpush2.bf16.msra.mxu0 0
      %1292 = vmatprep.subr.bf16.mxu0 0
      %1293 = vmatpush2.bf16.msra.mxu0 0
      %1294 = vmatprep.subr.bf16.mxu0 0
      %1295 = vmatpush2.bf16.msra.mxu0 0
      %1296 = vmatprep.subr.bf16.mxu0 0
      %1297 = vmatpush2.bf16.msra.mxu0 0
      %1298 = vmatprep.subr.bf16.mxu0 0
      %1299 = vmatpush2.bf16.msra.mxu0 0
      %1300 = vmatprep.subr.bf16.mxu0 0
      %1301 = vmatpush2.bf16.msra.mxu0 0
      %1302 = vmatprep.mubr.bf16.mxu0 0
      %1303 = vmatmul.mubr.bf16.gmra.mxu0 %v1268
      %v1304 = vpop.f32.mrf.mxu0
      %v1305 = vadd.f32 0.0, %v1304
      %v1306 = vpop.f32.mrf.mxu0
      %v1307 = vpop.f32.mrf.mxu0
      %v1308 = vadd.f32 0.0, %v1307
      %v1309 = vpop.f32.mrf.mxu0
      %1310 = vdwg.mxu0
      %v1311 = vadd.f32 %v1123, %v1305
      %v1312 = vadd.f32 %v1124, %v1308
      %v1313 = vld [vmem:[%s936] sm:$0x6]
      %v1314 = vld [vmem:[%s936 + $0x4] sm:$0x6]
      %v1315 = vld [vmem:[%s936 + $0x8] sm:$0x6]
      %v1320 = vunpack.c.l.s4 1966171168
      %v1321 = vunpack.c.0.s8 %v1320
      %v1322 = vlaneseq
      %v1323 = vshrl.u32 %v1322, 7
      %v1324 = vsub.s32 %v1321, %v1323
      %v1325 = vrot.slane %v1313, %v1324
      %v1326 = vcombine.high %v1325, %v1325
      %v1328 = vunpack.c.l.s4 1966171168
      %v1329 = vunpack.c.0.s8 %v1328
      %v1330 = vlaneseq
      %v1331 = vshrl.u32 %v1330, 7
      %v1332 = vsub.s32 %v1329, %v1331
      %v1333 = vrot.slane %v1325, %v1332
      %v1335 = vunpack.c.l.s4 1966171168
      %v1336 = vunpack.c.0.s8 %v1335
      %v1337 = vlaneseq
      %v1338 = vshrl.u32 %v1337, 7
      %v1339 = vsub.s32 %v1336, %v1338
      %v1340 = vrot.slane %v1326, %v1339
      %v1341 = vcombine.high %v1333, %v1333
      %v1343 = vunpack.c.l.s4 1966171168
      %v1344 = vunpack.c.0.s8 %v1343
      %v1345 = vlaneseq
      %v1346 = vshrl.u32 %v1345, 7
      %v1347 = vsub.s32 %v1344, %v1346
      %v1348 = vrot.slane %v1314, %v1347
      %v1349 = vcombine.high %v1348, %v1348
      %v1351 = vunpack.c.l.s4 1966171168
      %v1352 = vunpack.c.0.s8 %v1351
      %v1353 = vlaneseq
      %v1354 = vshrl.u32 %v1353, 7
      %v1355 = vsub.s32 %v1352, %v1354
      %v1356 = vrot.slane %v1348, %v1355
      %v1358 = vunpack.c.l.s4 1966171168
      %v1359 = vunpack.c.0.s8 %v1358
      %v1360 = vlaneseq
      %v1361 = vshrl.u32 %v1360, 7
      %v1362 = vsub.s32 %v1359, %v1361
      %v1363 = vrot.slane %v1349, %v1362
      %v1364 = vcombine.high %v1356, %v1356
      %v1366 = vunpack.c.l.s4 1966171168
      %v1367 = vunpack.c.0.s8 %v1366
      %v1368 = vlaneseq
      %v1369 = vshrl.u32 %v1368, 7
      %v1370 = vsub.s32 %v1367, %v1369
      %v1371 = vrot.slane %v1315, %v1370
      %v1372 = vcombine.high %v1371, %v1371
      %v1374 = vunpack.c.l.s4 1966171168
      %v1375 = vunpack.c.0.s8 %v1374
      %v1376 = vlaneseq
      %v1377 = vshrl.u32 %v1376, 7
      %v1378 = vsub.s32 %v1375, %v1377
      %v1379 = vrot.slane %v1371, %v1378
      %v1381 = vunpack.c.l.s4 1966171168
      %v1382 = vunpack.c.0.s8 %v1381
      %v1383 = vlaneseq
      %v1384 = vshrl.u32 %v1383, 7
      %v1385 = vsub.s32 %v1382, %v1384
      %v1386 = vrot.slane %v1372, %v1385
      %v1387 = vcombine.high %v1379, %v1379
      %v1388 = vunpack.i.l.s16 %v1340
      %v1389 = vunpack.i.h.s16 %v1340
      %v1390 = vunpack.i.l.s16 %v1341
      %v1391 = vunpack.i.l.s16 %v1363
      %v1392 = vunpack.i.h.s16 %v1363
      %v1393 = vunpack.i.l.s16 %v1364
      %v1394 = vunpack.i.l.s16 %v1386
      %v1395 = vunpack.i.h.s16 %v1386
      %v1396 = vunpack.i.l.s16 %v1387
      %s1397 = scalar_lea.vmem %s1, 96
      %v1398 = vld [vmem:[%s1397] sm:$0xf]
      %v1399 = vld [vmem:[%s1397 + $0x4] sm:$0xf]
      %v1400 = vld [vmem:[%s1397 + $0x8] sm:$0xf]
      %v1401 = vld [vmem:[%s1397 + $0xc] sm:$0xf]
      %v1402 = vpack.i.b16 %v1389, %v1388
      %v1403 = vpack.i.b16 %v1391, %v1390
      %v1404 = vpack.i.b16 %v1393, %v1392
      %v1405 = vpack.i.b16 %v1395, %v1394
      %v1407 = vcombine.low %v1402, %v1403
      %v1408 = vcombine.low %v1404, %v1405
      %v1410 = vunpack.c.l.s4 1966171168
      %v1411 = vunpack.c.0.s8 %v1410
      %v1412 = vlaneseq
      %v1413 = vshrl.u32 %v1412, 7
      %v1414 = vsub.s32 %v1411, %v1413
      %v1415 = vrot.slane %v1407, %v1414
      %v1417 = vunpack.c.l.s4 1966171168
      %v1418 = vunpack.c.0.s8 %v1417
      %v1419 = vlaneseq
      %v1420 = vshrl.u32 %v1419, 7
      %v1421 = vsub.s32 %v1418, %v1420
      %v1422 = vrot.slane %v1408, %v1421
      %v1424 = vunpack.c.l.s4 1966171168
      %v1425 = vunpack.c.0.s8 %v1424
      %v1426 = vlaneseq
      %v1427 = vshrl.u32 %v1426, 7
      %v1428 = vsub.s32 %v1425, %v1427
      %v1429 = vrot.slane %v1396, %v1428
      %v1430 = vcombine.low %v1415, %v1422
      %v1432 = vunpack.c.l.s4 1966171168
      %v1433 = vunpack.c.0.s8 %v1432
      %v1434 = vlaneseq
      %v1435 = vshrl.u32 %v1434, 7
      %v1436 = vsub.s32 %v1433, %v1435
      %v1437 = vrot.slane %v1430, %v1436
      %v1439 = vunpack.c.l.s4 1966171168
      %v1440 = vunpack.c.0.s8 %v1439
      %v1441 = vlaneseq
      %v1442 = vshrl.u32 %v1441, 7
      %v1443 = vsub.s32 %v1440, %v1442
      %v1444 = vrot.slane %v1429, %v1443
      %v1445 = vcombine.low %v1437, %v1444
      %v1450 = vunpack.c.l.b16 %v1398
      %v1451 = vunpack.c.l.b16 %v1399
      %v1452 = vunpack.c.l.b16 %v1400
      %v1453 = vunpack.c.l.b16 %v1401
      %v1454 = vpack.c.b16 %v1451, %v1450
      %v1455 = vpack.c.b16 %v1453, %v1452
      %v1459 = vsel %vm407, %v1445, 0
      %1461 = vmatprep.subr.bf16.mxu0 0
      %1462 = vmatpush1.bf16.msra.mxu0 0
      %1463 = vmatprep.subr.bf16.mxu0 0
      %1464 = vmatpush1.bf16.msra.mxu0 0
      %1465 = vmatprep.subr.bf16.mxu0 0
      %1466 = vmatpush1.bf16.msra.mxu0 0
      %1467 = vmatprep.subr.bf16.mxu0 0
      %1468 = vmatpush1.bf16.msra.mxu0 0
      %1469 = vmatprep.subr.bf16.mxu0 0
      %1470 = vmatpush1.bf16.msra.mxu0 0
      %1471 = vmatprep.subr.bf16.mxu0 0
      %1472 = vmatpush1.bf16.msra.mxu0 0
      %1473 = vmatprep.subr.bf16.mxu0 0
      %1474 = vmatpush1.bf16.msra.mxu0 %v1455
      %1475 = vmatprep.subr.bf16.mxu0 0
      %1476 = vmatpush1.bf16.msra.mxu0 %v1454
      %1477 = vmatprep.subr.bf16.mxu0 0
      %1478 = vmatpush2.bf16.msra.mxu0 0
      %1479 = vmatprep.subr.bf16.mxu0 0
      %1480 = vmatpush2.bf16.msra.mxu0 0
      %1481 = vmatprep.subr.bf16.mxu0 0
      %1482 = vmatpush2.bf16.msra.mxu0 0
      %1483 = vmatprep.subr.bf16.mxu0 0
      %1484 = vmatpush2.bf16.msra.mxu0 0
      %1485 = vmatprep.subr.bf16.mxu0 0
      %1486 = vmatpush2.bf16.msra.mxu0 0
      %1487 = vmatprep.subr.bf16.mxu0 0
      %1488 = vmatpush2.bf16.msra.mxu0 0
      %1489 = vmatprep.subr.bf16.mxu0 0
      %1490 = vmatpush2.bf16.msra.mxu0 0
      %1491 = vmatprep.subr.bf16.mxu0 0
      %1492 = vmatpush2.bf16.msra.mxu0 0
      %1493 = vmatprep.mubr.bf16.mxu0 0
      %1494 = vmatmul.mubr.bf16.gmra.mxu0 %v1459
      %v1495 = vpop.f32.mrf.mxu0
      %v1496 = vadd.f32 0.0, %v1495
      %v1497 = vpop.f32.mrf.mxu0
      %v1498 = vpop.f32.mrf.mxu0
      %v1499 = vadd.f32 0.0, %v1498
      %v1500 = vpop.f32.mrf.mxu0
      %1501 = vdwg.mxu0
      %v1502 = vadd.f32 %v1311, %v1496
      %v1503 = vadd.f32 %v1312, %v1499
      %v1504 = vld [vmem:[%s936] sm:$0x6]
      %v1505 = vld [vmem:[%s936 + $0x4] sm:$0x6]
      %v1506 = vld [vmem:[%s936 + $0x8] sm:$0x6]
      %v1511 = vunpack.c.l.s4 1966171168
      %v1512 = vunpack.c.0.s8 %v1511
      %v1513 = vlaneseq
      %v1514 = vshrl.u32 %v1513, 7
      %v1515 = vsub.s32 %v1512, %v1514
      %v1516 = vrot.slane %v1504, %v1515
      %v1517 = vcombine.high %v1516, %v1516
      %v1519 = vunpack.c.l.s4 1966171168
      %v1520 = vunpack.c.0.s8 %v1519
      %v1521 = vlaneseq
      %v1522 = vshrl.u32 %v1521, 7
      %v1523 = vsub.s32 %v1520, %v1522
      %v1524 = vrot.slane %v1516, %v1523
      %v1526 = vunpack.c.l.s4 1966171168
      %v1527 = vunpack.c.0.s8 %v1526
      %v1528 = vlaneseq
      %v1529 = vshrl.u32 %v1528, 7
      %v1530 = vsub.s32 %v1527, %v1529
      %v1531 = vrot.slane %v1517, %v1530
      %v1532 = vcombine.high %v1524, %v1524
      %v1534 = vunpack.c.l.s4 1966171168
      %v1535 = vunpack.c.0.s8 %v1534
      %v1536 = vlaneseq
      %v1537 = vshrl.u32 %v1536, 7
      %v1538 = vsub.s32 %v1535, %v1537
      %v1539 = vrot.slane %v1505, %v1538
      %v1540 = vcombine.high %v1539, %v1539
      %v1542 = vunpack.c.l.s4 1966171168
      %v1543 = vunpack.c.0.s8 %v1542
      %v1544 = vlaneseq
      %v1545 = vshrl.u32 %v1544, 7
      %v1546 = vsub.s32 %v1543, %v1545
      %v1547 = vrot.slane %v1539, %v1546
      %v1549 = vunpack.c.l.s4 1966171168
      %v1550 = vunpack.c.0.s8 %v1549
      %v1551 = vlaneseq
      %v1552 = vshrl.u32 %v1551, 7
      %v1553 = vsub.s32 %v1550, %v1552
      %v1554 = vrot.slane %v1540, %v1553
      %v1555 = vcombine.high %v1547, %v1547
      %v1557 = vunpack.c.l.s4 1966171168
      %v1558 = vunpack.c.0.s8 %v1557
      %v1559 = vlaneseq
      %v1560 = vshrl.u32 %v1559, 7
      %v1561 = vsub.s32 %v1558, %v1560
      %v1562 = vrot.slane %v1506, %v1561
      %v1563 = vcombine.high %v1562, %v1562
      %v1565 = vunpack.c.l.s4 1966171168
      %v1566 = vunpack.c.0.s8 %v1565
      %v1567 = vlaneseq
      %v1568 = vshrl.u32 %v1567, 7
      %v1569 = vsub.s32 %v1566, %v1568
      %v1570 = vrot.slane %v1562, %v1569
      %v1572 = vunpack.c.l.s4 1966171168
      %v1573 = vunpack.c.0.s8 %v1572
      %v1574 = vlaneseq
      %v1575 = vshrl.u32 %v1574, 7
      %v1576 = vsub.s32 %v1573, %v1575
      %v1577 = vrot.slane %v1563, %v1576
      %v1578 = vcombine.high %v1570, %v1570
      %v1579 = vunpack.i.h.s16 %v1531
      %v1580 = vunpack.i.l.s16 %v1532
      %v1581 = vunpack.i.h.s16 %v1532
      %v1582 = vunpack.i.h.s16 %v1554
      %v1583 = vunpack.i.l.s16 %v1555
      %v1584 = vunpack.i.h.s16 %v1555
      %v1585 = vunpack.i.h.s16 %v1577
      %v1586 = vunpack.i.l.s16 %v1578
      %v1587 = vunpack.i.h.s16 %v1578
      %s1588 = scalar_lea.vmem %s1, 112
      %v1589 = vld [vmem:[%s1588] sm:$0xf]
      %v1590 = vld [vmem:[%s1588 + $0x4] sm:$0xf]
      %v1591 = vld [vmem:[%s1588 + $0x8] sm:$0xf]
      %v1592 = vld [vmem:[%s1588 + $0xc] sm:$0xf]
      %v1593 = vpack.i.b16 %v1580, %v1579
      %v1594 = vpack.i.b16 %v1582, %v1581
      %v1595 = vpack.i.b16 %v1584, %v1583
      %v1596 = vpack.i.b16 %v1586, %v1585
      %v1598 = vcombine.low %v1593, %v1594
      %v1599 = vcombine.low %v1595, %v1596
      %v1601 = vunpack.c.l.s4 1966171168
      %v1602 = vunpack.c.0.s8 %v1601
      %v1603 = vlaneseq
      %v1604 = vshrl.u32 %v1603, 7
      %v1605 = vsub.s32 %v1602, %v1604
      %v1606 = vrot.slane %v1598, %v1605
      %v1608 = vunpack.c.l.s4 1966171168
      %v1609 = vunpack.c.0.s8 %v1608
      %v1610 = vlaneseq
      %v1611 = vshrl.u32 %v1610, 7
      %v1612 = vsub.s32 %v1609, %v1611
      %v1613 = vrot.slane %v1599, %v1612
      %v1615 = vunpack.c.l.s4 1966171168
      %v1616 = vunpack.c.0.s8 %v1615
      %v1617 = vlaneseq
      %v1618 = vshrl.u32 %v1617, 7
      %v1619 = vsub.s32 %v1616, %v1618
      %v1620 = vrot.slane %v1587, %v1619
      %v1621 = vcombine.low %v1606, %v1613
      %v1623 = vunpack.c.l.s4 1966171168
      %v1624 = vunpack.c.0.s8 %v1623
      %v1625 = vlaneseq
      %v1626 = vshrl.u32 %v1625, 7
      %v1627 = vsub.s32 %v1624, %v1626
      %v1628 = vrot.slane %v1621, %v1627
      %v1630 = vunpack.c.l.s4 1966171168
      %v1631 = vunpack.c.0.s8 %v1630
      %v1632 = vlaneseq
      %v1633 = vshrl.u32 %v1632, 7
      %v1634 = vsub.s32 %v1631, %v1633
      %v1635 = vrot.slane %v1620, %v1634
      %v1636 = vcombine.low %v1628, %v1635
      %v1641 = vunpack.c.l.b16 %v1589
      %v1642 = vunpack.c.l.b16 %v1590
      %v1643 = vunpack.c.l.b16 %v1591
      %v1644 = vunpack.c.l.b16 %v1592
      %v1645 = vpack.c.b16 %v1642, %v1641
      %v1646 = vpack.c.b16 %v1644, %v1643
      %v1650 = vsel %vm407, %v1636, 0
      %1652 = vmatprep.subr.bf16.mxu0 0
      %1653 = vmatpush1.bf16.msra.mxu0 0
      %1654 = vmatprep.subr.bf16.mxu0 0
      %1655 = vmatpush1.bf16.msra.mxu0 0
      %1656 = vmatprep.subr.bf16.mxu0 0
      %1657 = vmatpush1.bf16.msra.mxu0 0
      %1658 = vmatprep.subr.bf16.mxu0 0
      %1659 = vmatpush1.bf16.msra.mxu0 0
      %1660 = vmatprep.subr.bf16.mxu0 0
      %1661 = vmatpush1.bf16.msra.mxu0 0
      %1662 = vmatprep.subr.bf16.mxu0 0
      %1663 = vmatpush1.bf16.msra.mxu0 0
      %1664 = vmatprep.subr.bf16.mxu0 0
      %1665 = vmatpush1.bf16.msra.mxu0 %v1646
      %1666 = vmatprep.subr.bf16.mxu0 0
      %1667 = vmatpush1.bf16.msra.mxu0 %v1645
      %1668 = vmatprep.subr.bf16.mxu0 0
      %1669 = vmatpush2.bf16.msra.mxu0 0
      %1670 = vmatprep.subr.bf16.mxu0 0
      %1671 = vmatpush2.bf16.msra.mxu0 0
      %1672 = vmatprep.subr.bf16.mxu0 0
      %1673 = vmatpush2.bf16.msra.mxu0 0
      %1674 = vmatprep.subr.bf16.mxu0 0
      %1675 = vmatpush2.bf16.msra.mxu0 0
      %1676 = vmatprep.subr.bf16.mxu0 0
      %1677 = vmatpush2.bf16.msra.mxu0 0
      %1678 = vmatprep.subr.bf16.mxu0 0
      %1679 = vmatpush2.bf16.msra.mxu0 0
      %1680 = vmatprep.subr.bf16.mxu0 0
      %1681 = vmatpush2.bf16.msra.mxu0 0
      %1682 = vmatprep.subr.bf16.mxu0 0
      %1683 = vmatpush2.bf16.msra.mxu0 0
      %1684 = vmatprep.mubr.bf16.mxu0 0
      %1685 = vmatmul.mubr.bf16.gmra.mxu0 %v1650
      %v1686 = vpop.f32.mrf.mxu0
      %v1687 = vadd.f32 0.0, %v1686
      %v1688 = vpop.f32.mrf.mxu0
      %v1689 = vpop.f32.mrf.mxu0
      %v1690 = vadd.f32 0.0, %v1689
      %v1691 = vpop.f32.mrf.mxu0
      %1692 = vdwg.mxu0
      %v1693 = vadd.f32 %v1502, %v1687
      %v1694 = vadd.f32 %v1503, %v1690
      %s1695 = sadd.s32 %s255, 2
      %s1696 = smul.addr %s1695, 4
      %s1697 = scalar_lea.vmem %s231, %s1696
      %v1698 = vld [vmem:[%s1697] sm:$0x3]
      %v1699 = vld [vmem:[%s1697 + $0x4] sm:$0x3]
      %v1700 = vld [vmem:[%s1697 + $0x8] sm:$0x3]
      %v1705 = vunpack.c.l.s4 1966171168
      %v1706 = vunpack.c.0.s8 %v1705
      %v1707 = vlaneseq
      %v1708 = vshrl.u32 %v1707, 7
      %v1709 = vsub.s32 %v1706, %v1708
      %v1710 = vrot.slane %v1698, %v1709
      %v1711 = vcombine.high %v1710, %v1710
      %v1713 = vunpack.c.l.s4 1966171168
      %v1714 = vunpack.c.0.s8 %v1713
      %v1715 = vlaneseq
      %v1716 = vshrl.u32 %v1715, 7
      %v1717 = vsub.s32 %v1714, %v1716
      %v1718 = vrot.slane %v1710, %v1717
      %v1720 = vunpack.c.l.s4 1966171168
      %v1721 = vunpack.c.0.s8 %v1720
      %v1722 = vlaneseq
      %v1723 = vshrl.u32 %v1722, 7
      %v1724 = vsub.s32 %v1721, %v1723
      %v1725 = vrot.slane %v1711, %v1724
      %v1727 = vunpack.c.l.s4 1966171168
      %v1728 = vunpack.c.0.s8 %v1727
      %v1729 = vlaneseq
      %v1730 = vshrl.u32 %v1729, 7
      %v1731 = vsub.s32 %v1728, %v1730
      %v1732 = vrot.slane %v1699, %v1731
      %v1733 = vcombine.high %v1732, %v1732
      %v1735 = vunpack.c.l.s4 1966171168
      %v1736 = vunpack.c.0.s8 %v1735
      %v1737 = vlaneseq
      %v1738 = vshrl.u32 %v1737, 7
      %v1739 = vsub.s32 %v1736, %v1738
      %v1740 = vrot.slane %v1732, %v1739
      %v1742 = vunpack.c.l.s4 1966171168
      %v1743 = vunpack.c.0.s8 %v1742
      %v1744 = vlaneseq
      %v1745 = vshrl.u32 %v1744, 7
      %v1746 = vsub.s32 %v1743, %v1745
      %v1747 = vrot.slane %v1733, %v1746
      %v1749 = vunpack.c.l.s4 1966171168
      %v1750 = vunpack.c.0.s8 %v1749
      %v1751 = vlaneseq
      %v1752 = vshrl.u32 %v1751, 7
      %v1753 = vsub.s32 %v1750, %v1752
      %v1754 = vrot.slane %v1700, %v1753
      %v1755 = vcombine.high %v1754, %v1754
      %v1757 = vunpack.c.l.s4 1966171168
      %v1758 = vunpack.c.0.s8 %v1757
      %v1759 = vlaneseq
      %v1760 = vshrl.u32 %v1759, 7
      %v1761 = vsub.s32 %v1758, %v1760
      %v1762 = vrot.slane %v1754, %v1761
      %v1764 = vunpack.c.l.s4 1966171168
      %v1765 = vunpack.c.0.s8 %v1764
      %v1766 = vlaneseq
      %v1767 = vshrl.u32 %v1766, 7
      %v1768 = vsub.s32 %v1765, %v1767
      %v1769 = vrot.slane %v1755, %v1768
      %v1770 = vunpack.i.l.s16 %v1718
      %v1771 = vunpack.i.h.s16 %v1718
      %v1772 = vunpack.i.l.s16 %v1725
      %v1773 = vunpack.i.l.s16 %v1740
      %v1774 = vunpack.i.h.s16 %v1740
      %v1775 = vunpack.i.l.s16 %v1747
      %v1776 = vunpack.i.l.s16 %v1762
      %v1777 = vunpack.i.h.s16 %v1762
      %v1778 = vunpack.i.l.s16 %v1769
      %s1779 = scalar_lea.vmem %s1, 128
      %v1780 = vld [vmem:[%s1779] sm:$0xf]
      %v1781 = vld [vmem:[%s1779 + $0x4] sm:$0xf]
      %v1782 = vld [vmem:[%s1779 + $0x8] sm:$0xf]
      %v1783 = vld [vmem:[%s1779 + $0xc] sm:$0xf]
      %v1784 = vpack.i.b16 %v1771, %v1770
      %v1785 = vpack.i.b16 %v1773, %v1772
      %v1786 = vpack.i.b16 %v1775, %v1774
      %v1787 = vpack.i.b16 %v1777, %v1776
      %v1789 = vcombine.low %v1784, %v1785
      %v1790 = vcombine.low %v1786, %v1787
      %v1792 = vunpack.c.l.s4 1966171168
      %v1793 = vunpack.c.0.s8 %v1792
      %v1794 = vlaneseq
      %v1795 = vshrl.u32 %v1794, 7
      %v1796 = vsub.s32 %v1793, %v1795
      %v1797 = vrot.slane %v1789, %v1796
      %v1799 = vunpack.c.l.s4 1966171168
      %v1800 = vunpack.c.0.s8 %v1799
      %v1801 = vlaneseq
      %v1802 = vshrl.u32 %v1801, 7
      %v1803 = vsub.s32 %v1800, %v1802
      %v1804 = vrot.slane %v1790, %v1803
      %v1806 = vunpack.c.l.s4 1966171168
      %v1807 = vunpack.c.0.s8 %v1806
      %v1808 = vlaneseq
      %v1809 = vshrl.u32 %v1808, 7
      %v1810 = vsub.s32 %v1807, %v1809
      %v1811 = vrot.slane %v1778, %v1810
      %v1812 = vcombine.low %v1797, %v1804
      %v1814 = vunpack.c.l.s4 1966171168
      %v1815 = vunpack.c.0.s8 %v1814
      %v1816 = vlaneseq
      %v1817 = vshrl.u32 %v1816, 7
      %v1818 = vsub.s32 %v1815, %v1817
      %v1819 = vrot.slane %v1812, %v1818
      %v1821 = vunpack.c.l.s4 1966171168
      %v1822 = vunpack.c.0.s8 %v1821
      %v1823 = vlaneseq
      %v1824 = vshrl.u32 %v1823, 7
      %v1825 = vsub.s32 %v1822, %v1824
      %v1826 = vrot.slane %v1811, %v1825
      %v1827 = vcombine.low %v1819, %v1826
      %v1832 = vunpack.c.l.b16 %v1780
      %v1833 = vunpack.c.l.b16 %v1781
      %v1834 = vunpack.c.l.b16 %v1782
      %v1835 = vunpack.c.l.b16 %v1783
      %v1836 = vpack.c.b16 %v1833, %v1832
      %v1837 = vpack.c.b16 %v1835, %v1834
      %v1841 = vsel %vm407, %v1827, 0
      %1843 = vmatprep.subr.bf16.mxu0 0
      %1844 = vmatpush1.bf16.msra.mxu0 0
      %1845 = vmatprep.subr.bf16.mxu0 0
      %1846 = vmatpush1.bf16.msra.mxu0 0
      %1847 = vmatprep.subr.bf16.mxu0 0
      %1848 = vmatpush1.bf16.msra.mxu0 0
      %1849 = vmatprep.subr.bf16.mxu0 0
      %1850 = vmatpush1.bf16.msra.mxu0 0
      %1851 = vmatprep.subr.bf16.mxu0 0
      %1852 = vmatpush1.bf16.msra.mxu0 0
      %1853 = vmatprep.subr.bf16.mxu0 0
      %1854 = vmatpush1.bf16.msra.mxu0 0
      %1855 = vmatprep.subr.bf16.mxu0 0
      %1856 = vmatpush1.bf16.msra.mxu0 %v1837
      %1857 = vmatprep.subr.bf16.mxu0 0
      %1858 = vmatpush1.bf16.msra.mxu0 %v1836
      %1859 = vmatprep.subr.bf16.mxu0 0
      %1860 = vmatpush2.bf16.msra.mxu0 0
      %1861 = vmatprep.subr.bf16.mxu0 0
      %1862 = vmatpush2.bf16.msra.mxu0 0
      %1863 = vmatprep.subr.bf16.mxu0 0
      %1864 = vmatpush2.bf16.msra.mxu0 0
      %1865 = vmatprep.subr.bf16.mxu0 0
      %1866 = vmatpush2.bf16.msra.mxu0 0
      %1867 = vmatprep.subr.bf16.mxu0 0
      %1868 = vmatpush2.bf16.msra.mxu0 0
      %1869 = vmatprep.subr.bf16.mxu0 0
      %1870 = vmatpush2.bf16.msra.mxu0 0
      %1871 = vmatprep.subr.bf16.mxu0 0
      %1872 = vmatpush2.bf16.msra.mxu0 0
      %1873 = vmatprep.subr.bf16.mxu0 0
      %1874 = vmatpush2.bf16.msra.mxu0 0
      %1875 = vmatprep.mubr.bf16.mxu0 0
      %1876 = vmatmul.mubr.bf16.gmra.mxu0 %v1841
      %v1877 = vpop.f32.mrf.mxu0
      %v1878 = vadd.f32 0.0, %v1877
      %v1879 = vpop.f32.mrf.mxu0
      %v1880 = vpop.f32.mrf.mxu0
      %v1881 = vadd.f32 0.0, %v1880
      %v1882 = vpop.f32.mrf.mxu0
      %1883 = vdwg.mxu0
      %v1884 = vadd.f32 %v1693, %v1878
      %v1885 = vadd.f32 %v1694, %v1881
      %v1886 = vld [vmem:[%s1697] sm:$0x3]
      %v1887 = vld [vmem:[%s1697 + $0x4] sm:$0x3]
      %v1888 = vld [vmem:[%s1697 + $0x8] sm:$0x3]
      %v1893 = vunpack.c.l.s4 1966171168
      %v1894 = vunpack.c.0.s8 %v1893
      %v1895 = vlaneseq
      %v1896 = vshrl.u32 %v1895, 7
      %v1897 = vsub.s32 %v1894, %v1896
      %v1898 = vrot.slane %v1886, %v1897
      %v1899 = vcombine.high %v1898, %v1898
      %v1901 = vunpack.c.l.s4 1966171168
      %v1902 = vunpack.c.0.s8 %v1901
      %v1903 = vlaneseq
      %v1904 = vshrl.u32 %v1903, 7
      %v1905 = vsub.s32 %v1902, %v1904
      %v1906 = vrot.slane %v1898, %v1905
      %v1908 = vunpack.c.l.s4 1966171168
      %v1909 = vunpack.c.0.s8 %v1908
      %v1910 = vlaneseq
      %v1911 = vshrl.u32 %v1910, 7
      %v1912 = vsub.s32 %v1909, %v1911
      %v1913 = vrot.slane %v1899, %v1912
      %v1915 = vunpack.c.l.s4 1966171168
      %v1916 = vunpack.c.0.s8 %v1915
      %v1917 = vlaneseq
      %v1918 = vshrl.u32 %v1917, 7
      %v1919 = vsub.s32 %v1916, %v1918
      %v1920 = vrot.slane %v1887, %v1919
      %v1921 = vcombine.high %v1920, %v1920
      %v1923 = vunpack.c.l.s4 1966171168
      %v1924 = vunpack.c.0.s8 %v1923
      %v1925 = vlaneseq
      %v1926 = vshrl.u32 %v1925, 7
      %v1927 = vsub.s32 %v1924, %v1926
      %v1928 = vrot.slane %v1920, %v1927
      %v1930 = vunpack.c.l.s4 1966171168
      %v1931 = vunpack.c.0.s8 %v1930
      %v1932 = vlaneseq
      %v1933 = vshrl.u32 %v1932, 7
      %v1934 = vsub.s32 %v1931, %v1933
      %v1935 = vrot.slane %v1921, %v1934
      %v1937 = vunpack.c.l.s4 1966171168
      %v1938 = vunpack.c.0.s8 %v1937
      %v1939 = vlaneseq
      %v1940 = vshrl.u32 %v1939, 7
      %v1941 = vsub.s32 %v1938, %v1940
      %v1942 = vrot.slane %v1888, %v1941
      %v1943 = vcombine.high %v1942, %v1942
      %v1945 = vunpack.c.l.s4 1966171168
      %v1946 = vunpack.c.0.s8 %v1945
      %v1947 = vlaneseq
      %v1948 = vshrl.u32 %v1947, 7
      %v1949 = vsub.s32 %v1946, %v1948
      %v1950 = vrot.slane %v1942, %v1949
      %v1952 = vunpack.c.l.s4 1966171168
      %v1953 = vunpack.c.0.s8 %v1952
      %v1954 = vlaneseq
      %v1955 = vshrl.u32 %v1954, 7
      %v1956 = vsub.s32 %v1953, %v1955
      %v1957 = vrot.slane %v1943, %v1956
      %v1958 = vunpack.i.h.s16 %v1906
      %v1959 = vunpack.i.l.s16 %v1913
      %v1960 = vunpack.i.h.s16 %v1913
      %v1961 = vunpack.i.h.s16 %v1928
      %v1962 = vunpack.i.l.s16 %v1935
      %v1963 = vunpack.i.h.s16 %v1935
      %v1964 = vunpack.i.h.s16 %v1950
      %v1965 = vunpack.i.l.s16 %v1957
      %v1966 = vunpack.i.h.s16 %v1957
      %s1967 = scalar_lea.vmem %s1, 144
      %v1968 = vld [vmem:[%s1967] sm:$0xf]
      %v1969 = vld [vmem:[%s1967 + $0x4] sm:$0xf]
      %v1970 = vld [vmem:[%s1967 + $0x8] sm:$0xf]
      %v1971 = vld [vmem:[%s1967 + $0xc] sm:$0xf]
      %v1972 = vpack.i.b16 %v1959, %v1958
      %v1973 = vpack.i.b16 %v1961, %v1960
      %v1974 = vpack.i.b16 %v1963, %v1962
      %v1975 = vpack.i.b16 %v1965, %v1964
      %v1977 = vcombine.low %v1972, %v1973
      %v1978 = vcombine.low %v1974, %v1975
      %v1980 = vunpack.c.l.s4 1966171168
      %v1981 = vunpack.c.0.s8 %v1980
      %v1982 = vlaneseq
      %v1983 = vshrl.u32 %v1982, 7
      %v1984 = vsub.s32 %v1981, %v1983
      %v1985 = vrot.slane %v1977, %v1984
      %v1987 = vunpack.c.l.s4 1966171168
      %v1988 = vunpack.c.0.s8 %v1987
      %v1989 = vlaneseq
      %v1990 = vshrl.u32 %v1989, 7
      %v1991 = vsub.s32 %v1988, %v1990
      %v1992 = vrot.slane %v1978, %v1991
      %v1994 = vunpack.c.l.s4 1966171168
      %v1995 = vunpack.c.0.s8 %v1994
      %v1996 = vlaneseq
      %v1997 = vshrl.u32 %v1996, 7
      %v1998 = vsub.s32 %v1995, %v1997
      %v1999 = vrot.slane %v1966, %v1998
      %v2000 = vcombine.low %v1985, %v1992
      %v2002 = vunpack.c.l.s4 1966171168
      %v2003 = vunpack.c.0.s8 %v2002
      %v2004 = vlaneseq
      %v2005 = vshrl.u32 %v2004, 7
      %v2006 = vsub.s32 %v2003, %v2005
      %v2007 = vrot.slane %v2000, %v2006
      %v2009 = vunpack.c.l.s4 1966171168
      %v2010 = vunpack.c.0.s8 %v2009
      %v2011 = vlaneseq
      %v2012 = vshrl.u32 %v2011, 7
      %v2013 = vsub.s32 %v2010, %v2012
      %v2014 = vrot.slane %v1999, %v2013
      %v2015 = vcombine.low %v2007, %v2014
      %v2020 = vunpack.c.l.b16 %v1968
      %v2021 = vunpack.c.l.b16 %v1969
      %v2022 = vunpack.c.l.b16 %v1970
      %v2023 = vunpack.c.l.b16 %v1971
      %v2024 = vpack.c.b16 %v2021, %v2020
      %v2025 = vpack.c.b16 %v2023, %v2022
      %v2029 = vsel %vm407, %v2015, 0
      %2031 = vmatprep.subr.bf16.mxu0 0
      %2032 = vmatpush1.bf16.msra.mxu0 0
      %2033 = vmatprep.subr.bf16.mxu0 0
      %2034 = vmatpush1.bf16.msra.mxu0 0
      %2035 = vmatprep.subr.bf16.mxu0 0
      %2036 = vmatpush1.bf16.msra.mxu0 0
      %2037 = vmatprep.subr.bf16.mxu0 0
      %2038 = vmatpush1.bf16.msra.mxu0 0
      %2039 = vmatprep.subr.bf16.mxu0 0
      %2040 = vmatpush1.bf16.msra.mxu0 0
      %2041 = vmatprep.subr.bf16.mxu0 0
      %2042 = vmatpush1.bf16.msra.mxu0 0
      %2043 = vmatprep.subr.bf16.mxu0 0
      %2044 = vmatpush1.bf16.msra.mxu0 %v2025
      %2045 = vmatprep.subr.bf16.mxu0 0
      %2046 = vmatpush1.bf16.msra.mxu0 %v2024
      %2047 = vmatprep.subr.bf16.mxu0 0
      %2048 = vmatpush2.bf16.msra.mxu0 0
      %2049 = vmatprep.subr.bf16.mxu0 0
      %2050 = vmatpush2.bf16.msra.mxu0 0
      %2051 = vmatprep.subr.bf16.mxu0 0
      %2052 = vmatpush2.bf16.msra.mxu0 0
      %2053 = vmatprep.subr.bf16.mxu0 0
      %2054 = vmatpush2.bf16.msra.mxu0 0
      %2055 = vmatprep.subr.bf16.mxu0 0
      %2056 = vmatpush2.bf16.msra.mxu0 0
      %2057 = vmatprep.subr.bf16.mxu0 0
      %2058 = vmatpush2.bf16.msra.mxu0 0
      %2059 = vmatprep.subr.bf16.mxu0 0
      %2060 = vmatpush2.bf16.msra.mxu0 0
      %2061 = vmatprep.subr.bf16.mxu0 0
      %2062 = vmatpush2.bf16.msra.mxu0 0
      %2063 = vmatprep.mubr.bf16.mxu0 0
      %2064 = vmatmul.mubr.bf16.gmra.mxu0 %v2029
      %v2065 = vpop.f32.mrf.mxu0
      %v2066 = vadd.f32 0.0, %v2065
      %v2067 = vpop.f32.mrf.mxu0
      %v2068 = vpop.f32.mrf.mxu0
      %v2069 = vadd.f32 0.0, %v2068
      %v2070 = vpop.f32.mrf.mxu0
      %2071 = vdwg.mxu0
      %v2072 = vadd.f32 %v1884, %v2066
      %v2073 = vadd.f32 %v1885, %v2069
      %v2074 = vld [vmem:[%s1697] sm:$0x6]
      %v2075 = vld [vmem:[%s1697 + $0x4] sm:$0x6]
      %v2076 = vld [vmem:[%s1697 + $0x8] sm:$0x6]
      %v2081 = vunpack.c.l.s4 1966171168
      %v2082 = vunpack.c.0.s8 %v2081
      %v2083 = vlaneseq
      %v2084 = vshrl.u32 %v2083, 7
      %v2085 = vsub.s32 %v2082, %v2084
      %v2086 = vrot.slane %v2074, %v2085
      %v2087 = vcombine.high %v2086, %v2086
      %v2089 = vunpack.c.l.s4 1966171168
      %v2090 = vunpack.c.0.s8 %v2089
      %v2091 = vlaneseq
      %v2092 = vshrl.u32 %v2091, 7
      %v2093 = vsub.s32 %v2090, %v2092
      %v2094 = vrot.slane %v2086, %v2093
      %v2096 = vunpack.c.l.s4 1966171168
      %v2097 = vunpack.c.0.s8 %v2096
      %v2098 = vlaneseq
      %v2099 = vshrl.u32 %v2098, 7
      %v2100 = vsub.s32 %v2097, %v2099
      %v2101 = vrot.slane %v2087, %v2100
      %v2102 = vcombine.high %v2094, %v2094
      %v2104 = vunpack.c.l.s4 1966171168
      %v2105 = vunpack.c.0.s8 %v2104
      %v2106 = vlaneseq
      %v2107 = vshrl.u32 %v2106, 7
      %v2108 = vsub.s32 %v2105, %v2107
      %v2109 = vrot.slane %v2075, %v2108
      %v2110 = vcombine.high %v2109, %v2109
      %v2112 = vunpack.c.l.s4 1966171168
      %v2113 = vunpack.c.0.s8 %v2112
      %v2114 = vlaneseq
      %v2115 = vshrl.u32 %v2114, 7
      %v2116 = vsub.s32 %v2113, %v2115
      %v2117 = vrot.slane %v2109, %v2116
      %v2119 = vunpack.c.l.s4 1966171168
      %v2120 = vunpack.c.0.s8 %v2119
      %v2121 = vlaneseq
      %v2122 = vshrl.u32 %v2121, 7
      %v2123 = vsub.s32 %v2120, %v2122
      %v2124 = vrot.slane %v2110, %v2123
      %v2125 = vcombine.high %v2117, %v2117
      %v2127 = vunpack.c.l.s4 1966171168
      %v2128 = vunpack.c.0.s8 %v2127
      %v2129 = vlaneseq
      %v2130 = vshrl.u32 %v2129, 7
      %v2131 = vsub.s32 %v2128, %v2130
      %v2132 = vrot.slane %v2076, %v2131
      %v2133 = vcombine.high %v2132, %v2132
      %v2135 = vunpack.c.l.s4 1966171168
      %v2136 = vunpack.c.0.s8 %v2135
      %v2137 = vlaneseq
      %v2138 = vshrl.u32 %v2137, 7
      %v2139 = vsub.s32 %v2136, %v2138
      %v2140 = vrot.slane %v2132, %v2139
      %v2142 = vunpack.c.l.s4 1966171168
      %v2143 = vunpack.c.0.s8 %v2142
      %v2144 = vlaneseq
      %v2145 = vshrl.u32 %v2144, 7
      %v2146 = vsub.s32 %v2143, %v2145
      %v2147 = vrot.slane %v2133, %v2146
      %v2148 = vcombine.high %v2140, %v2140
      %v2149 = vunpack.i.l.s16 %v2101
      %v2150 = vunpack.i.h.s16 %v2101
      %v2151 = vunpack.i.l.s16 %v2102
      %v2152 = vunpack.i.l.s16 %v2124
      %v2153 = vunpack.i.h.s16 %v2124
      %v2154 = vunpack.i.l.s16 %v2125
      %v2155 = vunpack.i.l.s16 %v2147
      %v2156 = vunpack.i.h.s16 %v2147
      %v2157 = vunpack.i.l.s16 %v2148
      %s2158 = scalar_lea.vmem %s1, 160
      %v2159 = vld [vmem:[%s2158] sm:$0xf]
      %v2160 = vld [vmem:[%s2158 + $0x4] sm:$0xf]
      %v2161 = vld [vmem:[%s2158 + $0x8] sm:$0xf]
      %v2162 = vld [vmem:[%s2158 + $0xc] sm:$0xf]
      %v2163 = vpack.i.b16 %v2150, %v2149
      %v2164 = vpack.i.b16 %v2152, %v2151
      %v2165 = vpack.i.b16 %v2154, %v2153
      %v2166 = vpack.i.b16 %v2156, %v2155
      %v2168 = vcombine.low %v2163, %v2164
      %v2169 = vcombine.low %v2165, %v2166
      %v2171 = vunpack.c.l.s4 1966171168
      %v2172 = vunpack.c.0.s8 %v2171
      %v2173 = vlaneseq
      %v2174 = vshrl.u32 %v2173, 7
      %v2175 = vsub.s32 %v2172, %v2174
      %v2176 = vrot.slane %v2168, %v2175
      %v2178 = vunpack.c.l.s4 1966171168
      %v2179 = vunpack.c.0.s8 %v2178
      %v2180 = vlaneseq
      %v2181 = vshrl.u32 %v2180, 7
      %v2182 = vsub.s32 %v2179, %v2181
      %v2183 = vrot.slane %v2169, %v2182
      %v2185 = vunpack.c.l.s4 1966171168
      %v2186 = vunpack.c.0.s8 %v2185
      %v2187 = vlaneseq
      %v2188 = vshrl.u32 %v2187, 7
      %v2189 = vsub.s32 %v2186, %v2188
      %v2190 = vrot.slane %v2157, %v2189
      %v2191 = vcombine.low %v2176, %v2183
      %v2193 = vunpack.c.l.s4 1966171168
      %v2194 = vunpack.c.0.s8 %v2193
      %v2195 = vlaneseq
      %v2196 = vshrl.u32 %v2195, 7
      %v2197 = vsub.s32 %v2194, %v2196
      %v2198 = vrot.slane %v2191, %v2197
      %v2200 = vunpack.c.l.s4 1966171168
      %v2201 = vunpack.c.0.s8 %v2200
      %v2202 = vlaneseq
      %v2203 = vshrl.u32 %v2202, 7
      %v2204 = vsub.s32 %v2201, %v2203
      %v2205 = vrot.slane %v2190, %v2204
      %v2206 = vcombine.low %v2198, %v2205
      %v2211 = vunpack.c.l.b16 %v2159
      %v2212 = vunpack.c.l.b16 %v2160
      %v2213 = vunpack.c.l.b16 %v2161
      %v2214 = vunpack.c.l.b16 %v2162
      %v2215 = vpack.c.b16 %v2212, %v2211
      %v2216 = vpack.c.b16 %v2214, %v2213
      %v2220 = vsel %vm407, %v2206, 0
      %2222 = vmatprep.subr.bf16.mxu0 0
      %2223 = vmatpush1.bf16.msra.mxu0 0
      %2224 = vmatprep.subr.bf16.mxu0 0
      %2225 = vmatpush1.bf16.msra.mxu0 0
      %2226 = vmatprep.subr.bf16.mxu0 0
      %2227 = vmatpush1.bf16.msra.mxu0 0
      %2228 = vmatprep.subr.bf16.mxu0 0
      %2229 = vmatpush1.bf16.msra.mxu0 0
      %2230 = vmatprep.subr.bf16.mxu0 0
      %2231 = vmatpush1.bf16.msra.mxu0 0
      %2232 = vmatprep.subr.bf16.mxu0 0
      %2233 = vmatpush1.bf16.msra.mxu0 0
      %2234 = vmatprep.subr.bf16.mxu0 0
      %2235 = vmatpush1.bf16.msra.mxu0 %v2216
      %2236 = vmatprep.subr.bf16.mxu0 0
      %2237 = vmatpush1.bf16.msra.mxu0 %v2215
      %2238 = vmatprep.subr.bf16.mxu0 0
      %2239 = vmatpush2.bf16.msra.mxu0 0
      %2240 = vmatprep.subr.bf16.mxu0 0
      %2241 = vmatpush2.bf16.msra.mxu0 0
      %2242 = vmatprep.subr.bf16.mxu0 0
      %2243 = vmatpush2.bf16.msra.mxu0 0
      %2244 = vmatprep.subr.bf16.mxu0 0
      %2245 = vmatpush2.bf16.msra.mxu0 0
      %2246 = vmatprep.subr.bf16.mxu0 0
      %2247 = vmatpush2.bf16.msra.mxu0 0
      %2248 = vmatprep.subr.bf16.mxu0 0
      %2249 = vmatpush2.bf16.msra.mxu0 0
      %2250 = vmatprep.subr.bf16.mxu0 0
      %2251 = vmatpush2.bf16.msra.mxu0 0
      %2252 = vmatprep.subr.bf16.mxu0 0
      %2253 = vmatpush2.bf16.msra.mxu0 0
      %2254 = vmatprep.mubr.bf16.mxu0 0
      %2255 = vmatmul.mubr.bf16.gmra.mxu0 %v2220
      %v2256 = vpop.f32.mrf.mxu0
      %v2257 = vadd.f32 0.0, %v2256
      %v2258 = vpop.f32.mrf.mxu0
      %v2259 = vpop.f32.mrf.mxu0
      %v2260 = vadd.f32 0.0, %v2259
      %v2261 = vpop.f32.mrf.mxu0
      %2262 = vdwg.mxu0
      %v2263 = vadd.f32 %v2072, %v2257
      %v2264 = vadd.f32 %v2073, %v2260
      %v2265 = vld [vmem:[%s1697] sm:$0x6]
      %v2266 = vld [vmem:[%s1697 + $0x4] sm:$0x6]
      %v2267 = vld [vmem:[%s1697 + $0x8] sm:$0x6]
      %v2272 = vunpack.c.l.s4 1966171168
      %v2273 = vunpack.c.0.s8 %v2272
      %v2274 = vlaneseq
      %v2275 = vshrl.u32 %v2274, 7
      %v2276 = vsub.s32 %v2273, %v2275
      %v2277 = vrot.slane %v2265, %v2276
      %v2278 = vcombine.high %v2277, %v2277
      %v2280 = vunpack.c.l.s4 1966171168
      %v2281 = vunpack.c.0.s8 %v2280
      %v2282 = vlaneseq
      %v2283 = vshrl.u32 %v2282, 7
      %v2284 = vsub.s32 %v2281, %v2283
      %v2285 = vrot.slane %v2277, %v2284
      %v2287 = vunpack.c.l.s4 1966171168
      %v2288 = vunpack.c.0.s8 %v2287
      %v2289 = vlaneseq
      %v2290 = vshrl.u32 %v2289, 7
      %v2291 = vsub.s32 %v2288, %v2290
      %v2292 = vrot.slane %v2278, %v2291
      %v2293 = vcombine.high %v2285, %v2285
      %v2295 = vunpack.c.l.s4 1966171168
      %v2296 = vunpack.c.0.s8 %v2295
      %v2297 = vlaneseq
      %v2298 = vshrl.u32 %v2297, 7
      %v2299 = vsub.s32 %v2296, %v2298
      %v2300 = vrot.slane %v2266, %v2299
      %v2301 = vcombine.high %v2300, %v2300
      %v2303 = vunpack.c.l.s4 1966171168
      %v2304 = vunpack.c.0.s8 %v2303
      %v2305 = vlaneseq
      %v2306 = vshrl.u32 %v2305, 7
      %v2307 = vsub.s32 %v2304, %v2306
      %v2308 = vrot.slane %v2300, %v2307
      %v2310 = vunpack.c.l.s4 1966171168
      %v2311 = vunpack.c.0.s8 %v2310
      %v2312 = vlaneseq
      %v2313 = vshrl.u32 %v2312, 7
      %v2314 = vsub.s32 %v2311, %v2313
      %v2315 = vrot.slane %v2301, %v2314
      %v2316 = vcombine.high %v2308, %v2308
      %v2318 = vunpack.c.l.s4 1966171168
      %v2319 = vunpack.c.0.s8 %v2318
      %v2320 = vlaneseq
      %v2321 = vshrl.u32 %v2320, 7
      %v2322 = vsub.s32 %v2319, %v2321
      %v2323 = vrot.slane %v2267, %v2322
      %v2324 = vcombine.high %v2323, %v2323
      %v2326 = vunpack.c.l.s4 1966171168
      %v2327 = vunpack.c.0.s8 %v2326
      %v2328 = vlaneseq
      %v2329 = vshrl.u32 %v2328, 7
      %v2330 = vsub.s32 %v2327, %v2329
      %v2331 = vrot.slane %v2323, %v2330
      %v2333 = vunpack.c.l.s4 1966171168
      %v2334 = vunpack.c.0.s8 %v2333
      %v2335 = vlaneseq
      %v2336 = vshrl.u32 %v2335, 7
      %v2337 = vsub.s32 %v2334, %v2336
      %v2338 = vrot.slane %v2324, %v2337
      %v2339 = vcombine.high %v2331, %v2331
      %v2340 = vunpack.i.h.s16 %v2292
      %v2341 = vunpack.i.l.s16 %v2293
      %v2342 = vunpack.i.h.s16 %v2293
      %v2343 = vunpack.i.h.s16 %v2315
      %v2344 = vunpack.i.l.s16 %v2316
      %v2345 = vunpack.i.h.s16 %v2316
      %v2346 = vunpack.i.h.s16 %v2338
      %v2347 = vunpack.i.l.s16 %v2339
      %v2348 = vunpack.i.h.s16 %v2339
      %s2349 = scalar_lea.vmem %s1, 176
      %v2350 = vld [vmem:[%s2349] sm:$0xf]
      %v2351 = vld [vmem:[%s2349 + $0x4] sm:$0xf]
      %v2352 = vld [vmem:[%s2349 + $0x8] sm:$0xf]
      %v2353 = vld [vmem:[%s2349 + $0xc] sm:$0xf]
      %v2354 = vpack.i.b16 %v2341, %v2340
      %v2355 = vpack.i.b16 %v2343, %v2342
      %v2356 = vpack.i.b16 %v2345, %v2344
      %v2357 = vpack.i.b16 %v2347, %v2346
      %v2359 = vcombine.low %v2354, %v2355
      %v2360 = vcombine.low %v2356, %v2357
      %v2362 = vunpack.c.l.s4 1966171168
      %v2363 = vunpack.c.0.s8 %v2362
      %v2364 = vlaneseq
      %v2365 = vshrl.u32 %v2364, 7
      %v2366 = vsub.s32 %v2363, %v2365
      %v2367 = vrot.slane %v2359, %v2366
      %v2369 = vunpack.c.l.s4 1966171168
      %v2370 = vunpack.c.0.s8 %v2369
      %v2371 = vlaneseq
      %v2372 = vshrl.u32 %v2371, 7
      %v2373 = vsub.s32 %v2370, %v2372
      %v2374 = vrot.slane %v2360, %v2373
      %v2376 = vunpack.c.l.s4 1966171168
      %v2377 = vunpack.c.0.s8 %v2376
      %v2378 = vlaneseq
      %v2379 = vshrl.u32 %v2378, 7
      %v2380 = vsub.s32 %v2377, %v2379
      %v2381 = vrot.slane %v2348, %v2380
      %v2382 = vcombine.low %v2367, %v2374
      %v2384 = vunpack.c.l.s4 1966171168
      %v2385 = vunpack.c.0.s8 %v2384
      %v2386 = vlaneseq
      %v2387 = vshrl.u32 %v2386, 7
      %v2388 = vsub.s32 %v2385, %v2387
      %v2389 = vrot.slane %v2382, %v2388
      %v2391 = vunpack.c.l.s4 1966171168
      %v2392 = vunpack.c.0.s8 %v2391
      %v2393 = vlaneseq
      %v2394 = vshrl.u32 %v2393, 7
      %v2395 = vsub.s32 %v2392, %v2394
      %v2396 = vrot.slane %v2381, %v2395
      %v2397 = vcombine.low %v2389, %v2396
      %v2402 = vunpack.c.l.b16 %v2350
      %v2403 = vunpack.c.l.b16 %v2351
      %v2404 = vunpack.c.l.b16 %v2352
      %v2405 = vunpack.c.l.b16 %v2353
      %v2406 = vpack.c.b16 %v2403, %v2402
      %v2407 = vpack.c.b16 %v2405, %v2404
      %v2411 = vsel %vm407, %v2397, 0
      %2413 = vmatprep.subr.bf16.mxu0 0
      %2414 = vmatpush1.bf16.msra.mxu0 0
      %2415 = vmatprep.subr.bf16.mxu0 0
      %2416 = vmatpush1.bf16.msra.mxu0 0
      %2417 = vmatprep.subr.bf16.mxu0 0
      %2418 = vmatpush1.bf16.msra.mxu0 0
      %2419 = vmatprep.subr.bf16.mxu0 0
      %2420 = vmatpush1.bf16.msra.mxu0 0
      %2421 = vmatprep.subr.bf16.mxu0 0
      %2422 = vmatpush1.bf16.msra.mxu0 0
      %2423 = vmatprep.subr.bf16.mxu0 0
      %2424 = vmatpush1.bf16.msra.mxu0 0
      %2425 = vmatprep.subr.bf16.mxu0 0
      %2426 = vmatpush1.bf16.msra.mxu0 %v2407
      %2427 = vmatprep.subr.bf16.mxu0 0
      %2428 = vmatpush1.bf16.msra.mxu0 %v2406
      %2429 = vmatprep.subr.bf16.mxu0 0
      %2430 = vmatpush2.bf16.msra.mxu0 0
      %2431 = vmatprep.subr.bf16.mxu0 0
      %2432 = vmatpush2.bf16.msra.mxu0 0
      %2433 = vmatprep.subr.bf16.mxu0 0
      %2434 = vmatpush2.bf16.msra.mxu0 0
      %2435 = vmatprep.subr.bf16.mxu0 0
      %2436 = vmatpush2.bf16.msra.mxu0 0
      %2437 = vmatprep.subr.bf16.mxu0 0
      %2438 = vmatpush2.bf16.msra.mxu0 0
      %2439 = vmatprep.subr.bf16.mxu0 0
      %2440 = vmatpush2.bf16.msra.mxu0 0
      %2441 = vmatprep.subr.bf16.mxu0 0
      %2442 = vmatpush2.bf16.msra.mxu0 0
      %2443 = vmatprep.subr.bf16.mxu0 0
      %2444 = vmatpush2.bf16.msra.mxu0 0
      %2445 = vmatprep.mubr.bf16.mxu0 0
      %2446 = vmatmul.mubr.bf16.gmra.mxu0 %v2411
      %v2447 = vpop.f32.mrf.mxu0
      %v2448 = vadd.f32 0.0, %v2447
      %v2449 = vpop.f32.mrf.mxu0
      %v2450 = vpop.f32.mrf.mxu0
      %v2451 = vadd.f32 0.0, %v2450
      %v2452 = vpop.f32.mrf.mxu0
      %2453 = vdwg.mxu0
      %v2454 = vadd.f32 %v2263, %v2448
      %v2455 = vadd.f32 %v2264, %v2451
      %s2456 = sadd.s32 %s255, 3
      %s2457 = smul.addr %s2456, 4
      %s2458 = scalar_lea.vmem %s231, %s2457
      %v2459 = vld [vmem:[%s2458] sm:$0x3]
      %v2460 = vld [vmem:[%s2458 + $0x4] sm:$0x3]
      %v2461 = vld [vmem:[%s2458 + $0x8] sm:$0x3]
      %v2466 = vunpack.c.l.s4 1966171168
      %v2467 = vunpack.c.0.s8 %v2466
      %v2468 = vlaneseq
      %v2469 = vshrl.u32 %v2468, 7
      %v2470 = vsub.s32 %v2467, %v2469
      %v2471 = vrot.slane %v2459, %v2470
      %v2472 = vcombine.high %v2471, %v2471
      %v2474 = vunpack.c.l.s4 1966171168
      %v2475 = vunpack.c.0.s8 %v2474
      %v2476 = vlaneseq
      %v2477 = vshrl.u32 %v2476, 7
      %v2478 = vsub.s32 %v2475, %v2477
      %v2479 = vrot.slane %v2471, %v2478
      %v2481 = vunpack.c.l.s4 1966171168
      %v2482 = vunpack.c.0.s8 %v2481
      %v2483 = vlaneseq
      %v2484 = vshrl.u32 %v2483, 7
      %v2485 = vsub.s32 %v2482, %v2484
      %v2486 = vrot.slane %v2472, %v2485
      %v2488 = vunpack.c.l.s4 1966171168
      %v2489 = vunpack.c.0.s8 %v2488
      %v2490 = vlaneseq
      %v2491 = vshrl.u32 %v2490, 7
      %v2492 = vsub.s32 %v2489, %v2491
      %v2493 = vrot.slane %v2460, %v2492
      %v2494 = vcombine.high %v2493, %v2493
      %v2496 = vunpack.c.l.s4 1966171168
      %v2497 = vunpack.c.0.s8 %v2496
      %v2498 = vlaneseq
      %v2499 = vshrl.u32 %v2498, 7
      %v2500 = vsub.s32 %v2497, %v2499
      %v2501 = vrot.slane %v2493, %v2500
      %v2503 = vunpack.c.l.s4 1966171168
      %v2504 = vunpack.c.0.s8 %v2503
      %v2505 = vlaneseq
      %v2506 = vshrl.u32 %v2505, 7
      %v2507 = vsub.s32 %v2504, %v2506
      %v2508 = vrot.slane %v2494, %v2507
      %v2510 = vunpack.c.l.s4 1966171168
      %v2511 = vunpack.c.0.s8 %v2510
      %v2512 = vlaneseq
      %v2513 = vshrl.u32 %v2512, 7
      %v2514 = vsub.s32 %v2511, %v2513
      %v2515 = vrot.slane %v2461, %v2514
      %v2516 = vcombine.high %v2515, %v2515
      %v2518 = vunpack.c.l.s4 1966171168
      %v2519 = vunpack.c.0.s8 %v2518
      %v2520 = vlaneseq
      %v2521 = vshrl.u32 %v2520, 7
      %v2522 = vsub.s32 %v2519, %v2521
      %v2523 = vrot.slane %v2515, %v2522
      %v2525 = vunpack.c.l.s4 1966171168
      %v2526 = vunpack.c.0.s8 %v2525
      %v2527 = vlaneseq
      %v2528 = vshrl.u32 %v2527, 7
      %v2529 = vsub.s32 %v2526, %v2528
      %v2530 = vrot.slane %v2516, %v2529
      %v2531 = vunpack.i.l.s16 %v2479
      %v2532 = vunpack.i.h.s16 %v2479
      %v2533 = vunpack.i.l.s16 %v2486
      %v2534 = vunpack.i.l.s16 %v2501
      %v2535 = vunpack.i.h.s16 %v2501
      %v2536 = vunpack.i.l.s16 %v2508
      %v2537 = vunpack.i.l.s16 %v2523
      %v2538 = vunpack.i.h.s16 %v2523
      %v2539 = vunpack.i.l.s16 %v2530
      %s2540 = scalar_lea.vmem %s1, 192
      %v2541 = vld [vmem:[%s2540] sm:$0xf]
      %v2542 = vld [vmem:[%s2540 + $0x4] sm:$0xf]
      %v2543 = vld [vmem:[%s2540 + $0x8] sm:$0xf]
      %v2544 = vld [vmem:[%s2540 + $0xc] sm:$0xf]
      %v2545 = vpack.i.b16 %v2532, %v2531
      %v2546 = vpack.i.b16 %v2534, %v2533
      %v2547 = vpack.i.b16 %v2536, %v2535
      %v2548 = vpack.i.b16 %v2538, %v2537
      %v2550 = vcombine.low %v2545, %v2546
      %v2551 = vcombine.low %v2547, %v2548
      %v2553 = vunpack.c.l.s4 1966171168
      %v2554 = vunpack.c.0.s8 %v2553
      %v2555 = vlaneseq
      %v2556 = vshrl.u32 %v2555, 7
      %v2557 = vsub.s32 %v2554, %v2556
      %v2558 = vrot.slane %v2550, %v2557
      %v2560 = vunpack.c.l.s4 1966171168
      %v2561 = vunpack.c.0.s8 %v2560
      %v2562 = vlaneseq
      %v2563 = vshrl.u32 %v2562, 7
      %v2564 = vsub.s32 %v2561, %v2563
      %v2565 = vrot.slane %v2551, %v2564
      %v2567 = vunpack.c.l.s4 1966171168
      %v2568 = vunpack.c.0.s8 %v2567
      %v2569 = vlaneseq
      %v2570 = vshrl.u32 %v2569, 7
      %v2571 = vsub.s32 %v2568, %v2570
      %v2572 = vrot.slane %v2539, %v2571
      %v2573 = vcombine.low %v2558, %v2565
      %v2575 = vunpack.c.l.s4 1966171168
      %v2576 = vunpack.c.0.s8 %v2575
      %v2577 = vlaneseq
      %v2578 = vshrl.u32 %v2577, 7
      %v2579 = vsub.s32 %v2576, %v2578
      %v2580 = vrot.slane %v2573, %v2579
      %v2582 = vunpack.c.l.s4 1966171168
      %v2583 = vunpack.c.0.s8 %v2582
      %v2584 = vlaneseq
      %v2585 = vshrl.u32 %v2584, 7
      %v2586 = vsub.s32 %v2583, %v2585
      %v2587 = vrot.slane %v2572, %v2586
      %v2588 = vcombine.low %v2580, %v2587
      %v2593 = vunpack.c.l.b16 %v2541
      %v2594 = vunpack.c.l.b16 %v2542
      %v2595 = vunpack.c.l.b16 %v2543
      %v2596 = vunpack.c.l.b16 %v2544
      %v2597 = vpack.c.b16 %v2594, %v2593
      %v2598 = vpack.c.b16 %v2596, %v2595
      %v2602 = vsel %vm407, %v2588, 0
      %2604 = vmatprep.subr.bf16.mxu0 0
      %2605 = vmatpush1.bf16.msra.mxu0 0
      %2606 = vmatprep.subr.bf16.mxu0 0
      %2607 = vmatpush1.bf16.msra.mxu0 0
      %2608 = vmatprep.subr.bf16.mxu0 0
      %2609 = vmatpush1.bf16.msra.mxu0 0
      %2610 = vmatprep.subr.bf16.mxu0 0
      %2611 = vmatpush1.bf16.msra.mxu0 0
      %2612 = vmatprep.subr.bf16.mxu0 0
      %2613 = vmatpush1.bf16.msra.mxu0 0
      %2614 = vmatprep.subr.bf16.mxu0 0
      %2615 = vmatpush1.bf16.msra.mxu0 0
      %2616 = vmatprep.subr.bf16.mxu0 0
      %2617 = vmatpush1.bf16.msra.mxu0 %v2598
      %2618 = vmatprep.subr.bf16.mxu0 0
      %2619 = vmatpush1.bf16.msra.mxu0 %v2597
      %2620 = vmatprep.subr.bf16.mxu0 0
      %2621 = vmatpush2.bf16.msra.mxu0 0
      %2622 = vmatprep.subr.bf16.mxu0 0
      %2623 = vmatpush2.bf16.msra.mxu0 0
      %2624 = vmatprep.subr.bf16.mxu0 0
      %2625 = vmatpush2.bf16.msra.mxu0 0
      %2626 = vmatprep.subr.bf16.mxu0 0
      %2627 = vmatpush2.bf16.msra.mxu0 0
      %2628 = vmatprep.subr.bf16.mxu0 0
      %2629 = vmatpush2.bf16.msra.mxu0 0
      %2630 = vmatprep.subr.bf16.mxu0 0
      %2631 = vmatpush2.bf16.msra.mxu0 0
      %2632 = vmatprep.subr.bf16.mxu0 0
      %2633 = vmatpush2.bf16.msra.mxu0 0
      %2634 = vmatprep.subr.bf16.mxu0 0
      %2635 = vmatpush2.bf16.msra.mxu0 0
      %2636 = vmatprep.mubr.bf16.mxu0 0
      %2637 = vmatmul.mubr.bf16.gmra.mxu0 %v2602
      %v2638 = vpop.f32.mrf.mxu0
      %v2639 = vadd.f32 0.0, %v2638
      %v2640 = vpop.f32.mrf.mxu0
      %v2641 = vpop.f32.mrf.mxu0
      %v2642 = vadd.f32 0.0, %v2641
      %v2643 = vpop.f32.mrf.mxu0
      %2644 = vdwg.mxu0
      %v2645 = vadd.f32 %v2454, %v2639
      %v2646 = vadd.f32 %v2455, %v2642
      %v2647 = vld [vmem:[%s2458] sm:$0x3]
      %v2648 = vld [vmem:[%s2458 + $0x4] sm:$0x3]
      %v2649 = vld [vmem:[%s2458 + $0x8] sm:$0x3]
      %v2654 = vunpack.c.l.s4 1966171168
      %v2655 = vunpack.c.0.s8 %v2654
      %v2656 = vlaneseq
      %v2657 = vshrl.u32 %v2656, 7
      %v2658 = vsub.s32 %v2655, %v2657
      %v2659 = vrot.slane %v2647, %v2658
      %v2660 = vcombine.high %v2659, %v2659
      %v2662 = vunpack.c.l.s4 1966171168
      %v2663 = vunpack.c.0.s8 %v2662
      %v2664 = vlaneseq
      %v2665 = vshrl.u32 %v2664, 7
      %v2666 = vsub.s32 %v2663, %v2665
      %v2667 = vrot.slane %v2659, %v2666
      %v2669 = vunpack.c.l.s4 1966171168
      %v2670 = vunpack.c.0.s8 %v2669
      %v2671 = vlaneseq
      %v2672 = vshrl.u32 %v2671, 7
      %v2673 = vsub.s32 %v2670, %v2672
      %v2674 = vrot.slane %v2660, %v2673
      %v2676 = vunpack.c.l.s4 1966171168
      %v2677 = vunpack.c.0.s8 %v2676
      %v2678 = vlaneseq
      %v2679 = vshrl.u32 %v2678, 7
      %v2680 = vsub.s32 %v2677, %v2679
      %v2681 = vrot.slane %v2648, %v2680
      %v2682 = vcombine.high %v2681, %v2681
      %v2684 = vunpack.c.l.s4 1966171168
      %v2685 = vunpack.c.0.s8 %v2684
      %v2686 = vlaneseq
      %v2687 = vshrl.u32 %v2686, 7
      %v2688 = vsub.s32 %v2685, %v2687
      %v2689 = vrot.slane %v2681, %v2688
      %v2691 = vunpack.c.l.s4 1966171168
      %v2692 = vunpack.c.0.s8 %v2691
      %v2693 = vlaneseq
      %v2694 = vshrl.u32 %v2693, 7
      %v2695 = vsub.s32 %v2692, %v2694
      %v2696 = vrot.slane %v2682, %v2695
      %v2698 = vunpack.c.l.s4 1966171168
      %v2699 = vunpack.c.0.s8 %v2698
      %v2700 = vlaneseq
      %v2701 = vshrl.u32 %v2700, 7
      %v2702 = vsub.s32 %v2699, %v2701
      %v2703 = vrot.slane %v2649, %v2702
      %v2704 = vcombine.high %v2703, %v2703
      %v2706 = vunpack.c.l.s4 1966171168
      %v2707 = vunpack.c.0.s8 %v2706
      %v2708 = vlaneseq
      %v2709 = vshrl.u32 %v2708, 7
      %v2710 = vsub.s32 %v2707, %v2709
      %v2711 = vrot.slane %v2703, %v2710
      %v2713 = vunpack.c.l.s4 1966171168
      %v2714 = vunpack.c.0.s8 %v2713
      %v2715 = vlaneseq
      %v2716 = vshrl.u32 %v2715, 7
      %v2717 = vsub.s32 %v2714, %v2716
      %v2718 = vrot.slane %v2704, %v2717
      %v2719 = vunpack.i.h.s16 %v2667
      %v2720 = vunpack.i.l.s16 %v2674
      %v2721 = vunpack.i.h.s16 %v2674
      %v2722 = vunpack.i.h.s16 %v2689
      %v2723 = vunpack.i.l.s16 %v2696
      %v2724 = vunpack.i.h.s16 %v2696
      %v2725 = vunpack.i.h.s16 %v2711
      %v2726 = vunpack.i.l.s16 %v2718
      %v2727 = vunpack.i.h.s16 %v2718
      %s2728 = scalar_lea.vmem %s1, 208
      %v2729 = vld [vmem:[%s2728] sm:$0xf]
      %v2730 = vld [vmem:[%s2728 + $0x4] sm:$0xf]
      %v2731 = vld [vmem:[%s2728 + $0x8] sm:$0xf]
      %v2732 = vld [vmem:[%s2728 + $0xc] sm:$0xf]
      %v2733 = vpack.i.b16 %v2720, %v2719
      %v2734 = vpack.i.b16 %v2722, %v2721
      %v2735 = vpack.i.b16 %v2724, %v2723
      %v2736 = vpack.i.b16 %v2726, %v2725
      %v2738 = vcombine.low %v2733, %v2734
      %v2739 = vcombine.low %v2735, %v2736
      %v2741 = vunpack.c.l.s4 1966171168
      %v2742 = vunpack.c.0.s8 %v2741
      %v2743 = vlaneseq
      %v2744 = vshrl.u32 %v2743, 7
      %v2745 = vsub.s32 %v2742, %v2744
      %v2746 = vrot.slane %v2738, %v2745
      %v2748 = vunpack.c.l.s4 1966171168
      %v2749 = vunpack.c.0.s8 %v2748
      %v2750 = vlaneseq
      %v2751 = vshrl.u32 %v2750, 7
      %v2752 = vsub.s32 %v2749, %v2751
      %v2753 = vrot.slane %v2739, %v2752
      %v2755 = vunpack.c.l.s4 1966171168
      %v2756 = vunpack.c.0.s8 %v2755
      %v2757 = vlaneseq
      %v2758 = vshrl.u32 %v2757, 7
      %v2759 = vsub.s32 %v2756, %v2758
      %v2760 = vrot.slane %v2727, %v2759
      %v2761 = vcombine.low %v2746, %v2753
      %v2763 = vunpack.c.l.s4 1966171168
      %v2764 = vunpack.c.0.s8 %v2763
      %v2765 = vlaneseq
      %v2766 = vshrl.u32 %v2765, 7
      %v2767 = vsub.s32 %v2764, %v2766
      %v2768 = vrot.slane %v2761, %v2767
      %v2770 = vunpack.c.l.s4 1966171168
      %v2771 = vunpack.c.0.s8 %v2770
      %v2772 = vlaneseq
      %v2773 = vshrl.u32 %v2772, 7
      %v2774 = vsub.s32 %v2771, %v2773
      %v2775 = vrot.slane %v2760, %v2774
      %v2776 = vcombine.low %v2768, %v2775
      %v2781 = vunpack.c.l.b16 %v2729
      %v2782 = vunpack.c.l.b16 %v2730
      %v2783 = vunpack.c.l.b16 %v2731
      %v2784 = vunpack.c.l.b16 %v2732
      %v2785 = vpack.c.b16 %v2782, %v2781
      %v2786 = vpack.c.b16 %v2784, %v2783
      %v2790 = vsel %vm407, %v2776, 0
      %2792 = vmatprep.subr.bf16.mxu0 0
      %2793 = vmatpush1.bf16.msra.mxu0 0
      %2794 = vmatprep.subr.bf16.mxu0 0
      %2795 = vmatpush1.bf16.msra.mxu0 0
      %2796 = vmatprep.subr.bf16.mxu0 0
      %2797 = vmatpush1.bf16.msra.mxu0 0
      %2798 = vmatprep.subr.bf16.mxu0 0
      %2799 = vmatpush1.bf16.msra.mxu0 0
      %2800 = vmatprep.subr.bf16.mxu0 0
      %2801 = vmatpush1.bf16.msra.mxu0 0
      %2802 = vmatprep.subr.bf16.mxu0 0
      %2803 = vmatpush1.bf16.msra.mxu0 0
      %2804 = vmatprep.subr.bf16.mxu0 0
      %2805 = vmatpush1.bf16.msra.mxu0 %v2786
      %2806 = vmatprep.subr.bf16.mxu0 0
      %2807 = vmatpush1.bf16.msra.mxu0 %v2785
      %2808 = vmatprep.subr.bf16.mxu0 0
      %2809 = vmatpush2.bf16.msra.mxu0 0
      %2810 = vmatprep.subr.bf16.mxu0 0
      %2811 = vmatpush2.bf16.msra.mxu0 0
      %2812 = vmatprep.subr.bf16.mxu0 0
      %2813 = vmatpush2.bf16.msra.mxu0 0
      %2814 = vmatprep.subr.bf16.mxu0 0
      %2815 = vmatpush2.bf16.msra.mxu0 0
      %2816 = vmatprep.subr.bf16.mxu0 0
      %2817 = vmatpush2.bf16.msra.mxu0 0
      %2818 = vmatprep.subr.bf16.mxu0 0
      %2819 = vmatpush2.bf16.msra.mxu0 0
      %2820 = vmatprep.subr.bf16.mxu0 0
      %2821 = vmatpush2.bf16.msra.mxu0 0
      %2822 = vmatprep.subr.bf16.mxu0 0
      %2823 = vmatpush2.bf16.msra.mxu0 0
      %2824 = vmatprep.mubr.bf16.mxu0 0
      %2825 = vmatmul.mubr.bf16.gmra.mxu0 %v2790
      %v2826 = vpop.f32.mrf.mxu0
      %v2827 = vadd.f32 0.0, %v2826
      %v2828 = vpop.f32.mrf.mxu0
      %v2829 = vpop.f32.mrf.mxu0
      %v2830 = vadd.f32 0.0, %v2829
      %v2831 = vpop.f32.mrf.mxu0
      %2832 = vdwg.mxu0
      %v2833 = vadd.f32 %v2645, %v2827
      %v2834 = vadd.f32 %v2646, %v2830
      %v2835 = vld [vmem:[%s2458] sm:$0x6]
      %v2836 = vld [vmem:[%s2458 + $0x4] sm:$0x6]
      %v2837 = vld [vmem:[%s2458 + $0x8] sm:$0x6]
      %v2842 = vunpack.c.l.s4 1966171168
      %v2843 = vunpack.c.0.s8 %v2842
      %v2844 = vlaneseq
      %v2845 = vshrl.u32 %v2844, 7
      %v2846 = vsub.s32 %v2843, %v2845
      %v2847 = vrot.slane %v2835, %v2846
      %v2848 = vcombine.high %v2847, %v2847
      %v2850 = vunpack.c.l.s4 1966171168
      %v2851 = vunpack.c.0.s8 %v2850
      %v2852 = vlaneseq
      %v2853 = vshrl.u32 %v2852, 7
      %v2854 = vsub.s32 %v2851, %v2853
      %v2855 = vrot.slane %v2847, %v2854
      %v2857 = vunpack.c.l.s4 1966171168
      %v2858 = vunpack.c.0.s8 %v2857
      %v2859 = vlaneseq
      %v2860 = vshrl.u32 %v2859, 7
      %v2861 = vsub.s32 %v2858, %v2860
      %v2862 = vrot.slane %v2848, %v2861
      %v2863 = vcombine.high %v2855, %v2855
      %v2865 = vunpack.c.l.s4 1966171168
      %v2866 = vunpack.c.0.s8 %v2865
      %v2867 = vlaneseq
      %v2868 = vshrl.u32 %v2867, 7
      %v2869 = vsub.s32 %v2866, %v2868
      %v2870 = vrot.slane %v2836, %v2869
      %v2871 = vcombine.high %v2870, %v2870
      %v2873 = vunpack.c.l.s4 1966171168
      %v2874 = vunpack.c.0.s8 %v2873
      %v2875 = vlaneseq
      %v2876 = vshrl.u32 %v2875, 7
      %v2877 = vsub.s32 %v2874, %v2876
      %v2878 = vrot.slane %v2870, %v2877
      %v2880 = vunpack.c.l.s4 1966171168
      %v2881 = vunpack.c.0.s8 %v2880
      %v2882 = vlaneseq
      %v2883 = vshrl.u32 %v2882, 7
      %v2884 = vsub.s32 %v2881, %v2883
      %v2885 = vrot.slane %v2871, %v2884
      %v2886 = vcombine.high %v2878, %v2878
      %v2888 = vunpack.c.l.s4 1966171168
      %v2889 = vunpack.c.0.s8 %v2888
      %v2890 = vlaneseq
      %v2891 = vshrl.u32 %v2890, 7
      %v2892 = vsub.s32 %v2889, %v2891
      %v2893 = vrot.slane %v2837, %v2892
      %v2894 = vcombine.high %v2893, %v2893
      %v2896 = vunpack.c.l.s4 1966171168
      %v2897 = vunpack.c.0.s8 %v2896
      %v2898 = vlaneseq
      %v2899 = vshrl.u32 %v2898, 7
      %v2900 = vsub.s32 %v2897, %v2899
      %v2901 = vrot.slane %v2893, %v2900
      %v2903 = vunpack.c.l.s4 1966171168
      %v2904 = vunpack.c.0.s8 %v2903
      %v2905 = vlaneseq
      %v2906 = vshrl.u32 %v2905, 7
      %v2907 = vsub.s32 %v2904, %v2906
      %v2908 = vrot.slane %v2894, %v2907
      %v2909 = vcombine.high %v2901, %v2901
      %v2910 = vunpack.i.l.s16 %v2862
      %v2911 = vunpack.i.h.s16 %v2862
      %v2912 = vunpack.i.l.s16 %v2863
      %v2913 = vunpack.i.l.s16 %v2885
      %v2914 = vunpack.i.h.s16 %v2885
      %v2915 = vunpack.i.l.s16 %v2886
      %v2916 = vunpack.i.l.s16 %v2908
      %v2917 = vunpack.i.h.s16 %v2908
      %v2918 = vunpack.i.l.s16 %v2909
      %s2919 = scalar_lea.vmem %s1, 224
      %v2920 = vld [vmem:[%s2919] sm:$0xf]
      %v2921 = vld [vmem:[%s2919 + $0x4] sm:$0xf]
      %v2922 = vld [vmem:[%s2919 + $0x8] sm:$0xf]
      %v2923 = vld [vmem:[%s2919 + $0xc] sm:$0xf]
      %v2924 = vpack.i.b16 %v2911, %v2910
      %v2925 = vpack.i.b16 %v2913, %v2912
      %v2926 = vpack.i.b16 %v2915, %v2914
      %v2927 = vpack.i.b16 %v2917, %v2916
      %v2929 = vcombine.low %v2924, %v2925
      %v2930 = vcombine.low %v2926, %v2927
      %v2932 = vunpack.c.l.s4 1966171168
      %v2933 = vunpack.c.0.s8 %v2932
      %v2934 = vlaneseq
      %v2935 = vshrl.u32 %v2934, 7
      %v2936 = vsub.s32 %v2933, %v2935
      %v2937 = vrot.slane %v2929, %v2936
      %v2939 = vunpack.c.l.s4 1966171168
      %v2940 = vunpack.c.0.s8 %v2939
      %v2941 = vlaneseq
      %v2942 = vshrl.u32 %v2941, 7
      %v2943 = vsub.s32 %v2940, %v2942
      %v2944 = vrot.slane %v2930, %v2943
      %v2946 = vunpack.c.l.s4 1966171168
      %v2947 = vunpack.c.0.s8 %v2946
      %v2948 = vlaneseq
      %v2949 = vshrl.u32 %v2948, 7
      %v2950 = vsub.s32 %v2947, %v2949
      %v2951 = vrot.slane %v2918, %v2950
      %v2952 = vcombine.low %v2937, %v2944
      %v2954 = vunpack.c.l.s4 1966171168
      %v2955 = vunpack.c.0.s8 %v2954
      %v2956 = vlaneseq
      %v2957 = vshrl.u32 %v2956, 7
      %v2958 = vsub.s32 %v2955, %v2957
      %v2959 = vrot.slane %v2952, %v2958
      %v2961 = vunpack.c.l.s4 1966171168
      %v2962 = vunpack.c.0.s8 %v2961
      %v2963 = vlaneseq
      %v2964 = vshrl.u32 %v2963, 7
      %v2965 = vsub.s32 %v2962, %v2964
      %v2966 = vrot.slane %v2951, %v2965
      %v2967 = vcombine.low %v2959, %v2966
      %v2972 = vunpack.c.l.b16 %v2920
      %v2973 = vunpack.c.l.b16 %v2921
      %v2974 = vunpack.c.l.b16 %v2922
      %v2975 = vunpack.c.l.b16 %v2923
      %v2976 = vpack.c.b16 %v2973, %v2972
      %v2977 = vpack.c.b16 %v2975, %v2974
      %v2981 = vsel %vm407, %v2967, 0
      %2983 = vmatprep.subr.bf16.mxu0 0
      %2984 = vmatpush1.bf16.msra.mxu0 0
      %2985 = vmatprep.subr.bf16.mxu0 0
      %2986 = vmatpush1.bf16.msra.mxu0 0
      %2987 = vmatprep.subr.bf16.mxu0 0
      %2988 = vmatpush1.bf16.msra.mxu0 0
      %2989 = vmatprep.subr.bf16.mxu0 0
      %2990 = vmatpush1.bf16.msra.mxu0 0
      %2991 = vmatprep.subr.bf16.mxu0 0
      %2992 = vmatpush1.bf16.msra.mxu0 0
      %2993 = vmatprep.subr.bf16.mxu0 0
      %2994 = vmatpush1.bf16.msra.mxu0 0
      %2995 = vmatprep.subr.bf16.mxu0 0
      %2996 = vmatpush1.bf16.msra.mxu0 %v2977
      %2997 = vmatprep.subr.bf16.mxu0 0
      %2998 = vmatpush1.bf16.msra.mxu0 %v2976
      %2999 = vmatprep.subr.bf16.mxu0 0
      %3000 = vmatpush2.bf16.msra.mxu0 0
      %3001 = vmatprep.subr.bf16.mxu0 0
      %3002 = vmatpush2.bf16.msra.mxu0 0
      %3003 = vmatprep.subr.bf16.mxu0 0
      %3004 = vmatpush2.bf16.msra.mxu0 0
      %3005 = vmatprep.subr.bf16.mxu0 0
      %3006 = vmatpush2.bf16.msra.mxu0 0
      %3007 = vmatprep.subr.bf16.mxu0 0
      %3008 = vmatpush2.bf16.msra.mxu0 0
      %3009 = vmatprep.subr.bf16.mxu0 0
      %3010 = vmatpush2.bf16.msra.mxu0 0
      %3011 = vmatprep.subr.bf16.mxu0 0
      %3012 = vmatpush2.bf16.msra.mxu0 0
      %3013 = vmatprep.subr.bf16.mxu0 0
      %3014 = vmatpush2.bf16.msra.mxu0 0
      %3015 = vmatprep.mubr.bf16.mxu0 0
      %3016 = vmatmul.mubr.bf16.gmra.mxu0 %v2981
      %v3017 = vpop.f32.mrf.mxu0
      %v3018 = vadd.f32 0.0, %v3017
      %v3019 = vpop.f32.mrf.mxu0
      %v3020 = vpop.f32.mrf.mxu0
      %v3021 = vadd.f32 0.0, %v3020
      %v3022 = vpop.f32.mrf.mxu0
      %3023 = vdwg.mxu0
      %v3024 = vadd.f32 %v2833, %v3018
      %v3025 = vadd.f32 %v2834, %v3021
      %v3026 = vld [vmem:[%s2458] sm:$0x6]
      %v3027 = vld [vmem:[%s2458 + $0x4] sm:$0x6]
      %v3028 = vld [vmem:[%s2458 + $0x8] sm:$0x6]
      %v3033 = vunpack.c.l.s4 1966171168
      %v3034 = vunpack.c.0.s8 %v3033
      %v3035 = vlaneseq
      %v3036 = vshrl.u32 %v3035, 7
      %v3037 = vsub.s32 %v3034, %v3036
      %v3038 = vrot.slane %v3026, %v3037
      %v3039 = vcombine.high %v3038, %v3038
      %v3041 = vunpack.c.l.s4 1966171168
      %v3042 = vunpack.c.0.s8 %v3041
      %v3043 = vlaneseq
      %v3044 = vshrl.u32 %v3043, 7
      %v3045 = vsub.s32 %v3042, %v3044
      %v3046 = vrot.slane %v3038, %v3045
      %v3048 = vunpack.c.l.s4 1966171168
      %v3049 = vunpack.c.0.s8 %v3048
      %v3050 = vlaneseq
      %v3051 = vshrl.u32 %v3050, 7
      %v3052 = vsub.s32 %v3049, %v3051
      %v3053 = vrot.slane %v3039, %v3052
      %v3054 = vcombine.high %v3046, %v3046
      %v3056 = vunpack.c.l.s4 1966171168
      %v3057 = vunpack.c.0.s8 %v3056
      %v3058 = vlaneseq
      %v3059 = vshrl.u32 %v3058, 7
      %v3060 = vsub.s32 %v3057, %v3059
      %v3061 = vrot.slane %v3027, %v3060
      %v3062 = vcombine.high %v3061, %v3061
      %v3064 = vunpack.c.l.s4 1966171168
      %v3065 = vunpack.c.0.s8 %v3064
      %v3066 = vlaneseq
      %v3067 = vshrl.u32 %v3066, 7
      %v3068 = vsub.s32 %v3065, %v3067
      %v3069 = vrot.slane %v3061, %v3068
      %v3071 = vunpack.c.l.s4 1966171168
      %v3072 = vunpack.c.0.s8 %v3071
      %v3073 = vlaneseq
      %v3074 = vshrl.u32 %v3073, 7
      %v3075 = vsub.s32 %v3072, %v3074
      %v3076 = vrot.slane %v3062, %v3075
      %v3077 = vcombine.high %v3069, %v3069
      %v3079 = vunpack.c.l.s4 1966171168
      %v3080 = vunpack.c.0.s8 %v3079
      %v3081 = vlaneseq
      %v3082 = vshrl.u32 %v3081, 7
      %v3083 = vsub.s32 %v3080, %v3082
      %v3084 = vrot.slane %v3028, %v3083
      %v3085 = vcombine.high %v3084, %v3084
      %v3087 = vunpack.c.l.s4 1966171168
      %v3088 = vunpack.c.0.s8 %v3087
      %v3089 = vlaneseq
      %v3090 = vshrl.u32 %v3089, 7
      %v3091 = vsub.s32 %v3088, %v3090
      %v3092 = vrot.slane %v3084, %v3091
      %v3094 = vunpack.c.l.s4 1966171168
      %v3095 = vunpack.c.0.s8 %v3094
      %v3096 = vlaneseq
      %v3097 = vshrl.u32 %v3096, 7
      %v3098 = vsub.s32 %v3095, %v3097
      %v3099 = vrot.slane %v3085, %v3098
      %v3100 = vcombine.high %v3092, %v3092
      %v3101 = vunpack.i.h.s16 %v3053
      %v3102 = vunpack.i.l.s16 %v3054
      %v3103 = vunpack.i.h.s16 %v3054
      %v3104 = vunpack.i.h.s16 %v3076
      %v3105 = vunpack.i.l.s16 %v3077
      %v3106 = vunpack.i.h.s16 %v3077
      %v3107 = vunpack.i.h.s16 %v3099
      %v3108 = vunpack.i.l.s16 %v3100
      %v3109 = vunpack.i.h.s16 %v3100
      %s3110 = scalar_lea.vmem %s1, 240
      %v3111 = vld [vmem:[%s3110] sm:$0xf]
      %v3112 = vld [vmem:[%s3110 + $0x4] sm:$0xf]
      %v3113 = vld [vmem:[%s3110 + $0x8] sm:$0xf]
      %v3114 = vld [vmem:[%s3110 + $0xc] sm:$0xf]
      %v3115 = vpack.i.b16 %v3102, %v3101
      %v3116 = vpack.i.b16 %v3104, %v3103
      %v3117 = vpack.i.b16 %v3106, %v3105
      %v3118 = vpack.i.b16 %v3108, %v3107
      %v3120 = vcombine.low %v3115, %v3116
      %v3121 = vcombine.low %v3117, %v3118
      %v3123 = vunpack.c.l.s4 1966171168
      %v3124 = vunpack.c.0.s8 %v3123
      %v3125 = vlaneseq
      %v3126 = vshrl.u32 %v3125, 7
      %v3127 = vsub.s32 %v3124, %v3126
      %v3128 = vrot.slane %v3120, %v3127
      %v3130 = vunpack.c.l.s4 1966171168
      %v3131 = vunpack.c.0.s8 %v3130
      %v3132 = vlaneseq
      %v3133 = vshrl.u32 %v3132, 7
      %v3134 = vsub.s32 %v3131, %v3133
      %v3135 = vrot.slane %v3121, %v3134
      %v3137 = vunpack.c.l.s4 1966171168
      %v3138 = vunpack.c.0.s8 %v3137
      %v3139 = vlaneseq
      %v3140 = vshrl.u32 %v3139, 7
      %v3141 = vsub.s32 %v3138, %v3140
      %v3142 = vrot.slane %v3109, %v3141
      %v3143 = vcombine.low %v3128, %v3135
      %v3145 = vunpack.c.l.s4 1966171168
      %v3146 = vunpack.c.0.s8 %v3145
      %v3147 = vlaneseq
      %v3148 = vshrl.u32 %v3147, 7
      %v3149 = vsub.s32 %v3146, %v3148
      %v3150 = vrot.slane %v3143, %v3149
      %v3152 = vunpack.c.l.s4 1966171168
      %v3153 = vunpack.c.0.s8 %v3152
      %v3154 = vlaneseq
      %v3155 = vshrl.u32 %v3154, 7
      %v3156 = vsub.s32 %v3153, %v3155
      %v3157 = vrot.slane %v3142, %v3156
      %v3158 = vcombine.low %v3150, %v3157
      %v3163 = vunpack.c.l.b16 %v3111
      %v3164 = vunpack.c.l.b16 %v3112
      %v3165 = vunpack.c.l.b16 %v3113
      %v3166 = vunpack.c.l.b16 %v3114
      %v3167 = vpack.c.b16 %v3164, %v3163
      %v3168 = vpack.c.b16 %v3166, %v3165
      %v3172 = vsel %vm407, %v3158, 0
      %3174 = vmatprep.subr.bf16.mxu0 0
      %3175 = vmatpush1.bf16.msra.mxu0 0
      %3176 = vmatprep.subr.bf16.mxu0 0
      %3177 = vmatpush1.bf16.msra.mxu0 0
      %3178 = vmatprep.subr.bf16.mxu0 0
      %3179 = vmatpush1.bf16.msra.mxu0 0
      %3180 = vmatprep.subr.bf16.mxu0 0
      %3181 = vmatpush1.bf16.msra.mxu0 0
      %3182 = vmatprep.subr.bf16.mxu0 0
      %3183 = vmatpush1.bf16.msra.mxu0 0
      %3184 = vmatprep.subr.bf16.mxu0 0
      %3185 = vmatpush1.bf16.msra.mxu0 0
      %3186 = vmatprep.subr.bf16.mxu0 0
      %3187 = vmatpush1.bf16.msra.mxu0 %v3168
      %3188 = vmatprep.subr.bf16.mxu0 0
      %3189 = vmatpush1.bf16.msra.mxu0 %v3167
      %3190 = vmatprep.subr.bf16.mxu0 0
      %3191 = vmatpush2.bf16.msra.mxu0 0
      %3192 = vmatprep.subr.bf16.mxu0 0
      %3193 = vmatpush2.bf16.msra.mxu0 0
      %3194 = vmatprep.subr.bf16.mxu0 0
      %3195 = vmatpush2.bf16.msra.mxu0 0
      %3196 = vmatprep.subr.bf16.mxu0 0
      %3197 = vmatpush2.bf16.msra.mxu0 0
      %3198 = vmatprep.subr.bf16.mxu0 0
      %3199 = vmatpush2.bf16.msra.mxu0 0
      %3200 = vmatprep.subr.bf16.mxu0 0
      %3201 = vmatpush2.bf16.msra.mxu0 0
      %3202 = vmatprep.subr.bf16.mxu0 0
      %3203 = vmatpush2.bf16.msra.mxu0 0
      %3204 = vmatprep.subr.bf16.mxu0 0
      %3205 = vmatpush2.bf16.msra.mxu0 0
      %3206 = vmatprep.mubr.bf16.mxu0 0
      %3207 = vmatmul.mubr.bf16.gmra.mxu0 %v3172
      %v3208 = vpop.f32.mrf.mxu0
      %v3209 = vadd.f32 0.0, %v3208
      %v3210 = vpop.f32.mrf.mxu0
      %v3211 = vpop.f32.mrf.mxu0
      %v3212 = vadd.f32 0.0, %v3211
      %v3213 = vpop.f32.mrf.mxu0
      %3214 = vdwg.mxu0
      %v3215 = vadd.f32 %v3024, %v3209
      %v3216 = vadd.f32 %v3025, %v3212
      %v3219 = vcombine.high %v3215, %v3215
      %v3221 = vunpack.c.l.s4 1966171168
      %v3222 = vunpack.c.0.s8 %v3221
      %v3223 = vlaneseq
      %v3224 = vshrl.u32 %v3223, 7
      %v3225 = vsub.s32 %v3222, %v3224
      %v3226 = vrot.slane %v3215, %v3225
      %v3228 = vunpack.c.l.s4 1966171168
      %v3229 = vunpack.c.0.s8 %v3228
      %v3230 = vlaneseq
      %v3231 = vshrl.u32 %v3230, 7
      %v3232 = vsub.s32 %v3229, %v3231
      %v3233 = vrot.slane %v3219, %v3232
      %v3234 = vcombine.high %v3226, %v3226
      %v3235 = vcombine.high %v3233, %v3233
      %v3237 = vunpack.c.l.s4 1966171168
      %v3238 = vunpack.c.0.s8 %v3237
      %v3239 = vlaneseq
      %v3240 = vshrl.u32 %v3239, 7
      %v3241 = vsub.s32 %v3238, %v3240
      %v3242 = vrot.slane %v3226, %v3241
      %v3244 = vunpack.c.l.s4 1966171168
      %v3245 = vunpack.c.0.s8 %v3244
      %v3246 = vlaneseq
      %v3247 = vshrl.u32 %v3246, 7
      %v3248 = vsub.s32 %v3245, %v3247
      %v3249 = vrot.slane %v3233, %v3248
      %v3251 = vunpack.c.l.s4 1966171168
      %v3252 = vunpack.c.0.s8 %v3251
      %v3253 = vlaneseq
      %v3254 = vshrl.u32 %v3253, 7
      %v3255 = vsub.s32 %v3252, %v3254
      %v3256 = vrot.slane %v3234, %v3255
      %v3258 = vunpack.c.l.s4 1966171168
      %v3259 = vunpack.c.0.s8 %v3258
      %v3260 = vlaneseq
      %v3261 = vshrl.u32 %v3260, 7
      %v3262 = vsub.s32 %v3259, %v3261
      %v3263 = vrot.slane %v3235, %v3262
      %v3264 = vcombine.high %v3242, %v3242
      %v3265 = vcombine.high %v3249, %v3249
      %v3266 = vcombine.high %v3256, %v3256
      %v3267 = vcombine.high %v3263, %v3263
      %v3269 = vunpack.c.l.s4 1966171168
      %v3270 = vunpack.c.0.s8 %v3269
      %v3271 = vlaneseq
      %v3272 = vshrl.u32 %v3271, 7
      %v3273 = vsub.s32 %v3270, %v3272
      %v3274 = vrot.slane %v3216, %v3273
      %v3276 = vunpack.c.l.s4 1966171168
      %v3277 = vunpack.c.0.s8 %v3276
      %v3278 = vlaneseq
      %v3279 = vshrl.u32 %v3278, 7
      %v3280 = vsub.s32 %v3277, %v3279
      %v3281 = vrot.slane %v3274, %v3280
      %v3282 = vcombine.low %v3242, %v3256
      %v3284 = vunpack.c.l.s4 1966171168
      %v3285 = vunpack.c.0.s8 %v3284
      %v3286 = vlaneseq
      %v3287 = vshrl.u32 %v3286, 7
      %v3288 = vsub.s32 %v3285, %v3287
      %v3289 = vrot.slane %v3282, %v3288
      %v3291 = vunpack.c.l.s4 1966171168
      %v3292 = vunpack.c.0.s8 %v3291
      %v3293 = vlaneseq
      %v3294 = vshrl.u32 %v3293, 7
      %v3295 = vsub.s32 %v3292, %v3294
      %v3296 = vrot.slane %v3264, %v3295
      %v3297 = vcombine.low %v3289, %v3296
      %v3299 = vunpack.c.l.s4 1966171168
      %v3300 = vunpack.c.0.s8 %v3299
      %v3301 = vlaneseq
      %v3302 = vshrl.u32 %v3301, 7
      %v3303 = vsub.s32 %v3300, %v3302
      %v3304 = vrot.slane %v3297, %v3303
      %v3305 = vcombine.low %v3266, %v3249
      %v3307 = vunpack.c.l.s4 1966171168
      %v3308 = vunpack.c.0.s8 %v3307
      %v3309 = vlaneseq
      %v3310 = vshrl.u32 %v3309, 7
      %v3311 = vsub.s32 %v3308, %v3310
      %v3312 = vrot.slane %v3305, %v3311
      %v3314 = vunpack.c.l.s4 1966171168
      %v3315 = vunpack.c.0.s8 %v3314
      %v3316 = vlaneseq
      %v3317 = vshrl.u32 %v3316, 7
      %v3318 = vsub.s32 %v3315, %v3317
      %v3319 = vrot.slane %v3263, %v3318
      %v3320 = vcombine.low %v3312, %v3319
      %v3322 = vunpack.c.l.s4 1966171168
      %v3323 = vunpack.c.0.s8 %v3322
      %v3324 = vlaneseq
      %v3325 = vshrl.u32 %v3324, 7
      %v3326 = vsub.s32 %v3323, %v3325
      %v3327 = vrot.slane %v3320, %v3326
      %v3328 = vcombine.low %v3265, %v3267
      %v3330 = vunpack.c.l.s4 1966171168
      %v3331 = vunpack.c.0.s8 %v3330
      %v3332 = vlaneseq
      %v3333 = vshrl.u32 %v3332, 7
      %v3334 = vsub.s32 %v3331, %v3333
      %v3335 = vrot.slane %v3328, %v3334
      %v3337 = vunpack.c.l.s4 1966171168
      %v3338 = vunpack.c.0.s8 %v3337
      %v3339 = vlaneseq
      %v3340 = vshrl.u32 %v3339, 7
      %v3341 = vsub.s32 %v3338, %v3340
      %v3342 = vrot.slane %v3281, %v3341
      %v3343 = vcombine.low %v3335, %v3342
      %v3345 = vunpack.c.l.s4 1966171168
      %v3346 = vunpack.c.0.s8 %v3345
      %v3347 = vlaneseq
      %v3348 = vshrl.u32 %v3347, 7
      %v3349 = vsub.s32 %v3346, %v3348
      %v3350 = vrot.slane %v3343, %v3349
      %v3354 = vpack.c.bf16 %v3304, %v3304
      %v3355 = vpack.c.bf16 %v3327, %v3327
      %v3356 = vpack.c.bf16 %v3350, %v3350
      %vm3357 = vcmask 517120
      %vm3358 = vsmask.f32 1280
      %vm3359 = vmand %vm3357, %vm3358
      %v3360 = vld [vmem:[%s240] sm:$0x3]
      %v3361 = vsel %vm3359, %v3354, %v3360
      %3362 = vst [vmem:[%s240] sm:$0x3] %v3361
      %v3363 = vld [vmem:[%s240 + $0x2] sm:$0x3]
      %v3364 = vsel %vm3359, %v3355, %v3363
      %3365 = vst [vmem:[%s240 + $0x2] sm:$0x3] %v3364
      %v3366 = vld [vmem:[%s240 + $0x4] sm:$0x3]
      %v3367 = vsel %vm3359, %v3356, %v3366
      %3368 = vst [vmem:[%s240 + $0x4] sm:$0x3] %v3367
      %vm3369 = vcmask 523264
      %v3370 = vsel %vm3369, %v3215, 0.0
      %vm3371 = vcmask 516096
      %v3372 = vsel %vm3371, %v3216, 0.0
      %v3373 = vadd.f32 %v3370, %v3372
      %v3374 = vrot.slane %v3373, 4
      %v3375 = vadd.f32 %v3373, %v3374
      %v3376 = vrot.slane %v3375, 2
      %v3377 = vadd.f32 %v3375, %v3376
      %v3378 = vrot.slane %v3377, 1
      %v3379 = vadd.f32 %v3377, %v3378
      %3380 = vst.msk [vmem:[%s247] sm:$0x1] %vm3371, %v3379
      %v3381 = vmul.f32 %v3215, %v3215
      %v3382 = vmul.f32 %v3216, %v3216
      %v3383 = vsel %vm3369, %v3381, 0.0
      %v3384 = vsel %vm3371, %v3382, 0.0
      %v3385 = vadd.f32 %v3383, %v3384
      %v3386 = vrot.slane %v3385, 4
      %v3387 = vadd.f32 %v3385, %v3386
      %v3388 = vrot.slane %v3387, 2
      %v3389 = vadd.f32 %v3387, %v3388
      %v3390 = vrot.slane %v3389, 1
      %v3391 = vadd.f32 %v3389, %v3390
      %3392 = vst.msk [vmem:[%s253] sm:$0x1] %vm3371, %v3391
      %s3393 = smul.u32 3, %s21
      %p3394 = scmp.lt.s32.totalorder %s20, 1
      %s3395 = scalar_select %p3394, %s20, 1
      %p3396 = scmp.lt.s32.totalorder %s3393, 2
      %s3397 = scalar_select %p3396, %s3393, 2
      %s3398 = smul.addr %s3395, 3
      %s3399 = sadd.s32 %s3397, %s3398
      %s3400 = smul.addr %s3399, 2
      %s3401 = scalar_lea.vmem %s2, %s3400
      %p3402 = scmp.lt.s32.totalorder %s20, 1
      %s3403 = scalar_select %p3402, %s20, 1
      %p3404 = scmp.lt.s32.totalorder %s21, 0
      %s3405 = scalar_select %p3404, %s21, 0
      %s3406 = sadd.s32 %s3405, %s3403
      %s3407 = scalar_lea.vmem %s3, %s3406
      %p3408 = scmp.lt.s32.totalorder %s20, 1
      %s3409 = scalar_select %p3408, %s20, 1
      %p3410 = scmp.lt.s32.totalorder %s21, 0
      %s3411 = scalar_select %p3410, %s21, 0
      %s3412 = sadd.s32 %s3411, %s3409
      %s3413 = scalar_lea.vmem %s4, %s3412
      // Predicated region
      $region29: #{nlayer_discriminator_forward.8} parent=27 // pred_check
        %p3414 = pneg %p95
      $region30: #{nlayer_discriminator_forward.8} parent=27 // pred_check_branch
        %3416 = sbr.rel (%p3414) target = $region32
      $region31: #{nlayer_discriminator_forward.8} parent=27 // pred_region
        %s3417 = smul.u32 3, %s21
      $region32: #{nlayer_discriminator_forward.8} parent=27 // pred_fallthru
        _
      // Predicated region
      $region33: #{nlayer_discriminator_forward.8} parent=27 // pred_check
        %p3418 = pneg %p123
      $region34: #{nlayer_discriminator_forward.8} parent=27 // pred_check_branch
        %3420 = sbr.rel (%p3418) target = $region36
      $region35: #{nlayer_discriminator_forward.8} parent=27 // pred_region
        _
      $region36: #{nlayer_discriminator_forward.8} parent=27 // pred_fallthru
        _
      // Predicated region
      $region37: #{nlayer_discriminator_forward.8} parent=27 // pred_check
        %p3421 = pneg %p151
      $region38: #{nlayer_discriminator_forward.8} parent=27 // pred_check_branch
        %3423 = sbr.rel (%p3421) target = $region40
      $region39: #{nlayer_discriminator_forward.8} parent=27 // pred_region
        _
      $region40: #{nlayer_discriminator_forward.8} parent=27 // pred_fallthru
        _
    $region28: #{nlayer_discriminator_forward.8} parent=5 // pred_fallthru
      _
    %p3424 = scmp.le.s32.totalorder 2, %s11
    // Predicated region
    $region41: #{nlayer_discriminator_forward.8} parent=5 // pred_check
      %p3425 = pneg %p3424
    $region42: #{nlayer_discriminator_forward.8} parent=5 // pred_check_branch
      %3427 = sbr.rel (%p3425) target = $region44
    $region43: #{nlayer_discriminator_forward.8} parent=5 // pred_region
      %s3428 = ssub.s32 %s11, 2
      // Predicated region
      $region45: #{nlayer_discriminator_forward.8} parent=43 // pred_check
        %p3429 = pneg %p101
      $region46: #{nlayer_discriminator_forward.8} parent=43 // pred_check_branch
        %3431 = sbr.rel (%p3429) target = $region48
      $region47: #{nlayer_discriminator_forward.8} parent=43 // pred_region
        %s3432 = smul.u32 3, %s23
        %p3433 = scmp.lt.s32.totalorder %s22, 1
        %s3434 = scalar_select %p3433, %s22, 1
        %p3435 = scmp.lt.s32.totalorder %s3432, 2
        %s3436 = scalar_select %p3435, %s3432, 2
        %s3437 = smul.addr %s3434, 3
        %s3438 = sadd.s32 %s3436, %s3437
        %s3439 = smul.addr %s3438, 2
        %s3440 = scalar_lea.vmem %s2, %s3439
      $region48: #{nlayer_discriminator_forward.8} parent=43 // pred_fallthru
        _
      // Predicated region
      $region49: #{nlayer_discriminator_forward.8} parent=43 // pred_check
        %p3441 = pneg %p129
      $region50: #{nlayer_discriminator_forward.8} parent=43 // pred_check_branch
        %3443 = sbr.rel (%p3441) target = $region52
      $region51: #{nlayer_discriminator_forward.8} parent=43 // pred_region
        %p3444 = scmp.lt.s32.totalorder %s22, 1
        %s3445 = scalar_select %p3444, %s22, 1
        %p3446 = scmp.lt.s32.totalorder %s23, 0
        %s3447 = scalar_select %p3446, %s23, 0
        %s3448 = sadd.s32 %s3447, %s3445
        %s3449 = scalar_lea.vmem %s3, %s3448
      $region52: #{nlayer_discriminator_forward.8} parent=43 // pred_fallthru
        _
      // Predicated region
      $region53: #{nlayer_discriminator_forward.8} parent=43 // pred_check
        %p3450 = pneg %p157
      $region54: #{nlayer_discriminator_forward.8} parent=43 // pred_check_branch
        %3452 = sbr.rel (%p3450) target = $region56
      $region55: #{nlayer_discriminator_forward.8} parent=43 // pred_region
        %p3453 = scmp.lt.s32.totalorder %s22, 1
        %s3454 = scalar_select %p3453, %s22, 1
        %p3455 = scmp.lt.s32.totalorder %s23, 0
        %s3456 = scalar_select %p3455, %s23, 0
        %s3457 = sadd.s32 %s3456, %s3454
        %s3458 = scalar_lea.vmem %s4, %s3457
      $region56: #{nlayer_discriminator_forward.8} parent=43 // pred_fallthru
        _
    $region44: #{nlayer_discriminator_forward.8} parent=5 // pred_fallthru
      _
  $region6: #{nlayer_discriminator_forward.8} parent=0 // loop_footer
    %s15 = sadd.s32 1, %s11
  $region7: #{nlayer_discriminator_forward.8} parent=0 // loop_footer_branch
    %10 = sbr.rel target = $region3
  $region8: #{nlayer_discriminator_forward.8} parent=0 // loop_exit
    _

// kernel: nlayer_discriminator_forward.9
$region0: #{nlayer_discriminator_forward.9}
  #allocation0 [shape = 'u32[]', space=smem, size = 0x4, offset = 0x4, fixed_abs, tag = 'smem constant byte address 0x4 - core index']
  #allocation1 [shape = 'u32[144,128]{1,0:T(1,128)}', space=vmem, size = 0x12000, scoped, tag = 'internal scratch']
  %s0 = inlined_call_operand.vmem [shape: bf16[2,5,5,64], index: 0, kind: input, shape index: {}]
  %s1 = inlined_call_operand.vmem [shape: bf16[16,64,128], index: 1, kind: input, shape index: {}]
  %s2 = inlined_call_operand.vmem [shape: f32[1,128], index: 2, kind: input, shape index: {}]
  %s3 = inlined_call_operand.vmem [shape: f32[2,2,2,1], index: 3, kind: output, shape index: {}]
  %s4 = sld [smem:[#allocation0]]
  $region45: #{nlayer_discriminator_forward.9} parent=0
    _
  %s6 = ssub.s32 1, %s4
  %s7 = scalar_select 0, %s6, %s4
  loop: start=0, step=1, limit=4
  $region2: #{nlayer_discriminator_forward.9} parent=0 // loop_pre_header
    _
  $region3: #{nlayer_discriminator_forward.9} parent=0 // loop_header
    %s9 = sphi 0, %s13
    %p10 = scmp.ge.s32.totalorder %s9, 4
    %s16 = sphi 0, %s28
    %s17 = sphi 0, %s24
    %s18 = sphi 0, %s16
    %s19 = sphi 0, %s17
    %s20 = sphi 0, %s18
    %s21 = sphi 0, %s19
    %s31 = sphi 0, %s33
    %s34 = sphi 0, %s31
    %s35 = sphi 0, %s34
    %s51 = sphi 0, %s35
    %s55 = sphi 0, %s55
    %s57 = sphi 0, %s55
    %s58 = sphi 0, %s57
    %s72 = sphi 0, %s58
    %s76 = sphi 0, %s76
    %s78 = sphi 0, %s76
    %s79 = sphi 0, %s78
    %s93 = sphi 0, %s79
    %s101 = sphi 0, %s103
    %s104 = sphi 0, %s101
    %s105 = sphi 0, %s104
    %s121 = sphi 0, %s105
  $region4: #{nlayer_discriminator_forward.9} parent=0 // loop_header_branch
    %12 = sbr.rel (%p10) target = $region8
  $region5: #{nlayer_discriminator_forward.9} parent=0 // loop_body
    %s14 = ssub.s32 %s9, 1
    %s15 = ssub.s32 %s9, 2
    %s22 = sadd.s32 1, %s17
    %p23 = scmp.ge.s32.totalorder %s22, 1
    %s24 = scalar_select %p23, 0, %s22
    %s25 = sadd.s32 1, %s16
    %s26 = scalar_select %p23, %s25, %s16
    %p27 = scmp.ge.s32.totalorder %s26, 2
    %s28 = scalar_select %p27, 0, %s26
    %s29 = ssub.s32 %s16, %s28
    %p30 = scmp.eq.s32.totalorder %s29, 0
    %s32 = sadd.s32 %s31, 1
    %s33 = scalar_select %p30, %s31, %s32
    %p36 = pneg %p30
    %p37 = scmp.eq.s32.totalorder %s9, 1
    %p38 = por %p36, %p37
    %p39 = scmp.ne.s32.totalorder %s31, %s34
    %p40 = scmp.eq.s32.totalorder %s9, 0
    %p41 = por %p39, %p40
    %p42 = scmp.ne.s32.totalorder %s31, %s34
    %p43 = scmp.eq.s32.totalorder %s14, 1
    %p44 = por %p42, %p43
    %p45 = scmp.ne.s32.totalorder %s34, %s35
    %p46 = scmp.eq.s32.totalorder %s14, 0
    %p47 = por %p45, %p46
    %p48 = scmp.ne.s32.totalorder %s34, %s35
    %p49 = scmp.eq.s32.totalorder %s15, 1
    %p50 = por %p48, %p49
    %p52 = scmp.ne.s32.totalorder %s35, %s51
    %p53 = scmp.eq.s32.totalorder %s15, 0
    %p54 = por %p52, %p53
    %s56 = sadd.s32 %s55, 1
    %p59 = scmp.eq.s32.totalorder %s9, 1
    %p60 = scmp.ne.s32.totalorder %s55, %s57
    %p61 = scmp.eq.s32.totalorder %s9, 0
    %p62 = por %p60, %p61
    %p63 = scmp.ne.s32.totalorder %s55, %s57
    %p64 = scmp.eq.s32.totalorder %s14, 1
    %p65 = por %p63, %p64
    %p66 = scmp.ne.s32.totalorder %s57, %s58
    %p67 = scmp.eq.s32.totalorder %s14, 0
    %p68 = por %p66, %p67
    %p69 = scmp.ne.s32.totalorder %s57, %s58
    %p70 = scmp.eq.s32.totalorder %s15, 1
    %p71 = por %p69, %p70
    %p73 = scmp.ne.s32.totalorder %s58, %s72
    %p74 = scmp.eq.s32.totalorder %s15, 0
    %p75 = por %p73, %p74
    %s77 = sadd.s32 %s76, 1
    %p80 = scmp.eq.s32.totalorder %s9, 1
    %p81 = scmp.ne.s32.totalorder %s76, %s78
    %p82 = scmp.eq.s32.totalorder %s9, 0
    %p83 = por %p81, %p82
    %p84 = scmp.ne.s32.totalorder %s76, %s78
    %p85 = scmp.eq.s32.totalorder %s14, 1
    %p86 = por %p84, %p85
    %p87 = scmp.ne.s32.totalorder %s78, %s79
    %p88 = scmp.eq.s32.totalorder %s14, 0
    %p89 = por %p87, %p88
    %p90 = scmp.ne.s32.totalorder %s78, %s79
    %p91 = scmp.eq.s32.totalorder %s15, 1
    %p92 = por %p90, %p91
    %p94 = scmp.ne.s32.totalorder %s79, %s93
    %p95 = scmp.eq.s32.totalorder %s15, 0
    %p96 = por %p94, %p95
    %s97 = ssub.s32 %s16, %s28
    %s98 = ssub.s32 %s17, %s24
    %s99 = sor.u32 %s97, %s98
    %p100 = scmp.eq.s32.totalorder %s99, 0
    %s102 = sadd.s32 %s101, 1
    %s103 = scalar_select %p100, %s101, %s102
    %p106 = pneg %p100
    %p107 = scmp.eq.s32.totalorder %s9, 1
    %p108 = por %p106, %p107
    %p109 = scmp.ne.s32.totalorder %s101, %s104
    %p110 = scmp.eq.s32.totalorder %s9, 0
    %p111 = por %p109, %p110
    %p112 = scmp.ne.s32.totalorder %s101, %s104
    %p113 = scmp.eq.s32.totalorder %s14, 1
    %p114 = por %p112, %p113
    %p115 = scmp.ne.s32.totalorder %s104, %s105
    %p116 = scmp.eq.s32.totalorder %s14, 0
    %p117 = por %p115, %p116
    %p118 = scmp.ne.s32.totalorder %s104, %s105
    %p119 = scmp.eq.s32.totalorder %s15, 1
    %p120 = por %p118, %p119
    %p122 = scmp.ne.s32.totalorder %s105, %s121
    %p123 = scmp.eq.s32.totalorder %s15, 0
    %p124 = por %p122, %p123
    %p125 = scmp.le.s32.totalorder 1, %s9
    %p126 = scmp.lt.s32.totalorder %s9, 3
    %p127 = pnand %p125, %p126
    %p128 = pneg %p127
    // Predicated region
    $region9: #{nlayer_discriminator_forward.9} parent=5 // pred_check
      _
    $region10: #{nlayer_discriminator_forward.9} parent=5 // pred_check_branch
      %130 = sbr.rel (%p127) target = $region12
    $region11: #{nlayer_discriminator_forward.9} parent=5 // pred_region
      %s131 = ssub.s32 %s9, 1
      // Predicated region
      $region13: #{nlayer_discriminator_forward.9} parent=11 // pred_check
        %p132 = pneg %p68
      $region14: #{nlayer_discriminator_forward.9} parent=11 // pred_check_branch
        %134 = sbr.rel (%p132) target = $region16
      $region15: #{nlayer_discriminator_forward.9} parent=11 // pred_region
        _
      $region16: #{nlayer_discriminator_forward.9} parent=11 // pred_fallthru
        _
      // Predicated region
      $region17: #{nlayer_discriminator_forward.9} parent=11 // pred_check
        %p135 = pneg %p89
      $region18: #{nlayer_discriminator_forward.9} parent=11 // pred_check_branch
        %137 = sbr.rel (%p135) target = $region20
      $region19: #{nlayer_discriminator_forward.9} parent=11 // pred_region
        _
      $region20: #{nlayer_discriminator_forward.9} parent=11 // pred_fallthru
        _
    $region12: #{nlayer_discriminator_forward.9} parent=5 // pred_fallthru
      _
    %p138 = scmp.lt.s32.totalorder %s9, 2
    // Predicated region
    $region21: #{nlayer_discriminator_forward.9} parent=5 // pred_check
      %p139 = pneg %p138
    $region22: #{nlayer_discriminator_forward.9} parent=5 // pred_check_branch
      %141 = sbr.rel (%p139) target = $region24
    $region23: #{nlayer_discriminator_forward.9} parent=5 // pred_region
      // Predicated region
      $region25: #{nlayer_discriminator_forward.9} parent=23 // pred_check
        %p142 = pneg %p41
      $region26: #{nlayer_discriminator_forward.9} parent=23 // pred_check_branch
        %144 = sbr.rel (%p142) target = $region28
      $region27: #{nlayer_discriminator_forward.9} parent=23 // pred_region
        %p145 = scmp.lt.s32.totalorder %s16, 1
        %s146 = scalar_select %p145, %s16, 1
        %s147 = smul.addr %s146, 5
        %s148 = smul.addr %s147, 4
        %s149 = scalar_lea.vmem %s0, %s148
      $region28: #{nlayer_discriminator_forward.9} parent=23 // pred_fallthru
        _
    $region24: #{nlayer_discriminator_forward.9} parent=5 // pred_fallthru
      _
    %p150 = scmp.le.s32.totalorder 1, %s9
    %p151 = scmp.lt.s32.totalorder %s9, 3
    %p152 = pnand %p150, %p151
    %p153 = pneg %p152
    // Predicated region
    $region29: #{nlayer_discriminator_forward.9} parent=5 // pred_check
      _
    $region30: #{nlayer_discriminator_forward.9} parent=5 // pred_check_branch
      %155 = sbr.rel (%p152) target = $region32
    $region31: #{nlayer_discriminator_forward.9} parent=5 // pred_region
      %s156 = ssub.s32 %s9, 1
      %p157 = scmp.lt.s32.totalorder %s18, 1
      %s158 = scalar_select %p157, %s18, 1
      %s159 = smul.addr %s158, 5
      %s160 = smul.addr %s159, 4
      %s161 = scalar_lea.vmem %s0, %s160
      %p162 = pneg %p47
      %p163 = pneg %p44
      %p164 = pneg %p68
      %p165 = pneg %p65
      %p166 = pneg %p89
      %p167 = pneg %p86
      %p168 = pneg %p117
      %p169 = pneg %p114
      %s170 = smul.u32 2, %s19
      %p171 = scmp.lt.s32.totalorder %s18, 1
      %s172 = scalar_select %p171, %s18, 1
      %p173 = scmp.lt.s32.totalorder %s170, 1
      %s174 = scalar_select %p173, %s170, 1
      %s175 = smul.addr %s172, 2
      %s176 = sadd.s32 %s174, %s175
      %s177 = smul.addr %s176, 2
      %s178 = scalar_lea.vmem %s3, %s177
      %p179 = scmp.lt.s32.totalorder %s18, 1
      %s180 = scalar_select %p179, %s18, 1
      %s181 = smul.addr %s180, 5
      %s182 = smul.addr %s181, 4
      %s183 = scalar_lea.vmem %s0, %s182
      %s184 = smul.u32 2, %s19
      %p185 = scmp.lt.s32.totalorder %s18, 1
      %s186 = scalar_select %p185, %s18, 1
      %p187 = scmp.lt.s32.totalorder %s184, 1
      %s188 = scalar_select %p187, %s184, 1
      %s189 = smul.addr %s186, 2
      %s190 = sadd.s32 %s188, %s189
      %s191 = smul.addr %s190, 2
      %s192 = scalar_lea.vmem %s3, %s191
      %s193 = smul.u32 2, %s19
      %s195 = smul.u32 %s19, 2
      %s196 = smul.addr %s195, 4
      %s197 = scalar_lea.vmem %s183, %s196
      %v198 = vld [vmem:[%s197] sm:$0x1]
      %v199 = vld [vmem:[%s197 + $0x4] sm:$0x1]
      %v200 = vld [vmem:[%s1] sm:$0xf]
      %v201 = vld [vmem:[%s1 + $0x4] sm:$0xf]
      %v202 = vld [vmem:[%s1 + $0x8] sm:$0xf]
      %v203 = vld [vmem:[%s1 + $0xc] sm:$0xf]
      %v204 = vld [vmem:[%s1 + $0x10] sm:$0xf]
      %v205 = vld [vmem:[%s1 + $0x14] sm:$0xf]
      %v206 = vld [vmem:[%s1 + $0x18] sm:$0xf]
      %v207 = vld [vmem:[%s1 + $0x1c] sm:$0xf]
      %v208 = vld [vmem:[%s197] sm:$0x3]
      %v209 = vld [vmem:[%s197 + $0x4] sm:$0x3]
      %v213 = vunpack.c.l.s4 1966171168
      %v214 = vunpack.c.0.s8 %v213
      %v215 = vlaneseq
      %v216 = vshrl.u32 %v215, 7
      %v217 = vsub.s32 %v214, %v216
      %v218 = vrot.slane %v208, %v217
      %v219 = vcombine.high %v218, %v218
      %v221 = vunpack.c.l.s4 1966171168
      %v222 = vunpack.c.0.s8 %v221
      %v223 = vlaneseq
      %v224 = vshrl.u32 %v223, 7
      %v225 = vsub.s32 %v222, %v224
      %v226 = vrot.slane %v218, %v225
      %v228 = vunpack.c.l.s4 1966171168
      %v229 = vunpack.c.0.s8 %v228
      %v230 = vlaneseq
      %v231 = vshrl.u32 %v230, 7
      %v232 = vsub.s32 %v229, %v231
      %v233 = vrot.slane %v219, %v232
      %v235 = vunpack.c.l.s4 1966171168
      %v236 = vunpack.c.0.s8 %v235
      %v237 = vlaneseq
      %v238 = vshrl.u32 %v237, 7
      %v239 = vsub.s32 %v236, %v238
      %v240 = vrot.slane %v209, %v239
      %v241 = vcombine.high %v240, %v240
      %v243 = vunpack.c.l.s4 1966171168
      %v244 = vunpack.c.0.s8 %v243
      %v245 = vlaneseq
      %v246 = vshrl.u32 %v245, 7
      %v247 = vsub.s32 %v244, %v246
      %v248 = vrot.slane %v240, %v247
      %v250 = vunpack.c.l.s4 1966171168
      %v251 = vunpack.c.0.s8 %v250
      %v252 = vlaneseq
      %v253 = vshrl.u32 %v252, 7
      %v254 = vsub.s32 %v251, %v253
      %v255 = vrot.slane %v241, %v254
      %vm256 = vsmask.f32 256
      %vm257 = vsmask.f32 1284
      %vm258 = vmor %vm256, %vm257
      %vm259 = vsmask.f32 2312
      %vm260 = vmor %vm258, %vm259
      %vm261 = vsmask.f32 3340
      %vm262 = vmor %vm260, %vm261
      %vm263 = vsmask.f32 4368
      %vm264 = vmor %vm262, %vm263
      %vm265 = vsmask.f32 5396
      %vm266 = vmor %vm264, %vm265
      %vm267 = vsmask.f32 6424
      %vm268 = vmor %vm266, %vm267
      %vm269 = vsmask.f32 7452
      %vm270 = vmor %vm268, %vm269
      %v272 = vshrl.u32 %v226, 16
      %v274 = vrot.slane %v272, 7
      %v275 = vrot.slane %v274, 1
      %v277 = vshll.u32 %v233, 16
      %v279 = vsel %vm270, %v275, %v277
      %v281 = vshrl.u32 %v248, 16
      %v283 = vrot.slane %v281, 7
      %v284 = vrot.slane %v283, 1
      %v286 = vshll.u32 %v255, 16
      %v288 = vsel %vm270, %v284, %v286
      %s289 = scalar_lea.vmem %s1, 32
      %v290 = vld [vmem:[%s289] sm:$0xf]
      %v291 = vld [vmem:[%s289 + $0x4] sm:$0xf]
      %v292 = vld [vmem:[%s289 + $0x8] sm:$0xf]
      %v293 = vld [vmem:[%s289 + $0xc] sm:$0xf]
      %v294 = vld [vmem:[%s289 + $0x10] sm:$0xf]
      %v295 = vld [vmem:[%s289 + $0x14] sm:$0xf]
      %v296 = vld [vmem:[%s289 + $0x18] sm:$0xf]
      %v297 = vld [vmem:[%s289 + $0x1c] sm:$0xf]
      %v298 = vcombine.low %v279, %v288
      %v300 = vunpack.c.l.s4 1966171168
      %v301 = vunpack.c.0.s8 %v300
      %v302 = vlaneseq
      %v303 = vshrl.u32 %v302, 7
      %v304 = vsub.s32 %v301, %v303
      %v305 = vrot.slane %v298, %v304
      %v307 = vunpack.c.l.s4 1966171168
      %v308 = vunpack.c.0.s8 %v307
      %v309 = vlaneseq
      %v310 = vshrl.u32 %v309, 7
      %v311 = vsub.s32 %v308, %v310
      %v312 = vrot.slane %v305, %v311
      %v321 = vunpack.c.l.b16 %v290
      %v322 = vunpack.c.l.b16 %v291
      %v323 = vunpack.c.l.b16 %v292
      %v324 = vunpack.c.l.b16 %v293
      %v325 = vunpack.c.l.b16 %v294
      %v326 = vunpack.c.l.b16 %v295
      %v327 = vunpack.c.l.b16 %v296
      %v328 = vunpack.c.l.b16 %v297
      %v329 = vpack.c.b16 %v322, %v321
      %v330 = vpack.c.b16 %v324, %v323
      %v331 = vpack.c.b16 %v326, %v325
      %v332 = vpack.c.b16 %v328, %v327
      %vm337 = vcmask 523264
      %v339 = vsel %vm337, %v312, 0
      %341 = vmatprep.subr.bf16.mxu0 0
      %342 = vmatpush1.bf16.msra.mxu0 0
      %343 = vmatprep.subr.bf16.mxu0 0
      %344 = vmatpush1.bf16.msra.mxu0 0
      %345 = vmatprep.subr.bf16.mxu0 0
      %346 = vmatpush1.bf16.msra.mxu0 0
      %347 = vmatprep.subr.bf16.mxu0 0
      %348 = vmatpush1.bf16.msra.mxu0 0
      %349 = vmatprep.subr.bf16.mxu0 0
      %350 = vmatpush1.bf16.msra.mxu0 %v332
      %351 = vmatprep.subr.bf16.mxu0 0
      %352 = vmatpush1.bf16.msra.mxu0 %v331
      %353 = vmatprep.subr.bf16.mxu0 0
      %354 = vmatpush1.bf16.msra.mxu0 %v330
      %355 = vmatprep.subr.bf16.mxu0 0
      %356 = vmatpush1.bf16.msra.mxu0 %v329
      %357 = vmatprep.subr.bf16.mxu0 0
      %358 = vmatpush2.bf16.msra.mxu0 0
      %359 = vmatprep.subr.bf16.mxu0 0
      %360 = vmatpush2.bf16.msra.mxu0 0
      %361 = vmatprep.subr.bf16.mxu0 0
      %362 = vmatpush2.bf16.msra.mxu0 0
      %363 = vmatprep.subr.bf16.mxu0 0
      %364 = vmatpush2.bf16.msra.mxu0 0
      %365 = vmatprep.subr.bf16.mxu0 0
      %366 = vmatpush2.bf16.msra.mxu0 0
      %367 = vmatprep.subr.bf16.mxu0 0
      %368 = vmatpush2.bf16.msra.mxu0 0
      %369 = vmatprep.subr.bf16.mxu0 0
      %370 = vmatpush2.bf16.msra.mxu0 0
      %371 = vmatprep.subr.bf16.mxu0 0
      %372 = vmatpush2.bf16.msra.mxu0 0
      %373 = vmatprep.mubr.bf16.mxu0 0
      %374 = vmatmul.mubr.bf16.gmra.mxu0 %v339
      %v375 = vpop.f32.mrf.mxu0
      %v376 = vadd.f32 0.0, %v375
      %v377 = vpop.f32.mrf.mxu0
      %v378 = vpop.f32.mrf.mxu0
      %v379 = vpop.f32.mrf.mxu0
      %380 = vdwg.mxu0
      %v383 = vcombine.low %v198, %v199
      %v385 = vunpack.c.l.s4 1966171168
      %v386 = vunpack.c.0.s8 %v385
      %v387 = vlaneseq
      %v388 = vshrl.u32 %v387, 7
      %v389 = vsub.s32 %v386, %v388
      %v390 = vrot.slane %v383, %v389
      %v392 = vunpack.c.l.s4 1966171168
      %v393 = vunpack.c.0.s8 %v392
      %v394 = vlaneseq
      %v395 = vshrl.u32 %v394, 7
      %v396 = vsub.s32 %v393, %v395
      %v397 = vrot.slane %v390, %v396
      %v406 = vunpack.c.l.b16 %v200
      %v407 = vunpack.c.l.b16 %v201
      %v408 = vunpack.c.l.b16 %v202
      %v409 = vunpack.c.l.b16 %v203
      %v410 = vunpack.c.l.b16 %v204
      %v411 = vunpack.c.l.b16 %v205
      %v412 = vunpack.c.l.b16 %v206
      %v413 = vunpack.c.l.b16 %v207
      %v414 = vpack.c.b16 %v407, %v406
      %v415 = vpack.c.b16 %v409, %v408
      %v416 = vpack.c.b16 %v411, %v410
      %v417 = vpack.c.b16 %v413, %v412
      %v423 = vsel %vm337, %v397, 0
      %425 = vmatprep.subr.bf16.mxu0 0
      %426 = vmatpush1.bf16.msra.mxu0 0
      %427 = vmatprep.subr.bf16.mxu0 0
      %428 = vmatpush1.bf16.msra.mxu0 0
      %429 = vmatprep.subr.bf16.mxu0 0
      %430 = vmatpush1.bf16.msra.mxu0 0
      %431 = vmatprep.subr.bf16.mxu0 0
      %432 = vmatpush1.bf16.msra.mxu0 0
      %433 = vmatprep.subr.bf16.mxu0 0
      %434 = vmatpush1.bf16.msra.mxu0 %v417
      %435 = vmatprep.subr.bf16.mxu0 0
      %436 = vmatpush1.bf16.msra.mxu0 %v416
      %437 = vmatprep.subr.bf16.mxu0 0
      %438 = vmatpush1.bf16.msra.mxu0 %v415
      %439 = vmatprep.subr.bf16.mxu0 0
      %440 = vmatpush1.bf16.msra.mxu0 %v414
      %441 = vmatprep.subr.bf16.mxu0 0
      %442 = vmatpush2.bf16.msra.mxu0 0
      %443 = vmatprep.subr.bf16.mxu0 0
      %444 = vmatpush2.bf16.msra.mxu0 0
      %445 = vmatprep.subr.bf16.mxu0 0
      %446 = vmatpush2.bf16.msra.mxu0 0
      %447 = vmatprep.subr.bf16.mxu0 0
      %448 = vmatpush2.bf16.msra.mxu0 0
      %449 = vmatprep.subr.bf16.mxu0 0
      %450 = vmatpush2.bf16.msra.mxu0 0
      %451 = vmatprep.subr.bf16.mxu0 0
      %452 = vmatpush2.bf16.msra.mxu0 0
      %453 = vmatprep.subr.bf16.mxu0 0
      %454 = vmatpush2.bf16.msra.mxu0 0
      %455 = vmatprep.subr.bf16.mxu0 0
      %456 = vmatpush2.bf16.msra.mxu0 0
      %457 = vmatprep.mubr.bf16.mxu0 0
      %458 = vmatmul.mubr.bf16.gmra.mxu0 %v423
      %v459 = vpop.f32.mrf.mxu0
      %v460 = vadd.f32 %v376, %v459
      %v461 = vpop.f32.mrf.mxu0
      %v462 = vpop.f32.mrf.mxu0
      %v463 = vpop.f32.mrf.mxu0
      %464 = vdwg.mxu0
      %v465 = vld [vmem:[%s197] sm:$0x2]
      %v466 = vld [vmem:[%s197 + $0x4] sm:$0x2]
      %v470 = vunpack.c.l.s4 1966171168
      %v471 = vunpack.c.0.s8 %v470
      %v472 = vlaneseq
      %v473 = vshrl.u32 %v472, 7
      %v474 = vsub.s32 %v471, %v473
      %v475 = vrot.slane %v465, %v474
      %v476 = vcombine.high %v475, %v475
      %v478 = vunpack.c.l.s4 1966171168
      %v479 = vunpack.c.0.s8 %v478
      %v480 = vlaneseq
      %v481 = vshrl.u32 %v480, 7
      %v482 = vsub.s32 %v479, %v481
      %v483 = vrot.slane %v476, %v482
      %v485 = vunpack.c.l.s4 1966171168
      %v486 = vunpack.c.0.s8 %v485
      %v487 = vlaneseq
      %v488 = vshrl.u32 %v487, 7
      %v489 = vsub.s32 %v486, %v488
      %v490 = vrot.slane %v466, %v489
      %v491 = vcombine.high %v490, %v490
      %v493 = vunpack.c.l.s4 1966171168
      %v494 = vunpack.c.0.s8 %v493
      %v495 = vlaneseq
      %v496 = vshrl.u32 %v495, 7
      %v497 = vsub.s32 %v494, %v496
      %v498 = vrot.slane %v491, %v497
      %s499 = scalar_lea.vmem %s1, 64
      %v500 = vld [vmem:[%s499] sm:$0xf]
      %v501 = vld [vmem:[%s499 + $0x4] sm:$0xf]
      %v502 = vld [vmem:[%s499 + $0x8] sm:$0xf]
      %v503 = vld [vmem:[%s499 + $0xc] sm:$0xf]
      %v504 = vld [vmem:[%s499 + $0x10] sm:$0xf]
      %v505 = vld [vmem:[%s499 + $0x14] sm:$0xf]
      %v506 = vld [vmem:[%s499 + $0x18] sm:$0xf]
      %v507 = vld [vmem:[%s499 + $0x1c] sm:$0xf]
      %v508 = vcombine.low %v483, %v498
      %v510 = vunpack.c.l.s4 1966171168
      %v511 = vunpack.c.0.s8 %v510
      %v512 = vlaneseq
      %v513 = vshrl.u32 %v512, 7
      %v514 = vsub.s32 %v511, %v513
      %v515 = vrot.slane %v508, %v514
      %v517 = vunpack.c.l.s4 1966171168
      %v518 = vunpack.c.0.s8 %v517
      %v519 = vlaneseq
      %v520 = vshrl.u32 %v519, 7
      %v521 = vsub.s32 %v518, %v520
      %v522 = vrot.slane %v515, %v521
      %v531 = vunpack.c.l.b16 %v500
      %v532 = vunpack.c.l.b16 %v501
      %v533 = vunpack.c.l.b16 %v502
      %v534 = vunpack.c.l.b16 %v503
      %v535 = vunpack.c.l.b16 %v504
      %v536 = vunpack.c.l.b16 %v505
      %v537 = vunpack.c.l.b16 %v506
      %v538 = vunpack.c.l.b16 %v507
      %v539 = vpack.c.b16 %v532, %v531
      %v540 = vpack.c.b16 %v534, %v533
      %v541 = vpack.c.b16 %v536, %v535
      %v542 = vpack.c.b16 %v538, %v537
      %v548 = vsel %vm337, %v522, 0
      %550 = vmatprep.subr.bf16.mxu0 0
      %551 = vmatpush1.bf16.msra.mxu0 0
      %552 = vmatprep.subr.bf16.mxu0 0
      %553 = vmatpush1.bf16.msra.mxu0 0
      %554 = vmatprep.subr.bf16.mxu0 0
      %555 = vmatpush1.bf16.msra.mxu0 0
      %556 = vmatprep.subr.bf16.mxu0 0
      %557 = vmatpush1.bf16.msra.mxu0 0
      %558 = vmatprep.subr.bf16.mxu0 0
      %559 = vmatpush1.bf16.msra.mxu0 %v542
      %560 = vmatprep.subr.bf16.mxu0 0
      %561 = vmatpush1.bf16.msra.mxu0 %v541
      %562 = vmatprep.subr.bf16.mxu0 0
      %563 = vmatpush1.bf16.msra.mxu0 %v540
      %564 = vmatprep.subr.bf16.mxu0 0
      %565 = vmatpush1.bf16.msra.mxu0 %v539
      %566 = vmatprep.subr.bf16.mxu0 0
      %567 = vmatpush2.bf16.msra.mxu0 0
      %568 = vmatprep.subr.bf16.mxu0 0
      %569 = vmatpush2.bf16.msra.mxu0 0
      %570 = vmatprep.subr.bf16.mxu0 0
      %571 = vmatpush2.bf16.msra.mxu0 0
      %572 = vmatprep.subr.bf16.mxu0 0
      %573 = vmatpush2.bf16.msra.mxu0 0
      %574 = vmatprep.subr.bf16.mxu0 0
      %575 = vmatpush2.bf16.msra.mxu0 0
      %576 = vmatprep.subr.bf16.mxu0 0
      %577 = vmatpush2.bf16.msra.mxu0 0
      %578 = vmatprep.subr.bf16.mxu0 0
      %579 = vmatpush2.bf16.msra.mxu0 0
      %580 = vmatprep.subr.bf16.mxu0 0
      %581 = vmatpush2.bf16.msra.mxu0 0
      %582 = vmatprep.mubr.bf16.mxu0 0
      %583 = vmatmul.mubr.bf16.gmra.mxu0 %v548
      %v584 = vpop.f32.mrf.mxu0
      %v585 = vadd.f32 0.0, %v584
      %v586 = vpop.f32.mrf.mxu0
      %v587 = vpop.f32.mrf.mxu0
      %v588 = vpop.f32.mrf.mxu0
      %589 = vdwg.mxu0
      %v590 = vadd.f32 %v460, %v585
      %v591 = vld [vmem:[%s197] sm:$0x6]
      %v592 = vld [vmem:[%s197 + $0x4] sm:$0x6]
      %v596 = vunpack.c.l.s4 1966171168
      %v597 = vunpack.c.0.s8 %v596
      %v598 = vlaneseq
      %v599 = vshrl.u32 %v598, 7
      %v600 = vsub.s32 %v597, %v599
      %v601 = vrot.slane %v591, %v600
      %v602 = vcombine.high %v601, %v601
      %v604 = vunpack.c.l.s4 1966171168
      %v605 = vunpack.c.0.s8 %v604
      %v606 = vlaneseq
      %v607 = vshrl.u32 %v606, 7
      %v608 = vsub.s32 %v605, %v607
      %v609 = vrot.slane %v601, %v608
      %v611 = vunpack.c.l.s4 1966171168
      %v612 = vunpack.c.0.s8 %v611
      %v613 = vlaneseq
      %v614 = vshrl.u32 %v613, 7
      %v615 = vsub.s32 %v612, %v614
      %v616 = vrot.slane %v602, %v615
      %v617 = vcombine.high %v609, %v609
      %v619 = vunpack.c.l.s4 1966171168
      %v620 = vunpack.c.0.s8 %v619
      %v621 = vlaneseq
      %v622 = vshrl.u32 %v621, 7
      %v623 = vsub.s32 %v620, %v622
      %v624 = vrot.slane %v592, %v623
      %v625 = vcombine.high %v624, %v624
      %v627 = vunpack.c.l.s4 1966171168
      %v628 = vunpack.c.0.s8 %v627
      %v629 = vlaneseq
      %v630 = vshrl.u32 %v629, 7
      %v631 = vsub.s32 %v628, %v630
      %v632 = vrot.slane %v624, %v631
      %v634 = vunpack.c.l.s4 1966171168
      %v635 = vunpack.c.0.s8 %v634
      %v636 = vlaneseq
      %v637 = vshrl.u32 %v636, 7
      %v638 = vsub.s32 %v635, %v637
      %v639 = vrot.slane %v625, %v638
      %v640 = vcombine.high %v632, %v632
      %v642 = vshrl.u32 %v616, 16
      %v644 = vrot.slane %v642, 7
      %v645 = vrot.slane %v644, 1
      %v647 = vshll.u32 %v617, 16
      %v649 = vsel %vm270, %v645, %v647
      %v651 = vshrl.u32 %v639, 16
      %v653 = vrot.slane %v651, 7
      %v654 = vrot.slane %v653, 1
      %v656 = vshll.u32 %v640, 16
      %v658 = vsel %vm270, %v654, %v656
      %s659 = scalar_lea.vmem %s1, 96
      %v660 = vld [vmem:[%s659] sm:$0xf]
      %v661 = vld [vmem:[%s659 + $0x4] sm:$0xf]
      %v662 = vld [vmem:[%s659 + $0x8] sm:$0xf]
      %v663 = vld [vmem:[%s659 + $0xc] sm:$0xf]
      %v664 = vld [vmem:[%s659 + $0x10] sm:$0xf]
      %v665 = vld [vmem:[%s659 + $0x14] sm:$0xf]
      %v666 = vld [vmem:[%s659 + $0x18] sm:$0xf]
      %v667 = vld [vmem:[%s659 + $0x1c] sm:$0xf]
      %v668 = vcombine.low %v649, %v658
      %v670 = vunpack.c.l.s4 1966171168
      %v671 = vunpack.c.0.s8 %v670
      %v672 = vlaneseq
      %v673 = vshrl.u32 %v672, 7
      %v674 = vsub.s32 %v671, %v673
      %v675 = vrot.slane %v668, %v674
      %v677 = vunpack.c.l.s4 1966171168
      %v678 = vunpack.c.0.s8 %v677
      %v679 = vlaneseq
      %v680 = vshrl.u32 %v679, 7
      %v681 = vsub.s32 %v678, %v680
      %v682 = vrot.slane %v675, %v681
      %v691 = vunpack.c.l.b16 %v660
      %v692 = vunpack.c.l.b16 %v661
      %v693 = vunpack.c.l.b16 %v662
      %v694 = vunpack.c.l.b16 %v663
      %v695 = vunpack.c.l.b16 %v664
      %v696 = vunpack.c.l.b16 %v665
      %v697 = vunpack.c.l.b16 %v666
      %v698 = vunpack.c.l.b16 %v667
      %v699 = vpack.c.b16 %v692, %v691
      %v700 = vpack.c.b16 %v694, %v693
      %v701 = vpack.c.b16 %v696, %v695
      %v702 = vpack.c.b16 %v698, %v697
      %v708 = vsel %vm337, %v682, 0
      %710 = vmatprep.subr.bf16.mxu0 0
      %711 = vmatpush1.bf16.msra.mxu0 0
      %712 = vmatprep.subr.bf16.mxu0 0
      %713 = vmatpush1.bf16.msra.mxu0 0
      %714 = vmatprep.subr.bf16.mxu0 0
      %715 = vmatpush1.bf16.msra.mxu0 0
      %716 = vmatprep.subr.bf16.mxu0 0
      %717 = vmatpush1.bf16.msra.mxu0 0
      %718 = vmatprep.subr.bf16.mxu0 0
      %719 = vmatpush1.bf16.msra.mxu0 %v702
      %720 = vmatprep.subr.bf16.mxu0 0
      %721 = vmatpush1.bf16.msra.mxu0 %v701
      %722 = vmatprep.subr.bf16.mxu0 0
      %723 = vmatpush1.bf16.msra.mxu0 %v700
      %724 = vmatprep.subr.bf16.mxu0 0
      %725 = vmatpush1.bf16.msra.mxu0 %v699
      %726 = vmatprep.subr.bf16.mxu0 0
      %727 = vmatpush2.bf16.msra.mxu0 0
      %728 = vmatprep.subr.bf16.mxu0 0
      %729 = vmatpush2.bf16.msra.mxu0 0
      %730 = vmatprep.subr.bf16.mxu0 0
      %731 = vmatpush2.bf16.msra.mxu0 0
      %732 = vmatprep.subr.bf16.mxu0 0
      %733 = vmatpush2.bf16.msra.mxu0 0
      %734 = vmatprep.subr.bf16.mxu0 0
      %735 = vmatpush2.bf16.msra.mxu0 0
      %736 = vmatprep.subr.bf16.mxu0 0
      %737 = vmatpush2.bf16.msra.mxu0 0
      %738 = vmatprep.subr.bf16.mxu0 0
      %739 = vmatpush2.bf16.msra.mxu0 0
      %740 = vmatprep.subr.bf16.mxu0 0
      %741 = vmatpush2.bf16.msra.mxu0 0
      %742 = vmatprep.mubr.bf16.mxu0 0
      %743 = vmatmul.mubr.bf16.gmra.mxu0 %v708
      %v744 = vpop.f32.mrf.mxu0
      %v745 = vadd.f32 0.0, %v744
      %v746 = vpop.f32.mrf.mxu0
      %v747 = vpop.f32.mrf.mxu0
      %v748 = vpop.f32.mrf.mxu0
      %749 = vdwg.mxu0
      %v750 = vadd.f32 %v590, %v745
      %s751 = sadd.s32 %s195, 1
      %s752 = smul.addr %s751, 4
      %s753 = scalar_lea.vmem %s183, %s752
      %v754 = vld [vmem:[%s753] sm:$0x1]
      %v755 = vld [vmem:[%s753 + $0x4] sm:$0x1]
      %s756 = scalar_lea.vmem %s1, 128
      %v757 = vld [vmem:[%s756] sm:$0xf]
      %v758 = vld [vmem:[%s756 + $0x4] sm:$0xf]
      %v759 = vld [vmem:[%s756 + $0x8] sm:$0xf]
      %v760 = vld [vmem:[%s756 + $0xc] sm:$0xf]
      %v761 = vld [vmem:[%s756 + $0x10] sm:$0xf]
      %v762 = vld [vmem:[%s756 + $0x14] sm:$0xf]
      %v763 = vld [vmem:[%s756 + $0x18] sm:$0xf]
      %v764 = vld [vmem:[%s756 + $0x1c] sm:$0xf]
      %v767 = vcombine.low %v754, %v755
      %v769 = vunpack.c.l.s4 1966171168
      %v770 = vunpack.c.0.s8 %v769
      %v771 = vlaneseq
      %v772 = vshrl.u32 %v771, 7
      %v773 = vsub.s32 %v770, %v772
      %v774 = vrot.slane %v767, %v773
      %v776 = vunpack.c.l.s4 1966171168
      %v777 = vunpack.c.0.s8 %v776
      %v778 = vlaneseq
      %v779 = vshrl.u32 %v778, 7
      %v780 = vsub.s32 %v777, %v779
      %v781 = vrot.slane %v774, %v780
      %v790 = vunpack.c.l.b16 %v757
      %v791 = vunpack.c.l.b16 %v758
      %v792 = vunpack.c.l.b16 %v759
      %v793 = vunpack.c.l.b16 %v760
      %v794 = vunpack.c.l.b16 %v761
      %v795 = vunpack.c.l.b16 %v762
      %v796 = vunpack.c.l.b16 %v763
      %v797 = vunpack.c.l.b16 %v764
      %v798 = vpack.c.b16 %v791, %v790
      %v799 = vpack.c.b16 %v793, %v792
      %v800 = vpack.c.b16 %v795, %v794
      %v801 = vpack.c.b16 %v797, %v796
      %v807 = vsel %vm337, %v781, 0
      %809 = vmatprep.subr.bf16.mxu0 0
      %810 = vmatpush1.bf16.msra.mxu0 0
      %811 = vmatprep.subr.bf16.mxu0 0
      %812 = vmatpush1.bf16.msra.mxu0 0
      %813 = vmatprep.subr.bf16.mxu0 0
      %814 = vmatpush1.bf16.msra.mxu0 0
      %815 = vmatprep.subr.bf16.mxu0 0
      %816 = vmatpush1.bf16.msra.mxu0 0
      %817 = vmatprep.subr.bf16.mxu0 0
      %818 = vmatpush1.bf16.msra.mxu0 %v801
      %819 = vmatprep.subr.bf16.mxu0 0
      %820 = vmatpush1.bf16.msra.mxu0 %v800
      %821 = vmatprep.subr.bf16.mxu0 0
      %822 = vmatpush1.bf16.msra.mxu0 %v799
      %823 = vmatprep.subr.bf16.mxu0 0
      %824 = vmatpush1.bf16.msra.mxu0 %v798
      %825 = vmatprep.subr.bf16.mxu0 0
      %826 = vmatpush2.bf16.msra.mxu0 0
      %827 = vmatprep.subr.bf16.mxu0 0
      %828 = vmatpush2.bf16.msra.mxu0 0
      %829 = vmatprep.subr.bf16.mxu0 0
      %830 = vmatpush2.bf16.msra.mxu0 0
      %831 = vmatprep.subr.bf16.mxu0 0
      %832 = vmatpush2.bf16.msra.mxu0 0
      %833 = vmatprep.subr.bf16.mxu0 0
      %834 = vmatpush2.bf16.msra.mxu0 0
      %835 = vmatprep.subr.bf16.mxu0 0
      %836 = vmatpush2.bf16.msra.mxu0 0
      %837 = vmatprep.subr.bf16.mxu0 0
      %838 = vmatpush2.bf16.msra.mxu0 0
      %839 = vmatprep.subr.bf16.mxu0 0
      %840 = vmatpush2.bf16.msra.mxu0 0
      %841 = vmatprep.mubr.bf16.mxu0 0
      %842 = vmatmul.mubr.bf16.gmra.mxu0 %v807
      %v843 = vpop.f32.mrf.mxu0
      %v844 = vadd.f32 0.0, %v843
      %v845 = vpop.f32.mrf.mxu0
      %v846 = vpop.f32.mrf.mxu0
      %v847 = vpop.f32.mrf.mxu0
      %848 = vdwg.mxu0
      %v849 = vadd.f32 %v750, %v844
      %v850 = vld [vmem:[%s753] sm:$0x3]
      %v851 = vld [vmem:[%s753 + $0x4] sm:$0x3]
      %v855 = vunpack.c.l.s4 1966171168
      %v856 = vunpack.c.0.s8 %v855
      %v857 = vlaneseq
      %v858 = vshrl.u32 %v857, 7
      %v859 = vsub.s32 %v856, %v858
      %v860 = vrot.slane %v850, %v859
      %v861 = vcombine.high %v860, %v860
      %v863 = vunpack.c.l.s4 1966171168
      %v864 = vunpack.c.0.s8 %v863
      %v865 = vlaneseq
      %v866 = vshrl.u32 %v865, 7
      %v867 = vsub.s32 %v864, %v866
      %v868 = vrot.slane %v860, %v867
      %v870 = vunpack.c.l.s4 1966171168
      %v871 = vunpack.c.0.s8 %v870
      %v872 = vlaneseq
      %v873 = vshrl.u32 %v872, 7
      %v874 = vsub.s32 %v871, %v873
      %v875 = vrot.slane %v861, %v874
      %v877 = vunpack.c.l.s4 1966171168
      %v878 = vunpack.c.0.s8 %v877
      %v879 = vlaneseq
      %v880 = vshrl.u32 %v879, 7
      %v881 = vsub.s32 %v878, %v880
      %v882 = vrot.slane %v851, %v881
      %v883 = vcombine.high %v882, %v882
      %v885 = vunpack.c.l.s4 1966171168
      %v886 = vunpack.c.0.s8 %v885
      %v887 = vlaneseq
      %v888 = vshrl.u32 %v887, 7
      %v889 = vsub.s32 %v886, %v888
      %v890 = vrot.slane %v882, %v889
      %v892 = vunpack.c.l.s4 1966171168
      %v893 = vunpack.c.0.s8 %v892
      %v894 = vlaneseq
      %v895 = vshrl.u32 %v894, 7
      %v896 = vsub.s32 %v893, %v895
      %v897 = vrot.slane %v883, %v896
      %v899 = vshrl.u32 %v868, 16
      %v901 = vrot.slane %v899, 7
      %v902 = vrot.slane %v901, 1
      %v904 = vshll.u32 %v875, 16
      %v906 = vsel %vm270, %v902, %v904
      %v908 = vshrl.u32 %v890, 16
      %v910 = vrot.slane %v908, 7
      %v911 = vrot.slane %v910, 1
      %v913 = vshll.u32 %v897, 16
      %v915 = vsel %vm270, %v911, %v913
      %s916 = scalar_lea.vmem %s1, 160
      %v917 = vld [vmem:[%s916] sm:$0xf]
      %v918 = vld [vmem:[%s916 + $0x4] sm:$0xf]
      %v919 = vld [vmem:[%s916 + $0x8] sm:$0xf]
      %v920 = vld [vmem:[%s916 + $0xc] sm:$0xf]
      %v921 = vld [vmem:[%s916 + $0x10] sm:$0xf]
      %v922 = vld [vmem:[%s916 + $0x14] sm:$0xf]
      %v923 = vld [vmem:[%s916 + $0x18] sm:$0xf]
      %v924 = vld [vmem:[%s916 + $0x1c] sm:$0xf]
      %v925 = vcombine.low %v906, %v915
      %v927 = vunpack.c.l.s4 1966171168
      %v928 = vunpack.c.0.s8 %v927
      %v929 = vlaneseq
      %v930 = vshrl.u32 %v929, 7
      %v931 = vsub.s32 %v928, %v930
      %v932 = vrot.slane %v925, %v931
      %v934 = vunpack.c.l.s4 1966171168
      %v935 = vunpack.c.0.s8 %v934
      %v936 = vlaneseq
      %v937 = vshrl.u32 %v936, 7
      %v938 = vsub.s32 %v935, %v937
      %v939 = vrot.slane %v932, %v938
      %v948 = vunpack.c.l.b16 %v917
      %v949 = vunpack.c.l.b16 %v918
      %v950 = vunpack.c.l.b16 %v919
      %v951 = vunpack.c.l.b16 %v920
      %v952 = vunpack.c.l.b16 %v921
      %v953 = vunpack.c.l.b16 %v922
      %v954 = vunpack.c.l.b16 %v923
      %v955 = vunpack.c.l.b16 %v924
      %v956 = vpack.c.b16 %v949, %v948
      %v957 = vpack.c.b16 %v951, %v950
      %v958 = vpack.c.b16 %v953, %v952
      %v959 = vpack.c.b16 %v955, %v954
      %v965 = vsel %vm337, %v939, 0
      %967 = vmatprep.subr.bf16.mxu0 0
      %968 = vmatpush1.bf16.msra.mxu0 0
      %969 = vmatprep.subr.bf16.mxu0 0
      %970 = vmatpush1.bf16.msra.mxu0 0
      %971 = vmatprep.subr.bf16.mxu0 0
      %972 = vmatpush1.bf16.msra.mxu0 0
      %973 = vmatprep.subr.bf16.mxu0 0
      %974 = vmatpush1.bf16.msra.mxu0 0
      %975 = vmatprep.subr.bf16.mxu0 0
      %976 = vmatpush1.bf16.msra.mxu0 %v959
      %977 = vmatprep.subr.bf16.mxu0 0
      %978 = vmatpush1.bf16.msra.mxu0 %v958
      %979 = vmatprep.subr.bf16.mxu0 0
      %980 = vmatpush1.bf16.msra.mxu0 %v957
      %981 = vmatprep.subr.bf16.mxu0 0
      %982 = vmatpush1.bf16.msra.mxu0 %v956
      %983 = vmatprep.subr.bf16.mxu0 0
      %984 = vmatpush2.bf16.msra.mxu0 0
      %985 = vmatprep.subr.bf16.mxu0 0
      %986 = vmatpush2.bf16.msra.mxu0 0
      %987 = vmatprep.subr.bf16.mxu0 0
      %988 = vmatpush2.bf16.msra.mxu0 0
      %989 = vmatprep.subr.bf16.mxu0 0
      %990 = vmatpush2.bf16.msra.mxu0 0
      %991 = vmatprep.subr.bf16.mxu0 0
      %992 = vmatpush2.bf16.msra.mxu0 0
      %993 = vmatprep.subr.bf16.mxu0 0
      %994 = vmatpush2.bf16.msra.mxu0 0
      %995 = vmatprep.subr.bf16.mxu0 0
      %996 = vmatpush2.bf16.msra.mxu0 0
      %997 = vmatprep.subr.bf16.mxu0 0
      %998 = vmatpush2.bf16.msra.mxu0 0
      %999 = vmatprep.mubr.bf16.mxu0 0
      %1000 = vmatmul.mubr.bf16.gmra.mxu0 %v965
      %v1001 = vpop.f32.mrf.mxu0
      %v1002 = vadd.f32 0.0, %v1001
      %v1003 = vpop.f32.mrf.mxu0
      %v1004 = vpop.f32.mrf.mxu0
      %v1005 = vpop.f32.mrf.mxu0
      %1006 = vdwg.mxu0
      %v1007 = vadd.f32 %v849, %v1002
      %v1008 = vld [vmem:[%s753] sm:$0x2]
      %v1009 = vld [vmem:[%s753 + $0x4] sm:$0x2]
      %v1013 = vunpack.c.l.s4 1966171168
      %v1014 = vunpack.c.0.s8 %v1013
      %v1015 = vlaneseq
      %v1016 = vshrl.u32 %v1015, 7
      %v1017 = vsub.s32 %v1014, %v1016
      %v1018 = vrot.slane %v1008, %v1017
      %v1019 = vcombine.high %v1018, %v1018
      %v1021 = vunpack.c.l.s4 1966171168
      %v1022 = vunpack.c.0.s8 %v1021
      %v1023 = vlaneseq
      %v1024 = vshrl.u32 %v1023, 7
      %v1025 = vsub.s32 %v1022, %v1024
      %v1026 = vrot.slane %v1019, %v1025
      %v1028 = vunpack.c.l.s4 1966171168
      %v1029 = vunpack.c.0.s8 %v1028
      %v1030 = vlaneseq
      %v1031 = vshrl.u32 %v1030, 7
      %v1032 = vsub.s32 %v1029, %v1031
      %v1033 = vrot.slane %v1009, %v1032
      %v1034 = vcombine.high %v1033, %v1033
      %v1036 = vunpack.c.l.s4 1966171168
      %v1037 = vunpack.c.0.s8 %v1036
      %v1038 = vlaneseq
      %v1039 = vshrl.u32 %v1038, 7
      %v1040 = vsub.s32 %v1037, %v1039
      %v1041 = vrot.slane %v1034, %v1040
      %s1042 = scalar_lea.vmem %s1, 192
      %v1043 = vld [vmem:[%s1042] sm:$0xf]
      %v1044 = vld [vmem:[%s1042 + $0x4] sm:$0xf]
      %v1045 = vld [vmem:[%s1042 + $0x8] sm:$0xf]
      %v1046 = vld [vmem:[%s1042 + $0xc] sm:$0xf]
      %v1047 = vld [vmem:[%s1042 + $0x10] sm:$0xf]
      %v1048 = vld [vmem:[%s1042 + $0x14] sm:$0xf]
      %v1049 = vld [vmem:[%s1042 + $0x18] sm:$0xf]
      %v1050 = vld [vmem:[%s1042 + $0x1c] sm:$0xf]
      %v1051 = vcombine.low %v1026, %v1041
      %v1053 = vunpack.c.l.s4 1966171168
      %v1054 = vunpack.c.0.s8 %v1053
      %v1055 = vlaneseq
      %v1056 = vshrl.u32 %v1055, 7
      %v1057 = vsub.s32 %v1054, %v1056
      %v1058 = vrot.slane %v1051, %v1057
      %v1060 = vunpack.c.l.s4 1966171168
      %v1061 = vunpack.c.0.s8 %v1060
      %v1062 = vlaneseq
      %v1063 = vshrl.u32 %v1062, 7
      %v1064 = vsub.s32 %v1061, %v1063
      %v1065 = vrot.slane %v1058, %v1064
      %v1074 = vunpack.c.l.b16 %v1043
      %v1075 = vunpack.c.l.b16 %v1044
      %v1076 = vunpack.c.l.b16 %v1045
      %v1077 = vunpack.c.l.b16 %v1046
      %v1078 = vunpack.c.l.b16 %v1047
      %v1079 = vunpack.c.l.b16 %v1048
      %v1080 = vunpack.c.l.b16 %v1049
      %v1081 = vunpack.c.l.b16 %v1050
      %v1082 = vpack.c.b16 %v1075, %v1074
      %v1083 = vpack.c.b16 %v1077, %v1076
      %v1084 = vpack.c.b16 %v1079, %v1078
      %v1085 = vpack.c.b16 %v1081, %v1080
      %v1091 = vsel %vm337, %v1065, 0
      %1093 = vmatprep.subr.bf16.mxu0 0
      %1094 = vmatpush1.bf16.msra.mxu0 0
      %1095 = vmatprep.subr.bf16.mxu0 0
      %1096 = vmatpush1.bf16.msra.mxu0 0
      %1097 = vmatprep.subr.bf16.mxu0 0
      %1098 = vmatpush1.bf16.msra.mxu0 0
      %1099 = vmatprep.subr.bf16.mxu0 0
      %1100 = vmatpush1.bf16.msra.mxu0 0
      %1101 = vmatprep.subr.bf16.mxu0 0
      %1102 = vmatpush1.bf16.msra.mxu0 %v1085
      %1103 = vmatprep.subr.bf16.mxu0 0
      %1104 = vmatpush1.bf16.msra.mxu0 %v1084
      %1105 = vmatprep.subr.bf16.mxu0 0
      %1106 = vmatpush1.bf16.msra.mxu0 %v1083
      %1107 = vmatprep.subr.bf16.mxu0 0
      %1108 = vmatpush1.bf16.msra.mxu0 %v1082
      %1109 = vmatprep.subr.bf16.mxu0 0
      %1110 = vmatpush2.bf16.msra.mxu0 0
      %1111 = vmatprep.subr.bf16.mxu0 0
      %1112 = vmatpush2.bf16.msra.mxu0 0
      %1113 = vmatprep.subr.bf16.mxu0 0
      %1114 = vmatpush2.bf16.msra.mxu0 0
      %1115 = vmatprep.subr.bf16.mxu0 0
      %1116 = vmatpush2.bf16.msra.mxu0 0
      %1117 = vmatprep.subr.bf16.mxu0 0
      %1118 = vmatpush2.bf16.msra.mxu0 0
      %1119 = vmatprep.subr.bf16.mxu0 0
      %1120 = vmatpush2.bf16.msra.mxu0 0
      %1121 = vmatprep.subr.bf16.mxu0 0
      %1122 = vmatpush2.bf16.msra.mxu0 0
      %1123 = vmatprep.subr.bf16.mxu0 0
      %1124 = vmatpush2.bf16.msra.mxu0 0
      %1125 = vmatprep.mubr.bf16.mxu0 0
      %1126 = vmatmul.mubr.bf16.gmra.mxu0 %v1091
      %v1127 = vpop.f32.mrf.mxu0
      %v1128 = vadd.f32 0.0, %v1127
      %v1129 = vpop.f32.mrf.mxu0
      %v1130 = vpop.f32.mrf.mxu0
      %v1131 = vpop.f32.mrf.mxu0
      %1132 = vdwg.mxu0
      %v1133 = vadd.f32 %v1007, %v1128
      %v1134 = vld [vmem:[%s753] sm:$0x6]
      %v1135 = vld [vmem:[%s753 + $0x4] sm:$0x6]
      %v1139 = vunpack.c.l.s4 1966171168
      %v1140 = vunpack.c.0.s8 %v1139
      %v1141 = vlaneseq
      %v1142 = vshrl.u32 %v1141, 7
      %v1143 = vsub.s32 %v1140, %v1142
      %v1144 = vrot.slane %v1134, %v1143
      %v1145 = vcombine.high %v1144, %v1144
      %v1147 = vunpack.c.l.s4 1966171168
      %v1148 = vunpack.c.0.s8 %v1147
      %v1149 = vlaneseq
      %v1150 = vshrl.u32 %v1149, 7
      %v1151 = vsub.s32 %v1148, %v1150
      %v1152 = vrot.slane %v1144, %v1151
      %v1154 = vunpack.c.l.s4 1966171168
      %v1155 = vunpack.c.0.s8 %v1154
      %v1156 = vlaneseq
      %v1157 = vshrl.u32 %v1156, 7
      %v1158 = vsub.s32 %v1155, %v1157
      %v1159 = vrot.slane %v1145, %v1158
      %v1160 = vcombine.high %v1152, %v1152
      %v1162 = vunpack.c.l.s4 1966171168
      %v1163 = vunpack.c.0.s8 %v1162
      %v1164 = vlaneseq
      %v1165 = vshrl.u32 %v1164, 7
      %v1166 = vsub.s32 %v1163, %v1165
      %v1167 = vrot.slane %v1135, %v1166
      %v1168 = vcombine.high %v1167, %v1167
      %v1170 = vunpack.c.l.s4 1966171168
      %v1171 = vunpack.c.0.s8 %v1170
      %v1172 = vlaneseq
      %v1173 = vshrl.u32 %v1172, 7
      %v1174 = vsub.s32 %v1171, %v1173
      %v1175 = vrot.slane %v1167, %v1174
      %v1177 = vunpack.c.l.s4 1966171168
      %v1178 = vunpack.c.0.s8 %v1177
      %v1179 = vlaneseq
      %v1180 = vshrl.u32 %v1179, 7
      %v1181 = vsub.s32 %v1178, %v1180
      %v1182 = vrot.slane %v1168, %v1181
      %v1183 = vcombine.high %v1175, %v1175
      %v1185 = vshrl.u32 %v1159, 16
      %v1187 = vrot.slane %v1185, 7
      %v1188 = vrot.slane %v1187, 1
      %v1190 = vshll.u32 %v1160, 16
      %v1192 = vsel %vm270, %v1188, %v1190
      %v1194 = vshrl.u32 %v1182, 16
      %v1196 = vrot.slane %v1194, 7
      %v1197 = vrot.slane %v1196, 1
      %v1199 = vshll.u32 %v1183, 16
      %v1201 = vsel %vm270, %v1197, %v1199
      %s1202 = scalar_lea.vmem %s1, 224
      %v1203 = vld [vmem:[%s1202] sm:$0xf]
      %v1204 = vld [vmem:[%s1202 + $0x4] sm:$0xf]
      %v1205 = vld [vmem:[%s1202 + $0x8] sm:$0xf]
      %v1206 = vld [vmem:[%s1202 + $0xc] sm:$0xf]
      %v1207 = vld [vmem:[%s1202 + $0x10] sm:$0xf]
      %v1208 = vld [vmem:[%s1202 + $0x14] sm:$0xf]
      %v1209 = vld [vmem:[%s1202 + $0x18] sm:$0xf]
      %v1210 = vld [vmem:[%s1202 + $0x1c] sm:$0xf]
      %v1211 = vcombine.low %v1192, %v1201
      %v1213 = vunpack.c.l.s4 1966171168
      %v1214 = vunpack.c.0.s8 %v1213
      %v1215 = vlaneseq
      %v1216 = vshrl.u32 %v1215, 7
      %v1217 = vsub.s32 %v1214, %v1216
      %v1218 = vrot.slane %v1211, %v1217
      %v1220 = vunpack.c.l.s4 1966171168
      %v1221 = vunpack.c.0.s8 %v1220
      %v1222 = vlaneseq
      %v1223 = vshrl.u32 %v1222, 7
      %v1224 = vsub.s32 %v1221, %v1223
      %v1225 = vrot.slane %v1218, %v1224
      %v1234 = vunpack.c.l.b16 %v1203
      %v1235 = vunpack.c.l.b16 %v1204
      %v1236 = vunpack.c.l.b16 %v1205
      %v1237 = vunpack.c.l.b16 %v1206
      %v1238 = vunpack.c.l.b16 %v1207
      %v1239 = vunpack.c.l.b16 %v1208
      %v1240 = vunpack.c.l.b16 %v1209
      %v1241 = vunpack.c.l.b16 %v1210
      %v1242 = vpack.c.b16 %v1235, %v1234
      %v1243 = vpack.c.b16 %v1237, %v1236
      %v1244 = vpack.c.b16 %v1239, %v1238
      %v1245 = vpack.c.b16 %v1241, %v1240
      %v1251 = vsel %vm337, %v1225, 0
      %1253 = vmatprep.subr.bf16.mxu0 0
      %1254 = vmatpush1.bf16.msra.mxu0 0
      %1255 = vmatprep.subr.bf16.mxu0 0
      %1256 = vmatpush1.bf16.msra.mxu0 0
      %1257 = vmatprep.subr.bf16.mxu0 0
      %1258 = vmatpush1.bf16.msra.mxu0 0
      %1259 = vmatprep.subr.bf16.mxu0 0
      %1260 = vmatpush1.bf16.msra.mxu0 0
      %1261 = vmatprep.subr.bf16.mxu0 0
      %1262 = vmatpush1.bf16.msra.mxu0 %v1245
      %1263 = vmatprep.subr.bf16.mxu0 0
      %1264 = vmatpush1.bf16.msra.mxu0 %v1244
      %1265 = vmatprep.subr.bf16.mxu0 0
      %1266 = vmatpush1.bf16.msra.mxu0 %v1243
      %1267 = vmatprep.subr.bf16.mxu0 0
      %1268 = vmatpush1.bf16.msra.mxu0 %v1242
      %1269 = vmatprep.subr.bf16.mxu0 0
      %1270 = vmatpush2.bf16.msra.mxu0 0
      %1271 = vmatprep.subr.bf16.mxu0 0
      %1272 = vmatpush2.bf16.msra.mxu0 0
      %1273 = vmatprep.subr.bf16.mxu0 0
      %1274 = vmatpush2.bf16.msra.mxu0 0
      %1275 = vmatprep.subr.bf16.mxu0 0
      %1276 = vmatpush2.bf16.msra.mxu0 0
      %1277 = vmatprep.subr.bf16.mxu0 0
      %1278 = vmatpush2.bf16.msra.mxu0 0
      %1279 = vmatprep.subr.bf16.mxu0 0
      %1280 = vmatpush2.bf16.msra.mxu0 0
      %1281 = vmatprep.subr.bf16.mxu0 0
      %1282 = vmatpush2.bf16.msra.mxu0 0
      %1283 = vmatprep.subr.bf16.mxu0 0
      %1284 = vmatpush2.bf16.msra.mxu0 0
      %1285 = vmatprep.mubr.bf16.mxu0 0
      %1286 = vmatmul.mubr.bf16.gmra.mxu0 %v1251
      %v1287 = vpop.f32.mrf.mxu0
      %v1288 = vadd.f32 0.0, %v1287
      %v1289 = vpop.f32.mrf.mxu0
      %v1290 = vpop.f32.mrf.mxu0
      %v1291 = vpop.f32.mrf.mxu0
      %1292 = vdwg.mxu0
      %v1293 = vadd.f32 %v1133, %v1288
      %s1294 = sadd.s32 %s195, 2
      %s1295 = smul.addr %s1294, 4
      %s1296 = scalar_lea.vmem %s183, %s1295
      %v1297 = vld [vmem:[%s1296] sm:$0x1]
      %v1298 = vld [vmem:[%s1296 + $0x4] sm:$0x1]
      %s1299 = scalar_lea.vmem %s1, 256
      %v1300 = vld [vmem:[%s1299] sm:$0xf]
      %v1301 = vld [vmem:[%s1299 + $0x4] sm:$0xf]
      %v1302 = vld [vmem:[%s1299 + $0x8] sm:$0xf]
      %v1303 = vld [vmem:[%s1299 + $0xc] sm:$0xf]
      %v1304 = vld [vmem:[%s1299 + $0x10] sm:$0xf]
      %v1305 = vld [vmem:[%s1299 + $0x14] sm:$0xf]
      %v1306 = vld [vmem:[%s1299 + $0x18] sm:$0xf]
      %v1307 = vld [vmem:[%s1299 + $0x1c] sm:$0xf]
      %v1310 = vcombine.low %v1297, %v1298
      %v1312 = vunpack.c.l.s4 1966171168
      %v1313 = vunpack.c.0.s8 %v1312
      %v1314 = vlaneseq
      %v1315 = vshrl.u32 %v1314, 7
      %v1316 = vsub.s32 %v1313, %v1315
      %v1317 = vrot.slane %v1310, %v1316
      %v1319 = vunpack.c.l.s4 1966171168
      %v1320 = vunpack.c.0.s8 %v1319
      %v1321 = vlaneseq
      %v1322 = vshrl.u32 %v1321, 7
      %v1323 = vsub.s32 %v1320, %v1322
      %v1324 = vrot.slane %v1317, %v1323
      %v1333 = vunpack.c.l.b16 %v1300
      %v1334 = vunpack.c.l.b16 %v1301
      %v1335 = vunpack.c.l.b16 %v1302
      %v1336 = vunpack.c.l.b16 %v1303
      %v1337 = vunpack.c.l.b16 %v1304
      %v1338 = vunpack.c.l.b16 %v1305
      %v1339 = vunpack.c.l.b16 %v1306
      %v1340 = vunpack.c.l.b16 %v1307
      %v1341 = vpack.c.b16 %v1334, %v1333
      %v1342 = vpack.c.b16 %v1336, %v1335
      %v1343 = vpack.c.b16 %v1338, %v1337
      %v1344 = vpack.c.b16 %v1340, %v1339
      %v1350 = vsel %vm337, %v1324, 0
      %1352 = vmatprep.subr.bf16.mxu0 0
      %1353 = vmatpush1.bf16.msra.mxu0 0
      %1354 = vmatprep.subr.bf16.mxu0 0
      %1355 = vmatpush1.bf16.msra.mxu0 0
      %1356 = vmatprep.subr.bf16.mxu0 0
      %1357 = vmatpush1.bf16.msra.mxu0 0
      %1358 = vmatprep.subr.bf16.mxu0 0
      %1359 = vmatpush1.bf16.msra.mxu0 0
      %1360 = vmatprep.subr.bf16.mxu0 0
      %1361 = vmatpush1.bf16.msra.mxu0 %v1344
      %1362 = vmatprep.subr.bf16.mxu0 0
      %1363 = vmatpush1.bf16.msra.mxu0 %v1343
      %1364 = vmatprep.subr.bf16.mxu0 0
      %1365 = vmatpush1.bf16.msra.mxu0 %v1342
      %1366 = vmatprep.subr.bf16.mxu0 0
      %1367 = vmatpush1.bf16.msra.mxu0 %v1341
      %1368 = vmatprep.subr.bf16.mxu0 0
      %1369 = vmatpush2.bf16.msra.mxu0 0
      %1370 = vmatprep.subr.bf16.mxu0 0
      %1371 = vmatpush2.bf16.msra.mxu0 0
      %1372 = vmatprep.subr.bf16.mxu0 0
      %1373 = vmatpush2.bf16.msra.mxu0 0
      %1374 = vmatprep.subr.bf16.mxu0 0
      %1375 = vmatpush2.bf16.msra.mxu0 0
      %1376 = vmatprep.subr.bf16.mxu0 0
      %1377 = vmatpush2.bf16.msra.mxu0 0
      %1378 = vmatprep.subr.bf16.mxu0 0
      %1379 = vmatpush2.bf16.msra.mxu0 0
      %1380 = vmatprep.subr.bf16.mxu0 0
      %1381 = vmatpush2.bf16.msra.mxu0 0
      %1382 = vmatprep.subr.bf16.mxu0 0
      %1383 = vmatpush2.bf16.msra.mxu0 0
      %1384 = vmatprep.mubr.bf16.mxu0 0
      %1385 = vmatmul.mubr.bf16.gmra.mxu0 %v1350
      %v1386 = vpop.f32.mrf.mxu0
      %v1387 = vadd.f32 0.0, %v1386
      %v1388 = vpop.f32.mrf.mxu0
      %v1389 = vpop.f32.mrf.mxu0
      %v1390 = vpop.f32.mrf.mxu0
      %1391 = vdwg.mxu0
      %v1392 = vadd.f32 %v1293, %v1387
      %v1393 = vld [vmem:[%s1296] sm:$0x3]
      %v1394 = vld [vmem:[%s1296 + $0x4] sm:$0x3]
      %v1398 = vunpack.c.l.s4 1966171168
      %v1399 = vunpack.c.0.s8 %v1398
      %v1400 = vlaneseq
      %v1401 = vshrl.u32 %v1400, 7
      %v1402 = vsub.s32 %v1399, %v1401
      %v1403 = vrot.slane %v1393, %v1402
      %v1404 = vcombine.high %v1403, %v1403
      %v1406 = vunpack.c.l.s4 1966171168
      %v1407 = vunpack.c.0.s8 %v1406
      %v1408 = vlaneseq
      %v1409 = vshrl.u32 %v1408, 7
      %v1410 = vsub.s32 %v1407, %v1409
      %v1411 = vrot.slane %v1403, %v1410
      %v1413 = vunpack.c.l.s4 1966171168
      %v1414 = vunpack.c.0.s8 %v1413
      %v1415 = vlaneseq
      %v1416 = vshrl.u32 %v1415, 7
      %v1417 = vsub.s32 %v1414, %v1416
      %v1418 = vrot.slane %v1404, %v1417
      %v1420 = vunpack.c.l.s4 1966171168
      %v1421 = vunpack.c.0.s8 %v1420
      %v1422 = vlaneseq
      %v1423 = vshrl.u32 %v1422, 7
      %v1424 = vsub.s32 %v1421, %v1423
      %v1425 = vrot.slane %v1394, %v1424
      %v1426 = vcombine.high %v1425, %v1425
      %v1428 = vunpack.c.l.s4 1966171168
      %v1429 = vunpack.c.0.s8 %v1428
      %v1430 = vlaneseq
      %v1431 = vshrl.u32 %v1430, 7
      %v1432 = vsub.s32 %v1429, %v1431
      %v1433 = vrot.slane %v1425, %v1432
      %v1435 = vunpack.c.l.s4 1966171168
      %v1436 = vunpack.c.0.s8 %v1435
      %v1437 = vlaneseq
      %v1438 = vshrl.u32 %v1437, 7
      %v1439 = vsub.s32 %v1436, %v1438
      %v1440 = vrot.slane %v1426, %v1439
      %v1442 = vshrl.u32 %v1411, 16
      %v1444 = vrot.slane %v1442, 7
      %v1445 = vrot.slane %v1444, 1
      %v1447 = vshll.u32 %v1418, 16
      %v1449 = vsel %vm270, %v1445, %v1447
      %v1451 = vshrl.u32 %v1433, 16
      %v1453 = vrot.slane %v1451, 7
      %v1454 = vrot.slane %v1453, 1
      %v1456 = vshll.u32 %v1440, 16
      %v1458 = vsel %vm270, %v1454, %v1456
      %s1459 = scalar_lea.vmem %s1, 288
      %v1460 = vld [vmem:[%s1459] sm:$0xf]
      %v1461 = vld [vmem:[%s1459 + $0x4] sm:$0xf]
      %v1462 = vld [vmem:[%s1459 + $0x8] sm:$0xf]
      %v1463 = vld [vmem:[%s1459 + $0xc] sm:$0xf]
      %v1464 = vld [vmem:[%s1459 + $0x10] sm:$0xf]
      %v1465 = vld [vmem:[%s1459 + $0x14] sm:$0xf]
      %v1466 = vld [vmem:[%s1459 + $0x18] sm:$0xf]
      %v1467 = vld [vmem:[%s1459 + $0x1c] sm:$0xf]
      %v1468 = vcombine.low %v1449, %v1458
      %v1470 = vunpack.c.l.s4 1966171168
      %v1471 = vunpack.c.0.s8 %v1470
      %v1472 = vlaneseq
      %v1473 = vshrl.u32 %v1472, 7
      %v1474 = vsub.s32 %v1471, %v1473
      %v1475 = vrot.slane %v1468, %v1474
      %v1477 = vunpack.c.l.s4 1966171168
      %v1478 = vunpack.c.0.s8 %v1477
      %v1479 = vlaneseq
      %v1480 = vshrl.u32 %v1479, 7
      %v1481 = vsub.s32 %v1478, %v1480
      %v1482 = vrot.slane %v1475, %v1481
      %v1491 = vunpack.c.l.b16 %v1460
      %v1492 = vunpack.c.l.b16 %v1461
      %v1493 = vunpack.c.l.b16 %v1462
      %v1494 = vunpack.c.l.b16 %v1463
      %v1495 = vunpack.c.l.b16 %v1464
      %v1496 = vunpack.c.l.b16 %v1465
      %v1497 = vunpack.c.l.b16 %v1466
      %v1498 = vunpack.c.l.b16 %v1467
      %v1499 = vpack.c.b16 %v1492, %v1491
      %v1500 = vpack.c.b16 %v1494, %v1493
      %v1501 = vpack.c.b16 %v1496, %v1495
      %v1502 = vpack.c.b16 %v1498, %v1497
      %v1508 = vsel %vm337, %v1482, 0
      %1510 = vmatprep.subr.bf16.mxu0 0
      %1511 = vmatpush1.bf16.msra.mxu0 0
      %1512 = vmatprep.subr.bf16.mxu0 0
      %1513 = vmatpush1.bf16.msra.mxu0 0
      %1514 = vmatprep.subr.bf16.mxu0 0
      %1515 = vmatpush1.bf16.msra.mxu0 0
      %1516 = vmatprep.subr.bf16.mxu0 0
      %1517 = vmatpush1.bf16.msra.mxu0 0
      %1518 = vmatprep.subr.bf16.mxu0 0
      %1519 = vmatpush1.bf16.msra.mxu0 %v1502
      %1520 = vmatprep.subr.bf16.mxu0 0
      %1521 = vmatpush1.bf16.msra.mxu0 %v1501
      %1522 = vmatprep.subr.bf16.mxu0 0
      %1523 = vmatpush1.bf16.msra.mxu0 %v1500
      %1524 = vmatprep.subr.bf16.mxu0 0
      %1525 = vmatpush1.bf16.msra.mxu0 %v1499
      %1526 = vmatprep.subr.bf16.mxu0 0
      %1527 = vmatpush2.bf16.msra.mxu0 0
      %1528 = vmatprep.subr.bf16.mxu0 0
      %1529 = vmatpush2.bf16.msra.mxu0 0
      %1530 = vmatprep.subr.bf16.mxu0 0
      %1531 = vmatpush2.bf16.msra.mxu0 0
      %1532 = vmatprep.subr.bf16.mxu0 0
      %1533 = vmatpush2.bf16.msra.mxu0 0
      %1534 = vmatprep.subr.bf16.mxu0 0
      %1535 = vmatpush2.bf16.msra.mxu0 0
      %1536 = vmatprep.subr.bf16.mxu0 0
      %1537 = vmatpush2.bf16.msra.mxu0 0
      %1538 = vmatprep.subr.bf16.mxu0 0
      %1539 = vmatpush2.bf16.msra.mxu0 0
      %1540 = vmatprep.subr.bf16.mxu0 0
      %1541 = vmatpush2.bf16.msra.mxu0 0
      %1542 = vmatprep.mubr.bf16.mxu0 0
      %1543 = vmatmul.mubr.bf16.gmra.mxu0 %v1508
      %v1544 = vpop.f32.mrf.mxu0
      %v1545 = vadd.f32 0.0, %v1544
      %v1546 = vpop.f32.mrf.mxu0
      %v1547 = vpop.f32.mrf.mxu0
      %v1548 = vpop.f32.mrf.mxu0
      %1549 = vdwg.mxu0
      %v1550 = vadd.f32 %v1392, %v1545
      %v1551 = vld [vmem:[%s1296] sm:$0x2]
      %v1552 = vld [vmem:[%s1296 + $0x4] sm:$0x2]
      %v1556 = vunpack.c.l.s4 1966171168
      %v1557 = vunpack.c.0.s8 %v1556
      %v1558 = vlaneseq
      %v1559 = vshrl.u32 %v1558, 7
      %v1560 = vsub.s32 %v1557, %v1559
      %v1561 = vrot.slane %v1551, %v1560
      %v1562 = vcombine.high %v1561, %v1561
      %v1564 = vunpack.c.l.s4 1966171168
      %v1565 = vunpack.c.0.s8 %v1564
      %v1566 = vlaneseq
      %v1567 = vshrl.u32 %v1566, 7
      %v1568 = vsub.s32 %v1565, %v1567
      %v1569 = vrot.slane %v1562, %v1568
      %v1571 = vunpack.c.l.s4 1966171168
      %v1572 = vunpack.c.0.s8 %v1571
      %v1573 = vlaneseq
      %v1574 = vshrl.u32 %v1573, 7
      %v1575 = vsub.s32 %v1572, %v1574
      %v1576 = vrot.slane %v1552, %v1575
      %v1577 = vcombine.high %v1576, %v1576
      %v1579 = vunpack.c.l.s4 1966171168
      %v1580 = vunpack.c.0.s8 %v1579
      %v1581 = vlaneseq
      %v1582 = vshrl.u32 %v1581, 7
      %v1583 = vsub.s32 %v1580, %v1582
      %v1584 = vrot.slane %v1577, %v1583
      %s1585 = scalar_lea.vmem %s1, 320
      %v1586 = vld [vmem:[%s1585] sm:$0xf]
      %v1587 = vld [vmem:[%s1585 + $0x4] sm:$0xf]
      %v1588 = vld [vmem:[%s1585 + $0x8] sm:$0xf]
      %v1589 = vld [vmem:[%s1585 + $0xc] sm:$0xf]
      %v1590 = vld [vmem:[%s1585 + $0x10] sm:$0xf]
      %v1591 = vld [vmem:[%s1585 + $0x14] sm:$0xf]
      %v1592 = vld [vmem:[%s1585 + $0x18] sm:$0xf]
      %v1593 = vld [vmem:[%s1585 + $0x1c] sm:$0xf]
      %v1594 = vcombine.low %v1569, %v1584
      %v1596 = vunpack.c.l.s4 1966171168
      %v1597 = vunpack.c.0.s8 %v1596
      %v1598 = vlaneseq
      %v1599 = vshrl.u32 %v1598, 7
      %v1600 = vsub.s32 %v1597, %v1599
      %v1601 = vrot.slane %v1594, %v1600
      %v1603 = vunpack.c.l.s4 1966171168
      %v1604 = vunpack.c.0.s8 %v1603
      %v1605 = vlaneseq
      %v1606 = vshrl.u32 %v1605, 7
      %v1607 = vsub.s32 %v1604, %v1606
      %v1608 = vrot.slane %v1601, %v1607
      %v1617 = vunpack.c.l.b16 %v1586
      %v1618 = vunpack.c.l.b16 %v1587
      %v1619 = vunpack.c.l.b16 %v1588
      %v1620 = vunpack.c.l.b16 %v1589
      %v1621 = vunpack.c.l.b16 %v1590
      %v1622 = vunpack.c.l.b16 %v1591
      %v1623 = vunpack.c.l.b16 %v1592
      %v1624 = vunpack.c.l.b16 %v1593
      %v1625 = vpack.c.b16 %v1618, %v1617
      %v1626 = vpack.c.b16 %v1620, %v1619
      %v1627 = vpack.c.b16 %v1622, %v1621
      %v1628 = vpack.c.b16 %v1624, %v1623
      %v1634 = vsel %vm337, %v1608, 0
      %1636 = vmatprep.subr.bf16.mxu0 0
      %1637 = vmatpush1.bf16.msra.mxu0 0
      %1638 = vmatprep.subr.bf16.mxu0 0
      %1639 = vmatpush1.bf16.msra.mxu0 0
      %1640 = vmatprep.subr.bf16.mxu0 0
      %1641 = vmatpush1.bf16.msra.mxu0 0
      %1642 = vmatprep.subr.bf16.mxu0 0
      %1643 = vmatpush1.bf16.msra.mxu0 0
      %1644 = vmatprep.subr.bf16.mxu0 0
      %1645 = vmatpush1.bf16.msra.mxu0 %v1628
      %1646 = vmatprep.subr.bf16.mxu0 0
      %1647 = vmatpush1.bf16.msra.mxu0 %v1627
      %1648 = vmatprep.subr.bf16.mxu0 0
      %1649 = vmatpush1.bf16.msra.mxu0 %v1626
      %1650 = vmatprep.subr.bf16.mxu0 0
      %1651 = vmatpush1.bf16.msra.mxu0 %v1625
      %1652 = vmatprep.subr.bf16.mxu0 0
      %1653 = vmatpush2.bf16.msra.mxu0 0
      %1654 = vmatprep.subr.bf16.mxu0 0
      %1655 = vmatpush2.bf16.msra.mxu0 0
      %1656 = vmatprep.subr.bf16.mxu0 0
      %1657 = vmatpush2.bf16.msra.mxu0 0
      %1658 = vmatprep.subr.bf16.mxu0 0
      %1659 = vmatpush2.bf16.msra.mxu0 0
      %1660 = vmatprep.subr.bf16.mxu0 0
      %1661 = vmatpush2.bf16.msra.mxu0 0
      %1662 = vmatprep.subr.bf16.mxu0 0
      %1663 = vmatpush2.bf16.msra.mxu0 0
      %1664 = vmatprep.subr.bf16.mxu0 0
      %1665 = vmatpush2.bf16.msra.mxu0 0
      %1666 = vmatprep.subr.bf16.mxu0 0
      %1667 = vmatpush2.bf16.msra.mxu0 0
      %1668 = vmatprep.mubr.bf16.mxu0 0
      %1669 = vmatmul.mubr.bf16.gmra.mxu0 %v1634
      %v1670 = vpop.f32.mrf.mxu0
      %v1671 = vadd.f32 0.0, %v1670
      %v1672 = vpop.f32.mrf.mxu0
      %v1673 = vpop.f32.mrf.mxu0
      %v1674 = vpop.f32.mrf.mxu0
      %1675 = vdwg.mxu0
      %v1676 = vadd.f32 %v1550, %v1671
      %v1677 = vld [vmem:[%s1296] sm:$0x6]
      %v1678 = vld [vmem:[%s1296 + $0x4] sm:$0x6]
      %v1682 = vunpack.c.l.s4 1966171168
      %v1683 = vunpack.c.0.s8 %v1682
      %v1684 = vlaneseq
      %v1685 = vshrl.u32 %v1684, 7
      %v1686 = vsub.s32 %v1683, %v1685
      %v1687 = vrot.slane %v1677, %v1686
      %v1688 = vcombine.high %v1687, %v1687
      %v1690 = vunpack.c.l.s4 1966171168
      %v1691 = vunpack.c.0.s8 %v1690
      %v1692 = vlaneseq
      %v1693 = vshrl.u32 %v1692, 7
      %v1694 = vsub.s32 %v1691, %v1693
      %v1695 = vrot.slane %v1687, %v1694
      %v1697 = vunpack.c.l.s4 1966171168
      %v1698 = vunpack.c.0.s8 %v1697
      %v1699 = vlaneseq
      %v1700 = vshrl.u32 %v1699, 7
      %v1701 = vsub.s32 %v1698, %v1700
      %v1702 = vrot.slane %v1688, %v1701
      %v1703 = vcombine.high %v1695, %v1695
      %v1705 = vunpack.c.l.s4 1966171168
      %v1706 = vunpack.c.0.s8 %v1705
      %v1707 = vlaneseq
      %v1708 = vshrl.u32 %v1707, 7
      %v1709 = vsub.s32 %v1706, %v1708
      %v1710 = vrot.slane %v1678, %v1709
      %v1711 = vcombine.high %v1710, %v1710
      %v1713 = vunpack.c.l.s4 1966171168
      %v1714 = vunpack.c.0.s8 %v1713
      %v1715 = vlaneseq
      %v1716 = vshrl.u32 %v1715, 7
      %v1717 = vsub.s32 %v1714, %v1716
      %v1718 = vrot.slane %v1710, %v1717
      %v1720 = vunpack.c.l.s4 1966171168
      %v1721 = vunpack.c.0.s8 %v1720
      %v1722 = vlaneseq
      %v1723 = vshrl.u32 %v1722, 7
      %v1724 = vsub.s32 %v1721, %v1723
      %v1725 = vrot.slane %v1711, %v1724
      %v1726 = vcombine.high %v1718, %v1718
      %v1728 = vshrl.u32 %v1702, 16
      %v1730 = vrot.slane %v1728, 7
      %v1731 = vrot.slane %v1730, 1
      %v1733 = vshll.u32 %v1703, 16
      %v1735 = vsel %vm270, %v1731, %v1733
      %v1737 = vshrl.u32 %v1725, 16
      %v1739 = vrot.slane %v1737, 7
      %v1740 = vrot.slane %v1739, 1
      %v1742 = vshll.u32 %v1726, 16
      %v1744 = vsel %vm270, %v1740, %v1742
      %s1745 = scalar_lea.vmem %s1, 352
      %v1746 = vld [vmem:[%s1745] sm:$0xf]
      %v1747 = vld [vmem:[%s1745 + $0x4] sm:$0xf]
      %v1748 = vld [vmem:[%s1745 + $0x8] sm:$0xf]
      %v1749 = vld [vmem:[%s1745 + $0xc] sm:$0xf]
      %v1750 = vld [vmem:[%s1745 + $0x10] sm:$0xf]
      %v1751 = vld [vmem:[%s1745 + $0x14] sm:$0xf]
      %v1752 = vld [vmem:[%s1745 + $0x18] sm:$0xf]
      %v1753 = vld [vmem:[%s1745 + $0x1c] sm:$0xf]
      %v1754 = vcombine.low %v1735, %v1744
      %v1756 = vunpack.c.l.s4 1966171168
      %v1757 = vunpack.c.0.s8 %v1756
      %v1758 = vlaneseq
      %v1759 = vshrl.u32 %v1758, 7
      %v1760 = vsub.s32 %v1757, %v1759
      %v1761 = vrot.slane %v1754, %v1760
      %v1763 = vunpack.c.l.s4 1966171168
      %v1764 = vunpack.c.0.s8 %v1763
      %v1765 = vlaneseq
      %v1766 = vshrl.u32 %v1765, 7
      %v1767 = vsub.s32 %v1764, %v1766
      %v1768 = vrot.slane %v1761, %v1767
      %v1777 = vunpack.c.l.b16 %v1746
      %v1778 = vunpack.c.l.b16 %v1747
      %v1779 = vunpack.c.l.b16 %v1748
      %v1780 = vunpack.c.l.b16 %v1749
      %v1781 = vunpack.c.l.b16 %v1750
      %v1782 = vunpack.c.l.b16 %v1751
      %v1783 = vunpack.c.l.b16 %v1752
      %v1784 = vunpack.c.l.b16 %v1753
      %v1785 = vpack.c.b16 %v1778, %v1777
      %v1786 = vpack.c.b16 %v1780, %v1779
      %v1787 = vpack.c.b16 %v1782, %v1781
      %v1788 = vpack.c.b16 %v1784, %v1783
      %v1794 = vsel %vm337, %v1768, 0
      %1796 = vmatprep.subr.bf16.mxu0 0
      %1797 = vmatpush1.bf16.msra.mxu0 0
      %1798 = vmatprep.subr.bf16.mxu0 0
      %1799 = vmatpush1.bf16.msra.mxu0 0
      %1800 = vmatprep.subr.bf16.mxu0 0
      %1801 = vmatpush1.bf16.msra.mxu0 0
      %1802 = vmatprep.subr.bf16.mxu0 0
      %1803 = vmatpush1.bf16.msra.mxu0 0
      %1804 = vmatprep.subr.bf16.mxu0 0
      %1805 = vmatpush1.bf16.msra.mxu0 %v1788
      %1806 = vmatprep.subr.bf16.mxu0 0
      %1807 = vmatpush1.bf16.msra.mxu0 %v1787
      %1808 = vmatprep.subr.bf16.mxu0 0
      %1809 = vmatpush1.bf16.msra.mxu0 %v1786
      %1810 = vmatprep.subr.bf16.mxu0 0
      %1811 = vmatpush1.bf16.msra.mxu0 %v1785
      %1812 = vmatprep.subr.bf16.mxu0 0
      %1813 = vmatpush2.bf16.msra.mxu0 0
      %1814 = vmatprep.subr.bf16.mxu0 0
      %1815 = vmatpush2.bf16.msra.mxu0 0
      %1816 = vmatprep.subr.bf16.mxu0 0
      %1817 = vmatpush2.bf16.msra.mxu0 0
      %1818 = vmatprep.subr.bf16.mxu0 0
      %1819 = vmatpush2.bf16.msra.mxu0 0
      %1820 = vmatprep.subr.bf16.mxu0 0
      %1821 = vmatpush2.bf16.msra.mxu0 0
      %1822 = vmatprep.subr.bf16.mxu0 0
      %1823 = vmatpush2.bf16.msra.mxu0 0
      %1824 = vmatprep.subr.bf16.mxu0 0
      %1825 = vmatpush2.bf16.msra.mxu0 0
      %1826 = vmatprep.subr.bf16.mxu0 0
      %1827 = vmatpush2.bf16.msra.mxu0 0
      %1828 = vmatprep.mubr.bf16.mxu0 0
      %1829 = vmatmul.mubr.bf16.gmra.mxu0 %v1794
      %v1830 = vpop.f32.mrf.mxu0
      %v1831 = vadd.f32 0.0, %v1830
      %v1832 = vpop.f32.mrf.mxu0
      %v1833 = vpop.f32.mrf.mxu0
      %v1834 = vpop.f32.mrf.mxu0
      %1835 = vdwg.mxu0
      %v1836 = vadd.f32 %v1676, %v1831
      %s1837 = sadd.s32 %s195, 3
      %s1838 = smul.addr %s1837, 4
      %s1839 = scalar_lea.vmem %s183, %s1838
      %v1840 = vld [vmem:[%s1839] sm:$0x1]
      %v1841 = vld [vmem:[%s1839 + $0x4] sm:$0x1]
      %s1842 = scalar_lea.vmem %s1, 384
      %v1843 = vld [vmem:[%s1842] sm:$0xf]
      %v1844 = vld [vmem:[%s1842 + $0x4] sm:$0xf]
      %v1845 = vld [vmem:[%s1842 + $0x8] sm:$0xf]
      %v1846 = vld [vmem:[%s1842 + $0xc] sm:$0xf]
      %v1847 = vld [vmem:[%s1842 + $0x10] sm:$0xf]
      %v1848 = vld [vmem:[%s1842 + $0x14] sm:$0xf]
      %v1849 = vld [vmem:[%s1842 + $0x18] sm:$0xf]
      %v1850 = vld [vmem:[%s1842 + $0x1c] sm:$0xf]
      %v1853 = vcombine.low %v1840, %v1841
      %v1855 = vunpack.c.l.s4 1966171168
      %v1856 = vunpack.c.0.s8 %v1855
      %v1857 = vlaneseq
      %v1858 = vshrl.u32 %v1857, 7
      %v1859 = vsub.s32 %v1856, %v1858
      %v1860 = vrot.slane %v1853, %v1859
      %v1862 = vunpack.c.l.s4 1966171168
      %v1863 = vunpack.c.0.s8 %v1862
      %v1864 = vlaneseq
      %v1865 = vshrl.u32 %v1864, 7
      %v1866 = vsub.s32 %v1863, %v1865
      %v1867 = vrot.slane %v1860, %v1866
      %v1876 = vunpack.c.l.b16 %v1843
      %v1877 = vunpack.c.l.b16 %v1844
      %v1878 = vunpack.c.l.b16 %v1845
      %v1879 = vunpack.c.l.b16 %v1846
      %v1880 = vunpack.c.l.b16 %v1847
      %v1881 = vunpack.c.l.b16 %v1848
      %v1882 = vunpack.c.l.b16 %v1849
      %v1883 = vunpack.c.l.b16 %v1850
      %v1884 = vpack.c.b16 %v1877, %v1876
      %v1885 = vpack.c.b16 %v1879, %v1878
      %v1886 = vpack.c.b16 %v1881, %v1880
      %v1887 = vpack.c.b16 %v1883, %v1882
      %v1893 = vsel %vm337, %v1867, 0
      %1895 = vmatprep.subr.bf16.mxu0 0
      %1896 = vmatpush1.bf16.msra.mxu0 0
      %1897 = vmatprep.subr.bf16.mxu0 0
      %1898 = vmatpush1.bf16.msra.mxu0 0
      %1899 = vmatprep.subr.bf16.mxu0 0
      %1900 = vmatpush1.bf16.msra.mxu0 0
      %1901 = vmatprep.subr.bf16.mxu0 0
      %1902 = vmatpush1.bf16.msra.mxu0 0
      %1903 = vmatprep.subr.bf16.mxu0 0
      %1904 = vmatpush1.bf16.msra.mxu0 %v1887
      %1905 = vmatprep.subr.bf16.mxu0 0
      %1906 = vmatpush1.bf16.msra.mxu0 %v1886
      %1907 = vmatprep.subr.bf16.mxu0 0
      %1908 = vmatpush1.bf16.msra.mxu0 %v1885
      %1909 = vmatprep.subr.bf16.mxu0 0
      %1910 = vmatpush1.bf16.msra.mxu0 %v1884
      %1911 = vmatprep.subr.bf16.mxu0 0
      %1912 = vmatpush2.bf16.msra.mxu0 0
      %1913 = vmatprep.subr.bf16.mxu0 0
      %1914 = vmatpush2.bf16.msra.mxu0 0
      %1915 = vmatprep.subr.bf16.mxu0 0
      %1916 = vmatpush2.bf16.msra.mxu0 0
      %1917 = vmatprep.subr.bf16.mxu0 0
      %1918 = vmatpush2.bf16.msra.mxu0 0
      %1919 = vmatprep.subr.bf16.mxu0 0
      %1920 = vmatpush2.bf16.msra.mxu0 0
      %1921 = vmatprep.subr.bf16.mxu0 0
      %1922 = vmatpush2.bf16.msra.mxu0 0
      %1923 = vmatprep.subr.bf16.mxu0 0
      %1924 = vmatpush2.bf16.msra.mxu0 0
      %1925 = vmatprep.subr.bf16.mxu0 0
      %1926 = vmatpush2.bf16.msra.mxu0 0
      %1927 = vmatprep.mubr.bf16.mxu0 0
      %1928 = vmatmul.mubr.bf16.gmra.mxu0 %v1893
      %v1929 = vpop.f32.mrf.mxu0
      %v1930 = vadd.f32 0.0, %v1929
      %v1931 = vpop.f32.mrf.mxu0
      %v1932 = vpop.f32.mrf.mxu0
      %v1933 = vpop.f32.mrf.mxu0
      %1934 = vdwg.mxu0
      %v1935 = vadd.f32 %v1836, %v1930
      %v1936 = vld [vmem:[%s1839] sm:$0x3]
      %v1937 = vld [vmem:[%s1839 + $0x4] sm:$0x3]
      %v1941 = vunpack.c.l.s4 1966171168
      %v1942 = vunpack.c.0.s8 %v1941
      %v1943 = vlaneseq
      %v1944 = vshrl.u32 %v1943, 7
      %v1945 = vsub.s32 %v1942, %v1944
      %v1946 = vrot.slane %v1936, %v1945
      %v1947 = vcombine.high %v1946, %v1946
      %v1949 = vunpack.c.l.s4 1966171168
      %v1950 = vunpack.c.0.s8 %v1949
      %v1951 = vlaneseq
      %v1952 = vshrl.u32 %v1951, 7
      %v1953 = vsub.s32 %v1950, %v1952
      %v1954 = vrot.slane %v1946, %v1953
      %v1956 = vunpack.c.l.s4 1966171168
      %v1957 = vunpack.c.0.s8 %v1956
      %v1958 = vlaneseq
      %v1959 = vshrl.u32 %v1958, 7
      %v1960 = vsub.s32 %v1957, %v1959
      %v1961 = vrot.slane %v1947, %v1960
      %v1963 = vunpack.c.l.s4 1966171168
      %v1964 = vunpack.c.0.s8 %v1963
      %v1965 = vlaneseq
      %v1966 = vshrl.u32 %v1965, 7
      %v1967 = vsub.s32 %v1964, %v1966
      %v1968 = vrot.slane %v1937, %v1967
      %v1969 = vcombine.high %v1968, %v1968
      %v1971 = vunpack.c.l.s4 1966171168
      %v1972 = vunpack.c.0.s8 %v1971
      %v1973 = vlaneseq
      %v1974 = vshrl.u32 %v1973, 7
      %v1975 = vsub.s32 %v1972, %v1974
      %v1976 = vrot.slane %v1968, %v1975
      %v1978 = vunpack.c.l.s4 1966171168
      %v1979 = vunpack.c.0.s8 %v1978
      %v1980 = vlaneseq
      %v1981 = vshrl.u32 %v1980, 7
      %v1982 = vsub.s32 %v1979, %v1981
      %v1983 = vrot.slane %v1969, %v1982
      %v1985 = vshrl.u32 %v1954, 16
      %v1987 = vrot.slane %v1985, 7
      %v1988 = vrot.slane %v1987, 1
      %v1990 = vshll.u32 %v1961, 16
      %v1992 = vsel %vm270, %v1988, %v1990
      %v1994 = vshrl.u32 %v1976, 16
      %v1996 = vrot.slane %v1994, 7
      %v1997 = vrot.slane %v1996, 1
      %v1999 = vshll.u32 %v1983, 16
      %v2001 = vsel %vm270, %v1997, %v1999
      %s2002 = scalar_lea.vmem %s1, 416
      %v2003 = vld [vmem:[%s2002] sm:$0xf]
      %v2004 = vld [vmem:[%s2002 + $0x4] sm:$0xf]
      %v2005 = vld [vmem:[%s2002 + $0x8] sm:$0xf]
      %v2006 = vld [vmem:[%s2002 + $0xc] sm:$0xf]
      %v2007 = vld [vmem:[%s2002 + $0x10] sm:$0xf]
      %v2008 = vld [vmem:[%s2002 + $0x14] sm:$0xf]
      %v2009 = vld [vmem:[%s2002 + $0x18] sm:$0xf]
      %v2010 = vld [vmem:[%s2002 + $0x1c] sm:$0xf]
      %v2011 = vcombine.low %v1992, %v2001
      %v2013 = vunpack.c.l.s4 1966171168
      %v2014 = vunpack.c.0.s8 %v2013
      %v2015 = vlaneseq
      %v2016 = vshrl.u32 %v2015, 7
      %v2017 = vsub.s32 %v2014, %v2016
      %v2018 = vrot.slane %v2011, %v2017
      %v2020 = vunpack.c.l.s4 1966171168
      %v2021 = vunpack.c.0.s8 %v2020
      %v2022 = vlaneseq
      %v2023 = vshrl.u32 %v2022, 7
      %v2024 = vsub.s32 %v2021, %v2023
      %v2025 = vrot.slane %v2018, %v2024
      %v2034 = vunpack.c.l.b16 %v2003
      %v2035 = vunpack.c.l.b16 %v2004
      %v2036 = vunpack.c.l.b16 %v2005
      %v2037 = vunpack.c.l.b16 %v2006
      %v2038 = vunpack.c.l.b16 %v2007
      %v2039 = vunpack.c.l.b16 %v2008
      %v2040 = vunpack.c.l.b16 %v2009
      %v2041 = vunpack.c.l.b16 %v2010
      %v2042 = vpack.c.b16 %v2035, %v2034
      %v2043 = vpack.c.b16 %v2037, %v2036
      %v2044 = vpack.c.b16 %v2039, %v2038
      %v2045 = vpack.c.b16 %v2041, %v2040
      %v2051 = vsel %vm337, %v2025, 0
      %2053 = vmatprep.subr.bf16.mxu0 0
      %2054 = vmatpush1.bf16.msra.mxu0 0
      %2055 = vmatprep.subr.bf16.mxu0 0
      %2056 = vmatpush1.bf16.msra.mxu0 0
      %2057 = vmatprep.subr.bf16.mxu0 0
      %2058 = vmatpush1.bf16.msra.mxu0 0
      %2059 = vmatprep.subr.bf16.mxu0 0
      %2060 = vmatpush1.bf16.msra.mxu0 0
      %2061 = vmatprep.subr.bf16.mxu0 0
      %2062 = vmatpush1.bf16.msra.mxu0 %v2045
      %2063 = vmatprep.subr.bf16.mxu0 0
      %2064 = vmatpush1.bf16.msra.mxu0 %v2044
      %2065 = vmatprep.subr.bf16.mxu0 0
      %2066 = vmatpush1.bf16.msra.mxu0 %v2043
      %2067 = vmatprep.subr.bf16.mxu0 0
      %2068 = vmatpush1.bf16.msra.mxu0 %v2042
      %2069 = vmatprep.subr.bf16.mxu0 0
      %2070 = vmatpush2.bf16.msra.mxu0 0
      %2071 = vmatprep.subr.bf16.mxu0 0
      %2072 = vmatpush2.bf16.msra.mxu0 0
      %2073 = vmatprep.subr.bf16.mxu0 0
      %2074 = vmatpush2.bf16.msra.mxu0 0
      %2075 = vmatprep.subr.bf16.mxu0 0
      %2076 = vmatpush2.bf16.msra.mxu0 0
      %2077 = vmatprep.subr.bf16.mxu0 0
      %2078 = vmatpush2.bf16.msra.mxu0 0
      %2079 = vmatprep.subr.bf16.mxu0 0
      %2080 = vmatpush2.bf16.msra.mxu0 0
      %2081 = vmatprep.subr.bf16.mxu0 0
      %2082 = vmatpush2.bf16.msra.mxu0 0
      %2083 = vmatprep.subr.bf16.mxu0 0
      %2084 = vmatpush2.bf16.msra.mxu0 0
      %2085 = vmatprep.mubr.bf16.mxu0 0
      %2086 = vmatmul.mubr.bf16.gmra.mxu0 %v2051
      %v2087 = vpop.f32.mrf.mxu0
      %v2088 = vadd.f32 0.0, %v2087
      %v2089 = vpop.f32.mrf.mxu0
      %v2090 = vpop.f32.mrf.mxu0
      %v2091 = vpop.f32.mrf.mxu0
      %2092 = vdwg.mxu0
      %v2093 = vadd.f32 %v1935, %v2088
      %v2094 = vld [vmem:[%s1839] sm:$0x2]
      %v2095 = vld [vmem:[%s1839 + $0x4] sm:$0x2]
      %v2099 = vunpack.c.l.s4 1966171168
      %v2100 = vunpack.c.0.s8 %v2099
      %v2101 = vlaneseq
      %v2102 = vshrl.u32 %v2101, 7
      %v2103 = vsub.s32 %v2100, %v2102
      %v2104 = vrot.slane %v2094, %v2103
      %v2105 = vcombine.high %v2104, %v2104
      %v2107 = vunpack.c.l.s4 1966171168
      %v2108 = vunpack.c.0.s8 %v2107
      %v2109 = vlaneseq
      %v2110 = vshrl.u32 %v2109, 7
      %v2111 = vsub.s32 %v2108, %v2110
      %v2112 = vrot.slane %v2105, %v2111
      %v2114 = vunpack.c.l.s4 1966171168
      %v2115 = vunpack.c.0.s8 %v2114
      %v2116 = vlaneseq
      %v2117 = vshrl.u32 %v2116, 7
      %v2118 = vsub.s32 %v2115, %v2117
      %v2119 = vrot.slane %v2095, %v2118
      %v2120 = vcombine.high %v2119, %v2119
      %v2122 = vunpack.c.l.s4 1966171168
      %v2123 = vunpack.c.0.s8 %v2122
      %v2124 = vlaneseq
      %v2125 = vshrl.u32 %v2124, 7
      %v2126 = vsub.s32 %v2123, %v2125
      %v2127 = vrot.slane %v2120, %v2126
      %s2128 = scalar_lea.vmem %s1, 448
      %v2129 = vld [vmem:[%s2128] sm:$0xf]
      %v2130 = vld [vmem:[%s2128 + $0x4] sm:$0xf]
      %v2131 = vld [vmem:[%s2128 + $0x8] sm:$0xf]
      %v2132 = vld [vmem:[%s2128 + $0xc] sm:$0xf]
      %v2133 = vld [vmem:[%s2128 + $0x10] sm:$0xf]
      %v2134 = vld [vmem:[%s2128 + $0x14] sm:$0xf]
      %v2135 = vld [vmem:[%s2128 + $0x18] sm:$0xf]
      %v2136 = vld [vmem:[%s2128 + $0x1c] sm:$0xf]
      %v2137 = vcombine.low %v2112, %v2127
      %v2139 = vunpack.c.l.s4 1966171168
      %v2140 = vunpack.c.0.s8 %v2139
      %v2141 = vlaneseq
      %v2142 = vshrl.u32 %v2141, 7
      %v2143 = vsub.s32 %v2140, %v2142
      %v2144 = vrot.slane %v2137, %v2143
      %v2146 = vunpack.c.l.s4 1966171168
      %v2147 = vunpack.c.0.s8 %v2146
      %v2148 = vlaneseq
      %v2149 = vshrl.u32 %v2148, 7
      %v2150 = vsub.s32 %v2147, %v2149
      %v2151 = vrot.slane %v2144, %v2150
      %v2160 = vunpack.c.l.b16 %v2129
      %v2161 = vunpack.c.l.b16 %v2130
      %v2162 = vunpack.c.l.b16 %v2131
      %v2163 = vunpack.c.l.b16 %v2132
      %v2164 = vunpack.c.l.b16 %v2133
      %v2165 = vunpack.c.l.b16 %v2134
      %v2166 = vunpack.c.l.b16 %v2135
      %v2167 = vunpack.c.l.b16 %v2136
      %v2168 = vpack.c.b16 %v2161, %v2160
      %v2169 = vpack.c.b16 %v2163, %v2162
      %v2170 = vpack.c.b16 %v2165, %v2164
      %v2171 = vpack.c.b16 %v2167, %v2166
      %v2177 = vsel %vm337, %v2151, 0
      %2179 = vmatprep.subr.bf16.mxu0 0
      %2180 = vmatpush1.bf16.msra.mxu0 0
      %2181 = vmatprep.subr.bf16.mxu0 0
      %2182 = vmatpush1.bf16.msra.mxu0 0
      %2183 = vmatprep.subr.bf16.mxu0 0
      %2184 = vmatpush1.bf16.msra.mxu0 0
      %2185 = vmatprep.subr.bf16.mxu0 0
      %2186 = vmatpush1.bf16.msra.mxu0 0
      %2187 = vmatprep.subr.bf16.mxu0 0
      %2188 = vmatpush1.bf16.msra.mxu0 %v2171
      %2189 = vmatprep.subr.bf16.mxu0 0
      %2190 = vmatpush1.bf16.msra.mxu0 %v2170
      %2191 = vmatprep.subr.bf16.mxu0 0
      %2192 = vmatpush1.bf16.msra.mxu0 %v2169
      %2193 = vmatprep.subr.bf16.mxu0 0
      %2194 = vmatpush1.bf16.msra.mxu0 %v2168
      %2195 = vmatprep.subr.bf16.mxu0 0
      %2196 = vmatpush2.bf16.msra.mxu0 0
      %2197 = vmatprep.subr.bf16.mxu0 0
      %2198 = vmatpush2.bf16.msra.mxu0 0
      %2199 = vmatprep.subr.bf16.mxu0 0
      %2200 = vmatpush2.bf16.msra.mxu0 0
      %2201 = vmatprep.subr.bf16.mxu0 0
      %2202 = vmatpush2.bf16.msra.mxu0 0
      %2203 = vmatprep.subr.bf16.mxu0 0
      %2204 = vmatpush2.bf16.msra.mxu0 0
      %2205 = vmatprep.subr.bf16.mxu0 0
      %2206 = vmatpush2.bf16.msra.mxu0 0
      %2207 = vmatprep.subr.bf16.mxu0 0
      %2208 = vmatpush2.bf16.msra.mxu0 0
      %2209 = vmatprep.subr.bf16.mxu0 0
      %2210 = vmatpush2.bf16.msra.mxu0 0
      %2211 = vmatprep.mubr.bf16.mxu0 0
      %2212 = vmatmul.mubr.bf16.gmra.mxu0 %v2177
      %v2213 = vpop.f32.mrf.mxu0
      %v2214 = vadd.f32 0.0, %v2213
      %v2215 = vpop.f32.mrf.mxu0
      %v2216 = vpop.f32.mrf.mxu0
      %v2217 = vpop.f32.mrf.mxu0
      %2218 = vdwg.mxu0
      %v2219 = vadd.f32 %v2093, %v2214
      %v2220 = vld [vmem:[%s1839] sm:$0x6]
      %v2221 = vld [vmem:[%s1839 + $0x4] sm:$0x6]
      %v2225 = vunpack.c.l.s4 1966171168
      %v2226 = vunpack.c.0.s8 %v2225
      %v2227 = vlaneseq
      %v2228 = vshrl.u32 %v2227, 7
      %v2229 = vsub.s32 %v2226, %v2228
      %v2230 = vrot.slane %v2220, %v2229
      %v2231 = vcombine.high %v2230, %v2230
      %v2233 = vunpack.c.l.s4 1966171168
      %v2234 = vunpack.c.0.s8 %v2233
      %v2235 = vlaneseq
      %v2236 = vshrl.u32 %v2235, 7
      %v2237 = vsub.s32 %v2234, %v2236
      %v2238 = vrot.slane %v2230, %v2237
      %v2240 = vunpack.c.l.s4 1966171168
      %v2241 = vunpack.c.0.s8 %v2240
      %v2242 = vlaneseq
      %v2243 = vshrl.u32 %v2242, 7
      %v2244 = vsub.s32 %v2241, %v2243
      %v2245 = vrot.slane %v2231, %v2244
      %v2246 = vcombine.high %v2238, %v2238
      %v2248 = vunpack.c.l.s4 1966171168
      %v2249 = vunpack.c.0.s8 %v2248
      %v2250 = vlaneseq
      %v2251 = vshrl.u32 %v2250, 7
      %v2252 = vsub.s32 %v2249, %v2251
      %v2253 = vrot.slane %v2221, %v2252
      %v2254 = vcombine.high %v2253, %v2253
      %v2256 = vunpack.c.l.s4 1966171168
      %v2257 = vunpack.c.0.s8 %v2256
      %v2258 = vlaneseq
      %v2259 = vshrl.u32 %v2258, 7
      %v2260 = vsub.s32 %v2257, %v2259
      %v2261 = vrot.slane %v2253, %v2260
      %v2263 = vunpack.c.l.s4 1966171168
      %v2264 = vunpack.c.0.s8 %v2263
      %v2265 = vlaneseq
      %v2266 = vshrl.u32 %v2265, 7
      %v2267 = vsub.s32 %v2264, %v2266
      %v2268 = vrot.slane %v2254, %v2267
      %v2269 = vcombine.high %v2261, %v2261
      %v2271 = vshrl.u32 %v2245, 16
      %v2273 = vrot.slane %v2271, 7
      %v2274 = vrot.slane %v2273, 1
      %v2276 = vshll.u32 %v2246, 16
      %v2278 = vsel %vm270, %v2274, %v2276
      %v2280 = vshrl.u32 %v2268, 16
      %v2282 = vrot.slane %v2280, 7
      %v2283 = vrot.slane %v2282, 1
      %v2285 = vshll.u32 %v2269, 16
      %v2287 = vsel %vm270, %v2283, %v2285
      %s2288 = scalar_lea.vmem %s1, 480
      %v2289 = vld [vmem:[%s2288] sm:$0xf]
      %v2290 = vld [vmem:[%s2288 + $0x4] sm:$0xf]
      %v2291 = vld [vmem:[%s2288 + $0x8] sm:$0xf]
      %v2292 = vld [vmem:[%s2288 + $0xc] sm:$0xf]
      %v2293 = vld [vmem:[%s2288 + $0x10] sm:$0xf]
      %v2294 = vld [vmem:[%s2288 + $0x14] sm:$0xf]
      %v2295 = vld [vmem:[%s2288 + $0x18] sm:$0xf]
      %v2296 = vld [vmem:[%s2288 + $0x1c] sm:$0xf]
      %v2297 = vcombine.low %v2278, %v2287
      %v2299 = vunpack.c.l.s4 1966171168
      %v2300 = vunpack.c.0.s8 %v2299
      %v2301 = vlaneseq
      %v2302 = vshrl.u32 %v2301, 7
      %v2303 = vsub.s32 %v2300, %v2302
      %v2304 = vrot.slane %v2297, %v2303
      %v2306 = vunpack.c.l.s4 1966171168
      %v2307 = vunpack.c.0.s8 %v2306
      %v2308 = vlaneseq
      %v2309 = vshrl.u32 %v2308, 7
      %v2310 = vsub.s32 %v2307, %v2309
      %v2311 = vrot.slane %v2304, %v2310
      %v2320 = vunpack.c.l.b16 %v2289
      %v2321 = vunpack.c.l.b16 %v2290
      %v2322 = vunpack.c.l.b16 %v2291
      %v2323 = vunpack.c.l.b16 %v2292
      %v2324 = vunpack.c.l.b16 %v2293
      %v2325 = vunpack.c.l.b16 %v2294
      %v2326 = vunpack.c.l.b16 %v2295
      %v2327 = vunpack.c.l.b16 %v2296
      %v2328 = vpack.c.b16 %v2321, %v2320
      %v2329 = vpack.c.b16 %v2323, %v2322
      %v2330 = vpack.c.b16 %v2325, %v2324
      %v2331 = vpack.c.b16 %v2327, %v2326
      %v2337 = vsel %vm337, %v2311, 0
      %2339 = vmatprep.subr.bf16.mxu0 0
      %2340 = vmatpush1.bf16.msra.mxu0 0
      %2341 = vmatprep.subr.bf16.mxu0 0
      %2342 = vmatpush1.bf16.msra.mxu0 0
      %2343 = vmatprep.subr.bf16.mxu0 0
      %2344 = vmatpush1.bf16.msra.mxu0 0
      %2345 = vmatprep.subr.bf16.mxu0 0
      %2346 = vmatpush1.bf16.msra.mxu0 0
      %2347 = vmatprep.subr.bf16.mxu0 0
      %2348 = vmatpush1.bf16.msra.mxu0 %v2331
      %2349 = vmatprep.subr.bf16.mxu0 0
      %2350 = vmatpush1.bf16.msra.mxu0 %v2330
      %2351 = vmatprep.subr.bf16.mxu0 0
      %2352 = vmatpush1.bf16.msra.mxu0 %v2329
      %2353 = vmatprep.subr.bf16.mxu0 0
      %2354 = vmatpush1.bf16.msra.mxu0 %v2328
      %2355 = vmatprep.subr.bf16.mxu0 0
      %2356 = vmatpush2.bf16.msra.mxu0 0
      %2357 = vmatprep.subr.bf16.mxu0 0
      %2358 = vmatpush2.bf16.msra.mxu0 0
      %2359 = vmatprep.subr.bf16.mxu0 0
      %2360 = vmatpush2.bf16.msra.mxu0 0
      %2361 = vmatprep.subr.bf16.mxu0 0
      %2362 = vmatpush2.bf16.msra.mxu0 0
      %2363 = vmatprep.subr.bf16.mxu0 0
      %2364 = vmatpush2.bf16.msra.mxu0 0
      %2365 = vmatprep.subr.bf16.mxu0 0
      %2366 = vmatpush2.bf16.msra.mxu0 0
      %2367 = vmatprep.subr.bf16.mxu0 0
      %2368 = vmatpush2.bf16.msra.mxu0 0
      %2369 = vmatprep.subr.bf16.mxu0 0
      %2370 = vmatpush2.bf16.msra.mxu0 0
      %2371 = vmatprep.mubr.bf16.mxu0 0
      %2372 = vmatmul.mubr.bf16.gmra.mxu0 %v2337
      %v2373 = vpop.f32.mrf.mxu0
      %v2374 = vadd.f32 0.0, %v2373
      %v2375 = vpop.f32.mrf.mxu0
      %v2376 = vpop.f32.mrf.mxu0
      %v2377 = vpop.f32.mrf.mxu0
      %2378 = vdwg.mxu0
      %v2379 = vadd.f32 %v2219, %v2374
      %v2380 = vld [vmem:[%s2] sm:$0x1]
      %v2382 = vlaneseq
      %v2383 = vshrl.u32 %v2382, 7
      %v2384 = vsub.s32 0, %v2383
      %v2385 = vrot.slane %v2380, %v2384
      %v2387 = vadd.f32 %v2379, %v2385
      %v2390 = vunpack.c.l.s4 1983009808
      %v2391 = vunpack.c.0.s8 %v2390
      %v2392 = vlaneseq
      %v2393 = vshrl.u32 %v2392, 7
      %v2394 = vsub.s32 %v2391, %v2393
      %v2395 = vrot.slane %v2387, %v2394
      %v2396 = vcombine.high %v2395, %v2395
      %vm2399 = vcmask 1024
      %2400 = vst.msk [vmem:[%s192] sm:$0x3] %vm2399, %v2395
      %2401 = vst.msk [vmem:[%s192 + $0x2] sm:$0x3] %vm2399, %v2396
      %s2402 = smul.u32 2, %s19
      %p2403 = scmp.lt.s32.totalorder %s18, 1
      %s2404 = scalar_select %p2403, %s18, 1
      %p2405 = scmp.lt.s32.totalorder %s2402, 1
      %s2406 = scalar_select %p2405, %s2402, 1
      %s2407 = smul.addr %s2404, 2
      %s2408 = sadd.s32 %s2406, %s2407
      %s2409 = smul.addr %s2408, 2
      %s2410 = scalar_lea.vmem %s3, %s2409
      // Predicated region
      $region33: #{nlayer_discriminator_forward.9} parent=31 // pred_check
        %p2411 = pneg %p114
      $region34: #{nlayer_discriminator_forward.9} parent=31 // pred_check_branch
        %2413 = sbr.rel (%p2411) target = $region36
      $region35: #{nlayer_discriminator_forward.9} parent=31 // pred_region
        %s2414 = smul.u32 2, %s19
      $region36: #{nlayer_discriminator_forward.9} parent=31 // pred_fallthru
        _
    $region32: #{nlayer_discriminator_forward.9} parent=5 // pred_fallthru
      _
    %p2415 = scmp.le.s32.totalorder 2, %s9
    // Predicated region
    $region37: #{nlayer_discriminator_forward.9} parent=5 // pred_check
      %p2416 = pneg %p2415
    $region38: #{nlayer_discriminator_forward.9} parent=5 // pred_check_branch
      %2418 = sbr.rel (%p2416) target = $region40
    $region39: #{nlayer_discriminator_forward.9} parent=5 // pred_region
      %s2419 = ssub.s32 %s9, 2
      // Predicated region
      $region41: #{nlayer_discriminator_forward.9} parent=39 // pred_check
        %p2420 = pneg %p120
      $region42: #{nlayer_discriminator_forward.9} parent=39 // pred_check_branch
        %2422 = sbr.rel (%p2420) target = $region44
      $region43: #{nlayer_discriminator_forward.9} parent=39 // pred_region
        %s2423 = smul.u32 2, %s21
        %p2424 = scmp.lt.s32.totalorder %s20, 1
        %s2425 = scalar_select %p2424, %s20, 1
        %p2426 = scmp.lt.s32.totalorder %s2423, 1
        %s2427 = scalar_select %p2426, %s2423, 1
        %s2428 = smul.addr %s2425, 2
        %s2429 = sadd.s32 %s2427, %s2428
        %s2430 = smul.addr %s2429, 2
        %s2431 = scalar_lea.vmem %s3, %s2430
      $region44: #{nlayer_discriminator_forward.9} parent=39 // pred_fallthru
        _
    $region40: #{nlayer_discriminator_forward.9} parent=5 // pred_fallthru
      _
  $region6: #{nlayer_discriminator_forward.9} parent=0 // loop_footer
    %s13 = sadd.s32 1, %s9
  $region7: #{nlayer_discriminator_forward.9} parent=0 // loop_footer_branch
    %8 = sbr.rel target = $region3
  $region8: #{nlayer_discriminator_forward.9} parent=0 // loop_exit
    _

</llo_original>
